<compile_context>
chip_gen: v7x
topology: tpu7x:2x2x1
jax: 0.10.0
libtpu: 0.0.40
codegen_flags: <defaults>
</compile_context>

<pallas_src>
import functools
import math

import jax
import jax.numpy as jnp
from jax.experimental import pallas as pl
from jax.experimental.pallas import tpu as pltpu


# Set True to use exact softmax division (for tight parity checks against fp32 refs).
EXACT_SOFTMAX_DIV = False


# --------------------------------------------------------------------------
# VMEM budget helpers
# --------------------------------------------------------------------------
def _detect_vmem_cap():
    try:
        phys = int(pltpu.get_tpu_info().vmem_capacity_bytes)
    except Exception:
        phys = 64 * 1024 * 1024
    if phys <= 64 * 1024 * 1024:       # v7x-class: 64 MiB physical -> leave headroom
        return 40 * 1024 * 1024
    return 64 * 1024 * 1024            # v5e / v6e class (128 MiB physical)


_VMEM_CAP = _detect_vmem_cap()


def _nbytes(shape, dtype):
    n = 1
    for s in shape:
        n *= int(s)
    return n * jnp.dtype(dtype).itemsize


def _compiler_params(dims, footprint_bytes):
    # ~3x the block footprint (double buffering + intermediates) with a 2 MiB floor pad,
    # clamped to a per-chip-safe ceiling.
    limit = int(min(_VMEM_CAP, max(8 * 1024 * 1024, 3 * footprint_bytes + 2 * 1024 * 1024)))
    return pltpu.CompilerParams(dimension_semantics=dims, vmem_limit_bytes=limit)


# --------------------------------------------------------------------------
# Small helpers
# --------------------------------------------------------------------------
def _pick_tile(dim, candidates):
    for c in candidates:
        if c <= dim and dim % c == 0:
            return c
    return dim


def _pad_dim(a, axis, mult):
    pad = (-a.shape[axis]) % mult
    if pad == 0:
        return a
    widths = [(0, 0)] * a.ndim
    widths[axis] = (0, pad)
    return jnp.pad(a, widths)


def _layernorm_f32(y, g, b, eps=1e-5):
    # y: (rows, d) f32; g/b: (1, d) f32. Biased variance, eps=1e-5 (PyTorch default).
    mu = jnp.mean(y, axis=-1, keepdims=True)
    var = jnp.mean(jnp.square(y - mu), axis=-1, keepdims=True)
    return (y - mu) * jax.lax.rsqrt(var + eps) * g + b


def _attn_out_proj(q, k, v, wo, bo, nhead):
    # q: (Lq, D) bf16 (1/sqrt(dh) already folded into the Q projection), k/v: (Lk, D) bf16,
    # wo: (D, D) bf16, bo: (1, D) f32.
    # Returns concat_h(softmax(q_h k_h^T) v_h) @ wo + bo as (Lq, D) f32 — WITHOUT forming
    # the concat: each head's (Lq, dh) output is pushed through its dh-row slice of wo and
    # accumulated into one lane-dense (Lq, D) f32 slab (VPU adds, no 32-lane relayouts,
    # no live per-head output list).
    lq, d = q.shape
    dh = d // nhead
    y = jnp.zeros((lq, d), jnp.float32)
    for h in range(nhead):
        sl = slice(h * dh, (h + 1) * dh)
        s = jax.lax.dot_general(q[:, sl], k[:, sl], (((1,), (1,)), ((), ())),
                                preferred_element_type=jnp.float32)        # (Lq, Lk) f32
        m = jnp.max(s, axis=-1, keepdims=True)
        p = jnp.exp(s - m)
        denom = jnp.sum(p, axis=-1, keepdims=True)
        oh = jnp.dot(p.astype(jnp.bfloat16), v[:, sl],
                     preferred_element_type=jnp.float32)                    # (Lq, dh) f32
        if EXACT_SOFTMAX_DIV:
            oh = oh / denom
        else:
            oh = oh * pl.reciprocal(denom, approx=True)
        y = y + jnp.dot(oh.astype(jnp.bfloat16), wo[sl, :],
                        preferred_element_type=jnp.float32)                 # (Lq, D) f32
    return y + bo


# --------------------------------------------------------------------------
# Pallas kernels
# --------------------------------------------------------------------------
def _self_mha_kernel(x_ref, wqkv_ref, bqkv_ref, wo_ref, bo_ref, g_ref, beta_ref,
                     o_ref, *, nhead):
    # Fused: QKV projection + per-head attention + out-proj + residual + LayerNorm.
    x = x_ref[...]                                                          # (L, D) bf16
    d = x.shape[-1]
    qkv = jnp.dot(x, wqkv_ref[...], preferred_element_type=jnp.float32) + bqkv_ref[...]
    q = qkv[:, :d].astype(jnp.bfloat16)          # scale pre-folded into wqkv/bqkv
    k = qkv[:, d:2 * d].astype(jnp.bfloat16)
    v = qkv[:, 2 * d:].astype(jnp.bfloat16)
    y = _attn_out_proj(q, k, v, wo_ref[...], bo_ref[...], nhead)            # (L, D) f32
    y = y + x.astype(jnp.float32)                                           # residual
    o_ref[...] = _layernorm_f32(y, g_ref[...], beta_ref[...]).astype(o_ref.dtype)


def _cross_mha_kernel(xq_ref, mem_ref, wq_ref, bq_ref, wkv_ref, bkv_ref,
                      wo_ref, bo_ref, g_ref, beta_ref, o_ref, *, nhead):
    # Fused: Q proj (tgt) + KV proj (memory) + attention + out-proj + residual + LN.
    xq = xq_ref[...]                                                        # (Lq, D) bf16
    mem = mem_ref[...]                                                      # (Lk, D) bf16
    d = xq.shape[-1]
    q = (jnp.dot(xq, wq_ref[...], preferred_element_type=jnp.float32)
         + bq_ref[...]).astype(jnp.bfloat16)     # scale pre-folded into wq/bq
    kv = jnp.dot(mem, wkv_ref[...], preferred_element_type=jnp.float32) + bkv_ref[...]
    k = kv[:, :d].astype(jnp.bfloat16)
    v = kv[:, d:].astype(jnp.bfloat16)
    y = _attn_out_proj(q, k, v, wo_ref[...], bo_ref[...], nhead)
    y = y + xq.astype(jnp.float32)
    o_ref[...] = _layernorm_f32(y, g_ref[...], beta_ref[...]).astype(o_ref.dtype)


def _ffn_kernel(x_ref, w1_ref, b1_ref, w2_ref, b2_ref, g_ref, beta_ref,
                g2_ref, beta2_ref, o_ref, *, final_ln):
    # Fused: Linear1 + ReLU + Linear2 + residual + LayerNorm (+ optional fused final LN);
    # the (rows, d_ff) hidden stays in VMEM.
    x = x_ref[...]                                                          # (tm, D) bf16
    h = jnp.dot(x, w1_ref[...], preferred_element_type=jnp.float32) + b1_ref[...]
    h = jnp.maximum(h, 0.0).astype(jnp.bfloat16)                            # (tm, dff)
    y = jnp.dot(h, w2_ref[...], preferred_element_type=jnp.float32) + b2_ref[...]
    y = y + x.astype(jnp.float32)
    y = _layernorm_f32(y, g_ref[...], beta_ref[...])
    if final_ln:
        y = _layernorm_f32(y, g2_ref[...], beta2_ref[...])
    o_ref[...] = y.astype(o_ref.dtype)


def _matmul_bias_kernel(x_ref, w_ref, b_ref, o_ref, *, relu):
    # Single-K-tile matmul: no accumulator scratch, bias (+relu) and store in one step.
    y = jnp.dot(x_ref[...], w_ref[...], preferred_element_type=jnp.float32) + b_ref[...]
    if relu:
        y = jnp.maximum(y, 0.0)
    o_ref[...] = y.astype(o_ref.dtype)


def _matmul_acc_kernel(x_ref, w_ref, b_ref, o_ref, acc_ref, *, relu):
    # K-accumulating matmul: first k-step writes directly (no zero-fill pass).
    kk = pl.program_id(2)
    prod = jnp.dot(x_ref[...], w_ref[...], preferred_element_type=jnp.float32)

    @pl.when(kk == 0)
    def _():
        acc_ref[...] = prod

    @pl.when(kk > 0)
    def _():
        acc_ref[...] += prod

    @pl.when(kk == pl.num_programs(2) - 1)
    def _():
        y = acc_ref[...] + b_ref[...]
        if relu:
            y = jnp.maximum(y, 0.0)
        o_ref[...] = y.astype(o_ref.dtype)


# --------------------------------------------------------------------------
# Pallas-call wrappers
# --------------------------------------------------------------------------
def self_mha_block(x, p, nhead):
    b, l, d = x.shape
    fp = (2 * _nbytes((l, d), x.dtype)
          + _nbytes(p["wqkv"].shape, p["wqkv"].dtype)
          + _nbytes(p["bqkv"].shape, p["bqkv"].dtype)
          + _nbytes(p["wo"].shape, p["wo"].dtype)
          + _nbytes(p["bo"].shape, p["bo"].dtype)
          + 2 * _nbytes((1, d), jnp.float32))
    return pl.pallas_call(
        functools.partial(_self_mha_kernel, nhead=nhead),
        out_shape=jax.ShapeDtypeStruct((b, l, d), x.dtype),
        grid_spec=pltpu.PrefetchScalarGridSpec(
            num_scalar_prefetch=0,
            grid=(b,),
            in_specs=[
                pl.BlockSpec((None, l, d), lambda i: (i, 0, 0)),
                pl.BlockSpec((d, 3 * d), lambda i: (0, 0)),
                pl.BlockSpec((1, 3 * d), lambda i: (0, 0)),
                pl.BlockSpec((d, d), lambda i: (0, 0)),
                pl.BlockSpec((1, d), lambda i: (0, 0)),
                pl.BlockSpec((1, d), lambda i: (0, 0)),
                pl.BlockSpec((1, d), lambda i: (0, 0)),
            ],
            out_specs=pl.BlockSpec((None, l, d), lambda i: (i, 0, 0)),
        ),
        compiler_params=_compiler_params(("parallel",), fp),
    )(x, p["wqkv"], p["bqkv"], p["wo"], p["bo"], p["ln"]["g"], p["ln"]["b"])


def cross_mha_block(xq, mem, p, nhead):
    b, lq, d = xq.shape
    lk = mem.shape[1]
    fp = (2 * _nbytes((lq, d), xq.dtype) + _nbytes((lk, d), mem.dtype)
          + _nbytes(p["wq"].shape, p["wq"].dtype)
          + _nbytes(p["wkv"].shape, p["wkv"].dtype)
          + _nbytes(p["wo"].shape, p["wo"].dtype)
          + _nbytes(p["bq"].shape, jnp.float32)
          + _nbytes(p["bkv"].shape, jnp.float32)
          + _nbytes(p["bo"].shape, jnp.float32)
          + 2 * _nbytes((1, d), jnp.float32))
    return pl.pallas_call(
        functools.partial(_cross_mha_kernel, nhead=nhead),
        out_shape=jax.ShapeDtypeStruct((b, lq, d), xq.dtype),
        grid_spec=pltpu.PrefetchScalarGridSpec(
            num_scalar_prefetch=0,
            grid=(b,),
            in_specs=[
                pl.BlockSpec((None, lq, d), lambda i: (i, 0, 0)),
                pl.BlockSpec((None, lk, d), lambda i: (i, 0, 0)),
                pl.BlockSpec((d, d), lambda i: (0, 0)),
                pl.BlockSpec((1, d), lambda i: (0, 0)),
                pl.BlockSpec((d, 2 * d), lambda i: (0, 0)),
                pl.BlockSpec((1, 2 * d), lambda i: (0, 0)),
                pl.BlockSpec((d, d), lambda i: (0, 0)),
                pl.BlockSpec((1, d), lambda i: (0, 0)),
                pl.BlockSpec((1, d), lambda i: (0, 0)),
                pl.BlockSpec((1, d), lambda i: (0, 0)),
            ],
            out_specs=pl.BlockSpec((None, lq, d), lambda i: (i, 0, 0)),
        ),
        compiler_params=_compiler_params(("parallel",), fp),
    )(xq, mem, p["wq"], p["bq"], p["wkv"], p["bkv"], p["wo"], p["bo"],
      p["ln"]["g"], p["ln"]["b"])


def ffn_block(x, p, final_ln=None):
    b, l, d = x.shape
    m = b * l
    dff = p["w1"].shape[1]
    g2 = final_ln["g"] if final_ln is not None else p["ln"]["g"]
    b2 = final_ln["b"] if final_ln is not None else p["ln"]["b"]

    x2 = _pad_dim(x.reshape(m, d), 0, 16)        # bf16 packs 16 rows per vreg
    mp = x2.shape[0]
    tm = _pick_tile(mp, (256, 128, 64, 32, 16))
    fp = (2 * _nbytes((tm, d), x.dtype)
          + _nbytes(p["w1"].shape, p["w1"].dtype)
          + _nbytes(p["w2"].shape, p["w2"].dtype)
          + _nbytes((1, dff), jnp.float32)
          + 5 * _nbytes((1, d), jnp.float32)
          + _nbytes((tm, dff), jnp.float32))     # hidden activation (kernel-internal)
    out = pl.pallas_call(
        functools.partial(_ffn_kernel, final_ln=final_ln is not None),
        out_shape=jax.ShapeDtypeStruct((mp, d), x.dtype),
        grid_spec=pltpu.PrefetchScalarGridSpec(
            num_scalar_prefetch=0,
            grid=(mp // tm,),
            in_specs=[
                pl.BlockSpec((tm, d), lambda i: (i, 0)),
                pl.BlockSpec((d, dff), lambda i: (0, 0)),
                pl.BlockSpec((1, dff), lambda i: (0, 0)),
                pl.BlockSpec((dff, d), lambda i: (0, 0)),
                pl.BlockSpec((1, d), lambda i: (0, 0)),
                pl.BlockSpec((1, d), lambda i: (0, 0)),
                pl.BlockSpec((1, d), lambda i: (0, 0)),
                pl.BlockSpec((1, d), lambda i: (0, 0)),
                pl.BlockSpec((1, d), lambda i: (0, 0)),
            ],
            out_specs=pl.BlockSpec((tm, d), lambda i: (i, 0)),
        ),
        compiler_params=_compiler_params(("parallel",), fp),
    )(x2, p["w1"], p["b1"], p["w2"], p["b2"], p["ln"]["g"], p["ln"]["b"], g2, b2)
    return out[:m].reshape(b, l, d)


def linear_tiled(x2d, w, b, relu=False, out_dtype=None):
    # General tiled matmul + bias (+relu). `w`/`b` MUST already be padded to 128-multiples
    # (done once at init — no per-call HBM copy of the weight). Only the small activation
    # is padded per call (rows to 16, K to the weight's padded K with zeros).
    m, k = x2d.shape
    kp, np_ = w.shape
    assert kp % 128 == 0 and np_ % 128 == 0 and b.shape == (1, np_), \
        "vocab-head weight/bias must be pre-padded to 128-multiples at init"
    out_dtype = out_dtype or x2d.dtype

    xp = _pad_dim(_pad_dim(x2d, 0, 16), 1, 128)
    assert xp.shape[1] == kp, (xp.shape, w.shape)
    mp = xp.shape[0]

    tm = _pick_tile(mp, (512, 256, 128, 64, 32, 16))
    tn = _pick_tile(np_, (512, 256, 128))
    tk = _pick_tile(kp, (512, 256, 128))

    if kp == tk:
        # Single K tile: 2-D grid, no accumulator scratch, bias+store fused in one step;
        # x tile stays resident across the N sweep.
        fp = (_nbytes((tm, kp), xp.dtype) + _nbytes((kp, tn), w.dtype)
              + _nbytes((1, tn), jnp.float32) + _nbytes((tm, tn), out_dtype))
        out = pl.pallas_call(
            functools.partial(_matmul_bias_kernel, relu=relu),
            out_shape=jax.ShapeDtypeStruct((mp, np_), out_dtype),
            grid_spec=pltpu.PrefetchScalarGridSpec(
                num_scalar_prefetch=0,
                grid=(mp // tm, np_ // tn),
                in_specs=[
                    pl.BlockSpec((tm, kp), lambda i, j: (i, 0)),
                    pl.BlockSpec((kp, tn), lambda i, j: (0, j)),
                    pl.BlockSpec((1, tn), lambda i, j: (0, j)),
                ],
                out_specs=pl.BlockSpec((tm, tn), lambda i, j: (i, j)),
            ),
            compiler_params=_compiler_params(("parallel", "parallel"), fp),
        )(xp, w, b)
    else:
        fp = (_nbytes((tm, tk), xp.dtype) + _nbytes((tk, tn), w.dtype)
              + _nbytes((1, tn), jnp.float32) + _nbytes((tm, tn), out_dtype)
              + _nbytes((tm, tn), jnp.float32))
        out = pl.pallas_call(
            functools.partial(_matmul_acc_kernel, relu=relu),
            out_shape=jax.ShapeDtypeStruct((mp, np_), out_dtype),
            grid_spec=pltpu.PrefetchScalarGridSpec(
                num_scalar_prefetch=0,
                grid=(mp // tm, np_ // tn, kp // tk),
                in_specs=[
                    pl.BlockSpec((tm, tk), lambda i, j, kk: (i, kk)),
                    pl.BlockSpec((tk, tn), lambda i, j, kk: (kk, j)),
                    pl.BlockSpec((1, tn), lambda i, j, kk: (0, j)),
                ],
                out_specs=pl.BlockSpec((tm, tn), lambda i, j, kk: (i, j)),
                scratch_shapes=[pltpu.VMEM((tm, tn), jnp.float32)],
            ),
            compiler_params=_compiler_params(("parallel", "parallel", "arbitrary"), fp),
        )(xp, w, b)
    return out[:m]


# --------------------------------------------------------------------------
# Model (plain-JAX glue around fused Pallas kernels)
# --------------------------------------------------------------------------
def encoder_layer(x, p, nhead, final_ln=None):
    x = self_mha_block(x, p["sa"], nhead)    # self-attn + out-proj + residual + LN1
    x = ffn_block(x, p["ff"], final_ln)      # FFN + residual + LN2 (+ fused enc final LN)
    return x


def decoder_layer(x, mem, p, nhead, final_ln=None):
    x = self_mha_block(x, p["sa"], nhead)          # self-attn + residual + LN1
    x = cross_mha_block(x, mem, p["ca"], nhead)    # cross-attn + residual + LN2
    x = ffn_block(x, p["ff"], final_ln)            # FFN + residual + LN3 (+ dec final LN)
    return x


def transformer_gen(x, y, params, nhead, vocab_size):
    x = x.astype(jnp.bfloat16)
    y = y.astype(jnp.bfloat16)

    enc_layers = params["enc_layers"]
    mem = x
    for idx, lp in enumerate(enc_layers):
        fl = params["enc_norm"] if idx == len(enc_layers) - 1 else None
        mem = encoder_layer(mem, lp, nhead, final_ln=fl)

    dec_layers = params["dec_layers"]
    out = y
    for idx, lp in enumerate(dec_layers):
        fl = params["dec_norm"] if idx == len(dec_layers) - 1 else None
        out = decoder_layer(out, mem, lp, nhead, final_ln=fl)

    b, t, d = out.shape
    logits = linear_tiled(out.reshape(b * t, d), params["out"]["w"], params["out"]["b"],
                          out_dtype=jnp.float32)
    return logits[:, :vocab_size].reshape(b, t, vocab_size)


# --------------------------------------------------------------------------
# Deterministic parameter init. Weights stored transposed vs PyTorch ((Din, Dout));
# weights in bf16, biases / LayerNorm affine in f32. The 1/sqrt(dh) attention scale is
# folded into the Q-projection weights/bias; the vocab-head weight/bias are padded to
# 128-lane multiples here (once), not per forward pass.
# --------------------------------------------------------------------------
def _init_dense_f32(key, din, dout, scale=0.05):
    w = jax.random.normal(key, (din, dout), jnp.float32) * scale
    b = jnp.zeros((1, dout), jnp.float32)
    return w, b


def _init_ln(d):
    return {"g": jnp.ones((1, d), jnp.float32), "b": jnp.zeros((1, d), jnp.float32)}


def _init_self_attn(key, d, nhead):
    k1, k2 = jax.random.split(key)
    qk_scale = 1.0 / math.sqrt(d // nhead)
    wqkv, bqkv = _init_dense_f32(k1, d, 3 * d)
    wqkv = wqkv.at[:, :d].multiply(qk_scale)        # fold 1/sqrt(dh) into Q projection
    bqkv = bqkv.at[:, :d].multiply(qk_scale)
    wo, bo = _init_dense_f32(k2, d, d)
    return {"wqkv": wqkv.astype(jnp.bfloat16), "bqkv": bqkv,
            "wo": wo.astype(jnp.bfloat16), "bo": bo, "ln": _init_ln(d)}


def _init_cross_attn(key, d, nhead):
    k1, k2, k3 = jax.random.split(key, 3)
    qk_scale = 1.0 / math.sqrt(d // nhead)
    wq, bq = _init_dense_f32(k1, d, d)
    wq = wq * qk_scale
    bq = bq * qk_scale
    wkv, bkv = _init_dense_f32(k2, d, 2 * d)
    wo, bo = _init_dense_f32(k3, d, d)
    return {"wq": wq.astype(jnp.bfloat16), "bq": bq,
            "wkv": wkv.astype(jnp.bfloat16), "bkv": bkv,
            "wo": wo.astype(jnp.bfloat16), "bo": bo, "ln": _init_ln(d)}


def _init_ffn(key, d, dff):
    k1, k2 = jax.random.split(key)
    w1, b1 = _init_dense_f32(k1, d, dff)
    w2, b2 = _init_dense_f32(k2, dff, d)
    return {"w1": w1.astype(jnp.bfloat16), "b1": b1,
            "w2": w2.astype(jnp.bfloat16), "b2": b2, "ln": _init_ln(d)}


def _init_enc_layer(key, d, dff, nhead):
    k1, k2 = jax.random.split(key)
    return {"sa": _init_self_attn(k1, d, nhead), "ff": _init_ffn(k2, d, dff)}


def _init_dec_layer(key, d, dff, nhead):
    k1, k2, k3 = jax.random.split(key, 3)
    return {"sa": _init_self_attn(k1, d, nhead), "ca": _init_cross_attn(k2, d, nhead),
            "ff": _init_ffn(k3, d, dff)}


def init_params(key, vocab_size, d_model, dff, n_enc, n_dec, nhead):
    keys = jax.random.split(key, n_enc + n_dec + 1)
    enc_layers = [_init_enc_layer(keys[i], d_model, dff, nhead) for i in range(n_enc)]
    dec_layers = [_init_dec_layer(keys[n_enc + i], d_model, dff, nhead)
                  for i in range(n_dec)]
    w_out, b_out = _init_dense_f32(keys[-1], d_model, vocab_size)
    w_out = _pad_dim(_pad_dim(w_out, 0, 128), 1, 128).astype(jnp.bfloat16)  # pad at init
    b_out = _pad_dim(b_out, 1, 128)
    return {
        "enc_layers": enc_layers,
        "dec_layers": dec_layers,
        "enc_norm": _init_ln(d_model),
        "dec_norm": _init_ln(d_model),
        "out": {"w": w_out, "b": b_out},
    }


# --------------------------------------------------------------------------
if __name__ == "__main__":
    # Small shapes consistent with the module's forward (src/tgt are d_model embeddings).
    # seq=16 keeps every bf16 row block at a full 16-sublane vreg.
    B, S, T = 2, 16, 16
    D_MODEL, NHEAD, D_FF = 128, 4, 256
    VOCAB = 32
    N_ENC, N_DEC = 2, 2

    root = jax.random.PRNGKey(0)
    k_par, k_x, k_y = jax.random.split(root, 3)

    params = init_params(k_par, VOCAB, D_MODEL, D_FF, N_ENC, N_DEC, NHEAD)
    x = jax.random.normal(k_x, (B, S, D_MODEL), jnp.float32)   # src
    y = jax.random.normal(k_y, (B, T, D_MODEL), jnp.float32)   # tgt

    fwd = jax.jit(functools.partial(transformer_gen, nhead=NHEAD, vocab_size=VOCAB))
    logits = fwd(x, y, params)
    jax.block_until_ready(logits)

    assert logits.shape == (B, T, VOCAB), logits.shape
    assert bool(jnp.all(jnp.isfinite(logits)))
    print("KERNEL_OK")
</pallas_src>

<mosaic_0001>
module attributes {stable_mosaic.version = 11 : i64} {
  func.func @_ffn_kernel(%arg0: i32, %arg1: memref<32x128xbf16, #tpu.memory_space<vmem>>, %arg2: memref<128x256xbf16, #tpu.memory_space<vmem>>, %arg3: memref<1x256xf32, #tpu.memory_space<vmem>>, %arg4: memref<256x128xbf16, #tpu.memory_space<vmem>>, %arg5: memref<1x128xf32, #tpu.memory_space<vmem>>, %arg6: memref<1x128xf32, #tpu.memory_space<vmem>>, %arg7: memref<1x128xf32, #tpu.memory_space<vmem>>, %arg8: memref<1x128xf32, #tpu.memory_space<vmem>>, %arg9: memref<1x128xf32, #tpu.memory_space<vmem>>, %arg10: memref<32x128xbf16, #tpu.memory_space<vmem>>) attributes {dimension_semantics = [#tpu.dimension_semantics<parallel>], iteration_bounds = array<i64: 1>, scalar_prefetch = 0 : i64, scratch_operands = 0 : i64, tpu.core_type = #tpu.core_type<tc>, window_params = [{transform_indices = @transform_0, window_bounds = array<i64: 32, 128>}, {pipeline_mode = #tpu.pipeline_mode<synchronous>, transform_indices = @transform_1, window_bounds = array<i64: 128, 256>}, {pipeline_mode = #tpu.pipeline_mode<synchronous>, transform_indices = @transform_2, window_bounds = array<i64: 1, 256>}, {pipeline_mode = #tpu.pipeline_mode<synchronous>, transform_indices = @transform_3, window_bounds = array<i64: 256, 128>}, {pipeline_mode = #tpu.pipeline_mode<synchronous>, transform_indices = @transform_4, window_bounds = array<i64: 1, 128>}, {pipeline_mode = #tpu.pipeline_mode<synchronous>, transform_indices = @transform_5, window_bounds = array<i64: 1, 128>}, {pipeline_mode = #tpu.pipeline_mode<synchronous>, transform_indices = @transform_6, window_bounds = array<i64: 1, 128>}, {pipeline_mode = #tpu.pipeline_mode<synchronous>, transform_indices = @transform_7, window_bounds = array<i64: 1, 128>}, {pipeline_mode = #tpu.pipeline_mode<synchronous>, transform_indices = @transform_8, window_bounds = array<i64: 1, 128>}, {transform_indices = @transform_9, window_bounds = array<i64: 32, 128>}]} {
    %c0 = arith.constant 0 : index
    %c0_0 = arith.constant 0 : index
    %0 = vector.load %arg1[%c0, %c0_0] : memref<32x128xbf16, #tpu.memory_space<vmem>>, vector<32x128xbf16>
    %c0_1 = arith.constant 0 : index
    %c0_2 = arith.constant 0 : index
    %1 = vector.load %arg2[%c0_1, %c0_2] : memref<128x256xbf16, #tpu.memory_space<vmem>>, vector<128x256xbf16>
    %cst = arith.constant dense<0.000000e+00> : vector<32x256xf32>
    %2 = tpu.matmul %0, %1, %cst {dimension_numbers = #tpu.dot_dimension_numbers<[1], [0], [0], [1], [0, 0, 1, 1], [], []>} : vector<32x128xbf16>, vector<128x256xbf16>, vector<32x256xf32> -> vector<32x256xf32>
    %c0_3 = arith.constant 0 : index
    %c0_4 = arith.constant 0 : index
    %3 = vector.load %arg3[%c0_3, %c0_4] : memref<1x256xf32, #tpu.memory_space<vmem>>, vector<1x256xf32>
    %4 = vector.broadcast %3 : vector<1x256xf32> to vector<32x256xf32>
    %5 = arith.addf %2, %4 : vector<32x256xf32>
    %cst_5 = arith.constant 0.000000e+00 : f32
    %6 = vector.broadcast %cst_5 : f32 to vector<32x256xf32>
    %7 = arith.maximumf %5, %6 : vector<32x256xf32>
    %8 = arith.truncf %7 : vector<32x256xf32> to vector<32x256xbf16>
    %c0_6 = arith.constant 0 : index
    %c0_7 = arith.constant 0 : index
    %9 = vector.load %arg4[%c0_6, %c0_7] : memref<256x128xbf16, #tpu.memory_space<vmem>>, vector<256x128xbf16>
    %cst_8 = arith.constant dense<0.000000e+00> : vector<32x128xf32>
    %10 = tpu.matmul %8, %9, %cst_8 {dimension_numbers = #tpu.dot_dimension_numbers<[1], [0], [0], [1], [0, 0, 1, 1], [], []>} : vector<32x256xbf16>, vector<256x128xbf16>, vector<32x128xf32> -> vector<32x128xf32>
    %c0_9 = arith.constant 0 : index
    %c0_10 = arith.constant 0 : index
    %11 = vector.load %arg5[%c0_9, %c0_10] : memref<1x128xf32, #tpu.memory_space<vmem>>, vector<1x128xf32>
    %12 = vector.broadcast %11 : vector<1x128xf32> to vector<32x128xf32>
    %13 = arith.addf %10, %12 : vector<32x128xf32>
    %14 = arith.extf %0 : vector<32x128xbf16> to vector<32x128xf32>
    %15 = arith.addf %13, %14 : vector<32x128xf32>
    %c0_11 = arith.constant 0 : index
    %c0_12 = arith.constant 0 : index
    %16 = vector.load %arg6[%c0_11, %c0_12] : memref<1x128xf32, #tpu.memory_space<vmem>>, vector<1x128xf32>
    %c0_13 = arith.constant 0 : index
    %c0_14 = arith.constant 0 : index
    %17 = vector.load %arg7[%c0_13, %c0_14] : memref<1x128xf32, #tpu.memory_space<vmem>>, vector<1x128xf32>
    %cst_15 = arith.constant dense<0.000000e+00> : vector<32xf32>
    %18 = vector.multi_reduction <add>, %15, %cst_15 [1] : vector<32x128xf32> to vector<32xf32>
    %19 = vector.shape_cast %18 : vector<32xf32> to vector<32x1xf32>
    %cst_16 = arith.constant 1.280000e+02 : f32
    %20 = vector.broadcast %cst_16 : f32 to vector<32x1xf32>
    %21 = arith.divf %19, %20 : vector<32x1xf32>
    %22 = vector.broadcast %21 : vector<32x1xf32> to vector<32x128xf32>
    %23 = arith.subf %15, %22 : vector<32x128xf32>
    %24 = arith.mulf %23, %23 : vector<32x128xf32>
    %cst_17 = arith.constant dense<0.000000e+00> : vector<32xf32>
    %25 = vector.multi_reduction <add>, %24, %cst_17 [1] : vector<32x128xf32> to vector<32xf32>
    %26 = vector.shape_cast %25 : vector<32xf32> to vector<32x1xf32>
    %cst_18 = arith.constant 1.280000e+02 : f32
    %27 = vector.broadcast %cst_18 : f32 to vector<32x1xf32>
    %28 = arith.divf %26, %27 : vector<32x1xf32>
    %29 = vector.broadcast %21 : vector<32x1xf32> to vector<32x128xf32>
    %30 = arith.subf %15, %29 : vector<32x128xf32>
    %cst_19 = arith.constant 9.99999974E-6 : f32
    %31 = vector.broadcast %cst_19 : f32 to vector<32x1xf32>
    %32 = arith.addf %28, %31 : vector<32x1xf32>
    %33 = math.rsqrt %32 : vector<32x1xf32>
    %34 = vector.broadcast %33 : vector<32x1xf32> to vector<32x128xf32>
    %35 = arith.mulf %30, %34 : vector<32x128xf32>
    %36 = vector.broadcast %16 : vector<1x128xf32> to vector<32x128xf32>
    %37 = arith.mulf %35, %36 : vector<32x128xf32>
    %38 = vector.broadcast %17 : vector<1x128xf32> to vector<32x128xf32>
    %39 = arith.addf %37, %38 : vector<32x128xf32>
    %40 = arith.truncf %39 : vector<32x128xf32> to vector<32x128xbf16>
    %c0_20 = arith.constant 0 : index
    %c0_21 = arith.constant 0 : index
    %41 = vector.load %arg10[%c0_20, %c0_21] : memref<32x128xbf16, #tpu.memory_space<vmem>>, vector<32x128xbf16>
    tpu.vector_store %arg10[%c0_20, %c0_21], %40 {strides = array<i32>} : memref<32x128xbf16, #tpu.memory_space<vmem>>, vector<32x128xbf16>,
    return
  }
  func.func @transform_0(%arg0: i32) -> (i32, i32) {
    %c0_i32 = arith.constant 0 : i32
    %c0_i32_0 = arith.constant 0 : i32
    return %arg0, %c0_i32 : i32, i32
  }
  func.func @transform_1(%arg0: i32) -> (i32, i32) {
    %c0_i32 = arith.constant 0 : i32
    %c0_i32_0 = arith.constant 0 : i32
    %c0_i32_1 = arith.constant 0 : i32
    return %c0_i32, %c0_i32_0 : i32, i32
  }
  func.func @transform_2(%arg0: i32) -> (i32, i32) {
    %c0_i32 = arith.constant 0 : i32
    %c0_i32_0 = arith.constant 0 : i32
    %c0_i32_1 = arith.constant 0 : i32
    return %c0_i32, %c0_i32_0 : i32, i32
  }
  func.func @transform_3(%arg0: i32) -> (i32, i32) {
    %c0_i32 = arith.constant 0 : i32
    %c0_i32_0 = arith.constant 0 : i32
    %c0_i32_1 = arith.constant 0 : i32
    return %c0_i32, %c0_i32_0 : i32, i32
  }
  func.func @transform_4(%arg0: i32) -> (i32, i32) {
    %c0_i32 = arith.constant 0 : i32
    %c0_i32_0 = arith.constant 0 : i32
    %c0_i32_1 = arith.constant 0 : i32
    return %c0_i32, %c0_i32_0 : i32, i32
  }
  func.func @transform_5(%arg0: i32) -> (i32, i32) {
    %c0_i32 = arith.constant 0 : i32
    %c0_i32_0 = arith.constant 0 : i32
    %c0_i32_1 = arith.constant 0 : i32
    return %c0_i32, %c0_i32_0 : i32, i32
  }
  func.func @transform_6(%arg0: i32) -> (i32, i32) {
    %c0_i32 = arith.constant 0 : i32
    %c0_i32_0 = arith.constant 0 : i32
    %c0_i32_1 = arith.constant 0 : i32
    return %c0_i32, %c0_i32_0 : i32, i32
  }
  func.func @transform_7(%arg0: i32) -> (i32, i32) {
    %c0_i32 = arith.constant 0 : i32
    %c0_i32_0 = arith.constant 0 : i32
    %c0_i32_1 = arith.constant 0 : i32
    return %c0_i32, %c0_i32_0 : i32, i32
  }
  func.func @transform_8(%arg0: i32) -> (i32, i32) {
    %c0_i32 = arith.constant 0 : i32
    %c0_i32_0 = arith.constant 0 : i32
    %c0_i32_1 = arith.constant 0 : i32
    return %c0_i32, %c0_i32_0 : i32, i32
  }
  func.func @transform_9(%arg0: i32) -> (i32, i32) {
    %c0_i32 = arith.constant 0 : i32
    %c0_i32_0 = arith.constant 0 : i32
    return %arg0, %c0_i32 : i32, i32
  }
}

module attributes {stable_mosaic.version = 11 : i64} {
  func.func @_self_mha_kernel(%arg0: i32, %arg1: memref<1x16x128xbf16, #tpu.memory_space<vmem>>, %arg2: memref<128x384xbf16, #tpu.memory_space<vmem>>, %arg3: memref<1x384xf32, #tpu.memory_space<vmem>>, %arg4: memref<128x128xbf16, #tpu.memory_space<vmem>>, %arg5: memref<1x128xf32, #tpu.memory_space<vmem>>, %arg6: memref<1x128xf32, #tpu.memory_space<vmem>>, %arg7: memref<1x128xf32, #tpu.memory_space<vmem>>, %arg8: memref<1x16x128xbf16, #tpu.memory_space<vmem>>) attributes {dimension_semantics = [#tpu.dimension_semantics<parallel>], iteration_bounds = array<i64: 2>, scalar_prefetch = 0 : i64, scratch_operands = 0 : i64, tpu.core_type = #tpu.core_type<tc>, window_params = [{transform_indices = @transform_0, window_bounds = array<i64: 1, 16, 128>}, {pipeline_mode = #tpu.pipeline_mode<synchronous>, transform_indices = @transform_1, window_bounds = array<i64: 128, 384>}, {pipeline_mode = #tpu.pipeline_mode<synchronous>, transform_indices = @transform_2, window_bounds = array<i64: 1, 384>}, {pipeline_mode = #tpu.pipeline_mode<synchronous>, transform_indices = @transform_3, window_bounds = array<i64: 128, 128>}, {pipeline_mode = #tpu.pipeline_mode<synchronous>, transform_indices = @transform_4, window_bounds = array<i64: 1, 128>}, {pipeline_mode = #tpu.pipeline_mode<synchronous>, transform_indices = @transform_5, window_bounds = array<i64: 1, 128>}, {pipeline_mode = #tpu.pipeline_mode<synchronous>, transform_indices = @transform_6, window_bounds = array<i64: 1, 128>}, {transform_indices = @transform_7, window_bounds = array<i64: 1, 16, 128>}]} {
    %c0 = arith.constant 0 : index
    %c0_0 = arith.constant 0 : index
    %c0_1 = arith.constant 0 : index
    %0 = vector.load %arg1[%c0, %c0_0, %c0_1] : memref<1x16x128xbf16, #tpu.memory_space<vmem>>, vector<1x16x128xbf16>
    %1 = vector.shape_cast %0 : vector<1x16x128xbf16> to vector<16x128xbf16>
    %c0_2 = arith.constant 0 : index
    %c0_3 = arith.constant 0 : index
    %2 = vector.load %arg2[%c0_2, %c0_3] : memref<128x384xbf16, #tpu.memory_space<vmem>>, vector<128x384xbf16>
    %cst = arith.constant dense<0.000000e+00> : vector<16x384xf32>
    %3 = tpu.matmul %1, %2, %cst {dimension_numbers = #tpu.dot_dimension_numbers<[1], [0], [0], [1], [0, 0, 1, 1], [], []>} : vector<16x128xbf16>, vector<128x384xbf16>, vector<16x384xf32> -> vector<16x384xf32>
    %c0_4 = arith.constant 0 : index
    %c0_5 = arith.constant 0 : index
    %4 = vector.load %arg3[%c0_4, %c0_5] : memref<1x384xf32, #tpu.memory_space<vmem>>, vector<1x384xf32>
    %5 = vector.broadcast %4 : vector<1x384xf32> to vector<16x384xf32>
    %6 = arith.addf %3, %5 : vector<16x384xf32>
    %7 = vector.extract_strided_slice %6 {offsets = [0, 0], sizes = [16, 128], strides = [1, 1]} : vector<16x384xf32> to vector<16x128xf32>
    %8 = arith.truncf %7 : vector<16x128xf32> to vector<16x128xbf16>
    %9 = vector.extract_strided_slice %6 {offsets = [0, 128], sizes = [16, 128], strides = [1, 1]} : vector<16x384xf32> to vector<16x128xf32>
    %10 = arith.truncf %9 : vector<16x128xf32> to vector<16x128xbf16>
    %11 = vector.extract_strided_slice %6 {offsets = [0, 256], sizes = [16, 128], strides = [1, 1]} : vector<16x384xf32> to vector<16x128xf32>
    %12 = arith.truncf %11 : vector<16x128xf32> to vector<16x128xbf16>
    %c0_6 = arith.constant 0 : index
    %c0_7 = arith.constant 0 : index
    %13 = vector.load %arg4[%c0_6, %c0_7] : memref<128x128xbf16, #tpu.memory_space<vmem>>, vector<128x128xbf16>
    %c0_8 = arith.constant 0 : index
    %c0_9 = arith.constant 0 : index
    %14 = vector.load %arg5[%c0_8, %c0_9] : memref<1x128xf32, #tpu.memory_space<vmem>>, vector<1x128xf32>
    %cst_10 = arith.constant 0.000000e+00 : f32
    %15 = vector.broadcast %cst_10 : f32 to vector<16x128xf32>
    %16 = vector.extract_strided_slice %8 {offsets = [0, 0], sizes = [16, 32], strides = [1, 1]} : vector<16x128xbf16> to vector<16x32xbf16>
    %17 = vector.extract_strided_slice %10 {offsets = [0, 0], sizes = [16, 32], strides = [1, 1]} : vector<16x128xbf16> to vector<16x32xbf16>
    %cst_11 = arith.constant dense<0.000000e+00> : vector<16x16xf32>
    %18 = tpu.matmul %16, %17, %cst_11 {dimension_numbers = #tpu.dot_dimension_numbers<[1], [1], [0], [0], [0, 0, 1, 0], [], []>} : vector<16x32xbf16>, vector<16x32xbf16>, vector<16x16xf32> -> vector<16x16xf32>
    %cst_12 = arith.constant dense<0xFF800000> : vector<16xf32>
    %19 = vector.multi_reduction <maximumf>, %18, %cst_12 [1] : vector<16x16xf32> to vector<16xf32>
    %20 = vector.shape_cast %19 : vector<16xf32> to vector<16x1xf32>
    %21 = vector.broadcast %20 : vector<16x1xf32> to vector<16x16xf32>
    %22 = arith.subf %18, %21 : vector<16x16xf32>
    %23 = math.exp %22 : vector<16x16xf32>
    %cst_13 = arith.constant dense<0.000000e+00> : vector<16xf32>
    %24 = vector.multi_reduction <add>, %23, %cst_13 [1] : vector<16x16xf32> to vector<16xf32>
    %25 = vector.shape_cast %24 : vector<16xf32> to vector<16x1xf32>
    %26 = arith.truncf %23 : vector<16x16xf32> to vector<16x16xbf16>
    %27 = vector.extract_strided_slice %12 {offsets = [0, 0], sizes = [16, 32], strides = [1, 1]} : vector<16x128xbf16> to vector<16x32xbf16>
    %cst_14 = arith.constant dense<0.000000e+00> : vector<16x32xf32>
    %28 = tpu.matmul %26, %27, %cst_14 {dimension_numbers = #tpu.dot_dimension_numbers<[1], [0], [0], [1], [0, 0, 1, 1], [], []>} : vector<16x16xbf16>, vector<16x32xbf16>, vector<16x32xf32> -> vector<16x32xf32>
    %29 = tpu.reciprocal %25 {approx = true} : vector<16x1xf32> -> vector<16x1xf32>
    %30 = vector.broadcast %29 : vector<16x1xf32> to vector<16x32xf32>
    %31 = arith.mulf %28, %30 : vector<16x32xf32>
    %32 = arith.truncf %31 : vector<16x32xf32> to vector<16x32xbf16>
    %33 = vector.extract_strided_slice %13 {offsets = [0, 0], sizes = [32, 128], strides = [1, 1]} : vector<128x128xbf16> to vector<32x128xbf16>
    %cst_15 = arith.constant dense<0.000000e+00> : vector<16x128xf32>
    %34 = tpu.matmul %32, %33, %cst_15 {dimension_numbers = #tpu.dot_dimension_numbers<[1], [0], [0], [1], [0, 0, 1, 1], [], []>} : vector<16x32xbf16>, vector<32x128xbf16>, vector<16x128xf32> -> vector<16x128xf32>
    %35 = arith.addf %15, %34 : vector<16x128xf32>
    %36 = vector.extract_strided_slice %8 {offsets = [0, 32], sizes = [16, 32], strides = [1, 1]} : vector<16x128xbf16> to vector<16x32xbf16>
    %37 = vector.extract_strided_slice %10 {offsets = [0, 32], sizes = [16, 32], strides = [1, 1]} : vector<16x128xbf16> to vector<16x32xbf16>
    %cst_16 = arith.constant dense<0.000000e+00> : vector<16x16xf32>
    %38 = tpu.matmul %36, %37, %cst_16 {dimension_numbers = #tpu.dot_dimension_numbers<[1], [1], [0], [0], [0, 0, 1, 0], [], []>} : vector<16x32xbf16>, vector<16x32xbf16>, vector<16x16xf32> -> vector<16x16xf32>
    %cst_17 = arith.constant dense<0xFF800000> : vector<16xf32>
    %39 = vector.multi_reduction <maximumf>, %38, %cst_17 [1] : vector<16x16xf32> to vector<16xf32>
    %40 = vector.shape_cast %39 : vector<16xf32> to vector<16x1xf32>
    %41 = vector.broadcast %40 : vector<16x1xf32> to vector<16x16xf32>
    %42 = arith.subf %38, %41 : vector<16x16xf32>
    %43 = math.exp %42 : vector<16x16xf32>
    %cst_18 = arith.constant dense<0.000000e+00> : vector<16xf32>
    %44 = vector.multi_reduction <add>, %43, %cst_18 [1] : vector<16x16xf32> to vector<16xf32>
    %45 = vector.shape_cast %44 : vector<16xf32> to vector<16x1xf32>
    %46 = arith.truncf %43 : vector<16x16xf32> to vector<16x16xbf16>
    %47 = vector.extract_strided_slice %12 {offsets = [0, 32], sizes = [16, 32], strides = [1, 1]} : vector<16x128xbf16> to vector<16x32xbf16>
    %cst_19 = arith.constant dense<0.000000e+00> : vector<16x32xf32>
    %48 = tpu.matmul %46, %47, %cst_19 {dimension_numbers = #tpu.dot_dimension_numbers<[1], [0], [0], [1], [0, 0, 1, 1], [], []>} : vector<16x16xbf16>, vector<16x32xbf16>, vector<16x32xf32> -> vector<16x32xf32>
    %49 = tpu.reciprocal %45 {approx = true} : vector<16x1xf32> -> vector<16x1xf32>
    %50 = vector.broadcast %49 : vector<16x1xf32> to vector<16x32xf32>
    %51 = arith.mulf %48, %50 : vector<16x32xf32>
    %52 = arith.truncf %51 : vector<16x32xf32> to vector<16x32xbf16>
    %53 = vector.extract_strided_slice %13 {offsets = [32, 0], sizes = [32, 128], strides = [1, 1]} : vector<128x128xbf16> to vector<32x128xbf16>
    %cst_20 = arith.constant dense<0.000000e+00> : vector<16x128xf32>
    %54 = tpu.matmul %52, %53, %cst_20 {dimension_numbers = #tpu.dot_dimension_numbers<[1], [0], [0], [1], [0, 0, 1, 1], [], []>} : vector<16x32xbf16>, vector<32x128xbf16>, vector<16x128xf32> -> vector<16x128xf32>
    %55 = arith.addf %35, %54 : vector<16x128xf32>
    %56 = vector.extract_strided_slice %8 {offsets = [0, 64], sizes = [16, 32], strides = [1, 1]} : vector<16x128xbf16> to vector<16x32xbf16>
    %57 = vector.extract_strided_slice %10 {offsets = [0, 64], sizes = [16, 32], strides = [1, 1]} : vector<16x128xbf16> to vector<16x32xbf16>
    %cst_21 = arith.constant dense<0.000000e+00> : vector<16x16xf32>
    %58 = tpu.matmul %56, %57, %cst_21 {dimension_numbers = #tpu.dot_dimension_numbers<[1], [1], [0], [0], [0, 0, 1, 0], [], []>} : vector<16x32xbf16>, vector<16x32xbf16>, vector<16x16xf32> -> vector<16x16xf32>
    %cst_22 = arith.constant dense<0xFF800000> : vector<16xf32>
    %59 = vector.multi_reduction <maximumf>, %58, %cst_22 [1] : vector<16x16xf32> to vector<16xf32>
    %60 = vector.shape_cast %59 : vector<16xf32> to vector<16x1xf32>
    %61 = vector.broadcast %60 : vector<16x1xf32> to vector<16x16xf32>
    %62 = arith.subf %58, %61 : vector<16x16xf32>
    %63 = math.exp %62 : vector<16x16xf32>
    %cst_23 = arith.constant dense<0.000000e+00> : vector<16xf32>
    %64 = vector.multi_reduction <add>, %63, %cst_23 [1] : vector<16x16xf32> to vector<16xf32>
    %65 = vector.shape_cast %64 : vector<16xf32> to vector<16x1xf32>
    %66 = arith.truncf %63 : vector<16x16xf32> to vector<16x16xbf16>
    %67 = vector.extract_strided_slice %12 {offsets = [0, 64], sizes = [16, 32], strides = [1, 1]} : vector<16x128xbf16> to vector<16x32xbf16>
    %cst_24 = arith.constant dense<0.000000e+00> : vector<16x32xf32>
    %68 = tpu.matmul %66, %67, %cst_24 {dimension_numbers = #tpu.dot_dimension_numbers<[1], [0], [0], [1], [0, 0, 1, 1], [], []>} : vector<16x16xbf16>, vector<16x32xbf16>, vector<16x32xf32> -> vector<16x32xf32>
    %69 = tpu.reciprocal %65 {approx = true} : vector<16x1xf32> -> vector<16x1xf32>
    %70 = vector.broadcast %69 : vector<16x1xf32> to vector<16x32xf32>
    %71 = arith.mulf %68, %70 : vector<16x32xf32>
    %72 = arith.truncf %71 : vector<16x32xf32> to vector<16x32xbf16>
    %73 = vector.extract_strided_slice %13 {offsets = [64, 0], sizes = [32, 128], strides = [1, 1]} : vector<128x128xbf16> to vector<32x128xbf16>
    %cst_25 = arith.constant dense<0.000000e+00> : vector<16x128xf32>
    %74 = tpu.matmul %72, %73, %cst_25 {dimension_numbers = #tpu.dot_dimension_numbers<[1], [0], [0], [1], [0, 0, 1, 1], [], []>} : vector<16x32xbf16>, vector<32x128xbf16>, vector<16x128xf32> -> vector<16x128xf32>
    %75 = arith.addf %55, %74 : vector<16x128xf32>
    %76 = vector.extract_strided_slice %8 {offsets = [0, 96], sizes = [16, 32], strides = [1, 1]} : vector<16x128xbf16> to vector<16x32xbf16>
    %77 = vector.extract_strided_slice %10 {offsets = [0, 96], sizes = [16, 32], strides = [1, 1]} : vector<16x128xbf16> to vector<16x32xbf16>
    %cst_26 = arith.constant dense<0.000000e+00> : vector<16x16xf32>
    %78 = tpu.matmul %76, %77, %cst_26 {dimension_numbers = #tpu.dot_dimension_numbers<[1], [1], [0], [0], [0, 0, 1, 0], [], []>} : vector<16x32xbf16>, vector<16x32xbf16>, vector<16x16xf32> -> vector<16x16xf32>
    %cst_27 = arith.constant dense<0xFF800000> : vector<16xf32>
    %79 = vector.multi_reduction <maximumf>, %78, %cst_27 [1] : vector<16x16xf32> to vector<16xf32>
    %80 = vector.shape_cast %79 : vector<16xf32> to vector<16x1xf32>
    %81 = vector.broadcast %80 : vector<16x1xf32> to vector<16x16xf32>
    %82 = arith.subf %78, %81 : vector<16x16xf32>
    %83 = math.exp %82 : vector<16x16xf32>
    %cst_28 = arith.constant dense<0.000000e+00> : vector<16xf32>
    %84 = vector.multi_reduction <add>, %83, %cst_28 [1] : vector<16x16xf32> to vector<16xf32>
    %85 = vector.shape_cast %84 : vector<16xf32> to vector<16x1xf32>
    %86 = arith.truncf %83 : vector<16x16xf32> to vector<16x16xbf16>
    %87 = vector.extract_strided_slice %12 {offsets = [0, 96], sizes = [16, 32], strides = [1, 1]} : vector<16x128xbf16> to vector<16x32xbf16>
    %cst_29 = arith.constant dense<0.000000e+00> : vector<16x32xf32>
    %88 = tpu.matmul %86, %87, %cst_29 {dimension_numbers = #tpu.dot_dimension_numbers<[1], [0], [0], [1], [0, 0, 1, 1], [], []>} : vector<16x16xbf16>, vector<16x32xbf16>, vector<16x32xf32> -> vector<16x32xf32>
    %89 = tpu.reciprocal %85 {approx = true} : vector<16x1xf32> -> vector<16x1xf32>
    %90 = vector.broadcast %89 : vector<16x1xf32> to vector<16x32xf32>
    %91 = arith.mulf %88, %90 : vector<16x32xf32>
    %92 = arith.truncf %91 : vector<16x32xf32> to vector<16x32xbf16>
    %93 = vector.extract_strided_slice %13 {offsets = [96, 0], sizes = [32, 128], strides = [1, 1]} : vector<128x128xbf16> to vector<32x128xbf16>
    %cst_30 = arith.constant dense<0.000000e+00> : vector<16x128xf32>
    %94 = tpu.matmul %92, %93, %cst_30 {dimension_numbers = #tpu.dot_dimension_numbers<[1], [0], [0], [1], [0, 0, 1, 1], [], []>} : vector<16x32xbf16>, vector<32x128xbf16>, vector<16x128xf32> -> vector<16x128xf32>
    %95 = arith.addf %75, %94 : vector<16x128xf32>
    %96 = vector.broadcast %14 : vector<1x128xf32> to vector<16x128xf32>
    %97 = arith.addf %95, %96 : vector<16x128xf32>
    %98 = arith.extf %1 : vector<16x128xbf16> to vector<16x128xf32>
    %99 = arith.addf %97, %98 : vector<16x128xf32>
    %c0_31 = arith.constant 0 : index
    %c0_32 = arith.constant 0 : index
    %100 = vector.load %arg6[%c0_31, %c0_32] : memref<1x128xf32, #tpu.memory_space<vmem>>, vector<1x128xf32>
    %c0_33 = arith.constant 0 : index
    %c0_34 = arith.constant 0 : index
    %101 = vector.load %arg7[%c0_33, %c0_34] : memref<1x128xf32, #tpu.memory_space<vmem>>, vector<1x128xf32>
    %cst_35 = arith.constant dense<0.000000e+00> : vector<16xf32>
    %102 = vector.multi_reduction <add>, %99, %cst_35 [1] : vector<16x128xf32> to vector<16xf32>
    %103 = vector.shape_cast %102 : vector<16xf32> to vector<16x1xf32>
    %cst_36 = arith.constant 1.280000e+02 : f32
    %104 = vector.broadcast %cst_36 : f32 to vector<16x1xf32>
    %105 = arith.divf %103, %104 : vector<16x1xf32>
    %106 = vector.broadcast %105 : vector<16x1xf32> to vector<16x128xf32>
    %107 = arith.subf %99, %106 : vector<16x128xf32>
    %108 = arith.mulf %107, %107 : vector<16x128xf32>
    %cst_37 = arith.constant dense<0.000000e+00> : vector<16xf32>
    %109 = vector.multi_reduction <add>, %108, %cst_37 [1] : vector<16x128xf32> to vector<16xf32>
    %110 = vector.shape_cast %109 : vector<16xf32> to vector<16x1xf32>
    %cst_38 = arith.constant 1.280000e+02 : f32
    %111 = vector.broadcast %cst_38 : f32 to vector<16x1xf32>
    %112 = arith.divf %110, %111 : vector<16x1xf32>
    %113 = vector.broadcast %105 : vector<16x1xf32> to vector<16x128xf32>
    %114 = arith.subf %99, %113 : vector<16x128xf32>
    %cst_39 = arith.constant 9.99999974E-6 : f32
    %115 = vector.broadcast %cst_39 : f32 to vector<16x1xf32>
    %116 = arith.addf %112, %115 : vector<16x1xf32>
    %117 = math.rsqrt %116 : vector<16x1xf32>
    %118 = vector.broadcast %117 : vector<16x1xf32> to vector<16x128xf32>
    %119 = arith.mulf %114, %118 : vector<16x128xf32>
    %120 = vector.broadcast %100 : vector<1x128xf32> to vector<16x128xf32>
    %121 = arith.mulf %119, %120 : vector<16x128xf32>
    %122 = vector.broadcast %101 : vector<1x128xf32> to vector<16x128xf32>
    %123 = arith.addf %121, %122 : vector<16x128xf32>
    %124 = arith.truncf %123 : vector<16x128xf32> to vector<16x128xbf16>
    %c0_40 = arith.constant 0 : index
    %c0_41 = arith.constant 0 : index
    %c0_42 = arith.constant 0 : index
    %125 = vector.load %arg8[%c0_40, %c0_41, %c0_42] : memref<1x16x128xbf16, #tpu.memory_space<vmem>>, vector<1x16x128xbf16>
    %126 = vector.shape_cast %125 : vector<1x16x128xbf16> to vector<16x128xbf16>
    %127 = vector.shape_cast %124 : vector<16x128xbf16> to vector<1x16x128xbf16>
    tpu.vector_store %arg8[%c0_40, %c0_41, %c0_42], %127 {strides = array<i32>} : memref<1x16x128xbf16, #tpu.memory_space<vmem>>, vector<1x16x128xbf16>,
    return
  }
  func.func @transform_0(%arg0: i32) -> (i32, i32, i32) {
    %c0_i32 = arith.constant 0 : i32
    %c0_i32_0 = arith.constant 0 : i32
    %c0_i32_1 = arith.constant 0 : i32
    return %arg0, %c0_i32, %c0_i32_0 : i32, i32, i32
  }
  func.func @transform_1(%arg0: i32) -> (i32, i32) {
    %c0_i32 = arith.constant 0 : i32
    %c0_i32_0 = arith.constant 0 : i32
    %c0_i32_1 = arith.constant 0 : i32
    return %c0_i32, %c0_i32_0 : i32, i32
  }
  func.func @transform_2(%arg0: i32) -> (i32, i32) {
    %c0_i32 = arith.constant 0 : i32
    %c0_i32_0 = arith.constant 0 : i32
    %c0_i32_1 = arith.constant 0 : i32
    return %c0_i32, %c0_i32_0 : i32, i32
  }
  func.func @transform_3(%arg0: i32) -> (i32, i32) {
    %c0_i32 = arith.constant 0 : i32
    %c0_i32_0 = arith.constant 0 : i32
    %c0_i32_1 = arith.constant 0 : i32
    return %c0_i32, %c0_i32_0 : i32, i32
  }
  func.func @transform_4(%arg0: i32) -> (i32, i32) {
    %c0_i32 = arith.constant 0 : i32
    %c0_i32_0 = arith.constant 0 : i32
    %c0_i32_1 = arith.constant 0 : i32
    return %c0_i32, %c0_i32_0 : i32, i32
  }
  func.func @transform_5(%arg0: i32) -> (i32, i32) {
    %c0_i32 = arith.constant 0 : i32
    %c0_i32_0 = arith.constant 0 : i32
    %c0_i32_1 = arith.constant 0 : i32
    return %c0_i32, %c0_i32_0 : i32, i32
  }
  func.func @transform_6(%arg0: i32) -> (i32, i32) {
    %c0_i32 = arith.constant 0 : i32
    %c0_i32_0 = arith.constant 0 : i32
    %c0_i32_1 = arith.constant 0 : i32
    return %c0_i32, %c0_i32_0 : i32, i32
  }
  func.func @transform_7(%arg0: i32) -> (i32, i32, i32) {
    %c0_i32 = arith.constant 0 : i32
    %c0_i32_0 = arith.constant 0 : i32
    %c0_i32_1 = arith.constant 0 : i32
    return %arg0, %c0_i32, %c0_i32_0 : i32, i32, i32
  }
}

module attributes {stable_mosaic.version = 11 : i64} {
  func.func @_self_mha_kernel(%arg0: i32, %arg1: memref<1x16x128xbf16, #tpu.memory_space<vmem>>, %arg2: memref<128x384xbf16, #tpu.memory_space<vmem>>, %arg3: memref<1x384xf32, #tpu.memory_space<vmem>>, %arg4: memref<128x128xbf16, #tpu.memory_space<vmem>>, %arg5: memref<1x128xf32, #tpu.memory_space<vmem>>, %arg6: memref<1x128xf32, #tpu.memory_space<vmem>>, %arg7: memref<1x128xf32, #tpu.memory_space<vmem>>, %arg8: memref<1x16x128xbf16, #tpu.memory_space<vmem>>) attributes {dimension_semantics = [#tpu.dimension_semantics<parallel>], iteration_bounds = array<i64: 2>, scalar_prefetch = 0 : i64, scratch_operands = 0 : i64, tpu.core_type = #tpu.core_type<tc>, window_params = [{transform_indices = @transform_0, window_bounds = array<i64: 1, 16, 128>}, {pipeline_mode = #tpu.pipeline_mode<synchronous>, transform_indices = @transform_1, window_bounds = array<i64: 128, 384>}, {pipeline_mode = #tpu.pipeline_mode<synchronous>, transform_indices = @transform_2, window_bounds = array<i64: 1, 384>}, {pipeline_mode = #tpu.pipeline_mode<synchronous>, transform_indices = @transform_3, window_bounds = array<i64: 128, 128>}, {pipeline_mode = #tpu.pipeline_mode<synchronous>, transform_indices = @transform_4, window_bounds = array<i64: 1, 128>}, {pipeline_mode = #tpu.pipeline_mode<synchronous>, transform_indices = @transform_5, window_bounds = array<i64: 1, 128>}, {pipeline_mode = #tpu.pipeline_mode<synchronous>, transform_indices = @transform_6, window_bounds = array<i64: 1, 128>}, {transform_indices = @transform_7, window_bounds = array<i64: 1, 16, 128>}]} {
    %c0 = arith.constant 0 : index
    %c0_0 = arith.constant 0 : index
    %c0_1 = arith.constant 0 : index
    %0 = vector.load %arg1[%c0, %c0_0, %c0_1] : memref<1x16x128xbf16, #tpu.memory_space<vmem>>, vector<1x16x128xbf16>
    %1 = vector.shape_cast %0 : vector<1x16x128xbf16> to vector<16x128xbf16>
    %c0_2 = arith.constant 0 : index
    %c0_3 = arith.constant 0 : index
    %2 = vector.load %arg2[%c0_2, %c0_3] : memref<128x384xbf16, #tpu.memory_space<vmem>>, vector<128x384xbf16>
    %cst = arith.constant dense<0.000000e+00> : vector<16x384xf32>
    %3 = tpu.matmul %1, %2, %cst {dimension_numbers = #tpu.dot_dimension_numbers<[1], [0], [0], [1], [0, 0, 1, 1], [], []>} : vector<16x128xbf16>, vector<128x384xbf16>, vector<16x384xf32> -> vector<16x384xf32>
    %c0_4 = arith.constant 0 : index
    %c0_5 = arith.constant 0 : index
    %4 = vector.load %arg3[%c0_4, %c0_5] : memref<1x384xf32, #tpu.memory_space<vmem>>, vector<1x384xf32>
    %5 = vector.broadcast %4 : vector<1x384xf32> to vector<16x384xf32>
    %6 = arith.addf %3, %5 : vector<16x384xf32>
    %7 = vector.extract_strided_slice %6 {offsets = [0, 0], sizes = [16, 128], strides = [1, 1]} : vector<16x384xf32> to vector<16x128xf32>
    %8 = arith.truncf %7 : vector<16x128xf32> to vector<16x128xbf16>
    %9 = vector.extract_strided_slice %6 {offsets = [0, 128], sizes = [16, 128], strides = [1, 1]} : vector<16x384xf32> to vector<16x128xf32>
    %10 = arith.truncf %9 : vector<16x128xf32> to vector<16x128xbf16>
    %11 = vector.extract_strided_slice %6 {offsets = [0, 256], sizes = [16, 128], strides = [1, 1]} : vector<16x384xf32> to vector<16x128xf32>
    %12 = arith.truncf %11 : vector<16x128xf32> to vector<16x128xbf16>
    %c0_6 = arith.constant 0 : index
    %c0_7 = arith.constant 0 : index
    %13 = vector.load %arg4[%c0_6, %c0_7] : memref<128x128xbf16, #tpu.memory_space<vmem>>, vector<128x128xbf16>
    %c0_8 = arith.constant 0 : index
    %c0_9 = arith.constant 0 : index
    %14 = vector.load %arg5[%c0_8, %c0_9] : memref<1x128xf32, #tpu.memory_space<vmem>>, vector<1x128xf32>
    %cst_10 = arith.constant 0.000000e+00 : f32
    %15 = vector.broadcast %cst_10 : f32 to vector<16x128xf32>
    %16 = vector.extract_strided_slice %8 {offsets = [0, 0], sizes = [16, 32], strides = [1, 1]} : vector<16x128xbf16> to vector<16x32xbf16>
    %17 = vector.extract_strided_slice %10 {offsets = [0, 0], sizes = [16, 32], strides = [1, 1]} : vector<16x128xbf16> to vector<16x32xbf16>
    %cst_11 = arith.constant dense<0.000000e+00> : vector<16x16xf32>
    %18 = tpu.matmul %16, %17, %cst_11 {dimension_numbers = #tpu.dot_dimension_numbers<[1], [1], [0], [0], [0, 0, 1, 0], [], []>} : vector<16x32xbf16>, vector<16x32xbf16>, vector<16x16xf32> -> vector<16x16xf32>
    %cst_12 = arith.constant dense<0xFF800000> : vector<16xf32>
    %19 = vector.multi_reduction <maximumf>, %18, %cst_12 [1] : vector<16x16xf32> to vector<16xf32>
    %20 = vector.shape_cast %19 : vector<16xf32> to vector<16x1xf32>
    %21 = vector.broadcast %20 : vector<16x1xf32> to vector<16x16xf32>
    %22 = arith.subf %18, %21 : vector<16x16xf32>
    %23 = math.exp %22 : vector<16x16xf32>
    %cst_13 = arith.constant dense<0.000000e+00> : vector<16xf32>
    %24 = vector.multi_reduction <add>, %23, %cst_13 [1] : vector<16x16xf32> to vector<16xf32>
    %25 = vector.shape_cast %24 : vector<16xf32> to vector<16x1xf32>
    %26 = arith.truncf %23 : vector<16x16xf32> to vector<16x16xbf16>
    %27 = vector.extract_strided_slice %12 {offsets = [0, 0], sizes = [16, 32], strides = [1, 1]} : vector<16x128xbf16> to vector<16x32xbf16>
    %cst_14 = arith.constant dense<0.000000e+00> : vector<16x32xf32>
    %28 = tpu.matmul %26, %27, %cst_14 {dimension_numbers = #tpu.dot_dimension_numbers<[1], [0], [0], [1], [0, 0, 1, 1], [], []>} : vector<16x16xbf16>, vector<16x32xbf16>, vector<16x32xf32> -> vector<16x32xf32>
    %29 = tpu.reciprocal %25 {approx = true} : vector<16x1xf32> -> vector<16x1xf32>
    %30 = vector.broadcast %29 : vector<16x1xf32> to vector<16x32xf32>
    %31 = arith.mulf %28, %30 : vector<16x32xf32>
    %32 = arith.truncf %31 : vector<16x32xf32> to vector<16x32xbf16>
    %33 = vector.extract_strided_slice %13 {offsets = [0, 0], sizes = [32, 128], strides = [1, 1]} : vector<128x128xbf16> to vector<32x128xbf16>
    %cst_15 = arith.constant dense<0.000000e+00> : vector<16x128xf32>
    %34 = tpu.matmul %32, %33, %cst_15 {dimension_numbers = #tpu.dot_dimension_numbers<[1], [0], [0], [1], [0, 0, 1, 1], [], []>} : vector<16x32xbf16>, vector<32x128xbf16>, vector<16x128xf32> -> vector<16x128xf32>
    %35 = arith.addf %15, %34 : vector<16x128xf32>
    %36 = vector.extract_strided_slice %8 {offsets = [0, 32], sizes = [16, 32], strides = [1, 1]} : vector<16x128xbf16> to vector<16x32xbf16>
    %37 = vector.extract_strided_slice %10 {offsets = [0, 32], sizes = [16, 32], strides = [1, 1]} : vector<16x128xbf16> to vector<16x32xbf16>
    %cst_16 = arith.constant dense<0.000000e+00> : vector<16x16xf32>
    %38 = tpu.matmul %36, %37, %cst_16 {dimension_numbers = #tpu.dot_dimension_numbers<[1], [1], [0], [0], [0, 0, 1, 0], [], []>} : vector<16x32xbf16>, vector<16x32xbf16>, vector<16x16xf32> -> vector<16x16xf32>
    %cst_17 = arith.constant dense<0xFF800000> : vector<16xf32>
    %39 = vector.multi_reduction <maximumf>, %38, %cst_17 [1] : vector<16x16xf32> to vector<16xf32>
    %40 = vector.shape_cast %39 : vector<16xf32> to vector<16x1xf32>
    %41 = vector.broadcast %40 : vector<16x1xf32> to vector<16x16xf32>
    %42 = arith.subf %38, %41 : vector<16x16xf32>
    %43 = math.exp %42 : vector<16x16xf32>
    %cst_18 = arith.constant dense<0.000000e+00> : vector<16xf32>
    %44 = vector.multi_reduction <add>, %43, %cst_18 [1] : vector<16x16xf32> to vector<16xf32>
    %45 = vector.shape_cast %44 : vector<16xf32> to vector<16x1xf32>
    %46 = arith.truncf %43 : vector<16x16xf32> to vector<16x16xbf16>
    %47 = vector.extract_strided_slice %12 {offsets = [0, 32], sizes = [16, 32], strides = [1, 1]} : vector<16x128xbf16> to vector<16x32xbf16>
    %cst_19 = arith.constant dense<0.000000e+00> : vector<16x32xf32>
    %48 = tpu.matmul %46, %47, %cst_19 {dimension_numbers = #tpu.dot_dimension_numbers<[1], [0], [0], [1], [0, 0, 1, 1], [], []>} : vector<16x16xbf16>, vector<16x32xbf16>, vector<16x32xf32> -> vector<16x32xf32>
    %49 = tpu.reciprocal %45 {approx = true} : vector<16x1xf32> -> vector<16x1xf32>
    %50 = vector.broadcast %49 : vector<16x1xf32> to vector<16x32xf32>
    %51 = arith.mulf %48, %50 : vector<16x32xf32>
    %52 = arith.truncf %51 : vector<16x32xf32> to vector<16x32xbf16>
    %53 = vector.extract_strided_slice %13 {offsets = [32, 0], sizes = [32, 128], strides = [1, 1]} : vector<128x128xbf16> to vector<32x128xbf16>
    %cst_20 = arith.constant dense<0.000000e+00> : vector<16x128xf32>
    %54 = tpu.matmul %52, %53, %cst_20 {dimension_numbers = #tpu.dot_dimension_numbers<[1], [0], [0], [1], [0, 0, 1, 1], [], []>} : vector<16x32xbf16>, vector<32x128xbf16>, vector<16x128xf32> -> vector<16x128xf32>
    %55 = arith.addf %35, %54 : vector<16x128xf32>
    %56 = vector.extract_strided_slice %8 {offsets = [0, 64], sizes = [16, 32], strides = [1, 1]} : vector<16x128xbf16> to vector<16x32xbf16>
    %57 = vector.extract_strided_slice %10 {offsets = [0, 64], sizes = [16, 32], strides = [1, 1]} : vector<16x128xbf16> to vector<16x32xbf16>
    %cst_21 = arith.constant dense<0.000000e+00> : vector<16x16xf32>
    %58 = tpu.matmul %56, %57, %cst_21 {dimension_numbers = #tpu.dot_dimension_numbers<[1], [1], [0], [0], [0, 0, 1, 0], [], []>} : vector<16x32xbf16>, vector<16x32xbf16>, vector<16x16xf32> -> vector<16x16xf32>
    %cst_22 = arith.constant dense<0xFF800000> : vector<16xf32>
    %59 = vector.multi_reduction <maximumf>, %58, %cst_22 [1] : vector<16x16xf32> to vector<16xf32>
    %60 = vector.shape_cast %59 : vector<16xf32> to vector<16x1xf32>
    %61 = vector.broadcast %60 : vector<16x1xf32> to vector<16x16xf32>
    %62 = arith.subf %58, %61 : vector<16x16xf32>
    %63 = math.exp %62 : vector<16x16xf32>
    %cst_23 = arith.constant dense<0.000000e+00> : vector<16xf32>
    %64 = vector.multi_reduction <add>, %63, %cst_23 [1] : vector<16x16xf32> to vector<16xf32>
    %65 = vector.shape_cast %64 : vector<16xf32> to vector<16x1xf32>
    %66 = arith.truncf %63 : vector<16x16xf32> to vector<16x16xbf16>
    %67 = vector.extract_strided_slice %12 {offsets = [0, 64], sizes = [16, 32], strides = [1, 1]} : vector<16x128xbf16> to vector<16x32xbf16>
    %cst_24 = arith.constant dense<0.000000e+00> : vector<16x32xf32>
    %68 = tpu.matmul %66, %67, %cst_24 {dimension_numbers = #tpu.dot_dimension_numbers<[1], [0], [0], [1], [0, 0, 1, 1], [], []>} : vector<16x16xbf16>, vector<16x32xbf16>, vector<16x32xf32> -> vector<16x32xf32>
    %69 = tpu.reciprocal %65 {approx = true} : vector<16x1xf32> -> vector<16x1xf32>
    %70 = vector.broadcast %69 : vector<16x1xf32> to vector<16x32xf32>
    %71 = arith.mulf %68, %70 : vector<16x32xf32>
    %72 = arith.truncf %71 : vector<16x32xf32> to vector<16x32xbf16>
    %73 = vector.extract_strided_slice %13 {offsets = [64, 0], sizes = [32, 128], strides = [1, 1]} : vector<128x128xbf16> to vector<32x128xbf16>
    %cst_25 = arith.constant dense<0.000000e+00> : vector<16x128xf32>
    %74 = tpu.matmul %72, %73, %cst_25 {dimension_numbers = #tpu.dot_dimension_numbers<[1], [0], [0], [1], [0, 0, 1, 1], [], []>} : vector<16x32xbf16>, vector<32x128xbf16>, vector<16x128xf32> -> vector<16x128xf32>
    %75 = arith.addf %55, %74 : vector<16x128xf32>
    %76 = vector.extract_strided_slice %8 {offsets = [0, 96], sizes = [16, 32], strides = [1, 1]} : vector<16x128xbf16> to vector<16x32xbf16>
    %77 = vector.extract_strided_slice %10 {offsets = [0, 96], sizes = [16, 32], strides = [1, 1]} : vector<16x128xbf16> to vector<16x32xbf16>
    %cst_26 = arith.constant dense<0.000000e+00> : vector<16x16xf32>
    %78 = tpu.matmul %76, %77, %cst_26 {dimension_numbers = #tpu.dot_dimension_numbers<[1], [1], [0], [0], [0, 0, 1, 0], [], []>} : vector<16x32xbf16>, vector<16x32xbf16>, vector<16x16xf32> -> vector<16x16xf32>
    %cst_27 = arith.constant dense<0xFF800000> : vector<16xf32>
    %79 = vector.multi_reduction <maximumf>, %78, %cst_27 [1] : vector<16x16xf32> to vector<16xf32>
    %80 = vector.shape_cast %79 : vector<16xf32> to vector<16x1xf32>
    %81 = vector.broadcast %80 : vector<16x1xf32> to vector<16x16xf32>
    %82 = arith.subf %78, %81 : vector<16x16xf32>
    %83 = math.exp %82 : vector<16x16xf32>
    %cst_28 = arith.constant dense<0.000000e+00> : vector<16xf32>
    %84 = vector.multi_reduction <add>, %83, %cst_28 [1] : vector<16x16xf32> to vector<16xf32>
    %85 = vector.shape_cast %84 : vector<16xf32> to vector<16x1xf32>
    %86 = arith.truncf %83 : vector<16x16xf32> to vector<16x16xbf16>
    %87 = vector.extract_strided_slice %12 {offsets = [0, 96], sizes = [16, 32], strides = [1, 1]} : vector<16x128xbf16> to vector<16x32xbf16>
    %cst_29 = arith.constant dense<0.000000e+00> : vector<16x32xf32>
    %88 = tpu.matmul %86, %87, %cst_29 {dimension_numbers = #tpu.dot_dimension_numbers<[1], [0], [0], [1], [0, 0, 1, 1], [], []>} : vector<16x16xbf16>, vector<16x32xbf16>, vector<16x32xf32> -> vector<16x32xf32>
    %89 = tpu.reciprocal %85 {approx = true} : vector<16x1xf32> -> vector<16x1xf32>
    %90 = vector.broadcast %89 : vector<16x1xf32> to vector<16x32xf32>
    %91 = arith.mulf %88, %90 : vector<16x32xf32>
    %92 = arith.truncf %91 : vector<16x32xf32> to vector<16x32xbf16>
    %93 = vector.extract_strided_slice %13 {offsets = [96, 0], sizes = [32, 128], strides = [1, 1]} : vector<128x128xbf16> to vector<32x128xbf16>
    %cst_30 = arith.constant dense<0.000000e+00> : vector<16x128xf32>
    %94 = tpu.matmul %92, %93, %cst_30 {dimension_numbers = #tpu.dot_dimension_numbers<[1], [0], [0], [1], [0, 0, 1, 1], [], []>} : vector<16x32xbf16>, vector<32x128xbf16>, vector<16x128xf32> -> vector<16x128xf32>
    %95 = arith.addf %75, %94 : vector<16x128xf32>
    %96 = vector.broadcast %14 : vector<1x128xf32> to vector<16x128xf32>
    %97 = arith.addf %95, %96 : vector<16x128xf32>
    %98 = arith.extf %1 : vector<16x128xbf16> to vector<16x128xf32>
    %99 = arith.addf %97, %98 : vector<16x128xf32>
    %c0_31 = arith.constant 0 : index
    %c0_32 = arith.constant 0 : index
    %100 = vector.load %arg6[%c0_31, %c0_32] : memref<1x128xf32, #tpu.memory_space<vmem>>, vector<1x128xf32>
    %c0_33 = arith.constant 0 : index
    %c0_34 = arith.constant 0 : index
    %101 = vector.load %arg7[%c0_33, %c0_34] : memref<1x128xf32, #tpu.memory_space<vmem>>, vector<1x128xf32>
    %cst_35 = arith.constant dense<0.000000e+00> : vector<16xf32>
    %102 = vector.multi_reduction <add>, %99, %cst_35 [1] : vector<16x128xf32> to vector<16xf32>
    %103 = vector.shape_cast %102 : vector<16xf32> to vector<16x1xf32>
    %cst_36 = arith.constant 1.280000e+02 : f32
    %104 = vector.broadcast %cst_36 : f32 to vector<16x1xf32>
    %105 = arith.divf %103, %104 : vector<16x1xf32>
    %106 = vector.broadcast %105 : vector<16x1xf32> to vector<16x128xf32>
    %107 = arith.subf %99, %106 : vector<16x128xf32>
    %108 = arith.mulf %107, %107 : vector<16x128xf32>
    %cst_37 = arith.constant dense<0.000000e+00> : vector<16xf32>
    %109 = vector.multi_reduction <add>, %108, %cst_37 [1] : vector<16x128xf32> to vector<16xf32>
    %110 = vector.shape_cast %109 : vector<16xf32> to vector<16x1xf32>
    %cst_38 = arith.constant 1.280000e+02 : f32
    %111 = vector.broadcast %cst_38 : f32 to vector<16x1xf32>
    %112 = arith.divf %110, %111 : vector<16x1xf32>
    %113 = vector.broadcast %105 : vector<16x1xf32> to vector<16x128xf32>
    %114 = arith.subf %99, %113 : vector<16x128xf32>
    %cst_39 = arith.constant 9.99999974E-6 : f32
    %115 = vector.broadcast %cst_39 : f32 to vector<16x1xf32>
    %116 = arith.addf %112, %115 : vector<16x1xf32>
    %117 = math.rsqrt %116 : vector<16x1xf32>
    %118 = vector.broadcast %117 : vector<16x1xf32> to vector<16x128xf32>
    %119 = arith.mulf %114, %118 : vector<16x128xf32>
    %120 = vector.broadcast %100 : vector<1x128xf32> to vector<16x128xf32>
    %121 = arith.mulf %119, %120 : vector<16x128xf32>
    %122 = vector.broadcast %101 : vector<1x128xf32> to vector<16x128xf32>
    %123 = arith.addf %121, %122 : vector<16x128xf32>
    %124 = arith.truncf %123 : vector<16x128xf32> to vector<16x128xbf16>
    %c0_40 = arith.constant 0 : index
    %c0_41 = arith.constant 0 : index
    %c0_42 = arith.constant 0 : index
    %125 = vector.load %arg8[%c0_40, %c0_41, %c0_42] : memref<1x16x128xbf16, #tpu.memory_space<vmem>>, vector<1x16x128xbf16>
    %126 = vector.shape_cast %125 : vector<1x16x128xbf16> to vector<16x128xbf16>
    %127 = vector.shape_cast %124 : vector<16x128xbf16> to vector<1x16x128xbf16>
    tpu.vector_store %arg8[%c0_40, %c0_41, %c0_42], %127 {strides = array<i32>} : memref<1x16x128xbf16, #tpu.memory_space<vmem>>, vector<1x16x128xbf16>,
    return
  }
  func.func @transform_0(%arg0: i32) -> (i32, i32, i32) {
    %c0_i32 = arith.constant 0 : i32
    %c0_i32_0 = arith.constant 0 : i32
    %c0_i32_1 = arith.constant 0 : i32
    return %arg0, %c0_i32, %c0_i32_0 : i32, i32, i32
  }
  func.func @transform_1(%arg0: i32) -> (i32, i32) {
    %c0_i32 = arith.constant 0 : i32
    %c0_i32_0 = arith.constant 0 : i32
    %c0_i32_1 = arith.constant 0 : i32
    return %c0_i32, %c0_i32_0 : i32, i32
  }
  func.func @transform_2(%arg0: i32) -> (i32, i32) {
    %c0_i32 = arith.constant 0 : i32
    %c0_i32_0 = arith.constant 0 : i32
    %c0_i32_1 = arith.constant 0 : i32
    return %c0_i32, %c0_i32_0 : i32, i32
  }
  func.func @transform_3(%arg0: i32) -> (i32, i32) {
    %c0_i32 = arith.constant 0 : i32
    %c0_i32_0 = arith.constant 0 : i32
    %c0_i32_1 = arith.constant 0 : i32
    return %c0_i32, %c0_i32_0 : i32, i32
  }
  func.func @transform_4(%arg0: i32) -> (i32, i32) {
    %c0_i32 = arith.constant 0 : i32
    %c0_i32_0 = arith.constant 0 : i32
    %c0_i32_1 = arith.constant 0 : i32
    return %c0_i32, %c0_i32_0 : i32, i32
  }
  func.func @transform_5(%arg0: i32) -> (i32, i32) {
    %c0_i32 = arith.constant 0 : i32
    %c0_i32_0 = arith.constant 0 : i32
    %c0_i32_1 = arith.constant 0 : i32
    return %c0_i32, %c0_i32_0 : i32, i32
  }
  func.func @transform_6(%arg0: i32) -> (i32, i32) {
    %c0_i32 = arith.constant 0 : i32
    %c0_i32_0 = arith.constant 0 : i32
    %c0_i32_1 = arith.constant 0 : i32
    return %c0_i32, %c0_i32_0 : i32, i32
  }
  func.func @transform_7(%arg0: i32) -> (i32, i32, i32) {
    %c0_i32 = arith.constant 0 : i32
    %c0_i32_0 = arith.constant 0 : i32
    %c0_i32_1 = arith.constant 0 : i32
    return %arg0, %c0_i32, %c0_i32_0 : i32, i32, i32
  }
}

module attributes {stable_mosaic.version = 11 : i64} {
  func.func @_ffn_kernel(%arg0: i32, %arg1: memref<32x128xbf16, #tpu.memory_space<vmem>>, %arg2: memref<128x256xbf16, #tpu.memory_space<vmem>>, %arg3: memref<1x256xf32, #tpu.memory_space<vmem>>, %arg4: memref<256x128xbf16, #tpu.memory_space<vmem>>, %arg5: memref<1x128xf32, #tpu.memory_space<vmem>>, %arg6: memref<1x128xf32, #tpu.memory_space<vmem>>, %arg7: memref<1x128xf32, #tpu.memory_space<vmem>>, %arg8: memref<1x128xf32, #tpu.memory_space<vmem>>, %arg9: memref<1x128xf32, #tpu.memory_space<vmem>>, %arg10: memref<32x128xbf16, #tpu.memory_space<vmem>>) attributes {dimension_semantics = [#tpu.dimension_semantics<parallel>], iteration_bounds = array<i64: 1>, scalar_prefetch = 0 : i64, scratch_operands = 0 : i64, tpu.core_type = #tpu.core_type<tc>, window_params = [{transform_indices = @transform_0, window_bounds = array<i64: 32, 128>}, {pipeline_mode = #tpu.pipeline_mode<synchronous>, transform_indices = @transform_1, window_bounds = array<i64: 128, 256>}, {pipeline_mode = #tpu.pipeline_mode<synchronous>, transform_indices = @transform_2, window_bounds = array<i64: 1, 256>}, {pipeline_mode = #tpu.pipeline_mode<synchronous>, transform_indices = @transform_3, window_bounds = array<i64: 256, 128>}, {pipeline_mode = #tpu.pipeline_mode<synchronous>, transform_indices = @transform_4, window_bounds = array<i64: 1, 128>}, {pipeline_mode = #tpu.pipeline_mode<synchronous>, transform_indices = @transform_5, window_bounds = array<i64: 1, 128>}, {pipeline_mode = #tpu.pipeline_mode<synchronous>, transform_indices = @transform_6, window_bounds = array<i64: 1, 128>}, {pipeline_mode = #tpu.pipeline_mode<synchronous>, transform_indices = @transform_7, window_bounds = array<i64: 1, 128>}, {pipeline_mode = #tpu.pipeline_mode<synchronous>, transform_indices = @transform_8, window_bounds = array<i64: 1, 128>}, {transform_indices = @transform_9, window_bounds = array<i64: 32, 128>}]} {
    %c0 = arith.constant 0 : index
    %c0_0 = arith.constant 0 : index
    %0 = vector.load %arg1[%c0, %c0_0] : memref<32x128xbf16, #tpu.memory_space<vmem>>, vector<32x128xbf16>
    %c0_1 = arith.constant 0 : index
    %c0_2 = arith.constant 0 : index
    %1 = vector.load %arg2[%c0_1, %c0_2] : memref<128x256xbf16, #tpu.memory_space<vmem>>, vector<128x256xbf16>
    %cst = arith.constant dense<0.000000e+00> : vector<32x256xf32>
    %2 = tpu.matmul %0, %1, %cst {dimension_numbers = #tpu.dot_dimension_numbers<[1], [0], [0], [1], [0, 0, 1, 1], [], []>} : vector<32x128xbf16>, vector<128x256xbf16>, vector<32x256xf32> -> vector<32x256xf32>
    %c0_3 = arith.constant 0 : index
    %c0_4 = arith.constant 0 : index
    %3 = vector.load %arg3[%c0_3, %c0_4] : memref<1x256xf32, #tpu.memory_space<vmem>>, vector<1x256xf32>
    %4 = vector.broadcast %3 : vector<1x256xf32> to vector<32x256xf32>
    %5 = arith.addf %2, %4 : vector<32x256xf32>
    %cst_5 = arith.constant 0.000000e+00 : f32
    %6 = vector.broadcast %cst_5 : f32 to vector<32x256xf32>
    %7 = arith.maximumf %5, %6 : vector<32x256xf32>
    %8 = arith.truncf %7 : vector<32x256xf32> to vector<32x256xbf16>
    %c0_6 = arith.constant 0 : index
    %c0_7 = arith.constant 0 : index
    %9 = vector.load %arg4[%c0_6, %c0_7] : memref<256x128xbf16, #tpu.memory_space<vmem>>, vector<256x128xbf16>
    %cst_8 = arith.constant dense<0.000000e+00> : vector<32x128xf32>
    %10 = tpu.matmul %8, %9, %cst_8 {dimension_numbers = #tpu.dot_dimension_numbers<[1], [0], [0], [1], [0, 0, 1, 1], [], []>} : vector<32x256xbf16>, vector<256x128xbf16>, vector<32x128xf32> -> vector<32x128xf32>
    %c0_9 = arith.constant 0 : index
    %c0_10 = arith.constant 0 : index
    %11 = vector.load %arg5[%c0_9, %c0_10] : memref<1x128xf32, #tpu.memory_space<vmem>>, vector<1x128xf32>
    %12 = vector.broadcast %11 : vector<1x128xf32> to vector<32x128xf32>
    %13 = arith.addf %10, %12 : vector<32x128xf32>
    %14 = arith.extf %0 : vector<32x128xbf16> to vector<32x128xf32>
    %15 = arith.addf %13, %14 : vector<32x128xf32>
    %c0_11 = arith.constant 0 : index
    %c0_12 = arith.constant 0 : index
    %16 = vector.load %arg6[%c0_11, %c0_12] : memref<1x128xf32, #tpu.memory_space<vmem>>, vector<1x128xf32>
    %c0_13 = arith.constant 0 : index
    %c0_14 = arith.constant 0 : index
    %17 = vector.load %arg7[%c0_13, %c0_14] : memref<1x128xf32, #tpu.memory_space<vmem>>, vector<1x128xf32>
    %cst_15 = arith.constant dense<0.000000e+00> : vector<32xf32>
    %18 = vector.multi_reduction <add>, %15, %cst_15 [1] : vector<32x128xf32> to vector<32xf32>
    %19 = vector.shape_cast %18 : vector<32xf32> to vector<32x1xf32>
    %cst_16 = arith.constant 1.280000e+02 : f32
    %20 = vector.broadcast %cst_16 : f32 to vector<32x1xf32>
    %21 = arith.divf %19, %20 : vector<32x1xf32>
    %22 = vector.broadcast %21 : vector<32x1xf32> to vector<32x128xf32>
    %23 = arith.subf %15, %22 : vector<32x128xf32>
    %24 = arith.mulf %23, %23 : vector<32x128xf32>
    %cst_17 = arith.constant dense<0.000000e+00> : vector<32xf32>
    %25 = vector.multi_reduction <add>, %24, %cst_17 [1] : vector<32x128xf32> to vector<32xf32>
    %26 = vector.shape_cast %25 : vector<32xf32> to vector<32x1xf32>
    %cst_18 = arith.constant 1.280000e+02 : f32
    %27 = vector.broadcast %cst_18 : f32 to vector<32x1xf32>
    %28 = arith.divf %26, %27 : vector<32x1xf32>
    %29 = vector.broadcast %21 : vector<32x1xf32> to vector<32x128xf32>
    %30 = arith.subf %15, %29 : vector<32x128xf32>
    %cst_19 = arith.constant 9.99999974E-6 : f32
    %31 = vector.broadcast %cst_19 : f32 to vector<32x1xf32>
    %32 = arith.addf %28, %31 : vector<32x1xf32>
    %33 = math.rsqrt %32 : vector<32x1xf32>
    %34 = vector.broadcast %33 : vector<32x1xf32> to vector<32x128xf32>
    %35 = arith.mulf %30, %34 : vector<32x128xf32>
    %36 = vector.broadcast %16 : vector<1x128xf32> to vector<32x128xf32>
    %37 = arith.mulf %35, %36 : vector<32x128xf32>
    %38 = vector.broadcast %17 : vector<1x128xf32> to vector<32x128xf32>
    %39 = arith.addf %37, %38 : vector<32x128xf32>
    %c0_20 = arith.constant 0 : index
    %c0_21 = arith.constant 0 : index
    %40 = vector.load %arg8[%c0_20, %c0_21] : memref<1x128xf32, #tpu.memory_space<vmem>>, vector<1x128xf32>
    %c0_22 = arith.constant 0 : index
    %c0_23 = arith.constant 0 : index
    %41 = vector.load %arg9[%c0_22, %c0_23] : memref<1x128xf32, #tpu.memory_space<vmem>>, vector<1x128xf32>
    %cst_24 = arith.constant dense<0.000000e+00> : vector<32xf32>
    %42 = vector.multi_reduction <add>, %39, %cst_24 [1] : vector<32x128xf32> to vector<32xf32>
    %43 = vector.shape_cast %42 : vector<32xf32> to vector<32x1xf32>
    %cst_25 = arith.constant 1.280000e+02 : f32
    %44 = vector.broadcast %cst_25 : f32 to vector<32x1xf32>
    %45 = arith.divf %43, %44 : vector<32x1xf32>
    %46 = vector.broadcast %45 : vector<32x1xf32> to vector<32x128xf32>
    %47 = arith.subf %39, %46 : vector<32x128xf32>
    %48 = arith.mulf %47, %47 : vector<32x128xf32>
    %cst_26 = arith.constant dense<0.000000e+00> : vector<32xf32>
    %49 = vector.multi_reduction <add>, %48, %cst_26 [1] : vector<32x128xf32> to vector<32xf32>
    %50 = vector.shape_cast %49 : vector<32xf32> to vector<32x1xf32>
    %cst_27 = arith.constant 1.280000e+02 : f32
    %51 = vector.broadcast %cst_27 : f32 to vector<32x1xf32>
    %52 = arith.divf %50, %51 : vector<32x1xf32>
    %53 = vector.broadcast %45 : vector<32x1xf32> to vector<32x128xf32>
    %54 = arith.subf %39, %53 : vector<32x128xf32>
    %cst_28 = arith.constant 9.99999974E-6 : f32
    %55 = vector.broadcast %cst_28 : f32 to vector<32x1xf32>
    %56 = arith.addf %52, %55 : vector<32x1xf32>
    %57 = math.rsqrt %56 : vector<32x1xf32>
    %58 = vector.broadcast %57 : vector<32x1xf32> to vector<32x128xf32>
    %59 = arith.mulf %54, %58 : vector<32x128xf32>
    %60 = vector.broadcast %40 : vector<1x128xf32> to vector<32x128xf32>
    %61 = arith.mulf %59, %60 : vector<32x128xf32>
    %62 = vector.broadcast %41 : vector<1x128xf32> to vector<32x128xf32>
    %63 = arith.addf %61, %62 : vector<32x128xf32>
    %64 = arith.truncf %63 : vector<32x128xf32> to vector<32x128xbf16>
    %c0_29 = arith.constant 0 : index
    %c0_30 = arith.constant 0 : index
    %65 = vector.load %arg10[%c0_29, %c0_30] : memref<32x128xbf16, #tpu.memory_space<vmem>>, vector<32x128xbf16>
    tpu.vector_store %arg10[%c0_29, %c0_30], %64 {strides = array<i32>} : memref<32x128xbf16, #tpu.memory_space<vmem>>, vector<32x128xbf16>,
    return
  }
  func.func @transform_0(%arg0: i32) -> (i32, i32) {
    %c0_i32 = arith.constant 0 : i32
    %c0_i32_0 = arith.constant 0 : i32
    return %arg0, %c0_i32 : i32, i32
  }
  func.func @transform_1(%arg0: i32) -> (i32, i32) {
    %c0_i32 = arith.constant 0 : i32
    %c0_i32_0 = arith.constant 0 : i32
    %c0_i32_1 = arith.constant 0 : i32
    return %c0_i32, %c0_i32_0 : i32, i32
  }
  func.func @transform_2(%arg0: i32) -> (i32, i32) {
    %c0_i32 = arith.constant 0 : i32
    %c0_i32_0 = arith.constant 0 : i32
    %c0_i32_1 = arith.constant 0 : i32
    return %c0_i32, %c0_i32_0 : i32, i32
  }
  func.func @transform_3(%arg0: i32) -> (i32, i32) {
    %c0_i32 = arith.constant 0 : i32
    %c0_i32_0 = arith.constant 0 : i32
    %c0_i32_1 = arith.constant 0 : i32
    return %c0_i32, %c0_i32_0 : i32, i32
  }
  func.func @transform_4(%arg0: i32) -> (i32, i32) {
    %c0_i32 = arith.constant 0 : i32
    %c0_i32_0 = arith.constant 0 : i32
    %c0_i32_1 = arith.constant 0 : i32
    return %c0_i32, %c0_i32_0 : i32, i32
  }
  func.func @transform_5(%arg0: i32) -> (i32, i32) {
    %c0_i32 = arith.constant 0 : i32
    %c0_i32_0 = arith.constant 0 : i32
    %c0_i32_1 = arith.constant 0 : i32
    return %c0_i32, %c0_i32_0 : i32, i32
  }
  func.func @transform_6(%arg0: i32) -> (i32, i32) {
    %c0_i32 = arith.constant 0 : i32
    %c0_i32_0 = arith.constant 0 : i32
    %c0_i32_1 = arith.constant 0 : i32
    return %c0_i32, %c0_i32_0 : i32, i32
  }
  func.func @transform_7(%arg0: i32) -> (i32, i32) {
    %c0_i32 = arith.constant 0 : i32
    %c0_i32_0 = arith.constant 0 : i32
    %c0_i32_1 = arith.constant 0 : i32
    return %c0_i32, %c0_i32_0 : i32, i32
  }
  func.func @transform_8(%arg0: i32) -> (i32, i32) {
    %c0_i32 = arith.constant 0 : i32
    %c0_i32_0 = arith.constant 0 : i32
    %c0_i32_1 = arith.constant 0 : i32
    return %c0_i32, %c0_i32_0 : i32, i32
  }
  func.func @transform_9(%arg0: i32) -> (i32, i32) {
    %c0_i32 = arith.constant 0 : i32
    %c0_i32_0 = arith.constant 0 : i32
    return %arg0, %c0_i32 : i32, i32
  }
}

module attributes {stable_mosaic.version = 11 : i64} {
  func.func @_cross_mha_kernel(%arg0: i32, %arg1: memref<1x16x128xbf16, #tpu.memory_space<vmem>>, %arg2: memref<1x16x128xbf16, #tpu.memory_space<vmem>>, %arg3: memref<128x128xbf16, #tpu.memory_space<vmem>>, %arg4: memref<1x128xf32, #tpu.memory_space<vmem>>, %arg5: memref<128x256xbf16, #tpu.memory_space<vmem>>, %arg6: memref<1x256xf32, #tpu.memory_space<vmem>>, %arg7: memref<128x128xbf16, #tpu.memory_space<vmem>>, %arg8: memref<1x128xf32, #tpu.memory_space<vmem>>, %arg9: memref<1x128xf32, #tpu.memory_space<vmem>>, %arg10: memref<1x128xf32, #tpu.memory_space<vmem>>, %arg11: memref<1x16x128xbf16, #tpu.memory_space<vmem>>) attributes {dimension_semantics = [#tpu.dimension_semantics<parallel>], iteration_bounds = array<i64: 2>, scalar_prefetch = 0 : i64, scratch_operands = 0 : i64, tpu.core_type = #tpu.core_type<tc>, window_params = [{transform_indices = @transform_0, window_bounds = array<i64: 1, 16, 128>}, {transform_indices = @transform_1, window_bounds = array<i64: 1, 16, 128>}, {pipeline_mode = #tpu.pipeline_mode<synchronous>, transform_indices = @transform_2, window_bounds = array<i64: 128, 128>}, {pipeline_mode = #tpu.pipeline_mode<synchronous>, transform_indices = @transform_3, window_bounds = array<i64: 1, 128>}, {pipeline_mode = #tpu.pipeline_mode<synchronous>, transform_indices = @transform_4, window_bounds = array<i64: 128, 256>}, {pipeline_mode = #tpu.pipeline_mode<synchronous>, transform_indices = @transform_5, window_bounds = array<i64: 1, 256>}, {pipeline_mode = #tpu.pipeline_mode<synchronous>, transform_indices = @transform_6, window_bounds = array<i64: 128, 128>}, {pipeline_mode = #tpu.pipeline_mode<synchronous>, transform_indices = @transform_7, window_bounds = array<i64: 1, 128>}, {pipeline_mode = #tpu.pipeline_mode<synchronous>, transform_indices = @transform_8, window_bounds = array<i64: 1, 128>}, {pipeline_mode = #tpu.pipeline_mode<synchronous>, transform_indices = @transform_9, window_bounds = array<i64: 1, 128>}, {transform_indices = @transform_10, window_bounds = array<i64: 1, 16, 128>}]} {
    %c0 = arith.constant 0 : index
    %c0_0 = arith.constant 0 : index
    %c0_1 = arith.constant 0 : index
    %0 = vector.load %arg1[%c0, %c0_0, %c0_1] : memref<1x16x128xbf16, #tpu.memory_space<vmem>>, vector<1x16x128xbf16>
    %1 = vector.shape_cast %0 : vector<1x16x128xbf16> to vector<16x128xbf16>
    %c0_2 = arith.constant 0 : index
    %c0_3 = arith.constant 0 : index
    %c0_4 = arith.constant 0 : index
    %2 = vector.load %arg2[%c0_2, %c0_3, %c0_4] : memref<1x16x128xbf16, #tpu.memory_space<vmem>>, vector<1x16x128xbf16>
    %3 = vector.shape_cast %2 : vector<1x16x128xbf16> to vector<16x128xbf16>
    %c0_5 = arith.constant 0 : index
    %c0_6 = arith.constant 0 : index
    %4 = vector.load %arg3[%c0_5, %c0_6] : memref<128x128xbf16, #tpu.memory_space<vmem>>, vector<128x128xbf16>
    %cst = arith.constant dense<0.000000e+00> : vector<16x128xf32>
    %5 = tpu.matmul %1, %4, %cst {dimension_numbers = #tpu.dot_dimension_numbers<[1], [0], [0], [1], [0, 0, 1, 1], [], []>} : vector<16x128xbf16>, vector<128x128xbf16>, vector<16x128xf32> -> vector<16x128xf32>
    %c0_7 = arith.constant 0 : index
    %c0_8 = arith.constant 0 : index
    %6 = vector.load %arg4[%c0_7, %c0_8] : memref<1x128xf32, #tpu.memory_space<vmem>>, vector<1x128xf32>
    %7 = vector.broadcast %6 : vector<1x128xf32> to vector<16x128xf32>
    %8 = arith.addf %5, %7 : vector<16x128xf32>
    %9 = arith.truncf %8 : vector<16x128xf32> to vector<16x128xbf16>
    %c0_9 = arith.constant 0 : index
    %c0_10 = arith.constant 0 : index
    %10 = vector.load %arg5[%c0_9, %c0_10] : memref<128x256xbf16, #tpu.memory_space<vmem>>, vector<128x256xbf16>
    %cst_11 = arith.constant dense<0.000000e+00> : vector<16x256xf32>
    %11 = tpu.matmul %3, %10, %cst_11 {dimension_numbers = #tpu.dot_dimension_numbers<[1], [0], [0], [1], [0, 0, 1, 1], [], []>} : vector<16x128xbf16>, vector<128x256xbf16>, vector<16x256xf32> -> vector<16x256xf32>
    %c0_12 = arith.constant 0 : index
    %c0_13 = arith.constant 0 : index
    %12 = vector.load %arg6[%c0_12, %c0_13] : memref<1x256xf32, #tpu.memory_space<vmem>>, vector<1x256xf32>
    %13 = vector.broadcast %12 : vector<1x256xf32> to vector<16x256xf32>
    %14 = arith.addf %11, %13 : vector<16x256xf32>
    %15 = vector.extract_strided_slice %14 {offsets = [0, 0], sizes = [16, 128], strides = [1, 1]} : vector<16x256xf32> to vector<16x128xf32>
    %16 = arith.truncf %15 : vector<16x128xf32> to vector<16x128xbf16>
    %17 = vector.extract_strided_slice %14 {offsets = [0, 128], sizes = [16, 128], strides = [1, 1]} : vector<16x256xf32> to vector<16x128xf32>
    %18 = arith.truncf %17 : vector<16x128xf32> to vector<16x128xbf16>
    %c0_14 = arith.constant 0 : index
    %c0_15 = arith.constant 0 : index
    %19 = vector.load %arg7[%c0_14, %c0_15] : memref<128x128xbf16, #tpu.memory_space<vmem>>, vector<128x128xbf16>
    %c0_16 = arith.constant 0 : index
    %c0_17 = arith.constant 0 : index
    %20 = vector.load %arg8[%c0_16, %c0_17] : memref<1x128xf32, #tpu.memory_space<vmem>>, vector<1x128xf32>
    %cst_18 = arith.constant 0.000000e+00 : f32
    %21 = vector.broadcast %cst_18 : f32 to vector<16x128xf32>
    %22 = vector.extract_strided_slice %9 {offsets = [0, 0], sizes = [16, 32], strides = [1, 1]} : vector<16x128xbf16> to vector<16x32xbf16>
    %23 = vector.extract_strided_slice %16 {offsets = [0, 0], sizes = [16, 32], strides = [1, 1]} : vector<16x128xbf16> to vector<16x32xbf16>
    %cst_19 = arith.constant dense<0.000000e+00> : vector<16x16xf32>
    %24 = tpu.matmul %22, %23, %cst_19 {dimension_numbers = #tpu.dot_dimension_numbers<[1], [1], [0], [0], [0, 0, 1, 0], [], []>} : vector<16x32xbf16>, vector<16x32xbf16>, vector<16x16xf32> -> vector<16x16xf32>
    %cst_20 = arith.constant dense<0xFF800000> : vector<16xf32>
    %25 = vector.multi_reduction <maximumf>, %24, %cst_20 [1] : vector<16x16xf32> to vector<16xf32>
    %26 = vector.shape_cast %25 : vector<16xf32> to vector<16x1xf32>
    %27 = vector.broadcast %26 : vector<16x1xf32> to vector<16x16xf32>
    %28 = arith.subf %24, %27 : vector<16x16xf32>
    %29 = math.exp %28 : vector<16x16xf32>
    %cst_21 = arith.constant dense<0.000000e+00> : vector<16xf32>
    %30 = vector.multi_reduction <add>, %29, %cst_21 [1] : vector<16x16xf32> to vector<16xf32>
    %31 = vector.shape_cast %30 : vector<16xf32> to vector<16x1xf32>
    %32 = arith.truncf %29 : vector<16x16xf32> to vector<16x16xbf16>
    %33 = vector.extract_strided_slice %18 {offsets = [0, 0], sizes = [16, 32], strides = [1, 1]} : vector<16x128xbf16> to vector<16x32xbf16>
    %cst_22 = arith.constant dense<0.000000e+00> : vector<16x32xf32>
    %34 = tpu.matmul %32, %33, %cst_22 {dimension_numbers = #tpu.dot_dimension_numbers<[1], [0], [0], [1], [0, 0, 1, 1], [], []>} : vector<16x16xbf16>, vector<16x32xbf16>, vector<16x32xf32> -> vector<16x32xf32>
    %35 = tpu.reciprocal %31 {approx = true} : vector<16x1xf32> -> vector<16x1xf32>
    %36 = vector.broadcast %35 : vector<16x1xf32> to vector<16x32xf32>
    %37 = arith.mulf %34, %36 : vector<16x32xf32>
    %38 = arith.truncf %37 : vector<16x32xf32> to vector<16x32xbf16>
    %39 = vector.extract_strided_slice %19 {offsets = [0, 0], sizes = [32, 128], strides = [1, 1]} : vector<128x128xbf16> to vector<32x128xbf16>
    %cst_23 = arith.constant dense<0.000000e+00> : vector<16x128xf32>
    %40 = tpu.matmul %38, %39, %cst_23 {dimension_numbers = #tpu.dot_dimension_numbers<[1], [0], [0], [1], [0, 0, 1, 1], [], []>} : vector<16x32xbf16>, vector<32x128xbf16>, vector<16x128xf32> -> vector<16x128xf32>
    %41 = arith.addf %21, %40 : vector<16x128xf32>
    %42 = vector.extract_strided_slice %9 {offsets = [0, 32], sizes = [16, 32], strides = [1, 1]} : vector<16x128xbf16> to vector<16x32xbf16>
    %43 = vector.extract_strided_slice %16 {offsets = [0, 32], sizes = [16, 32], strides = [1, 1]} : vector<16x128xbf16> to vector<16x32xbf16>
    %cst_24 = arith.constant dense<0.000000e+00> : vector<16x16xf32>
    %44 = tpu.matmul %42, %43, %cst_24 {dimension_numbers = #tpu.dot_dimension_numbers<[1], [1], [0], [0], [0, 0, 1, 0], [], []>} : vector<16x32xbf16>, vector<16x32xbf16>, vector<16x16xf32> -> vector<16x16xf32>
    %cst_25 = arith.constant dense<0xFF800000> : vector<16xf32>
    %45 = vector.multi_reduction <maximumf>, %44, %cst_25 [1] : vector<16x16xf32> to vector<16xf32>
    %46 = vector.shape_cast %45 : vector<16xf32> to vector<16x1xf32>
    %47 = vector.broadcast %46 : vector<16x1xf32> to vector<16x16xf32>
    %48 = arith.subf %44, %47 : vector<16x16xf32>
    %49 = math.exp %48 : vector<16x16xf32>
    %cst_26 = arith.constant dense<0.000000e+00> : vector<16xf32>
    %50 = vector.multi_reduction <add>, %49, %cst_26 [1] : vector<16x16xf32> to vector<16xf32>
    %51 = vector.shape_cast %50 : vector<16xf32> to vector<16x1xf32>
    %52 = arith.truncf %49 : vector<16x16xf32> to vector<16x16xbf16>
    %53 = vector.extract_strided_slice %18 {offsets = [0, 32], sizes = [16, 32], strides = [1, 1]} : vector<16x128xbf16> to vector<16x32xbf16>
    %cst_27 = arith.constant dense<0.000000e+00> : vector<16x32xf32>
    %54 = tpu.matmul %52, %53, %cst_27 {dimension_numbers = #tpu.dot_dimension_numbers<[1], [0], [0], [1], [0, 0, 1, 1], [], []>} : vector<16x16xbf16>, vector<16x32xbf16>, vector<16x32xf32> -> vector<16x32xf32>
    %55 = tpu.reciprocal %51 {approx = true} : vector<16x1xf32> -> vector<16x1xf32>
    %56 = vector.broadcast %55 : vector<16x1xf32> to vector<16x32xf32>
    %57 = arith.mulf %54, %56 : vector<16x32xf32>
    %58 = arith.truncf %57 : vector<16x32xf32> to vector<16x32xbf16>
    %59 = vector.extract_strided_slice %19 {offsets = [32, 0], sizes = [32, 128], strides = [1, 1]} : vector<128x128xbf16> to vector<32x128xbf16>
    %cst_28 = arith.constant dense<0.000000e+00> : vector<16x128xf32>
    %60 = tpu.matmul %58, %59, %cst_28 {dimension_numbers = #tpu.dot_dimension_numbers<[1], [0], [0], [1], [0, 0, 1, 1], [], []>} : vector<16x32xbf16>, vector<32x128xbf16>, vector<16x128xf32> -> vector<16x128xf32>
    %61 = arith.addf %41, %60 : vector<16x128xf32>
    %62 = vector.extract_strided_slice %9 {offsets = [0, 64], sizes = [16, 32], strides = [1, 1]} : vector<16x128xbf16> to vector<16x32xbf16>
    %63 = vector.extract_strided_slice %16 {offsets = [0, 64], sizes = [16, 32], strides = [1, 1]} : vector<16x128xbf16> to vector<16x32xbf16>
    %cst_29 = arith.constant dense<0.000000e+00> : vector<16x16xf32>
    %64 = tpu.matmul %62, %63, %cst_29 {dimension_numbers = #tpu.dot_dimension_numbers<[1], [1], [0], [0], [0, 0, 1, 0], [], []>} : vector<16x32xbf16>, vector<16x32xbf16>, vector<16x16xf32> -> vector<16x16xf32>
    %cst_30 = arith.constant dense<0xFF800000> : vector<16xf32>
    %65 = vector.multi_reduction <maximumf>, %64, %cst_30 [1] : vector<16x16xf32> to vector<16xf32>
    %66 = vector.shape_cast %65 : vector<16xf32> to vector<16x1xf32>
    %67 = vector.broadcast %66 : vector<16x1xf32> to vector<16x16xf32>
    %68 = arith.subf %64, %67 : vector<16x16xf32>
    %69 = math.exp %68 : vector<16x16xf32>
    %cst_31 = arith.constant dense<0.000000e+00> : vector<16xf32>
    %70 = vector.multi_reduction <add>, %69, %cst_31 [1] : vector<16x16xf32> to vector<16xf32>
    %71 = vector.shape_cast %70 : vector<16xf32> to vector<16x1xf32>
    %72 = arith.truncf %69 : vector<16x16xf32> to vector<16x16xbf16>
    %73 = vector.extract_strided_slice %18 {offsets = [0, 64], sizes = [16, 32], strides = [1, 1]} : vector<16x128xbf16> to vector<16x32xbf16>
    %cst_32 = arith.constant dense<0.000000e+00> : vector<16x32xf32>
    %74 = tpu.matmul %72, %73, %cst_32 {dimension_numbers = #tpu.dot_dimension_numbers<[1], [0], [0], [1], [0, 0, 1, 1], [], []>} : vector<16x16xbf16>, vector<16x32xbf16>, vector<16x32xf32> -> vector<16x32xf32>
    %75 = tpu.reciprocal %71 {approx = true} : vector<16x1xf32> -> vector<16x1xf32>
    %76 = vector.broadcast %75 : vector<16x1xf32> to vector<16x32xf32>
    %77 = arith.mulf %74, %76 : vector<16x32xf32>
    %78 = arith.truncf %77 : vector<16x32xf32> to vector<16x32xbf16>
    %79 = vector.extract_strided_slice %19 {offsets = [64, 0], sizes = [32, 128], strides = [1, 1]} : vector<128x128xbf16> to vector<32x128xbf16>
    %cst_33 = arith.constant dense<0.000000e+00> : vector<16x128xf32>
    %80 = tpu.matmul %78, %79, %cst_33 {dimension_numbers = #tpu.dot_dimension_numbers<[1], [0], [0], [1], [0, 0, 1, 1], [], []>} : vector<16x32xbf16>, vector<32x128xbf16>, vector<16x128xf32> -> vector<16x128xf32>
    %81 = arith.addf %61, %80 : vector<16x128xf32>
    %82 = vector.extract_strided_slice %9 {offsets = [0, 96], sizes = [16, 32], strides = [1, 1]} : vector<16x128xbf16> to vector<16x32xbf16>
    %83 = vector.extract_strided_slice %16 {offsets = [0, 96], sizes = [16, 32], strides = [1, 1]} : vector<16x128xbf16> to vector<16x32xbf16>
    %cst_34 = arith.constant dense<0.000000e+00> : vector<16x16xf32>
    %84 = tpu.matmul %82, %83, %cst_34 {dimension_numbers = #tpu.dot_dimension_numbers<[1], [1], [0], [0], [0, 0, 1, 0], [], []>} : vector<16x32xbf16>, vector<16x32xbf16>, vector<16x16xf32> -> vector<16x16xf32>
    %cst_35 = arith.constant dense<0xFF800000> : vector<16xf32>
    %85 = vector.multi_reduction <maximumf>, %84, %cst_35 [1] : vector<16x16xf32> to vector<16xf32>
    %86 = vector.shape_cast %85 : vector<16xf32> to vector<16x1xf32>
    %87 = vector.broadcast %86 : vector<16x1xf32> to vector<16x16xf32>
    %88 = arith.subf %84, %87 : vector<16x16xf32>
    %89 = math.exp %88 : vector<16x16xf32>
    %cst_36 = arith.constant dense<0.000000e+00> : vector<16xf32>
    %90 = vector.multi_reduction <add>, %89, %cst_36 [1] : vector<16x16xf32> to vector<16xf32>
    %91 = vector.shape_cast %90 : vector<16xf32> to vector<16x1xf32>
    %92 = arith.truncf %89 : vector<16x16xf32> to vector<16x16xbf16>
    %93 = vector.extract_strided_slice %18 {offsets = [0, 96], sizes = [16, 32], strides = [1, 1]} : vector<16x128xbf16> to vector<16x32xbf16>
    %cst_37 = arith.constant dense<0.000000e+00> : vector<16x32xf32>
    %94 = tpu.matmul %92, %93, %cst_37 {dimension_numbers = #tpu.dot_dimension_numbers<[1], [0], [0], [1], [0, 0, 1, 1], [], []>} : vector<16x16xbf16>, vector<16x32xbf16>, vector<16x32xf32> -> vector<16x32xf32>
    %95 = tpu.reciprocal %91 {approx = true} : vector<16x1xf32> -> vector<16x1xf32>
    %96 = vector.broadcast %95 : vector<16x1xf32> to vector<16x32xf32>
    %97 = arith.mulf %94, %96 : vector<16x32xf32>
    %98 = arith.truncf %97 : vector<16x32xf32> to vector<16x32xbf16>
    %99 = vector.extract_strided_slice %19 {offsets = [96, 0], sizes = [32, 128], strides = [1, 1]} : vector<128x128xbf16> to vector<32x128xbf16>
    %cst_38 = arith.constant dense<0.000000e+00> : vector<16x128xf32>
    %100 = tpu.matmul %98, %99, %cst_38 {dimension_numbers = #tpu.dot_dimension_numbers<[1], [0], [0], [1], [0, 0, 1, 1], [], []>} : vector<16x32xbf16>, vector<32x128xbf16>, vector<16x128xf32> -> vector<16x128xf32>
    %101 = arith.addf %81, %100 : vector<16x128xf32>
    %102 = vector.broadcast %20 : vector<1x128xf32> to vector<16x128xf32>
    %103 = arith.addf %101, %102 : vector<16x128xf32>
    %104 = arith.extf %1 : vector<16x128xbf16> to vector<16x128xf32>
    %105 = arith.addf %103, %104 : vector<16x128xf32>
    %c0_39 = arith.constant 0 : index
    %c0_40 = arith.constant 0 : index
    %106 = vector.load %arg9[%c0_39, %c0_40] : memref<1x128xf32, #tpu.memory_space<vmem>>, vector<1x128xf32>
    %c0_41 = arith.constant 0 : index
    %c0_42 = arith.constant 0 : index
    %107 = vector.load %arg10[%c0_41, %c0_42] : memref<1x128xf32, #tpu.memory_space<vmem>>, vector<1x128xf32>
    %cst_43 = arith.constant dense<0.000000e+00> : vector<16xf32>
    %108 = vector.multi_reduction <add>, %105, %cst_43 [1] : vector<16x128xf32> to vector<16xf32>
    %109 = vector.shape_cast %108 : vector<16xf32> to vector<16x1xf32>
    %cst_44 = arith.constant 1.280000e+02 : f32
    %110 = vector.broadcast %cst_44 : f32 to vector<16x1xf32>
    %111 = arith.divf %109, %110 : vector<16x1xf32>
    %112 = vector.broadcast %111 : vector<16x1xf32> to vector<16x128xf32>
    %113 = arith.subf %105, %112 : vector<16x128xf32>
    %114 = arith.mulf %113, %113 : vector<16x128xf32>
    %cst_45 = arith.constant dense<0.000000e+00> : vector<16xf32>
    %115 = vector.multi_reduction <add>, %114, %cst_45 [1] : vector<16x128xf32> to vector<16xf32>
    %116 = vector.shape_cast %115 : vector<16xf32> to vector<16x1xf32>
    %cst_46 = arith.constant 1.280000e+02 : f32
    %117 = vector.broadcast %cst_46 : f32 to vector<16x1xf32>
    %118 = arith.divf %116, %117 : vector<16x1xf32>
    %119 = vector.broadcast %111 : vector<16x1xf32> to vector<16x128xf32>
    %120 = arith.subf %105, %119 : vector<16x128xf32>
    %cst_47 = arith.constant 9.99999974E-6 : f32
    %121 = vector.broadcast %cst_47 : f32 to vector<16x1xf32>
    %122 = arith.addf %118, %121 : vector<16x1xf32>
    %123 = math.rsqrt %122 : vector<16x1xf32>
    %124 = vector.broadcast %123 : vector<16x1xf32> to vector<16x128xf32>
    %125 = arith.mulf %120, %124 : vector<16x128xf32>
    %126 = vector.broadcast %106 : vector<1x128xf32> to vector<16x128xf32>
    %127 = arith.mulf %125, %126 : vector<16x128xf32>
    %128 = vector.broadcast %107 : vector<1x128xf32> to vector<16x128xf32>
    %129 = arith.addf %127, %128 : vector<16x128xf32>
    %130 = arith.truncf %129 : vector<16x128xf32> to vector<16x128xbf16>
    %c0_48 = arith.constant 0 : index
    %c0_49 = arith.constant 0 : index
    %c0_50 = arith.constant 0 : index
    %131 = vector.load %arg11[%c0_48, %c0_49, %c0_50] : memref<1x16x128xbf16, #tpu.memory_space<vmem>>, vector<1x16x128xbf16>
    %132 = vector.shape_cast %131 : vector<1x16x128xbf16> to vector<16x128xbf16>
    %133 = vector.shape_cast %130 : vector<16x128xbf16> to vector<1x16x128xbf16>
    tpu.vector_store %arg11[%c0_48, %c0_49, %c0_50], %133 {strides = array<i32>} : memref<1x16x128xbf16, #tpu.memory_space<vmem>>, vector<1x16x128xbf16>,
    return
  }
  func.func @transform_0(%arg0: i32) -> (i32, i32, i32) {
    %c0_i32 = arith.constant 0 : i32
    %c0_i32_0 = arith.constant 0 : i32
    %c0_i32_1 = arith.constant 0 : i32
    return %arg0, %c0_i32, %c0_i32_0 : i32, i32, i32
  }
  func.func @transform_1(%arg0: i32) -> (i32, i32, i32) {
    %c0_i32 = arith.constant 0 : i32
    %c0_i32_0 = arith.constant 0 : i32
    %c0_i32_1 = arith.constant 0 : i32
    return %arg0, %c0_i32, %c0_i32_0 : i32, i32, i32
  }
  func.func @transform_2(%arg0: i32) -> (i32, i32) {
    %c0_i32 = arith.constant 0 : i32
    %c0_i32_0 = arith.constant 0 : i32
    %c0_i32_1 = arith.constant 0 : i32
    return %c0_i32, %c0_i32_0 : i32, i32
  }
  func.func @transform_3(%arg0: i32) -> (i32, i32) {
    %c0_i32 = arith.constant 0 : i32
    %c0_i32_0 = arith.constant 0 : i32
    %c0_i32_1 = arith.constant 0 : i32
    return %c0_i32, %c0_i32_0 : i32, i32
  }
  func.func @transform_4(%arg0: i32) -> (i32, i32) {
    %c0_i32 = arith.constant 0 : i32
    %c0_i32_0 = arith.constant 0 : i32
    %c0_i32_1 = arith.constant 0 : i32
    return %c0_i32, %c0_i32_0 : i32, i32
  }
  func.func @transform_5(%arg0: i32) -> (i32, i32) {
    %c0_i32 = arith.constant 0 : i32
    %c0_i32_0 = arith.constant 0 : i32
    %c0_i32_1 = arith.constant 0 : i32
    return %c0_i32, %c0_i32_0 : i32, i32
  }
  func.func @transform_6(%arg0: i32) -> (i32, i32) {
    %c0_i32 = arith.constant 0 : i32
    %c0_i32_0 = arith.constant 0 : i32
    %c0_i32_1 = arith.constant 0 : i32
    return %c0_i32, %c0_i32_0 : i32, i32
  }
  func.func @transform_7(%arg0: i32) -> (i32, i32) {
    %c0_i32 = arith.constant 0 : i32
    %c0_i32_0 = arith.constant 0 : i32
    %c0_i32_1 = arith.constant 0 : i32
    return %c0_i32, %c0_i32_0 : i32, i32
  }
  func.func @transform_8(%arg0: i32) -> (i32, i32) {
    %c0_i32 = arith.constant 0 : i32
    %c0_i32_0 = arith.constant 0 : i32
    %c0_i32_1 = arith.constant 0 : i32
    return %c0_i32, %c0_i32_0 : i32, i32
  }
  func.func @transform_9(%arg0: i32) -> (i32, i32) {
    %c0_i32 = arith.constant 0 : i32
    %c0_i32_0 = arith.constant 0 : i32
    %c0_i32_1 = arith.constant 0 : i32
    return %c0_i32, %c0_i32_0 : i32, i32
  }
  func.func @transform_10(%arg0: i32) -> (i32, i32, i32) {
    %c0_i32 = arith.constant 0 : i32
    %c0_i32_0 = arith.constant 0 : i32
    %c0_i32_1 = arith.constant 0 : i32
    return %arg0, %c0_i32, %c0_i32_0 : i32, i32, i32
  }
}

module attributes {stable_mosaic.version = 11 : i64} {
  func.func @_matmul_bias_kernel(%arg0: i32, %arg1: i32, %arg2: memref<32x128xbf16, #tpu.memory_space<vmem>>, %arg3: memref<128x128xbf16, #tpu.memory_space<vmem>>, %arg4: memref<1x128xf32, #tpu.memory_space<vmem>>, %arg5: memref<32x128xf32, #tpu.memory_space<vmem>>) attributes {dimension_semantics = [#tpu.dimension_semantics<parallel>, #tpu.dimension_semantics<parallel>], iteration_bounds = array<i64: 1, 1>, scalar_prefetch = 0 : i64, scratch_operands = 0 : i64, tpu.core_type = #tpu.core_type<tc>, window_params = [{transform_indices = @transform_0, window_bounds = array<i64: 32, 128>}, {transform_indices = @transform_1, window_bounds = array<i64: 128, 128>}, {transform_indices = @transform_2, window_bounds = array<i64: 1, 128>}, {transform_indices = @transform_3, window_bounds = array<i64: 32, 128>}]} {
    %c0 = arith.constant 0 : index
    %c0_0 = arith.constant 0 : index
    %0 = vector.load %arg2[%c0, %c0_0] : memref<32x128xbf16, #tpu.memory_space<vmem>>, vector<32x128xbf16>
    %c0_1 = arith.constant 0 : index
    %c0_2 = arith.constant 0 : index
    %1 = vector.load %arg3[%c0_1, %c0_2] : memref<128x128xbf16, #tpu.memory_space<vmem>>, vector<128x128xbf16>
    %cst = arith.constant dense<0.000000e+00> : vector<32x128xf32>
    %2 = tpu.matmul %0, %1, %cst {dimension_numbers = #tpu.dot_dimension_numbers<[1], [0], [0], [1], [0, 0, 1, 1], [], []>} : vector<32x128xbf16>, vector<128x128xbf16>, vector<32x128xf32> -> vector<32x128xf32>
    %c0_3 = arith.constant 0 : index
    %c0_4 = arith.constant 0 : index
    %3 = vector.load %arg4[%c0_3, %c0_4] : memref<1x128xf32, #tpu.memory_space<vmem>>, vector<1x128xf32>
    %4 = vector.broadcast %3 : vector<1x128xf32> to vector<32x128xf32>
    %5 = arith.addf %2, %4 : vector<32x128xf32>
    %c0_5 = arith.constant 0 : index
    %c0_6 = arith.constant 0 : index
    %6 = vector.load %arg5[%c0_5, %c0_6] : memref<32x128xf32, #tpu.memory_space<vmem>>, vector<32x128xf32>
    tpu.vector_store %arg5[%c0_5, %c0_6], %5 {strides = array<i32>} : memref<32x128xf32, #tpu.memory_space<vmem>>, vector<32x128xf32>,
    return
  }
  func.func @transform_0(%arg0: i32, %arg1: i32) -> (i32, i32) {
    %c0_i32 = arith.constant 0 : i32
    %c0_i32_0 = arith.constant 0 : i32
    return %arg0, %c0_i32 : i32, i32
  }
  func.func @transform_1(%arg0: i32, %arg1: i32) -> (i32, i32) {
    %c0_i32 = arith.constant 0 : i32
    %c0_i32_0 = arith.constant 0 : i32
    return %c0_i32, %arg1 : i32, i32
  }
  func.func @transform_2(%arg0: i32, %arg1: i32) -> (i32, i32) {
    %c0_i32 = arith.constant 0 : i32
    %c0_i32_0 = arith.constant 0 : i32
    return %c0_i32, %arg1 : i32, i32
  }
  func.func @transform_3(%arg0: i32, %arg1: i32) -> (i32, i32) {
    %c0_i32 = arith.constant 0 : i32
    return %arg0, %arg1 : i32, i32
  }
}

</mosaic_0001>

<llo_original>
// kernel: transformer_gen.12
$region0: #{transformer_gen.12}
  #allocation0 [shape = 'u32[]', space=smem, size = 0x4, offset = 0x4, fixed_abs, tag = 'smem constant byte address 0x4 - core index']
  #allocation1 [shape = 'u32[144,128]{1,0:T(1,128)}', space=vmem, size = 0x12000, scoped, tag = 'internal scratch']
  %s0 = inlined_call_operand.vmem [shape: bf16[32,128], index: 0, kind: input, shape index: {}]
  %s1 = inlined_call_operand.vmem [shape: bf16[128,256], index: 1, kind: input, shape index: {}]
  %s2 = inlined_call_operand.vmem [shape: f32[1,256], index: 2, kind: input, shape index: {}]
  %s3 = inlined_call_operand.vmem [shape: bf16[256,128], index: 3, kind: input, shape index: {}]
  %s4 = inlined_call_operand.vmem [shape: f32[1,128], index: 4, kind: input, shape index: {}]
  %s5 = inlined_call_operand.vmem [shape: f32[1,128], index: 5, kind: input, shape index: {}, may-alias: {5,7}]
  %s6 = inlined_call_operand.vmem [shape: f32[1,128], index: 6, kind: input, shape index: {}, may-alias: {6,8}]
  %s7 = inlined_call_operand.vmem [shape: f32[1,128], index: 7, kind: input, shape index: {}, may-alias: {5,7}]
  %s8 = inlined_call_operand.vmem [shape: f32[1,128], index: 8, kind: input, shape index: {}, may-alias: {6,8}]
  %s9 = inlined_call_operand.vmem [shape: bf16[32,128], index: 9, kind: output, shape index: {}]
  %s10 = sld [smem:[#allocation0]]
  $region46: #{transformer_gen.12} parent=0
    _
  %s12 = ssub.s32 1, %s10
  %s13 = scalar_select 0, %s12, %s10
  // Predicated region
  $region2: #{transformer_gen.12} parent=0 // pred_check
    _
  $region3: #{transformer_gen.12} parent=0 // pred_check_branch
    %15 = sbr.rel (0) target = $region5
  $region4: #{transformer_gen.12} parent=0 // pred_region
    _
  $region5: #{transformer_gen.12} parent=0 // pred_fallthru
    _
  // Predicated region
  $region6: #{transformer_gen.12} parent=0 // pred_check
    _
  $region7: #{transformer_gen.12} parent=0 // pred_check_branch
    %17 = sbr.rel (0) target = $region9
  $region8: #{transformer_gen.12} parent=0 // pred_region
    _
  $region9: #{transformer_gen.12} parent=0 // pred_fallthru
    _
  // Predicated region
  $region10: #{transformer_gen.12} parent=0 // pred_check
    _
  $region11: #{transformer_gen.12} parent=0 // pred_check_branch
    %19 = sbr.rel (0) target = $region13
  $region12: #{transformer_gen.12} parent=0 // pred_region
    _
  $region13: #{transformer_gen.12} parent=0 // pred_fallthru
    _
  // Predicated region
  $region14: #{transformer_gen.12} parent=0 // pred_check
    _
  $region15: #{transformer_gen.12} parent=0 // pred_check_branch
    %21 = sbr.rel (0) target = $region17
  $region16: #{transformer_gen.12} parent=0 // pred_region
    _
  $region17: #{transformer_gen.12} parent=0 // pred_fallthru
    _
  // Predicated region
  $region18: #{transformer_gen.12} parent=0 // pred_check
    _
  $region19: #{transformer_gen.12} parent=0 // pred_check_branch
    %23 = sbr.rel (0) target = $region21
  $region20: #{transformer_gen.12} parent=0 // pred_region
    _
  $region21: #{transformer_gen.12} parent=0 // pred_fallthru
    _
  // Predicated region
  $region22: #{transformer_gen.12} parent=0 // pred_check
    _
  $region23: #{transformer_gen.12} parent=0 // pred_check_branch
    %25 = sbr.rel (0) target = $region25
  $region24: #{transformer_gen.12} parent=0 // pred_region
    _
  $region25: #{transformer_gen.12} parent=0 // pred_fallthru
    _
  // Predicated region
  $region26: #{transformer_gen.12} parent=0 // pred_check
    _
  $region27: #{transformer_gen.12} parent=0 // pred_check_branch
    %27 = sbr.rel (0) target = $region29
  $region28: #{transformer_gen.12} parent=0 // pred_region
    _
  $region29: #{transformer_gen.12} parent=0 // pred_fallthru
    _
  // Predicated region
  $region30: #{transformer_gen.12} parent=0 // pred_check
    _
  $region31: #{transformer_gen.12} parent=0 // pred_check_branch
    %29 = sbr.rel (0) target = $region33
  $region32: #{transformer_gen.12} parent=0 // pred_region
    _
  $region33: #{transformer_gen.12} parent=0 // pred_fallthru
    _
  // Predicated region
  $region34: #{transformer_gen.12} parent=0 // pred_check
    _
  $region35: #{transformer_gen.12} parent=0 // pred_check_branch
    %31 = sbr.rel (0) target = $region37
  $region36: #{transformer_gen.12} parent=0 // pred_region
    _
  $region37: #{transformer_gen.12} parent=0 // pred_fallthru
    _
  %v33 = vld [vmem:[%s0] sm:$0xf]
  %v34 = vld [vmem:[%s0 + $0x4] sm:$0xf]
  %v35 = vld [vmem:[%s0 + $0x8] sm:$0xf]
  %v36 = vld [vmem:[%s0 + $0xc] sm:$0xf]
  %v37 = vld [vmem:[%s1] sm:$0xff]
  %v38 = vld [vmem:[%s1 + $0x8] sm:$0xff]
  %v39 = vld [vmem:[%s1 + $0x10] sm:$0xff]
  %v40 = vld [vmem:[%s1 + $0x18] sm:$0xff]
  %v41 = vld [vmem:[%s1 + $0x20] sm:$0xff]
  %v42 = vld [vmem:[%s1 + $0x28] sm:$0xff]
  %v43 = vld [vmem:[%s1 + $0x30] sm:$0xff]
  %v44 = vld [vmem:[%s1 + $0x38] sm:$0xff]
  %v45 = vld [vmem:[%s1 + $0x40] sm:$0xff]
  %v46 = vld [vmem:[%s1 + $0x48] sm:$0xff]
  %v47 = vld [vmem:[%s1 + $0x50] sm:$0xff]
  %v48 = vld [vmem:[%s1 + $0x58] sm:$0xff]
  %v49 = vld [vmem:[%s1 + $0x60] sm:$0xff]
  %v50 = vld [vmem:[%s1 + $0x68] sm:$0xff]
  %v51 = vld [vmem:[%s1 + $0x70] sm:$0xff]
  %v52 = vld [vmem:[%s1 + $0x78] sm:$0xff]
  %v53 = vld [vmem:[%s2] sm:$0x3]
  %v55 = vlaneseq
  %v56 = vshrl.u32 %v55, 7
  %v57 = vsub.s32 0, %v56
  %v58 = vrot.slane %v53, %v57
  %v59 = vlaneseq
  %v60 = vshrl.u32 %v59, 7
  %v61 = vsub.s32 1, %v60
  %v62 = vrot.slane %v53, %v61
  %v69 = vunpack.c.l.b16 %v33
  %v70 = vunpack.c.l.b16 %v34
  %v71 = vunpack.c.l.b16 %v35
  %v72 = vunpack.c.l.b16 %v36
  %v73 = vpack.c.b16 %v70, %v69
  %v74 = vpack.c.b16 %v72, %v71
  %v93 = vunpack.c.l.b16 %v37
  %v94 = vunpack.c.h.b16 %v37
  %v95 = vunpack.c.l.b16 %v38
  %v96 = vunpack.c.h.b16 %v38
  %v97 = vunpack.c.l.b16 %v39
  %v98 = vunpack.c.h.b16 %v39
  %v99 = vunpack.c.l.b16 %v40
  %v100 = vunpack.c.h.b16 %v40
  %v101 = vunpack.c.l.b16 %v41
  %v102 = vunpack.c.h.b16 %v41
  %v103 = vunpack.c.l.b16 %v42
  %v104 = vunpack.c.h.b16 %v42
  %v105 = vunpack.c.l.b16 %v43
  %v106 = vunpack.c.h.b16 %v43
  %v107 = vunpack.c.l.b16 %v44
  %v108 = vunpack.c.h.b16 %v44
  %v109 = vunpack.c.l.b16 %v45
  %v110 = vunpack.c.h.b16 %v45
  %v111 = vunpack.c.l.b16 %v46
  %v112 = vunpack.c.h.b16 %v46
  %v113 = vunpack.c.l.b16 %v47
  %v114 = vunpack.c.h.b16 %v47
  %v115 = vunpack.c.l.b16 %v48
  %v116 = vunpack.c.h.b16 %v48
  %v117 = vunpack.c.l.b16 %v49
  %v118 = vunpack.c.h.b16 %v49
  %v119 = vunpack.c.l.b16 %v50
  %v120 = vunpack.c.h.b16 %v50
  %v121 = vunpack.c.l.b16 %v51
  %v122 = vunpack.c.h.b16 %v51
  %v123 = vunpack.c.l.b16 %v52
  %v124 = vunpack.c.h.b16 %v52
  %v125 = vpack.c.b16 %v95, %v93
  %v126 = vpack.c.b16 %v96, %v94
  %v127 = vpack.c.b16 %v99, %v97
  %v128 = vpack.c.b16 %v100, %v98
  %v129 = vpack.c.b16 %v103, %v101
  %v130 = vpack.c.b16 %v104, %v102
  %v131 = vpack.c.b16 %v107, %v105
  %v132 = vpack.c.b16 %v108, %v106
  %v133 = vpack.c.b16 %v111, %v109
  %v134 = vpack.c.b16 %v112, %v110
  %v135 = vpack.c.b16 %v115, %v113
  %v136 = vpack.c.b16 %v116, %v114
  %v137 = vpack.c.b16 %v119, %v117
  %v138 = vpack.c.b16 %v120, %v118
  %v139 = vpack.c.b16 %v123, %v121
  %v140 = vpack.c.b16 %v124, %v122
  %157 = vmatprep.subr.bf16.mxu0 %v126
  %158 = vmatpush1.bf16.msra.mxu0 %v125
  %159 = vmatprep.subr.bf16.mxu0 %v128
  %160 = vmatpush1.bf16.msra.mxu0 %v127
  %161 = vmatprep.subr.bf16.mxu0 %v130
  %162 = vmatpush1.bf16.msra.mxu0 %v129
  %163 = vmatprep.subr.bf16.mxu0 %v132
  %164 = vmatpush1.bf16.msra.mxu0 %v131
  %165 = vmatprep.subr.bf16.mxu0 %v134
  %166 = vmatpush1.bf16.msra.mxu0 %v133
  %167 = vmatprep.subr.bf16.mxu0 %v136
  %168 = vmatpush1.bf16.msra.mxu0 %v135
  %169 = vmatprep.subr.bf16.mxu0 %v138
  %170 = vmatpush1.bf16.msra.mxu0 %v137
  %171 = vmatprep.subr.bf16.mxu0 %v140
  %172 = vmatpush1.bf16.msra.mxu0 %v139
  %173 = vmatprep.subr.bf16.mxu0 0
  %174 = vmatpush1.bf16.msra.mxu0 0
  %175 = vmatprep.subr.bf16.mxu0 0
  %176 = vmatpush1.bf16.msra.mxu0 0
  %177 = vmatprep.subr.bf16.mxu0 0
  %178 = vmatpush1.bf16.msra.mxu0 0
  %179 = vmatprep.subr.bf16.mxu0 0
  %180 = vmatpush1.bf16.msra.mxu0 0
  %181 = vmatprep.subr.bf16.mxu0 0
  %182 = vmatpush1.bf16.msra.mxu0 0
  %183 = vmatprep.subr.bf16.mxu0 0
  %184 = vmatpush1.bf16.msra.mxu0 0
  %185 = vmatprep.subr.bf16.mxu0 0
  %186 = vmatpush1.bf16.msra.mxu0 0
  %187 = vmatprep.subr.bf16.mxu0 0
  %188 = vmatpush1.bf16.msra.mxu0 0
  %189 = vmatprep.mubr.bf16.mxu0 0
  %190 = vmatmul.mubr.bf16.gmra.mrb[0].mxu0 %v73
  %v191 = vpop.f32.mrb[0].mxu0
  %v192 = vadd.f32 %v58, %v191
  %v193 = vpop.f32.mrb[0].mxu0
  %v194 = vadd.f32 %v62, %v193
  %v195 = vpop.f32.mrb[0].mxu0
  %v196 = vadd.f32 %v58, %v195
  %v197 = vpop.f32.mrb[0].mxu0
  %v198 = vadd.f32 %v62, %v197
  %199 = vmatprep.mubr.bf16.mxu0 0
  %200 = vmatmul.mubr.bf16.gmra.mrb[0].mxu0 %v74
  %v201 = vpop.f32.mrb[0].mxu0
  %v202 = vadd.f32 %v58, %v201
  %v203 = vpop.f32.mrb[0].mxu0
  %v204 = vadd.f32 %v62, %v203
  %v205 = vpop.f32.mrb[0].mxu0
  %v206 = vadd.f32 %v58, %v205
  %v207 = vpop.f32.mrb[0].mxu0
  %v208 = vadd.f32 %v62, %v207
  %209 = vdwg.mxu0
  %v210 = vmax.f32 %v192, 0.0
  %v211 = vmax.f32 %v194, 0.0
  %v212 = vmax.f32 %v196, 0.0
  %v213 = vmax.f32 %v198, 0.0
  %v214 = vmax.f32 %v202, 0.0
  %v215 = vmax.f32 %v204, 0.0
  %v216 = vmax.f32 %v206, 0.0
  %v217 = vmax.f32 %v208, 0.0
  %v218 = vpack.c.bf16 %v212, %v210
  %v219 = vpack.c.bf16 %v213, %v211
  %v220 = vpack.c.bf16 %v216, %v214
  %v221 = vpack.c.bf16 %v217, %v215
  %v222 = vld [vmem:[%s3] sm:$0xf]
  %v223 = vld [vmem:[%s3 + $0x4] sm:$0xf]
  %v224 = vld [vmem:[%s3 + $0x8] sm:$0xf]
  %v225 = vld [vmem:[%s3 + $0xc] sm:$0xf]
  %v226 = vld [vmem:[%s3 + $0x10] sm:$0xf]
  %v227 = vld [vmem:[%s3 + $0x14] sm:$0xf]
  %v228 = vld [vmem:[%s3 + $0x18] sm:$0xf]
  %v229 = vld [vmem:[%s3 + $0x1c] sm:$0xf]
  %v230 = vld [vmem:[%s3 + $0x20] sm:$0xf]
  %v231 = vld [vmem:[%s3 + $0x24] sm:$0xf]
  %v232 = vld [vmem:[%s3 + $0x28] sm:$0xf]
  %v233 = vld [vmem:[%s3 + $0x2c] sm:$0xf]
  %v234 = vld [vmem:[%s3 + $0x30] sm:$0xf]
  %v235 = vld [vmem:[%s3 + $0x34] sm:$0xf]
  %v236 = vld [vmem:[%s3 + $0x38] sm:$0xf]
  %v237 = vld [vmem:[%s3 + $0x3c] sm:$0xf]
  %v238 = vld [vmem:[%s3 + $0x40] sm:$0xf]
  %v239 = vld [vmem:[%s3 + $0x44] sm:$0xf]
  %v240 = vld [vmem:[%s3 + $0x48] sm:$0xf]
  %v241 = vld [vmem:[%s3 + $0x4c] sm:$0xf]
  %v242 = vld [vmem:[%s3 + $0x50] sm:$0xf]
  %v243 = vld [vmem:[%s3 + $0x54] sm:$0xf]
  %v244 = vld [vmem:[%s3 + $0x58] sm:$0xf]
  %v245 = vld [vmem:[%s3 + $0x5c] sm:$0xf]
  %v246 = vld [vmem:[%s3 + $0x60] sm:$0xf]
  %v247 = vld [vmem:[%s3 + $0x64] sm:$0xf]
  %v248 = vld [vmem:[%s3 + $0x68] sm:$0xf]
  %v249 = vld [vmem:[%s3 + $0x6c] sm:$0xf]
  %v250 = vld [vmem:[%s3 + $0x70] sm:$0xf]
  %v251 = vld [vmem:[%s3 + $0x74] sm:$0xf]
  %v252 = vld [vmem:[%s3 + $0x78] sm:$0xf]
  %v253 = vld [vmem:[%s3 + $0x7c] sm:$0xf]
  %v254 = vld [vmem:[%s4] sm:$0x1]
  %v256 = vlaneseq
  %v257 = vshrl.u32 %v256, 7
  %v258 = vsub.s32 0, %v257
  %v259 = vrot.slane %v254, %v258
  %v293 = vunpack.c.l.b16 %v222
  %v294 = vunpack.c.l.b16 %v223
  %v295 = vunpack.c.l.b16 %v224
  %v296 = vunpack.c.l.b16 %v225
  %v297 = vunpack.c.l.b16 %v226
  %v298 = vunpack.c.l.b16 %v227
  %v299 = vunpack.c.l.b16 %v228
  %v300 = vunpack.c.l.b16 %v229
  %v301 = vunpack.c.l.b16 %v230
  %v302 = vunpack.c.l.b16 %v231
  %v303 = vunpack.c.l.b16 %v232
  %v304 = vunpack.c.l.b16 %v233
  %v305 = vunpack.c.l.b16 %v234
  %v306 = vunpack.c.l.b16 %v235
  %v307 = vunpack.c.l.b16 %v236
  %v308 = vunpack.c.l.b16 %v237
  %v309 = vunpack.c.l.b16 %v238
  %v310 = vunpack.c.l.b16 %v239
  %v311 = vunpack.c.l.b16 %v240
  %v312 = vunpack.c.l.b16 %v241
  %v313 = vunpack.c.l.b16 %v242
  %v314 = vunpack.c.l.b16 %v243
  %v315 = vunpack.c.l.b16 %v244
  %v316 = vunpack.c.l.b16 %v245
  %v317 = vunpack.c.l.b16 %v246
  %v318 = vunpack.c.l.b16 %v247
  %v319 = vunpack.c.l.b16 %v248
  %v320 = vunpack.c.l.b16 %v249
  %v321 = vunpack.c.l.b16 %v250
  %v322 = vunpack.c.l.b16 %v251
  %v323 = vunpack.c.l.b16 %v252
  %v324 = vunpack.c.l.b16 %v253
  %v325 = vpack.c.b16 %v294, %v293
  %v326 = vpack.c.b16 %v296, %v295
  %v327 = vpack.c.b16 %v298, %v297
  %v328 = vpack.c.b16 %v300, %v299
  %v329 = vpack.c.b16 %v302, %v301
  %v330 = vpack.c.b16 %v304, %v303
  %v331 = vpack.c.b16 %v306, %v305
  %v332 = vpack.c.b16 %v308, %v307
  %v333 = vpack.c.b16 %v310, %v309
  %v334 = vpack.c.b16 %v312, %v311
  %v335 = vpack.c.b16 %v314, %v313
  %v336 = vpack.c.b16 %v316, %v315
  %v337 = vpack.c.b16 %v318, %v317
  %v338 = vpack.c.b16 %v320, %v319
  %v339 = vpack.c.b16 %v322, %v321
  %v340 = vpack.c.b16 %v324, %v323
  %357 = vmatprep.subr.bf16.mxu0 0
  %358 = vmatpush1.bf16.msra.mxu0 %v325
  %359 = vmatprep.subr.bf16.mxu0 0
  %360 = vmatpush1.bf16.msra.mxu0 %v326
  %361 = vmatprep.subr.bf16.mxu0 0
  %362 = vmatpush1.bf16.msra.mxu0 %v327
  %363 = vmatprep.subr.bf16.mxu0 0
  %364 = vmatpush1.bf16.msra.mxu0 %v328
  %365 = vmatprep.subr.bf16.mxu0 0
  %366 = vmatpush1.bf16.msra.mxu0 %v329
  %367 = vmatprep.subr.bf16.mxu0 0
  %368 = vmatpush1.bf16.msra.mxu0 %v330
  %369 = vmatprep.subr.bf16.mxu0 0
  %370 = vmatpush1.bf16.msra.mxu0 %v331
  %371 = vmatprep.subr.bf16.mxu0 0
  %372 = vmatpush1.bf16.msra.mxu0 %v332
  %373 = vmatprep.subr.bf16.mxu0 0
  %374 = vmatpush1.bf16.msra.mxu0 %v333
  %375 = vmatprep.subr.bf16.mxu0 0
  %376 = vmatpush1.bf16.msra.mxu0 %v334
  %377 = vmatprep.subr.bf16.mxu0 0
  %378 = vmatpush1.bf16.msra.mxu0 %v335
  %379 = vmatprep.subr.bf16.mxu0 0
  %380 = vmatpush1.bf16.msra.mxu0 %v336
  %381 = vmatprep.subr.bf16.mxu0 0
  %382 = vmatpush1.bf16.msra.mxu0 %v337
  %383 = vmatprep.subr.bf16.mxu0 0
  %384 = vmatpush1.bf16.msra.mxu0 %v338
  %385 = vmatprep.subr.bf16.mxu0 0
  %386 = vmatpush1.bf16.msra.mxu0 %v339
  %387 = vmatprep.subr.bf16.mxu0 0
  %388 = vmatpush1.bf16.msra.mxu0 %v340
  %389 = vmatprep.mubr.bf16.mxu0 %v219
  %390 = vmatmul.mubr.bf16.gmra.mrb[0].mxu0 %v218
  %v391 = vpop.f32.mrb[0].mxu0
  %v392 = vadd.f32 %v259, %v391
  %v393 = vpop.f32.mrb[0].mxu0
  %v394 = vpop.f32.mrb[0].mxu0
  %v395 = vadd.f32 %v259, %v394
  %v396 = vpop.f32.mrb[0].mxu0
  %397 = vmatprep.mubr.bf16.mxu0 %v221
  %398 = vmatmul.mubr.bf16.gmra.mrb[0].mxu0 %v220
  %v399 = vpop.f32.mrb[0].mxu0
  %v400 = vadd.f32 %v259, %v399
  %v401 = vpop.f32.mrb[0].mxu0
  %v402 = vpop.f32.mrb[0].mxu0
  %v403 = vadd.f32 %v259, %v402
  %v404 = vpop.f32.mrb[0].mxu0
  %405 = vdwg.mxu0
  %v406 = vunpack.c.l.bf16 %v33
  %v407 = vunpack.c.l.bf16 %v34
  %v408 = vunpack.c.l.bf16 %v35
  %v409 = vunpack.c.l.bf16 %v36
  %v410 = vadd.f32 %v392, %v406
  %v411 = vadd.f32 %v395, %v407
  %v412 = vadd.f32 %v400, %v408
  %v413 = vadd.f32 %v403, %v409
  %v414 = vld [vmem:[%s5] sm:$0x1]
  %v415 = vld [vmem:[%s6] sm:$0x1]
  %416 = vadd.xlane.f32.xlu0 %v410
  %v417 = vpop.xlane.xlu0 %416
  %418 = vadd.xlane.f32.xlu0 %v411
  %v419 = vpop.xlane.xlu0 %418
  %420 = vadd.xlane.f32.xlu0 %v412
  %v421 = vpop.xlane.xlu0 %420
  %422 = vadd.xlane.f32.xlu0 %v413
  %v423 = vpop.xlane.xlu0 %422
  %v424 = vrcp.pop 128.0
  %v425 = vmul.f32 %v417, %v424
  %v426 = vmul.f32 %v419, %v424
  %v427 = vmul.f32 %v421, %v424
  %v428 = vmul.f32 %v423, %v424
  %v429 = vsub.f32 %v410, %v425
  %v430 = vsub.f32 %v411, %v426
  %v431 = vsub.f32 %v412, %v427
  %v432 = vsub.f32 %v413, %v428
  %v433 = vmul.f32 %v429, %v429
  %v434 = vmul.f32 %v430, %v430
  %v435 = vmul.f32 %v431, %v431
  %v436 = vmul.f32 %v432, %v432
  %437 = vadd.xlane.f32.xlu0 %v433
  %v438 = vpop.xlane.xlu0 %437
  %439 = vadd.xlane.f32.xlu0 %v434
  %v440 = vpop.xlane.xlu0 %439
  %441 = vadd.xlane.f32.xlu0 %v435
  %v442 = vpop.xlane.xlu0 %441
  %443 = vadd.xlane.f32.xlu0 %v436
  %v444 = vpop.xlane.xlu0 %443
  %v445 = vmul.f32 %v438, %v424
  %v446 = vmul.f32 %v440, %v424
  %v447 = vmul.f32 %v442, %v424
  %v448 = vmul.f32 %v444, %v424
  %v449 = vadd.f32 %v445, 1e-05
  %v450 = vadd.f32 %v446, 1e-05
  %v451 = vadd.f32 %v447, 1e-05
  %v452 = vadd.f32 %v448, 1e-05
  %v453 = vrsqrt.pop %v449
  %v454 = vrsqrt.pop %v450
  %v455 = vrsqrt.pop %v451
  %v456 = vrsqrt.pop %v452
  %v457 = vmul.f32 %v429, %v453
  %v458 = vmul.f32 %v430, %v454
  %v459 = vmul.f32 %v431, %v455
  %v460 = vmul.f32 %v432, %v456
  %v462 = vlaneseq
  %v463 = vshrl.u32 %v462, 7
  %v464 = vsub.s32 0, %v463
  %v465 = vrot.slane %v414, %v464
  %v467 = vmul.f32 %v457, %v465
  %v468 = vmul.f32 %v458, %v465
  %v469 = vmul.f32 %v459, %v465
  %v470 = vmul.f32 %v460, %v465
  %v472 = vlaneseq
  %v473 = vshrl.u32 %v472, 7
  %v474 = vsub.s32 0, %v473
  %v475 = vrot.slane %v415, %v474
  %v477 = vadd.f32 %v467, %v475
  %v478 = vadd.f32 %v468, %v475
  %v479 = vadd.f32 %v469, %v475
  %v480 = vadd.f32 %v470, %v475
  %v481 = vpack.c.bf16 %v478, %v477
  %v482 = vpack.c.bf16 %v480, %v479
  %v485 = vunpack.c.l.b16 %v481
  %v486 = vunpack.c.h.b16 %v481
  %v487 = vunpack.c.l.b16 %v482
  %v488 = vunpack.c.h.b16 %v482
  %v489 = vpack.c.b16 %v485, %v485
  %v490 = vpack.c.b16 %v486, %v486
  %v491 = vpack.c.b16 %v487, %v487
  %v492 = vpack.c.b16 %v488, %v488
  %497 = vst [vmem:[%s9] sm:$0xf] %v489
  %498 = vst [vmem:[%s9 + $0x4] sm:$0xf] %v490
  %499 = vst [vmem:[%s9 + $0x8] sm:$0xf] %v491
  %500 = vst [vmem:[%s9 + $0xc] sm:$0xf] %v492
  // Predicated region
  $region38: #{transformer_gen.12} parent=0 // pred_check
    _
  $region39: #{transformer_gen.12} parent=0 // pred_check_branch
    %502 = sbr.rel (0) target = $region41
  $region40: #{transformer_gen.12} parent=0 // pred_region
    _
  $region41: #{transformer_gen.12} parent=0 // pred_fallthru
    _
  // Predicated region
  $region42: #{transformer_gen.12} parent=0 // pred_check
    _
  $region43: #{transformer_gen.12} parent=0 // pred_check_branch
    %504 = sbr.rel (0) target = $region45
  $region44: #{transformer_gen.12} parent=0 // pred_region
    _
  $region45: #{transformer_gen.12} parent=0 // pred_fallthru
    _

// kernel: transformer_gen.13
$region0: #{transformer_gen.13}
  #allocation0 [shape = 'u32[]', space=smem, size = 0x4, offset = 0x4, fixed_abs, tag = 'smem constant byte address 0x4 - core index']
  #allocation1 [shape = 'u32[144,128]{1,0:T(1,128)}', space=vmem, size = 0x12000, scoped, tag = 'internal scratch']
  %s0 = inlined_call_operand.vmem [shape: bf16[2,16,128], index: 0, kind: input, shape index: {}]
  %s1 = inlined_call_operand.vmem [shape: bf16[128,384], index: 1, kind: input, shape index: {}]
  %s2 = inlined_call_operand.vmem [shape: f32[1,384], index: 2, kind: input, shape index: {}]
  %s3 = inlined_call_operand.vmem [shape: bf16[128,128], index: 3, kind: input, shape index: {}]
  %s4 = inlined_call_operand.vmem [shape: f32[1,128], index: 4, kind: input, shape index: {}]
  %s5 = inlined_call_operand.vmem [shape: f32[1,128], index: 5, kind: input, shape index: {}]
  %s6 = inlined_call_operand.vmem [shape: f32[1,128], index: 6, kind: input, shape index: {}]
  %s7 = inlined_call_operand.vmem [shape: bf16[2,16,128], index: 7, kind: output, shape index: {}]
  %s8 = sld [smem:[#allocation0]]
  $region61: #{transformer_gen.13} parent=0
    _
  %s10 = ssub.s32 1, %s8
  %s11 = scalar_select 0, %s10, %s8
  loop: start=0, step=1, limit=4
  $region2: #{transformer_gen.13} parent=0 // loop_pre_header
    _
  $region3: #{transformer_gen.13} parent=0 // loop_header
    %s13 = sphi 0, %s17
    %p14 = scmp.ge.s32.totalorder %s13, 4
    %s23 = sphi 0, %s25
    %s26 = sphi 0, %s23
    %s27 = sphi 0, %s26
    %s43 = sphi 0, %s27
    %s47 = sphi 0, %s47
    %s49 = sphi 0, %s47
    %s50 = sphi 0, %s49
    %s64 = sphi 0, %s50
    %s68 = sphi 0, %s68
    %s70 = sphi 0, %s68
    %s71 = sphi 0, %s70
    %s85 = sphi 0, %s71
    %s89 = sphi 0, %s89
    %s91 = sphi 0, %s89
    %s92 = sphi 0, %s91
    %s106 = sphi 0, %s92
    %s110 = sphi 0, %s110
    %s112 = sphi 0, %s110
    %s113 = sphi 0, %s112
    %s127 = sphi 0, %s113
    %s131 = sphi 0, %s131
    %s133 = sphi 0, %s131
    %s134 = sphi 0, %s133
    %s148 = sphi 0, %s134
    %s152 = sphi 0, %s152
    %s154 = sphi 0, %s152
    %s155 = sphi 0, %s154
    %s169 = sphi 0, %s155
    %s175 = sphi 0, %s177
    %s178 = sphi 0, %s175
    %s179 = sphi 0, %s178
    %s195 = sphi 0, %s179
  $region4: #{transformer_gen.13} parent=0 // loop_header_branch
    %16 = sbr.rel (%p14) target = $region8
  $region5: #{transformer_gen.13} parent=0 // loop_body
    %s18 = ssub.s32 %s13, 1
    %s19 = ssub.s32 %s13, 2
    %s20 = sadd.s32 %s13, 1
    %s21 = ssub.s32 %s13, %s20
    %p22 = scmp.eq.s32.totalorder %s21, 0
    %s24 = sadd.s32 %s23, 1
    %s25 = scalar_select %p22, %s23, %s24
    %p28 = pneg %p22
    %p29 = scmp.eq.s32.totalorder %s13, 1
    %p30 = por %p28, %p29
    %p31 = scmp.ne.s32.totalorder %s23, %s26
    %p32 = scmp.eq.s32.totalorder %s13, 0
    %p33 = por %p31, %p32
    %p34 = scmp.ne.s32.totalorder %s23, %s26
    %p35 = scmp.eq.s32.totalorder %s18, 1
    %p36 = por %p34, %p35
    %p37 = scmp.ne.s32.totalorder %s26, %s27
    %p38 = scmp.eq.s32.totalorder %s18, 0
    %p39 = por %p37, %p38
    %p40 = scmp.ne.s32.totalorder %s26, %s27
    %p41 = scmp.eq.s32.totalorder %s19, 1
    %p42 = por %p40, %p41
    %p44 = scmp.ne.s32.totalorder %s27, %s43
    %p45 = scmp.eq.s32.totalorder %s19, 0
    %p46 = por %p44, %p45
    %s48 = sadd.s32 %s47, 1
    %p51 = scmp.eq.s32.totalorder %s13, 1
    %p52 = scmp.ne.s32.totalorder %s47, %s49
    %p53 = scmp.eq.s32.totalorder %s13, 0
    %p54 = por %p52, %p53
    %p55 = scmp.ne.s32.totalorder %s47, %s49
    %p56 = scmp.eq.s32.totalorder %s18, 1
    %p57 = por %p55, %p56
    %p58 = scmp.ne.s32.totalorder %s49, %s50
    %p59 = scmp.eq.s32.totalorder %s18, 0
    %p60 = por %p58, %p59
    %p61 = scmp.ne.s32.totalorder %s49, %s50
    %p62 = scmp.eq.s32.totalorder %s19, 1
    %p63 = por %p61, %p62
    %p65 = scmp.ne.s32.totalorder %s50, %s64
    %p66 = scmp.eq.s32.totalorder %s19, 0
    %p67 = por %p65, %p66
    %s69 = sadd.s32 %s68, 1
    %p72 = scmp.eq.s32.totalorder %s13, 1
    %p73 = scmp.ne.s32.totalorder %s68, %s70
    %p74 = scmp.eq.s32.totalorder %s13, 0
    %p75 = por %p73, %p74
    %p76 = scmp.ne.s32.totalorder %s68, %s70
    %p77 = scmp.eq.s32.totalorder %s18, 1
    %p78 = por %p76, %p77
    %p79 = scmp.ne.s32.totalorder %s70, %s71
    %p80 = scmp.eq.s32.totalorder %s18, 0
    %p81 = por %p79, %p80
    %p82 = scmp.ne.s32.totalorder %s70, %s71
    %p83 = scmp.eq.s32.totalorder %s19, 1
    %p84 = por %p82, %p83
    %p86 = scmp.ne.s32.totalorder %s71, %s85
    %p87 = scmp.eq.s32.totalorder %s19, 0
    %p88 = por %p86, %p87
    %s90 = sadd.s32 %s89, 1
    %p93 = scmp.eq.s32.totalorder %s13, 1
    %p94 = scmp.ne.s32.totalorder %s89, %s91
    %p95 = scmp.eq.s32.totalorder %s13, 0
    %p96 = por %p94, %p95
    %p97 = scmp.ne.s32.totalorder %s89, %s91
    %p98 = scmp.eq.s32.totalorder %s18, 1
    %p99 = por %p97, %p98
    %p100 = scmp.ne.s32.totalorder %s91, %s92
    %p101 = scmp.eq.s32.totalorder %s18, 0
    %p102 = por %p100, %p101
    %p103 = scmp.ne.s32.totalorder %s91, %s92
    %p104 = scmp.eq.s32.totalorder %s19, 1
    %p105 = por %p103, %p104
    %p107 = scmp.ne.s32.totalorder %s92, %s106
    %p108 = scmp.eq.s32.totalorder %s19, 0
    %p109 = por %p107, %p108
    %s111 = sadd.s32 %s110, 1
    %p114 = scmp.eq.s32.totalorder %s13, 1
    %p115 = scmp.ne.s32.totalorder %s110, %s112
    %p116 = scmp.eq.s32.totalorder %s13, 0
    %p117 = por %p115, %p116
    %p118 = scmp.ne.s32.totalorder %s110, %s112
    %p119 = scmp.eq.s32.totalorder %s18, 1
    %p120 = por %p118, %p119
    %p121 = scmp.ne.s32.totalorder %s112, %s113
    %p122 = scmp.eq.s32.totalorder %s18, 0
    %p123 = por %p121, %p122
    %p124 = scmp.ne.s32.totalorder %s112, %s113
    %p125 = scmp.eq.s32.totalorder %s19, 1
    %p126 = por %p124, %p125
    %p128 = scmp.ne.s32.totalorder %s113, %s127
    %p129 = scmp.eq.s32.totalorder %s19, 0
    %p130 = por %p128, %p129
    %s132 = sadd.s32 %s131, 1
    %p135 = scmp.eq.s32.totalorder %s13, 1
    %p136 = scmp.ne.s32.totalorder %s131, %s133
    %p137 = scmp.eq.s32.totalorder %s13, 0
    %p138 = por %p136, %p137
    %p139 = scmp.ne.s32.totalorder %s131, %s133
    %p140 = scmp.eq.s32.totalorder %s18, 1
    %p141 = por %p139, %p140
    %p142 = scmp.ne.s32.totalorder %s133, %s134
    %p143 = scmp.eq.s32.totalorder %s18, 0
    %p144 = por %p142, %p143
    %p145 = scmp.ne.s32.totalorder %s133, %s134
    %p146 = scmp.eq.s32.totalorder %s19, 1
    %p147 = por %p145, %p146
    %p149 = scmp.ne.s32.totalorder %s134, %s148
    %p150 = scmp.eq.s32.totalorder %s19, 0
    %p151 = por %p149, %p150
    %s153 = sadd.s32 %s152, 1
    %p156 = scmp.eq.s32.totalorder %s13, 1
    %p157 = scmp.ne.s32.totalorder %s152, %s154
    %p158 = scmp.eq.s32.totalorder %s13, 0
    %p159 = por %p157, %p158
    %p160 = scmp.ne.s32.totalorder %s152, %s154
    %p161 = scmp.eq.s32.totalorder %s18, 1
    %p162 = por %p160, %p161
    %p163 = scmp.ne.s32.totalorder %s154, %s155
    %p164 = scmp.eq.s32.totalorder %s18, 0
    %p165 = por %p163, %p164
    %p166 = scmp.ne.s32.totalorder %s154, %s155
    %p167 = scmp.eq.s32.totalorder %s19, 1
    %p168 = por %p166, %p167
    %p170 = scmp.ne.s32.totalorder %s155, %s169
    %p171 = scmp.eq.s32.totalorder %s19, 0
    %p172 = por %p170, %p171
    %s173 = ssub.s32 %s13, %s20
    %p174 = scmp.eq.s32.totalorder %s173, 0
    %s176 = sadd.s32 %s175, 1
    %s177 = scalar_select %p174, %s175, %s176
    %p180 = pneg %p174
    %p181 = scmp.eq.s32.totalorder %s13, 1
    %p182 = por %p180, %p181
    %p183 = scmp.ne.s32.totalorder %s175, %s178
    %p184 = scmp.eq.s32.totalorder %s13, 0
    %p185 = por %p183, %p184
    %p186 = scmp.ne.s32.totalorder %s175, %s178
    %p187 = scmp.eq.s32.totalorder %s18, 1
    %p188 = por %p186, %p187
    %p189 = scmp.ne.s32.totalorder %s178, %s179
    %p190 = scmp.eq.s32.totalorder %s18, 0
    %p191 = por %p189, %p190
    %p192 = scmp.ne.s32.totalorder %s178, %s179
    %p193 = scmp.eq.s32.totalorder %s19, 1
    %p194 = por %p192, %p193
    %p196 = scmp.ne.s32.totalorder %s179, %s195
    %p197 = scmp.eq.s32.totalorder %s19, 0
    %p198 = por %p196, %p197
    %p199 = scmp.le.s32.totalorder 1, %s13
    %p200 = scmp.lt.s32.totalorder %s13, 3
    %p201 = pnand %p199, %p200
    %p202 = pneg %p201
    // Predicated region
    $region9: #{transformer_gen.13} parent=5 // pred_check
      _
    $region10: #{transformer_gen.13} parent=5 // pred_check_branch
      %204 = sbr.rel (%p201) target = $region12
    $region11: #{transformer_gen.13} parent=5 // pred_region
      %s205 = ssub.s32 %s13, 1
      // Predicated region
      $region13: #{transformer_gen.13} parent=11 // pred_check
        %p206 = pneg %p60
      $region14: #{transformer_gen.13} parent=11 // pred_check_branch
        %208 = sbr.rel (%p206) target = $region16
      $region15: #{transformer_gen.13} parent=11 // pred_region
        _
      $region16: #{transformer_gen.13} parent=11 // pred_fallthru
        _
      // Predicated region
      $region17: #{transformer_gen.13} parent=11 // pred_check
        %p209 = pneg %p81
      $region18: #{transformer_gen.13} parent=11 // pred_check_branch
        %211 = sbr.rel (%p209) target = $region20
      $region19: #{transformer_gen.13} parent=11 // pred_region
        _
      $region20: #{transformer_gen.13} parent=11 // pred_fallthru
        _
      // Predicated region
      $region21: #{transformer_gen.13} parent=11 // pred_check
        %p212 = pneg %p102
      $region22: #{transformer_gen.13} parent=11 // pred_check_branch
        %214 = sbr.rel (%p212) target = $region24
      $region23: #{transformer_gen.13} parent=11 // pred_region
        _
      $region24: #{transformer_gen.13} parent=11 // pred_fallthru
        _
      // Predicated region
      $region25: #{transformer_gen.13} parent=11 // pred_check
        %p215 = pneg %p123
      $region26: #{transformer_gen.13} parent=11 // pred_check_branch
        %217 = sbr.rel (%p215) target = $region28
      $region27: #{transformer_gen.13} parent=11 // pred_region
        _
      $region28: #{transformer_gen.13} parent=11 // pred_fallthru
        _
      // Predicated region
      $region29: #{transformer_gen.13} parent=11 // pred_check
        %p218 = pneg %p144
      $region30: #{transformer_gen.13} parent=11 // pred_check_branch
        %220 = sbr.rel (%p218) target = $region32
      $region31: #{transformer_gen.13} parent=11 // pred_region
        _
      $region32: #{transformer_gen.13} parent=11 // pred_fallthru
        _
      // Predicated region
      $region33: #{transformer_gen.13} parent=11 // pred_check
        %p221 = pneg %p165
      $region34: #{transformer_gen.13} parent=11 // pred_check_branch
        %223 = sbr.rel (%p221) target = $region36
      $region35: #{transformer_gen.13} parent=11 // pred_region
        _
      $region36: #{transformer_gen.13} parent=11 // pred_fallthru
        _
    $region12: #{transformer_gen.13} parent=5 // pred_fallthru
      _
    %p224 = scmp.lt.s32.totalorder %s13, 2
    // Predicated region
    $region37: #{transformer_gen.13} parent=5 // pred_check
      %p225 = pneg %p224
    $region38: #{transformer_gen.13} parent=5 // pred_check_branch
      %227 = sbr.rel (%p225) target = $region40
    $region39: #{transformer_gen.13} parent=5 // pred_region
      // Predicated region
      $region41: #{transformer_gen.13} parent=39 // pred_check
        %p228 = pneg %p33
      $region42: #{transformer_gen.13} parent=39 // pred_check_branch
        %230 = sbr.rel (%p228) target = $region44
      $region43: #{transformer_gen.13} parent=39 // pred_region
        %p231 = scmp.lt.s32.totalorder %s13, 1
        %s232 = scalar_select %p231, %s13, 1
        %s233 = smul.addr %s232, 2
        %s234 = smul.addr %s233, 4
        %s235 = scalar_lea.vmem %s0, %s234
      $region44: #{transformer_gen.13} parent=39 // pred_fallthru
        _
    $region40: #{transformer_gen.13} parent=5 // pred_fallthru
      _
    %p236 = scmp.le.s32.totalorder 1, %s13
    %p237 = scmp.lt.s32.totalorder %s13, 3
    %p238 = pnand %p236, %p237
    %p239 = pneg %p238
    // Predicated region
    $region45: #{transformer_gen.13} parent=5 // pred_check
      _
    $region46: #{transformer_gen.13} parent=5 // pred_check_branch
      %241 = sbr.rel (%p238) target = $region48
    $region47: #{transformer_gen.13} parent=5 // pred_region
      %s242 = ssub.s32 %s13, 1
      %p243 = scmp.lt.s32.totalorder %s18, 1
      %s244 = scalar_select %p243, %s18, 1
      %s245 = smul.addr %s244, 2
      %s246 = smul.addr %s245, 4
      %s247 = scalar_lea.vmem %s0, %s246
      %p248 = pneg %p39
      %p249 = pneg %p36
      %p250 = pneg %p60
      %p251 = pneg %p57
      %p252 = pneg %p81
      %p253 = pneg %p78
      %p254 = pneg %p102
      %p255 = pneg %p99
      %p256 = pneg %p123
      %p257 = pneg %p120
      %p258 = pneg %p144
      %p259 = pneg %p141
      %p260 = pneg %p165
      %p261 = pneg %p162
      %p262 = pneg %p191
      %p263 = pneg %p188
      %p264 = scmp.lt.s32.totalorder %s18, 1
      %s265 = scalar_select %p264, %s18, 1
      %s266 = smul.addr %s265, 2
      %s267 = smul.addr %s266, 4
      %s268 = scalar_lea.vmem %s7, %s267
      %p269 = scmp.lt.s32.totalorder %s18, 1
      %s270 = scalar_select %p269, %s18, 1
      %s271 = smul.addr %s270, 2
      %s272 = smul.addr %s271, 4
      %s273 = scalar_lea.vmem %s0, %s272
      %p274 = scmp.lt.s32.totalorder %s18, 1
      %s275 = scalar_select %p274, %s18, 1
      %s276 = smul.addr %s275, 2
      %s277 = smul.addr %s276, 4
      %s278 = scalar_lea.vmem %s7, %s277
      %v280 = vld [vmem:[%s273] sm:$0xf]
      %v281 = vld [vmem:[%s273 + $0x4] sm:$0xf]
      %v282 = vld [vmem:[%s1] sm:$0xff]
      %v283 = vld [vmem:[%s1 + $0x8] sm:$0xf]
      %v284 = vld [vmem:[%s1 + $0xc] sm:$0xff]
      %v285 = vld [vmem:[%s1 + $0x14] sm:$0xf]
      %v286 = vld [vmem:[%s1 + $0x18] sm:$0xff]
      %v287 = vld [vmem:[%s1 + $0x20] sm:$0xf]
      %v288 = vld [vmem:[%s1 + $0x24] sm:$0xff]
      %v289 = vld [vmem:[%s1 + $0x2c] sm:$0xf]
      %v290 = vld [vmem:[%s1 + $0x30] sm:$0xff]
      %v291 = vld [vmem:[%s1 + $0x38] sm:$0xf]
      %v292 = vld [vmem:[%s1 + $0x3c] sm:$0xff]
      %v293 = vld [vmem:[%s1 + $0x44] sm:$0xf]
      %v294 = vld [vmem:[%s1 + $0x48] sm:$0xff]
      %v295 = vld [vmem:[%s1 + $0x50] sm:$0xf]
      %v296 = vld [vmem:[%s1 + $0x54] sm:$0xff]
      %v297 = vld [vmem:[%s1 + $0x5c] sm:$0xf]
      %v298 = vld [vmem:[%s1 + $0x60] sm:$0xff]
      %v299 = vld [vmem:[%s1 + $0x68] sm:$0xf]
      %v300 = vld [vmem:[%s1 + $0x6c] sm:$0xff]
      %v301 = vld [vmem:[%s1 + $0x74] sm:$0xf]
      %v302 = vld [vmem:[%s1 + $0x78] sm:$0xff]
      %v303 = vld [vmem:[%s1 + $0x80] sm:$0xf]
      %v304 = vld [vmem:[%s1 + $0x84] sm:$0xff]
      %v305 = vld [vmem:[%s1 + $0x8c] sm:$0xf]
      %v306 = vld [vmem:[%s1 + $0x90] sm:$0xff]
      %v307 = vld [vmem:[%s1 + $0x98] sm:$0xf]
      %v308 = vld [vmem:[%s1 + $0x9c] sm:$0xff]
      %v309 = vld [vmem:[%s1 + $0xa4] sm:$0xf]
      %v310 = vld [vmem:[%s1 + $0xa8] sm:$0xff]
      %v311 = vld [vmem:[%s1 + $0xb0] sm:$0xf]
      %v312 = vld [vmem:[%s1 + $0xb4] sm:$0xff]
      %v313 = vld [vmem:[%s1 + $0xbc] sm:$0xf]
      %v314 = vld [vmem:[%s2] sm:$0x7]
      %v316 = vlaneseq
      %v317 = vshrl.u32 %v316, 7
      %v318 = vsub.s32 0, %v317
      %v319 = vrot.slane %v314, %v318
      %v320 = vlaneseq
      %v321 = vshrl.u32 %v320, 7
      %v322 = vsub.s32 1, %v321
      %v323 = vrot.slane %v314, %v322
      %v324 = vlaneseq
      %v325 = vshrl.u32 %v324, 7
      %v326 = vsub.s32 2, %v325
      %v327 = vrot.slane %v314, %v326
      %v333 = vunpack.c.l.b16 %v280
      %v334 = vunpack.c.l.b16 %v281
      %v335 = vpack.c.b16 %v334, %v333
      %v369 = vunpack.c.l.b16 %v282
      %v370 = vunpack.c.h.b16 %v282
      %v371 = vunpack.c.l.b16 %v283
      %v372 = vunpack.c.l.b16 %v284
      %v373 = vunpack.c.h.b16 %v284
      %v374 = vunpack.c.l.b16 %v285
      %v375 = vunpack.c.l.b16 %v286
      %v376 = vunpack.c.h.b16 %v286
      %v377 = vunpack.c.l.b16 %v287
      %v378 = vunpack.c.l.b16 %v288
      %v379 = vunpack.c.h.b16 %v288
      %v380 = vunpack.c.l.b16 %v289
      %v381 = vunpack.c.l.b16 %v290
      %v382 = vunpack.c.h.b16 %v290
      %v383 = vunpack.c.l.b16 %v291
      %v384 = vunpack.c.l.b16 %v292
      %v385 = vunpack.c.h.b16 %v292
      %v386 = vunpack.c.l.b16 %v293
      %v387 = vunpack.c.l.b16 %v294
      %v388 = vunpack.c.h.b16 %v294
      %v389 = vunpack.c.l.b16 %v295
      %v390 = vunpack.c.l.b16 %v296
      %v391 = vunpack.c.h.b16 %v296
      %v392 = vunpack.c.l.b16 %v297
      %v393 = vunpack.c.l.b16 %v298
      %v394 = vunpack.c.h.b16 %v298
      %v395 = vunpack.c.l.b16 %v299
      %v396 = vunpack.c.l.b16 %v300
      %v397 = vunpack.c.h.b16 %v300
      %v398 = vunpack.c.l.b16 %v301
      %v399 = vunpack.c.l.b16 %v302
      %v400 = vunpack.c.h.b16 %v302
      %v401 = vunpack.c.l.b16 %v303
      %v402 = vunpack.c.l.b16 %v304
      %v403 = vunpack.c.h.b16 %v304
      %v404 = vunpack.c.l.b16 %v305
      %v405 = vunpack.c.l.b16 %v306
      %v406 = vunpack.c.h.b16 %v306
      %v407 = vunpack.c.l.b16 %v307
      %v408 = vunpack.c.l.b16 %v308
      %v409 = vunpack.c.h.b16 %v308
      %v410 = vunpack.c.l.b16 %v309
      %v411 = vunpack.c.l.b16 %v310
      %v412 = vunpack.c.h.b16 %v310
      %v413 = vunpack.c.l.b16 %v311
      %v414 = vunpack.c.l.b16 %v312
      %v415 = vunpack.c.h.b16 %v312
      %v416 = vunpack.c.l.b16 %v313
      %v417 = vpack.c.b16 %v372, %v369
      %v418 = vpack.c.b16 %v373, %v370
      %v419 = vpack.c.b16 %v374, %v371
      %v420 = vpack.c.b16 %v378, %v375
      %v421 = vpack.c.b16 %v379, %v376
      %v422 = vpack.c.b16 %v380, %v377
      %v423 = vpack.c.b16 %v384, %v381
      %v424 = vpack.c.b16 %v385, %v382
      %v425 = vpack.c.b16 %v386, %v383
      %v426 = vpack.c.b16 %v390, %v387
      %v427 = vpack.c.b16 %v391, %v388
      %v428 = vpack.c.b16 %v392, %v389
      %v429 = vpack.c.b16 %v396, %v393
      %v430 = vpack.c.b16 %v397, %v394
      %v431 = vpack.c.b16 %v398, %v395
      %v432 = vpack.c.b16 %v402, %v399
      %v433 = vpack.c.b16 %v403, %v400
      %v434 = vpack.c.b16 %v404, %v401
      %v435 = vpack.c.b16 %v408, %v405
      %v436 = vpack.c.b16 %v409, %v406
      %v437 = vpack.c.b16 %v410, %v407
      %v438 = vpack.c.b16 %v414, %v411
      %v439 = vpack.c.b16 %v415, %v412
      %v440 = vpack.c.b16 %v416, %v413
      %465 = vmatprep.subr.bf16.mxu0 %v418
      %466 = vmatpush1.bf16.msra.mxu0 %v417
      %467 = vmatprep.subr.bf16.mxu0 %v421
      %468 = vmatpush1.bf16.msra.mxu0 %v420
      %469 = vmatprep.subr.bf16.mxu0 %v424
      %470 = vmatpush1.bf16.msra.mxu0 %v423
      %471 = vmatprep.subr.bf16.mxu0 %v427
      %472 = vmatpush1.bf16.msra.mxu0 %v426
      %473 = vmatprep.subr.bf16.mxu0 %v430
      %474 = vmatpush1.bf16.msra.mxu0 %v429
      %475 = vmatprep.subr.bf16.mxu0 %v433
      %476 = vmatpush1.bf16.msra.mxu0 %v432
      %477 = vmatprep.subr.bf16.mxu0 %v436
      %478 = vmatpush1.bf16.msra.mxu0 %v435
      %479 = vmatprep.subr.bf16.mxu0 %v439
      %480 = vmatpush1.bf16.msra.mxu0 %v438
      %481 = vmatprep.subr.bf16.mxu0 0
      %482 = vmatpush1.bf16.msra.mxu0 0
      %483 = vmatprep.subr.bf16.mxu0 0
      %484 = vmatpush1.bf16.msra.mxu0 0
      %485 = vmatprep.subr.bf16.mxu0 0
      %486 = vmatpush1.bf16.msra.mxu0 0
      %487 = vmatprep.subr.bf16.mxu0 0
      %488 = vmatpush1.bf16.msra.mxu0 0
      %489 = vmatprep.subr.bf16.mxu0 0
      %490 = vmatpush1.bf16.msra.mxu0 0
      %491 = vmatprep.subr.bf16.mxu0 0
      %492 = vmatpush1.bf16.msra.mxu0 0
      %493 = vmatprep.subr.bf16.mxu0 0
      %494 = vmatpush1.bf16.msra.mxu0 0
      %495 = vmatprep.subr.bf16.mxu0 0
      %496 = vmatpush1.bf16.msra.mxu0 0
      %497 = vmatprep.mubr.bf16.mxu0 0
      %498 = vmatmul.mubr.bf16.gmra.mrb[0].mxu0 %v335
      %v499 = vpop.f32.mrb[0].mxu0
      %v500 = vadd.f32 %v319, %v499
      %v501 = vpop.f32.mrb[0].mxu0
      %v502 = vadd.f32 %v323, %v501
      %v503 = vpop.f32.mrb[0].mxu0
      %v504 = vadd.f32 %v319, %v503
      %v505 = vpop.f32.mrb[0].mxu0
      %v506 = vadd.f32 %v323, %v505
      %507 = vdwg.mxu0
      %508 = vmatprep.subr.bf16.mxu0 0
      %509 = vmatpush1.bf16.msra.mxu0 %v419
      %510 = vmatprep.subr.bf16.mxu0 0
      %511 = vmatpush1.bf16.msra.mxu0 %v422
      %512 = vmatprep.subr.bf16.mxu0 0
      %513 = vmatpush1.bf16.msra.mxu0 %v425
      %514 = vmatprep.subr.bf16.mxu0 0
      %515 = vmatpush1.bf16.msra.mxu0 %v428
      %516 = vmatprep.subr.bf16.mxu0 0
      %517 = vmatpush1.bf16.msra.mxu0 %v431
      %518 = vmatprep.subr.bf16.mxu0 0
      %519 = vmatpush1.bf16.msra.mxu0 %v434
      %520 = vmatprep.subr.bf16.mxu0 0
      %521 = vmatpush1.bf16.msra.mxu0 %v437
      %522 = vmatprep.subr.bf16.mxu0 0
      %523 = vmatpush1.bf16.msra.mxu0 %v440
      %524 = vmatprep.subr.bf16.mxu0 0
      %525 = vmatpush1.bf16.msra.mxu0 0
      %526 = vmatprep.subr.bf16.mxu0 0
      %527 = vmatpush1.bf16.msra.mxu0 0
      %528 = vmatprep.subr.bf16.mxu0 0
      %529 = vmatpush1.bf16.msra.mxu0 0
      %530 = vmatprep.subr.bf16.mxu0 0
      %531 = vmatpush1.bf16.msra.mxu0 0
      %532 = vmatprep.subr.bf16.mxu0 0
      %533 = vmatpush1.bf16.msra.mxu0 0
      %534 = vmatprep.subr.bf16.mxu0 0
      %535 = vmatpush1.bf16.msra.mxu0 0
      %536 = vmatprep.subr.bf16.mxu0 0
      %537 = vmatpush1.bf16.msra.mxu0 0
      %538 = vmatprep.subr.bf16.mxu0 0
      %539 = vmatpush1.bf16.msra.mxu0 0
      %540 = vmatprep.mubr.bf16.mxu0 0
      %541 = vmatmul.mubr.bf16.gmra.mrb[0].mxu0 %v335
      %v542 = vpop.f32.mrb[0].mxu0
      %v543 = vadd.f32 %v327, %v542
      %v544 = vpop.f32.mrb[0].mxu0
      %v545 = vpop.f32.mrb[0].mxu0
      %v546 = vadd.f32 %v327, %v545
      %v547 = vpop.f32.mrb[0].mxu0
      %548 = vdwg.mxu0
      %v549 = vpack.c.bf16 %v504, %v500
      %v550 = vpack.c.bf16 %v506, %v502
      %v551 = vpack.c.bf16 %v546, %v543
      %v552 = vld [vmem:[%s3] sm:$0xf]
      %v553 = vld [vmem:[%s3 + $0x4] sm:$0xf]
      %v554 = vld [vmem:[%s3 + $0x8] sm:$0xf]
      %v555 = vld [vmem:[%s3 + $0xc] sm:$0xf]
      %v556 = vld [vmem:[%s3 + $0x10] sm:$0xf]
      %v557 = vld [vmem:[%s3 + $0x14] sm:$0xf]
      %v558 = vld [vmem:[%s3 + $0x18] sm:$0xf]
      %v559 = vld [vmem:[%s3 + $0x1c] sm:$0xf]
      %v560 = vld [vmem:[%s3 + $0x20] sm:$0xf]
      %v561 = vld [vmem:[%s3 + $0x24] sm:$0xf]
      %v562 = vld [vmem:[%s3 + $0x28] sm:$0xf]
      %v563 = vld [vmem:[%s3 + $0x2c] sm:$0xf]
      %v564 = vld [vmem:[%s3 + $0x30] sm:$0xf]
      %v565 = vld [vmem:[%s3 + $0x34] sm:$0xf]
      %v566 = vld [vmem:[%s3 + $0x38] sm:$0xf]
      %v567 = vld [vmem:[%s3 + $0x3c] sm:$0xf]
      %v568 = vld [vmem:[%s4] sm:$0x1]
      %vm569 = vcmask 261120
      %v571 = vsel %vm569, %v549, 0
      %v574 = vsel %vm569, %v550, 0
      %576 = vmatprep.subr.bf16.mxu0 0
      %577 = vmatpush1.bf16.xpose.msra.mxu0 %v574
      %578 = vmatprep.subr.bf16.mxu0 0
      %579 = vmatpush1.bf16.xpose.msra.mxu0 0
      %580 = vmatprep.subr.bf16.mxu0 0
      %581 = vmatpush1.bf16.xpose.msra.mxu0 0
      %582 = vmatprep.subr.bf16.mxu0 0
      %583 = vmatpush1.bf16.xpose.msra.mxu0 0
      %584 = vmatprep.subr.bf16.mxu0 0
      %585 = vmatpush1.bf16.xpose.msra.mxu0 0
      %586 = vmatprep.subr.bf16.mxu0 0
      %587 = vmatpush1.bf16.xpose.msra.mxu0 0
      %588 = vmatprep.subr.bf16.mxu0 0
      %589 = vmatpush1.bf16.xpose.msra.mxu0 0
      %590 = vmatprep.subr.bf16.mxu0 0
      %591 = vmatpush1.bf16.xpose.msra.mxu0 0
      %592 = vmatprep.subr.bf16.mxu0 0
      %593 = vmatpush1.bf16.xpose.msra.mxu0 0
      %594 = vmatprep.subr.bf16.mxu0 0
      %595 = vmatpush1.bf16.xpose.msra.mxu0 0
      %596 = vmatprep.subr.bf16.mxu0 0
      %597 = vmatpush1.bf16.xpose.msra.mxu0 0
      %598 = vmatprep.subr.bf16.mxu0 0
      %599 = vmatpush1.bf16.xpose.msra.mxu0 0
      %600 = vmatprep.subr.bf16.mxu0 0
      %601 = vmatpush1.bf16.xpose.msra.mxu0 0
      %602 = vmatprep.subr.bf16.mxu0 0
      %603 = vmatpush1.bf16.xpose.msra.mxu0 0
      %604 = vmatprep.subr.bf16.mxu0 0
      %605 = vmatpush1.bf16.xpose.msra.mxu0 0
      %606 = vmatprep.subr.bf16.mxu0 0
      %607 = vmatpush1.bf16.xpose.msra.mxu0 0
      %608 = vmatprep.mubr.bf16.mxu0 0
      %609 = vmatmul.mubr.bf16.gmra.mrb[0].mxu0 %v571
      %v610 = vpop.f32.mrb[0].mxu0
      %v611 = vadd.f32 0.0, %v610
      %v612 = vpop.f32.mrb[0].mxu0
      %v613 = vpop.f32.mrb[0].mxu0
      %v614 = vadd.f32 0.0, %v613
      %v615 = vpop.f32.mrb[0].mxu0
      %616 = vdwg.mxu0
      %vm617 = vcmask 130048
      %v618 = vsel %vm617, %v611, -inf
      %619 = vmax.xlane.f32.xlu0 %v618
      %v620 = vpop.xlane.xlu0 %619
      %v621 = vsel %vm617, %v614, -inf
      %622 = vmax.xlane.f32.xlu0 %v621
      %v623 = vpop.xlane.xlu0 %622
      %v624 = vsub.f32 %v611, %v620
      %v625 = vsub.f32 %v614, %v623
      %v626 = vmul.f32 %v624, 1.442695
      %v627 = vpow.pop %v626
      %v628 = vmul.f32 %v625, 1.442695
      %v629 = vpow.pop %v628
      %v630 = vsel %vm617, %v627, 0.0
      %631 = vadd.xlane.f32.xlu0 %v630
      %v632 = vpop.xlane.xlu0 %631
      %v633 = vsel %vm617, %v629, 0.0
      %634 = vadd.xlane.f32.xlu0 %v633
      %v635 = vpop.xlane.xlu0 %634
      %v636 = vpack.c.bf16 %v629, %v627
      %v638 = vsel %vm617, %v636, 0
      %640 = vmatprep.subr.bf16.mxu0 0
      %641 = vmatpush1.bf16.msra.mxu0 %v551
      %642 = vmatprep.subr.bf16.mxu0 0
      %643 = vmatpush1.bf16.msra.mxu0 0
      %644 = vmatprep.subr.bf16.mxu0 0
      %645 = vmatpush1.bf16.msra.mxu0 0
      %646 = vmatprep.subr.bf16.mxu0 0
      %647 = vmatpush1.bf16.msra.mxu0 0
      %648 = vmatprep.subr.bf16.mxu0 0
      %649 = vmatpush1.bf16.msra.mxu0 0
      %650 = vmatprep.subr.bf16.mxu0 0
      %651 = vmatpush1.bf16.msra.mxu0 0
      %652 = vmatprep.subr.bf16.mxu0 0
      %653 = vmatpush1.bf16.msra.mxu0 0
      %654 = vmatprep.subr.bf16.mxu0 0
      %655 = vmatpush1.bf16.msra.mxu0 0
      %656 = vmatprep.subr.bf16.mxu0 0
      %657 = vmatpush1.bf16.msra.mxu0 0
      %658 = vmatprep.subr.bf16.mxu0 0
      %659 = vmatpush1.bf16.msra.mxu0 0
      %660 = vmatprep.subr.bf16.mxu0 0
      %661 = vmatpush1.bf16.msra.mxu0 0
      %662 = vmatprep.subr.bf16.mxu0 0
      %663 = vmatpush1.bf16.msra.mxu0 0
      %664 = vmatprep.subr.bf16.mxu0 0
      %665 = vmatpush1.bf16.msra.mxu0 0
      %666 = vmatprep.subr.bf16.mxu0 0
      %667 = vmatpush1.bf16.msra.mxu0 0
      %668 = vmatprep.subr.bf16.mxu0 0
      %669 = vmatpush1.bf16.msra.mxu0 0
      %670 = vmatprep.subr.bf16.mxu0 0
      %671 = vmatpush1.bf16.msra.mxu0 0
      %672 = vmatprep.mubr.bf16.mxu0 0
      %673 = vmatmul.mubr.bf16.gmra.mrb[0].mxu0 %v638
      %v674 = vpop.f32.mrb[0].mxu0
      %v675 = vadd.f32 0.0, %v674
      %v676 = vpop.f32.mrb[0].mxu0
      %v677 = vpop.f32.mrb[0].mxu0
      %v678 = vadd.f32 0.0, %v677
      %v679 = vpop.f32.mrb[0].mxu0
      %680 = vdwg.mxu0
      %v681 = vrcp.pop %v632
      %v682 = vrcp.pop %v635
      %v683 = vmul.f32 %v675, %v681
      %v684 = vmul.f32 %v678, %v682
      %v685 = vpack.c.bf16 %v684, %v683
      %687 = vrot.lane.b32.xlu0 %v549, 96
      %v688 = vpop.permute.xlu0 %687
      %690 = vrot.lane.b32.xlu0 %v550, 96
      %v691 = vpop.permute.xlu0 %690
      %v693 = vsel %vm569, %v688, 0
      %v696 = vsel %vm569, %v691, 0
      %698 = vmatprep.subr.bf16.mxu0 0
      %699 = vmatpush1.bf16.xpose.msra.mxu0 %v696
      %700 = vmatprep.subr.bf16.mxu0 0
      %701 = vmatpush1.bf16.xpose.msra.mxu0 0
      %702 = vmatprep.subr.bf16.mxu0 0
      %703 = vmatpush1.bf16.xpose.msra.mxu0 0
      %704 = vmatprep.subr.bf16.mxu0 0
      %705 = vmatpush1.bf16.xpose.msra.mxu0 0
      %706 = vmatprep.subr.bf16.mxu0 0
      %707 = vmatpush1.bf16.xpose.msra.mxu0 0
      %708 = vmatprep.subr.bf16.mxu0 0
      %709 = vmatpush1.bf16.xpose.msra.mxu0 0
      %710 = vmatprep.subr.bf16.mxu0 0
      %711 = vmatpush1.bf16.xpose.msra.mxu0 0
      %712 = vmatprep.subr.bf16.mxu0 0
      %713 = vmatpush1.bf16.xpose.msra.mxu0 0
      %714 = vmatprep.subr.bf16.mxu0 0
      %715 = vmatpush1.bf16.xpose.msra.mxu0 0
      %716 = vmatprep.subr.bf16.mxu0 0
      %717 = vmatpush1.bf16.xpose.msra.mxu0 0
      %718 = vmatprep.subr.bf16.mxu0 0
      %719 = vmatpush1.bf16.xpose.msra.mxu0 0
      %720 = vmatprep.subr.bf16.mxu0 0
      %721 = vmatpush1.bf16.xpose.msra.mxu0 0
      %722 = vmatprep.subr.bf16.mxu0 0
      %723 = vmatpush1.bf16.xpose.msra.mxu0 0
      %724 = vmatprep.subr.bf16.mxu0 0
      %725 = vmatpush1.bf16.xpose.msra.mxu0 0
      %726 = vmatprep.subr.bf16.mxu0 0
      %727 = vmatpush1.bf16.xpose.msra.mxu0 0
      %728 = vmatprep.subr.bf16.mxu0 0
      %729 = vmatpush1.bf16.xpose.msra.mxu0 0
      %730 = vmatprep.mubr.bf16.mxu0 0
      %731 = vmatmul.mubr.bf16.gmra.mrb[0].mxu0 %v693
      %v732 = vpop.f32.mrb[0].mxu0
      %v733 = vadd.f32 0.0, %v732
      %v734 = vpop.f32.mrb[0].mxu0
      %v735 = vpop.f32.mrb[0].mxu0
      %v736 = vadd.f32 0.0, %v735
      %v737 = vpop.f32.mrb[0].mxu0
      %738 = vdwg.mxu0
      %v739 = vsel %vm617, %v733, -inf
      %740 = vmax.xlane.f32.xlu0 %v739
      %v741 = vpop.xlane.xlu0 %740
      %v742 = vsel %vm617, %v736, -inf
      %743 = vmax.xlane.f32.xlu0 %v742
      %v744 = vpop.xlane.xlu0 %743
      %v745 = vsub.f32 %v733, %v741
      %v746 = vsub.f32 %v736, %v744
      %v747 = vmul.f32 %v745, 1.442695
      %v748 = vpow.pop %v747
      %v749 = vmul.f32 %v746, 1.442695
      %v750 = vpow.pop %v749
      %v751 = vsel %vm617, %v748, 0.0
      %752 = vadd.xlane.f32.xlu0 %v751
      %v753 = vpop.xlane.xlu0 %752
      %v754 = vsel %vm617, %v750, 0.0
      %755 = vadd.xlane.f32.xlu0 %v754
      %v756 = vpop.xlane.xlu0 %755
      %v757 = vpack.c.bf16 %v750, %v748
      %759 = vrot.lane.b32.xlu0 %v551, 96
      %v760 = vpop.permute.xlu0 %759
      %v763 = vsel %vm617, %v757, 0
      %765 = vmatprep.subr.bf16.mxu0 0
      %766 = vmatpush1.bf16.msra.mxu0 %v760
      %767 = vmatprep.subr.bf16.mxu0 0
      %768 = vmatpush1.bf16.msra.mxu0 0
      %769 = vmatprep.subr.bf16.mxu0 0
      %770 = vmatpush1.bf16.msra.mxu0 0
      %771 = vmatprep.subr.bf16.mxu0 0
      %772 = vmatpush1.bf16.msra.mxu0 0
      %773 = vmatprep.subr.bf16.mxu0 0
      %774 = vmatpush1.bf16.msra.mxu0 0
      %775 = vmatprep.subr.bf16.mxu0 0
      %776 = vmatpush1.bf16.msra.mxu0 0
      %777 = vmatprep.subr.bf16.mxu0 0
      %778 = vmatpush1.bf16.msra.mxu0 0
      %779 = vmatprep.subr.bf16.mxu0 0
      %780 = vmatpush1.bf16.msra.mxu0 0
      %781 = vmatprep.subr.bf16.mxu0 0
      %782 = vmatpush1.bf16.msra.mxu0 0
      %783 = vmatprep.subr.bf16.mxu0 0
      %784 = vmatpush1.bf16.msra.mxu0 0
      %785 = vmatprep.subr.bf16.mxu0 0
      %786 = vmatpush1.bf16.msra.mxu0 0
      %787 = vmatprep.subr.bf16.mxu0 0
      %788 = vmatpush1.bf16.msra.mxu0 0
      %789 = vmatprep.subr.bf16.mxu0 0
      %790 = vmatpush1.bf16.msra.mxu0 0
      %791 = vmatprep.subr.bf16.mxu0 0
      %792 = vmatpush1.bf16.msra.mxu0 0
      %793 = vmatprep.subr.bf16.mxu0 0
      %794 = vmatpush1.bf16.msra.mxu0 0
      %795 = vmatprep.subr.bf16.mxu0 0
      %796 = vmatpush1.bf16.msra.mxu0 0
      %797 = vmatprep.mubr.bf16.mxu0 0
      %798 = vmatmul.mubr.bf16.gmra.mrb[0].mxu0 %v763
      %v799 = vpop.f32.mrb[0].mxu0
      %v800 = vadd.f32 0.0, %v799
      %v801 = vpop.f32.mrb[0].mxu0
      %v802 = vpop.f32.mrb[0].mxu0
      %v803 = vadd.f32 0.0, %v802
      %v804 = vpop.f32.mrb[0].mxu0
      %805 = vdwg.mxu0
      %v806 = vrcp.pop %v753
      %v807 = vrcp.pop %v756
      %v808 = vmul.f32 %v800, %v806
      %v809 = vmul.f32 %v803, %v807
      %v810 = vpack.c.bf16 %v809, %v808
      %v815 = vunpack.c.l.b16 %v556
      %v816 = vunpack.c.l.b16 %v557
      %v817 = vunpack.c.l.b16 %v558
      %v818 = vunpack.c.l.b16 %v559
      %v819 = vpack.c.b16 %v816, %v815
      %v820 = vpack.c.b16 %v818, %v817
      %v824 = vsel %vm569, %v810, 0
      %826 = vmatprep.subr.bf16.mxu0 0
      %827 = vmatpush1.bf16.msra.mxu0 %v819
      %828 = vmatprep.subr.bf16.mxu0 0
      %829 = vmatpush1.bf16.msra.mxu0 %v820
      %830 = vmatprep.subr.bf16.mxu0 0
      %831 = vmatpush1.bf16.msra.mxu0 0
      %832 = vmatprep.subr.bf16.mxu0 0
      %833 = vmatpush1.bf16.msra.mxu0 0
      %834 = vmatprep.subr.bf16.mxu0 0
      %835 = vmatpush1.bf16.msra.mxu0 0
      %836 = vmatprep.subr.bf16.mxu0 0
      %837 = vmatpush1.bf16.msra.mxu0 0
      %838 = vmatprep.subr.bf16.mxu0 0
      %839 = vmatpush1.bf16.msra.mxu0 0
      %840 = vmatprep.subr.bf16.mxu0 0
      %841 = vmatpush1.bf16.msra.mxu0 0
      %842 = vmatprep.subr.bf16.mxu0 0
      %843 = vmatpush1.bf16.msra.mxu0 0
      %844 = vmatprep.subr.bf16.mxu0 0
      %845 = vmatpush1.bf16.msra.mxu0 0
      %846 = vmatprep.subr.bf16.mxu0 0
      %847 = vmatpush1.bf16.msra.mxu0 0
      %848 = vmatprep.subr.bf16.mxu0 0
      %849 = vmatpush1.bf16.msra.mxu0 0
      %850 = vmatprep.subr.bf16.mxu0 0
      %851 = vmatpush1.bf16.msra.mxu0 0
      %852 = vmatprep.subr.bf16.mxu0 0
      %853 = vmatpush1.bf16.msra.mxu0 0
      %854 = vmatprep.subr.bf16.mxu0 0
      %855 = vmatpush1.bf16.msra.mxu0 0
      %856 = vmatprep.subr.bf16.mxu0 0
      %857 = vmatpush1.bf16.msra.mxu0 0
      %858 = vmatprep.mubr.bf16.mxu0 0
      %859 = vmatmul.mubr.bf16.gmra.mrb[0].mxu0 %v824
      %v860 = vpop.f32.mrb[0].mxu0
      %v861 = vadd.f32 0.0, %v860
      %v862 = vpop.f32.mrb[0].mxu0
      %v863 = vpop.f32.mrb[0].mxu0
      %v864 = vadd.f32 0.0, %v863
      %v865 = vpop.f32.mrb[0].mxu0
      %866 = vdwg.mxu0
      %v871 = vunpack.c.l.b16 %v552
      %v872 = vunpack.c.l.b16 %v553
      %v873 = vunpack.c.l.b16 %v554
      %v874 = vunpack.c.l.b16 %v555
      %v875 = vpack.c.b16 %v872, %v871
      %v876 = vpack.c.b16 %v874, %v873
      %v880 = vsel %vm569, %v685, 0
      %882 = vmatprep.subr.bf16.mxu0 0
      %883 = vmatpush1.bf16.msra.mxu0 %v875
      %884 = vmatprep.subr.bf16.mxu0 0
      %885 = vmatpush1.bf16.msra.mxu0 %v876
      %886 = vmatprep.subr.bf16.mxu0 0
      %887 = vmatpush1.bf16.msra.mxu0 0
      %888 = vmatprep.subr.bf16.mxu0 0
      %889 = vmatpush1.bf16.msra.mxu0 0
      %890 = vmatprep.subr.bf16.mxu0 0
      %891 = vmatpush1.bf16.msra.mxu0 0
      %892 = vmatprep.subr.bf16.mxu0 0
      %893 = vmatpush1.bf16.msra.mxu0 0
      %894 = vmatprep.subr.bf16.mxu0 0
      %895 = vmatpush1.bf16.msra.mxu0 0
      %896 = vmatprep.subr.bf16.mxu0 0
      %897 = vmatpush1.bf16.msra.mxu0 0
      %898 = vmatprep.subr.bf16.mxu0 0
      %899 = vmatpush1.bf16.msra.mxu0 0
      %900 = vmatprep.subr.bf16.mxu0 0
      %901 = vmatpush1.bf16.msra.mxu0 0
      %902 = vmatprep.subr.bf16.mxu0 0
      %903 = vmatpush1.bf16.msra.mxu0 0
      %904 = vmatprep.subr.bf16.mxu0 0
      %905 = vmatpush1.bf16.msra.mxu0 0
      %906 = vmatprep.subr.bf16.mxu0 0
      %907 = vmatpush1.bf16.msra.mxu0 0
      %908 = vmatprep.subr.bf16.mxu0 0
      %909 = vmatpush1.bf16.msra.mxu0 0
      %910 = vmatprep.subr.bf16.mxu0 0
      %911 = vmatpush1.bf16.msra.mxu0 0
      %912 = vmatprep.subr.bf16.mxu0 0
      %913 = vmatpush1.bf16.msra.mxu0 0
      %914 = vmatprep.mubr.bf16.mxu0 0
      %915 = vmatmul.mubr.bf16.gmra.mrb[0].mxu0 %v880
      %v916 = vpop.f32.mrb[0].mxu0
      %v917 = vadd.f32 %v861, %v916
      %v918 = vpop.f32.mrb[0].mxu0
      %v919 = vpop.f32.mrb[0].mxu0
      %v920 = vadd.f32 %v864, %v919
      %v921 = vpop.f32.mrb[0].mxu0
      %922 = vdwg.mxu0
      %923 = vrot.lane.b32.xlu0 %v549, 64
      %v924 = vpop.permute.xlu0 %923
      %925 = vrot.lane.b32.xlu0 %v550, 64
      %v926 = vpop.permute.xlu0 %925
      %v928 = vsel %vm569, %v924, 0
      %v931 = vsel %vm569, %v926, 0
      %933 = vmatprep.subr.bf16.mxu0 0
      %934 = vmatpush1.bf16.xpose.msra.mxu0 %v931
      %935 = vmatprep.subr.bf16.mxu0 0
      %936 = vmatpush1.bf16.xpose.msra.mxu0 0
      %937 = vmatprep.subr.bf16.mxu0 0
      %938 = vmatpush1.bf16.xpose.msra.mxu0 0
      %939 = vmatprep.subr.bf16.mxu0 0
      %940 = vmatpush1.bf16.xpose.msra.mxu0 0
      %941 = vmatprep.subr.bf16.mxu0 0
      %942 = vmatpush1.bf16.xpose.msra.mxu0 0
      %943 = vmatprep.subr.bf16.mxu0 0
      %944 = vmatpush1.bf16.xpose.msra.mxu0 0
      %945 = vmatprep.subr.bf16.mxu0 0
      %946 = vmatpush1.bf16.xpose.msra.mxu0 0
      %947 = vmatprep.subr.bf16.mxu0 0
      %948 = vmatpush1.bf16.xpose.msra.mxu0 0
      %949 = vmatprep.subr.bf16.mxu0 0
      %950 = vmatpush1.bf16.xpose.msra.mxu0 0
      %951 = vmatprep.subr.bf16.mxu0 0
      %952 = vmatpush1.bf16.xpose.msra.mxu0 0
      %953 = vmatprep.subr.bf16.mxu0 0
      %954 = vmatpush1.bf16.xpose.msra.mxu0 0
      %955 = vmatprep.subr.bf16.mxu0 0
      %956 = vmatpush1.bf16.xpose.msra.mxu0 0
      %957 = vmatprep.subr.bf16.mxu0 0
      %958 = vmatpush1.bf16.xpose.msra.mxu0 0
      %959 = vmatprep.subr.bf16.mxu0 0
      %960 = vmatpush1.bf16.xpose.msra.mxu0 0
      %961 = vmatprep.subr.bf16.mxu0 0
      %962 = vmatpush1.bf16.xpose.msra.mxu0 0
      %963 = vmatprep.subr.bf16.mxu0 0
      %964 = vmatpush1.bf16.xpose.msra.mxu0 0
      %965 = vmatprep.mubr.bf16.mxu0 0
      %966 = vmatmul.mubr.bf16.gmra.mrb[0].mxu0 %v928
      %v967 = vpop.f32.mrb[0].mxu0
      %v968 = vadd.f32 0.0, %v967
      %v969 = vpop.f32.mrb[0].mxu0
      %v970 = vpop.f32.mrb[0].mxu0
      %v971 = vadd.f32 0.0, %v970
      %v972 = vpop.f32.mrb[0].mxu0
      %973 = vdwg.mxu0
      %v974 = vsel %vm617, %v968, -inf
      %975 = vmax.xlane.f32.xlu0 %v974
      %v976 = vpop.xlane.xlu0 %975
      %v977 = vsel %vm617, %v971, -inf
      %978 = vmax.xlane.f32.xlu0 %v977
      %v979 = vpop.xlane.xlu0 %978
      %v980 = vsub.f32 %v968, %v976
      %v981 = vsub.f32 %v971, %v979
      %v982 = vmul.f32 %v980, 1.442695
      %v983 = vpow.pop %v982
      %v984 = vmul.f32 %v981, 1.442695
      %v985 = vpow.pop %v984
      %v986 = vsel %vm617, %v983, 0.0
      %987 = vadd.xlane.f32.xlu0 %v986
      %v988 = vpop.xlane.xlu0 %987
      %v989 = vsel %vm617, %v985, 0.0
      %990 = vadd.xlane.f32.xlu0 %v989
      %v991 = vpop.xlane.xlu0 %990
      %v992 = vpack.c.bf16 %v985, %v983
      %993 = vrot.lane.b32.xlu0 %v551, 64
      %v994 = vpop.permute.xlu0 %993
      %v997 = vsel %vm617, %v992, 0
      %999 = vmatprep.subr.bf16.mxu0 0
      %1000 = vmatpush1.bf16.msra.mxu0 %v994
      %1001 = vmatprep.subr.bf16.mxu0 0
      %1002 = vmatpush1.bf16.msra.mxu0 0
      %1003 = vmatprep.subr.bf16.mxu0 0
      %1004 = vmatpush1.bf16.msra.mxu0 0
      %1005 = vmatprep.subr.bf16.mxu0 0
      %1006 = vmatpush1.bf16.msra.mxu0 0
      %1007 = vmatprep.subr.bf16.mxu0 0
      %1008 = vmatpush1.bf16.msra.mxu0 0
      %1009 = vmatprep.subr.bf16.mxu0 0
      %1010 = vmatpush1.bf16.msra.mxu0 0
      %1011 = vmatprep.subr.bf16.mxu0 0
      %1012 = vmatpush1.bf16.msra.mxu0 0
      %1013 = vmatprep.subr.bf16.mxu0 0
      %1014 = vmatpush1.bf16.msra.mxu0 0
      %1015 = vmatprep.subr.bf16.mxu0 0
      %1016 = vmatpush1.bf16.msra.mxu0 0
      %1017 = vmatprep.subr.bf16.mxu0 0
      %1018 = vmatpush1.bf16.msra.mxu0 0
      %1019 = vmatprep.subr.bf16.mxu0 0
      %1020 = vmatpush1.bf16.msra.mxu0 0
      %1021 = vmatprep.subr.bf16.mxu0 0
      %1022 = vmatpush1.bf16.msra.mxu0 0
      %1023 = vmatprep.subr.bf16.mxu0 0
      %1024 = vmatpush1.bf16.msra.mxu0 0
      %1025 = vmatprep.subr.bf16.mxu0 0
      %1026 = vmatpush1.bf16.msra.mxu0 0
      %1027 = vmatprep.subr.bf16.mxu0 0
      %1028 = vmatpush1.bf16.msra.mxu0 0
      %1029 = vmatprep.subr.bf16.mxu0 0
      %1030 = vmatpush1.bf16.msra.mxu0 0
      %1031 = vmatprep.mubr.bf16.mxu0 0
      %1032 = vmatmul.mubr.bf16.gmra.mrb[0].mxu0 %v997
      %v1033 = vpop.f32.mrb[0].mxu0
      %v1034 = vadd.f32 0.0, %v1033
      %v1035 = vpop.f32.mrb[0].mxu0
      %v1036 = vpop.f32.mrb[0].mxu0
      %v1037 = vadd.f32 0.0, %v1036
      %v1038 = vpop.f32.mrb[0].mxu0
      %1039 = vdwg.mxu0
      %v1040 = vrcp.pop %v988
      %v1041 = vrcp.pop %v991
      %v1042 = vmul.f32 %v1034, %v1040
      %v1043 = vmul.f32 %v1037, %v1041
      %v1044 = vpack.c.bf16 %v1043, %v1042
      %v1049 = vunpack.c.l.b16 %v560
      %v1050 = vunpack.c.l.b16 %v561
      %v1051 = vunpack.c.l.b16 %v562
      %v1052 = vunpack.c.l.b16 %v563
      %v1053 = vpack.c.b16 %v1050, %v1049
      %v1054 = vpack.c.b16 %v1052, %v1051
      %v1058 = vsel %vm569, %v1044, 0
      %1060 = vmatprep.subr.bf16.mxu0 0
      %1061 = vmatpush1.bf16.msra.mxu0 %v1053
      %1062 = vmatprep.subr.bf16.mxu0 0
      %1063 = vmatpush1.bf16.msra.mxu0 %v1054
      %1064 = vmatprep.subr.bf16.mxu0 0
      %1065 = vmatpush1.bf16.msra.mxu0 0
      %1066 = vmatprep.subr.bf16.mxu0 0
      %1067 = vmatpush1.bf16.msra.mxu0 0
      %1068 = vmatprep.subr.bf16.mxu0 0
      %1069 = vmatpush1.bf16.msra.mxu0 0
      %1070 = vmatprep.subr.bf16.mxu0 0
      %1071 = vmatpush1.bf16.msra.mxu0 0
      %1072 = vmatprep.subr.bf16.mxu0 0
      %1073 = vmatpush1.bf16.msra.mxu0 0
      %1074 = vmatprep.subr.bf16.mxu0 0
      %1075 = vmatpush1.bf16.msra.mxu0 0
      %1076 = vmatprep.subr.bf16.mxu0 0
      %1077 = vmatpush1.bf16.msra.mxu0 0
      %1078 = vmatprep.subr.bf16.mxu0 0
      %1079 = vmatpush1.bf16.msra.mxu0 0
      %1080 = vmatprep.subr.bf16.mxu0 0
      %1081 = vmatpush1.bf16.msra.mxu0 0
      %1082 = vmatprep.subr.bf16.mxu0 0
      %1083 = vmatpush1.bf16.msra.mxu0 0
      %1084 = vmatprep.subr.bf16.mxu0 0
      %1085 = vmatpush1.bf16.msra.mxu0 0
      %1086 = vmatprep.subr.bf16.mxu0 0
      %1087 = vmatpush1.bf16.msra.mxu0 0
      %1088 = vmatprep.subr.bf16.mxu0 0
      %1089 = vmatpush1.bf16.msra.mxu0 0
      %1090 = vmatprep.subr.bf16.mxu0 0
      %1091 = vmatpush1.bf16.msra.mxu0 0
      %1092 = vmatprep.mubr.bf16.mxu0 0
      %1093 = vmatmul.mubr.bf16.gmra.mrb[0].mxu0 %v1058
      %v1094 = vpop.f32.mrb[0].mxu0
      %v1095 = vadd.f32 0.0, %v1094
      %v1096 = vpop.f32.mrb[0].mxu0
      %v1097 = vpop.f32.mrb[0].mxu0
      %v1098 = vadd.f32 0.0, %v1097
      %v1099 = vpop.f32.mrb[0].mxu0
      %1100 = vdwg.mxu0
      %v1101 = vadd.f32 %v917, %v1095
      %v1102 = vadd.f32 %v920, %v1098
      %1103 = vrot.lane.b32.xlu0 %v549, 32
      %v1104 = vpop.permute.xlu0 %1103
      %1105 = vrot.lane.b32.xlu0 %v550, 32
      %v1106 = vpop.permute.xlu0 %1105
      %v1108 = vsel %vm569, %v1104, 0
      %v1111 = vsel %vm569, %v1106, 0
      %1113 = vmatprep.subr.bf16.mxu0 0
      %1114 = vmatpush1.bf16.xpose.msra.mxu0 %v1111
      %1115 = vmatprep.subr.bf16.mxu0 0
      %1116 = vmatpush1.bf16.xpose.msra.mxu0 0
      %1117 = vmatprep.subr.bf16.mxu0 0
      %1118 = vmatpush1.bf16.xpose.msra.mxu0 0
      %1119 = vmatprep.subr.bf16.mxu0 0
      %1120 = vmatpush1.bf16.xpose.msra.mxu0 0
      %1121 = vmatprep.subr.bf16.mxu0 0
      %1122 = vmatpush1.bf16.xpose.msra.mxu0 0
      %1123 = vmatprep.subr.bf16.mxu0 0
      %1124 = vmatpush1.bf16.xpose.msra.mxu0 0
      %1125 = vmatprep.subr.bf16.mxu0 0
      %1126 = vmatpush1.bf16.xpose.msra.mxu0 0
      %1127 = vmatprep.subr.bf16.mxu0 0
      %1128 = vmatpush1.bf16.xpose.msra.mxu0 0
      %1129 = vmatprep.subr.bf16.mxu0 0
      %1130 = vmatpush1.bf16.xpose.msra.mxu0 0
      %1131 = vmatprep.subr.bf16.mxu0 0
      %1132 = vmatpush1.bf16.xpose.msra.mxu0 0
      %1133 = vmatprep.subr.bf16.mxu0 0
      %1134 = vmatpush1.bf16.xpose.msra.mxu0 0
      %1135 = vmatprep.subr.bf16.mxu0 0
      %1136 = vmatpush1.bf16.xpose.msra.mxu0 0
      %1137 = vmatprep.subr.bf16.mxu0 0
      %1138 = vmatpush1.bf16.xpose.msra.mxu0 0
      %1139 = vmatprep.subr.bf16.mxu0 0
      %1140 = vmatpush1.bf16.xpose.msra.mxu0 0
      %1141 = vmatprep.subr.bf16.mxu0 0
      %1142 = vmatpush1.bf16.xpose.msra.mxu0 0
      %1143 = vmatprep.subr.bf16.mxu0 0
      %1144 = vmatpush1.bf16.xpose.msra.mxu0 0
      %1145 = vmatprep.mubr.bf16.mxu0 0
      %1146 = vmatmul.mubr.bf16.gmra.mrb[0].mxu0 %v1108
      %v1147 = vpop.f32.mrb[0].mxu0
      %v1148 = vadd.f32 0.0, %v1147
      %v1149 = vpop.f32.mrb[0].mxu0
      %v1150 = vpop.f32.mrb[0].mxu0
      %v1151 = vadd.f32 0.0, %v1150
      %v1152 = vpop.f32.mrb[0].mxu0
      %1153 = vdwg.mxu0
      %v1154 = vsel %vm617, %v1148, -inf
      %1155 = vmax.xlane.f32.xlu0 %v1154
      %v1156 = vpop.xlane.xlu0 %1155
      %v1157 = vsel %vm617, %v1151, -inf
      %1158 = vmax.xlane.f32.xlu0 %v1157
      %v1159 = vpop.xlane.xlu0 %1158
      %v1160 = vsub.f32 %v1148, %v1156
      %v1161 = vsub.f32 %v1151, %v1159
      %v1162 = vmul.f32 %v1160, 1.442695
      %v1163 = vpow.pop %v1162
      %v1164 = vmul.f32 %v1161, 1.442695
      %v1165 = vpow.pop %v1164
      %v1166 = vsel %vm617, %v1163, 0.0
      %1167 = vadd.xlane.f32.xlu0 %v1166
      %v1168 = vpop.xlane.xlu0 %1167
      %v1169 = vsel %vm617, %v1165, 0.0
      %1170 = vadd.xlane.f32.xlu0 %v1169
      %v1171 = vpop.xlane.xlu0 %1170
      %v1172 = vpack.c.bf16 %v1165, %v1163
      %1173 = vrot.lane.b32.xlu0 %v551, 32
      %v1174 = vpop.permute.xlu0 %1173
      %v1177 = vsel %vm617, %v1172, 0
      %1179 = vmatprep.subr.bf16.mxu0 0
      %1180 = vmatpush1.bf16.msra.mxu0 %v1174
      %1181 = vmatprep.subr.bf16.mxu0 0
      %1182 = vmatpush1.bf16.msra.mxu0 0
      %1183 = vmatprep.subr.bf16.mxu0 0
      %1184 = vmatpush1.bf16.msra.mxu0 0
      %1185 = vmatprep.subr.bf16.mxu0 0
      %1186 = vmatpush1.bf16.msra.mxu0 0
      %1187 = vmatprep.subr.bf16.mxu0 0
      %1188 = vmatpush1.bf16.msra.mxu0 0
      %1189 = vmatprep.subr.bf16.mxu0 0
      %1190 = vmatpush1.bf16.msra.mxu0 0
      %1191 = vmatprep.subr.bf16.mxu0 0
      %1192 = vmatpush1.bf16.msra.mxu0 0
      %1193 = vmatprep.subr.bf16.mxu0 0
      %1194 = vmatpush1.bf16.msra.mxu0 0
      %1195 = vmatprep.subr.bf16.mxu0 0
      %1196 = vmatpush1.bf16.msra.mxu0 0
      %1197 = vmatprep.subr.bf16.mxu0 0
      %1198 = vmatpush1.bf16.msra.mxu0 0
      %1199 = vmatprep.subr.bf16.mxu0 0
      %1200 = vmatpush1.bf16.msra.mxu0 0
      %1201 = vmatprep.subr.bf16.mxu0 0
      %1202 = vmatpush1.bf16.msra.mxu0 0
      %1203 = vmatprep.subr.bf16.mxu0 0
      %1204 = vmatpush1.bf16.msra.mxu0 0
      %1205 = vmatprep.subr.bf16.mxu0 0
      %1206 = vmatpush1.bf16.msra.mxu0 0
      %1207 = vmatprep.subr.bf16.mxu0 0
      %1208 = vmatpush1.bf16.msra.mxu0 0
      %1209 = vmatprep.subr.bf16.mxu0 0
      %1210 = vmatpush1.bf16.msra.mxu0 0
      %1211 = vmatprep.mubr.bf16.mxu0 0
      %1212 = vmatmul.mubr.bf16.gmra.mrb[0].mxu0 %v1177
      %v1213 = vpop.f32.mrb[0].mxu0
      %v1214 = vadd.f32 0.0, %v1213
      %v1215 = vpop.f32.mrb[0].mxu0
      %v1216 = vpop.f32.mrb[0].mxu0
      %v1217 = vadd.f32 0.0, %v1216
      %v1218 = vpop.f32.mrb[0].mxu0
      %1219 = vdwg.mxu0
      %v1220 = vrcp.pop %v1168
      %v1221 = vrcp.pop %v1171
      %v1222 = vmul.f32 %v1214, %v1220
      %v1223 = vmul.f32 %v1217, %v1221
      %v1224 = vpack.c.bf16 %v1223, %v1222
      %v1229 = vunpack.c.l.b16 %v564
      %v1230 = vunpack.c.l.b16 %v565
      %v1231 = vunpack.c.l.b16 %v566
      %v1232 = vunpack.c.l.b16 %v567
      %v1233 = vpack.c.b16 %v1230, %v1229
      %v1234 = vpack.c.b16 %v1232, %v1231
      %v1238 = vsel %vm569, %v1224, 0
      %1240 = vmatprep.subr.bf16.mxu0 0
      %1241 = vmatpush1.bf16.msra.mxu0 %v1233
      %1242 = vmatprep.subr.bf16.mxu0 0
      %1243 = vmatpush1.bf16.msra.mxu0 %v1234
      %1244 = vmatprep.subr.bf16.mxu0 0
      %1245 = vmatpush1.bf16.msra.mxu0 0
      %1246 = vmatprep.subr.bf16.mxu0 0
      %1247 = vmatpush1.bf16.msra.mxu0 0
      %1248 = vmatprep.subr.bf16.mxu0 0
      %1249 = vmatpush1.bf16.msra.mxu0 0
      %1250 = vmatprep.subr.bf16.mxu0 0
      %1251 = vmatpush1.bf16.msra.mxu0 0
      %1252 = vmatprep.subr.bf16.mxu0 0
      %1253 = vmatpush1.bf16.msra.mxu0 0
      %1254 = vmatprep.subr.bf16.mxu0 0
      %1255 = vmatpush1.bf16.msra.mxu0 0
      %1256 = vmatprep.subr.bf16.mxu0 0
      %1257 = vmatpush1.bf16.msra.mxu0 0
      %1258 = vmatprep.subr.bf16.mxu0 0
      %1259 = vmatpush1.bf16.msra.mxu0 0
      %1260 = vmatprep.subr.bf16.mxu0 0
      %1261 = vmatpush1.bf16.msra.mxu0 0
      %1262 = vmatprep.subr.bf16.mxu0 0
      %1263 = vmatpush1.bf16.msra.mxu0 0
      %1264 = vmatprep.subr.bf16.mxu0 0
      %1265 = vmatpush1.bf16.msra.mxu0 0
      %1266 = vmatprep.subr.bf16.mxu0 0
      %1267 = vmatpush1.bf16.msra.mxu0 0
      %1268 = vmatprep.subr.bf16.mxu0 0
      %1269 = vmatpush1.bf16.msra.mxu0 0
      %1270 = vmatprep.subr.bf16.mxu0 0
      %1271 = vmatpush1.bf16.msra.mxu0 0
      %1272 = vmatprep.mubr.bf16.mxu0 0
      %1273 = vmatmul.mubr.bf16.gmra.mrb[0].mxu0 %v1238
      %v1274 = vpop.f32.mrb[0].mxu0
      %v1275 = vadd.f32 0.0, %v1274
      %v1276 = vpop.f32.mrb[0].mxu0
      %v1277 = vpop.f32.mrb[0].mxu0
      %v1278 = vadd.f32 0.0, %v1277
      %v1279 = vpop.f32.mrb[0].mxu0
      %1280 = vdwg.mxu0
      %v1281 = vadd.f32 %v1101, %v1275
      %v1282 = vadd.f32 %v1102, %v1278
      %v1284 = vlaneseq
      %v1285 = vshrl.u32 %v1284, 7
      %v1286 = vsub.s32 0, %v1285
      %v1287 = vrot.slane %v568, %v1286
      %v1289 = vadd.f32 %v1281, %v1287
      %v1290 = vadd.f32 %v1282, %v1287
      %v1291 = vunpack.c.l.bf16 %v280
      %v1292 = vunpack.c.l.bf16 %v281
      %v1293 = vadd.f32 %v1289, %v1291
      %v1294 = vadd.f32 %v1290, %v1292
      %v1295 = vld [vmem:[%s5] sm:$0x1]
      %v1296 = vld [vmem:[%s6] sm:$0x1]
      %1297 = vadd.xlane.f32.xlu0 %v1293
      %v1298 = vpop.xlane.xlu0 %1297
      %1299 = vadd.xlane.f32.xlu0 %v1294
      %v1300 = vpop.xlane.xlu0 %1299
      %v1301 = vrcp.pop 128.0
      %v1302 = vmul.f32 %v1298, %v1301
      %v1303 = vmul.f32 %v1300, %v1301
      %v1304 = vsub.f32 %v1293, %v1302
      %v1305 = vsub.f32 %v1294, %v1303
      %v1306 = vmul.f32 %v1304, %v1304
      %v1307 = vmul.f32 %v1305, %v1305
      %1308 = vadd.xlane.f32.xlu0 %v1306
      %v1309 = vpop.xlane.xlu0 %1308
      %1310 = vadd.xlane.f32.xlu0 %v1307
      %v1311 = vpop.xlane.xlu0 %1310
      %v1312 = vmul.f32 %v1309, %v1301
      %v1313 = vmul.f32 %v1311, %v1301
      %v1314 = vadd.f32 %v1312, 1e-05
      %v1315 = vadd.f32 %v1313, 1e-05
      %v1316 = vrsqrt.pop %v1314
      %v1317 = vrsqrt.pop %v1315
      %v1318 = vmul.f32 %v1304, %v1316
      %v1319 = vmul.f32 %v1305, %v1317
      %v1321 = vlaneseq
      %v1322 = vshrl.u32 %v1321, 7
      %v1323 = vsub.s32 0, %v1322
      %v1324 = vrot.slane %v1295, %v1323
      %v1326 = vmul.f32 %v1318, %v1324
      %v1327 = vmul.f32 %v1319, %v1324
      %v1329 = vlaneseq
      %v1330 = vshrl.u32 %v1329, 7
      %v1331 = vsub.s32 0, %v1330
      %v1332 = vrot.slane %v1296, %v1331
      %v1334 = vadd.f32 %v1326, %v1332
      %v1335 = vadd.f32 %v1327, %v1332
      %v1336 = vpack.c.bf16 %v1335, %v1334
      %v1338 = vunpack.c.l.b16 %v1336
      %v1339 = vunpack.c.h.b16 %v1336
      %v1340 = vpack.c.b16 %v1338, %v1338
      %v1341 = vpack.c.b16 %v1339, %v1339
      %1344 = vst [vmem:[%s278] sm:$0xf] %v1340
      %1345 = vst [vmem:[%s278 + $0x4] sm:$0xf] %v1341
      %p1346 = scmp.lt.s32.totalorder %s18, 1
      %s1347 = scalar_select %p1346, %s18, 1
      %s1348 = smul.addr %s1347, 2
      %s1349 = smul.addr %s1348, 4
      %s1350 = scalar_lea.vmem %s7, %s1349
      // Predicated region
      $region49: #{transformer_gen.13} parent=47 // pred_check
        %p1351 = pneg %p188
      $region50: #{transformer_gen.13} parent=47 // pred_check_branch
        %1353 = sbr.rel (%p1351) target = $region52
      $region51: #{transformer_gen.13} parent=47 // pred_region
        _
      $region52: #{transformer_gen.13} parent=47 // pred_fallthru
        _
    $region48: #{transformer_gen.13} parent=5 // pred_fallthru
      _
    %p1354 = scmp.le.s32.totalorder 2, %s13
    // Predicated region
    $region53: #{transformer_gen.13} parent=5 // pred_check
      %p1355 = pneg %p1354
    $region54: #{transformer_gen.13} parent=5 // pred_check_branch
      %1357 = sbr.rel (%p1355) target = $region56
    $region55: #{transformer_gen.13} parent=5 // pred_region
      %s1358 = ssub.s32 %s13, 2
      // Predicated region
      $region57: #{transformer_gen.13} parent=55 // pred_check
        %p1359 = pneg %p194
      $region58: #{transformer_gen.13} parent=55 // pred_check_branch
        %1361 = sbr.rel (%p1359) target = $region60
      $region59: #{transformer_gen.13} parent=55 // pred_region
        %p1362 = scmp.lt.s32.totalorder %s19, 1
        %s1363 = scalar_select %p1362, %s19, 1
        %s1364 = smul.addr %s1363, 2
        %s1365 = smul.addr %s1364, 4
        %s1366 = scalar_lea.vmem %s7, %s1365
      $region60: #{transformer_gen.13} parent=55 // pred_fallthru
        _
    $region56: #{transformer_gen.13} parent=5 // pred_fallthru
      _
  $region6: #{transformer_gen.13} parent=0 // loop_footer
    %s17 = sadd.s32 1, %s13
  $region7: #{transformer_gen.13} parent=0 // loop_footer_branch
    %12 = sbr.rel target = $region3
  $region8: #{transformer_gen.13} parent=0 // loop_exit
    _

// kernel: transformer_gen.11
$region0: #{transformer_gen.11}
  #allocation0 [shape = 'u32[]', space=smem, size = 0x4, offset = 0x4, fixed_abs, tag = 'smem constant byte address 0x4 - core index']
  #allocation1 [shape = 'u32[144,128]{1,0:T(1,128)}', space=vmem, size = 0x12000, scoped, tag = 'internal scratch']
  %s0 = inlined_call_operand.vmem [shape: bf16[2,16,128], index: 0, kind: input, shape index: {}]
  %s1 = inlined_call_operand.vmem [shape: bf16[128,384], index: 1, kind: input, shape index: {}]
  %s2 = inlined_call_operand.hbm [shape: f32[1,384], index: 2, kind: input, shape index: {}]
  %s3 = inlined_call_operand.vmem [shape: bf16[128,128], index: 3, kind: input, shape index: {}]
  %s4 = inlined_call_operand.hbm [shape: f32[1,128], index: 4, kind: input, shape index: {}]
  %s5 = inlined_call_operand.hbm [shape: f32[1,128], index: 5, kind: input, shape index: {}]
  %s6 = inlined_call_operand.hbm [shape: f32[1,128], index: 6, kind: input, shape index: {}]
  %s7 = inlined_call_operand.vmem [shape: bf16[2,16,128], index: 7, kind: output, shape index: {}]
  %s8 = sld [smem:[#allocation0]]
  $region77: #{transformer_gen.11} parent=0
    _
  %s10 = ssub.s32 1, %s8
  %s11 = scalar_select 0, %s10, %s8
  $region1: #{transformer_gen.11} parent=0
    #allocation2 [shape = 'u8[1536]{0}', space=vmem, size = 0x800, scoped, tag = 'input window, operand 2, single buffered']
    #allocation3 [shape = 's32[2]{0}', space=sflag, size = 0x8, scoped, tag = 'scoped memory for transformer_gen.11']
    #allocation4 [shape = 'u8[512]{0}', space=vmem, size = 0x400, scoped, tag = 'input window, operand 4, single buffered']
    #allocation5 [shape = 's32[1]{0}', space=sflag, size = 0x4, scoped, tag = 'scoped memory for transformer_gen.11']
    #allocation6 [shape = 'u8[512]{0}', space=vmem, size = 0x400, scoped, tag = 'input window, operand 5, single buffered']
    #allocation7 [shape = 'u8[512]{0}', space=vmem, size = 0x400, scoped, tag = 'input window, operand 6, single buffered']
    #allocation8 [shape = 's32[1]{0}', space=sflag, size = 0x4, scoped, tag = 'scoped memory for transformer_gen.11']
    %12 = vsyncpa [#allocation3], 0
    %13 = vsyncpa [#allocation5], 0
    %14 = vsyncpa [#allocation8], 0
    loop: start=0, step=1, limit=4
    $region2: #{transformer_gen.11} parent=1 // loop_pre_header
      _
    $region3: #{transformer_gen.11} parent=1 // loop_header
      %s16 = sphi 0, %s20
      %p17 = scmp.ge.s32.totalorder %s16, 4
      %s26 = sphi 0, %s28
      %s29 = sphi 0, %s26
      %s30 = sphi 0, %s29
      %s46 = sphi 0, %s30
      %s50 = sphi 0, %s50
      %s52 = sphi 0, %s50
      %s53 = sphi 0, %s52
      %s67 = sphi 0, %s53
      %s71 = sphi 0, %s71
      %s73 = sphi 0, %s71
      %s74 = sphi 0, %s73
      %s88 = sphi 0, %s74
      %s92 = sphi 0, %s92
      %s94 = sphi 0, %s92
      %s95 = sphi 0, %s94
      %s109 = sphi 0, %s95
      %s113 = sphi 0, %s113
      %s115 = sphi 0, %s113
      %s116 = sphi 0, %s115
      %s130 = sphi 0, %s116
      %s134 = sphi 0, %s134
      %s136 = sphi 0, %s134
      %s137 = sphi 0, %s136
      %s151 = sphi 0, %s137
      %s155 = sphi 0, %s155
      %s157 = sphi 0, %s155
      %s158 = sphi 0, %s157
      %s172 = sphi 0, %s158
      %s178 = sphi 0, %s180
      %s181 = sphi 0, %s178
      %s182 = sphi 0, %s181
      %s198 = sphi 0, %s182
    $region4: #{transformer_gen.11} parent=1 // loop_header_branch
      %19 = sbr.rel (%p17) target = $region8
    $region5: #{transformer_gen.11} parent=1 // loop_body
      %s21 = ssub.s32 %s16, 1
      %s22 = ssub.s32 %s16, 2
      %s23 = sadd.s32 %s16, 1
      %s24 = ssub.s32 %s16, %s23
      %p25 = scmp.eq.s32.totalorder %s24, 0
      %s27 = sadd.s32 %s26, 1
      %s28 = scalar_select %p25, %s26, %s27
      %p31 = pneg %p25
      %p32 = scmp.eq.s32.totalorder %s16, 1
      %p33 = por %p31, %p32
      %p34 = scmp.ne.s32.totalorder %s26, %s29
      %p35 = scmp.eq.s32.totalorder %s16, 0
      %p36 = por %p34, %p35
      %p37 = scmp.ne.s32.totalorder %s26, %s29
      %p38 = scmp.eq.s32.totalorder %s21, 1
      %p39 = por %p37, %p38
      %p40 = scmp.ne.s32.totalorder %s29, %s30
      %p41 = scmp.eq.s32.totalorder %s21, 0
      %p42 = por %p40, %p41
      %p43 = scmp.ne.s32.totalorder %s29, %s30
      %p44 = scmp.eq.s32.totalorder %s22, 1
      %p45 = por %p43, %p44
      %p47 = scmp.ne.s32.totalorder %s30, %s46
      %p48 = scmp.eq.s32.totalorder %s22, 0
      %p49 = por %p47, %p48
      %s51 = sadd.s32 %s50, 1
      %p54 = scmp.eq.s32.totalorder %s16, 1
      %p55 = scmp.ne.s32.totalorder %s50, %s52
      %p56 = scmp.eq.s32.totalorder %s16, 0
      %p57 = por %p55, %p56
      %p58 = scmp.ne.s32.totalorder %s50, %s52
      %p59 = scmp.eq.s32.totalorder %s21, 1
      %p60 = por %p58, %p59
      %p61 = scmp.ne.s32.totalorder %s52, %s53
      %p62 = scmp.eq.s32.totalorder %s21, 0
      %p63 = por %p61, %p62
      %p64 = scmp.ne.s32.totalorder %s52, %s53
      %p65 = scmp.eq.s32.totalorder %s22, 1
      %p66 = por %p64, %p65
      %p68 = scmp.ne.s32.totalorder %s53, %s67
      %p69 = scmp.eq.s32.totalorder %s22, 0
      %p70 = por %p68, %p69
      %s72 = sadd.s32 %s71, 1
      %p75 = scmp.eq.s32.totalorder %s16, 1
      %p76 = scmp.ne.s32.totalorder %s71, %s73
      %p77 = scmp.eq.s32.totalorder %s16, 0
      %p78 = por %p76, %p77
      %p79 = scmp.ne.s32.totalorder %s71, %s73
      %p80 = scmp.eq.s32.totalorder %s21, 1
      %p81 = por %p79, %p80
      %p82 = scmp.ne.s32.totalorder %s73, %s74
      %p83 = scmp.eq.s32.totalorder %s21, 0
      %p84 = por %p82, %p83
      %p85 = scmp.ne.s32.totalorder %s73, %s74
      %p86 = scmp.eq.s32.totalorder %s22, 1
      %p87 = por %p85, %p86
      %p89 = scmp.ne.s32.totalorder %s74, %s88
      %p90 = scmp.eq.s32.totalorder %s22, 0
      %p91 = por %p89, %p90
      %s93 = sadd.s32 %s92, 1
      %p96 = scmp.eq.s32.totalorder %s16, 1
      %p97 = scmp.ne.s32.totalorder %s92, %s94
      %p98 = scmp.eq.s32.totalorder %s16, 0
      %p99 = por %p97, %p98
      %p100 = scmp.ne.s32.totalorder %s92, %s94
      %p101 = scmp.eq.s32.totalorder %s21, 1
      %p102 = por %p100, %p101
      %p103 = scmp.ne.s32.totalorder %s94, %s95
      %p104 = scmp.eq.s32.totalorder %s21, 0
      %p105 = por %p103, %p104
      %p106 = scmp.ne.s32.totalorder %s94, %s95
      %p107 = scmp.eq.s32.totalorder %s22, 1
      %p108 = por %p106, %p107
      %p110 = scmp.ne.s32.totalorder %s95, %s109
      %p111 = scmp.eq.s32.totalorder %s22, 0
      %p112 = por %p110, %p111
      %s114 = sadd.s32 %s113, 1
      %p117 = scmp.eq.s32.totalorder %s16, 1
      %p118 = scmp.ne.s32.totalorder %s113, %s115
      %p119 = scmp.eq.s32.totalorder %s16, 0
      %p120 = por %p118, %p119
      %p121 = scmp.ne.s32.totalorder %s113, %s115
      %p122 = scmp.eq.s32.totalorder %s21, 1
      %p123 = por %p121, %p122
      %p124 = scmp.ne.s32.totalorder %s115, %s116
      %p125 = scmp.eq.s32.totalorder %s21, 0
      %p126 = por %p124, %p125
      %p127 = scmp.ne.s32.totalorder %s115, %s116
      %p128 = scmp.eq.s32.totalorder %s22, 1
      %p129 = por %p127, %p128
      %p131 = scmp.ne.s32.totalorder %s116, %s130
      %p132 = scmp.eq.s32.totalorder %s22, 0
      %p133 = por %p131, %p132
      %s135 = sadd.s32 %s134, 1
      %p138 = scmp.eq.s32.totalorder %s16, 1
      %p139 = scmp.ne.s32.totalorder %s134, %s136
      %p140 = scmp.eq.s32.totalorder %s16, 0
      %p141 = por %p139, %p140
      %p142 = scmp.ne.s32.totalorder %s134, %s136
      %p143 = scmp.eq.s32.totalorder %s21, 1
      %p144 = por %p142, %p143
      %p145 = scmp.ne.s32.totalorder %s136, %s137
      %p146 = scmp.eq.s32.totalorder %s21, 0
      %p147 = por %p145, %p146
      %p148 = scmp.ne.s32.totalorder %s136, %s137
      %p149 = scmp.eq.s32.totalorder %s22, 1
      %p150 = por %p148, %p149
      %p152 = scmp.ne.s32.totalorder %s137, %s151
      %p153 = scmp.eq.s32.totalorder %s22, 0
      %p154 = por %p152, %p153
      %s156 = sadd.s32 %s155, 1
      %p159 = scmp.eq.s32.totalorder %s16, 1
      %p160 = scmp.ne.s32.totalorder %s155, %s157
      %p161 = scmp.eq.s32.totalorder %s16, 0
      %p162 = por %p160, %p161
      %p163 = scmp.ne.s32.totalorder %s155, %s157
      %p164 = scmp.eq.s32.totalorder %s21, 1
      %p165 = por %p163, %p164
      %p166 = scmp.ne.s32.totalorder %s157, %s158
      %p167 = scmp.eq.s32.totalorder %s21, 0
      %p168 = por %p166, %p167
      %p169 = scmp.ne.s32.totalorder %s157, %s158
      %p170 = scmp.eq.s32.totalorder %s22, 1
      %p171 = por %p169, %p170
      %p173 = scmp.ne.s32.totalorder %s158, %s172
      %p174 = scmp.eq.s32.totalorder %s22, 0
      %p175 = por %p173, %p174
      %s176 = ssub.s32 %s16, %s23
      %p177 = scmp.eq.s32.totalorder %s176, 0
      %s179 = sadd.s32 %s178, 1
      %s180 = scalar_select %p177, %s178, %s179
      %p183 = pneg %p177
      %p184 = scmp.eq.s32.totalorder %s16, 1
      %p185 = por %p183, %p184
      %p186 = scmp.ne.s32.totalorder %s178, %s181
      %p187 = scmp.eq.s32.totalorder %s16, 0
      %p188 = por %p186, %p187
      %p189 = scmp.ne.s32.totalorder %s178, %s181
      %p190 = scmp.eq.s32.totalorder %s21, 1
      %p191 = por %p189, %p190
      %p192 = scmp.ne.s32.totalorder %s181, %s182
      %p193 = scmp.eq.s32.totalorder %s21, 0
      %p194 = por %p192, %p193
      %p195 = scmp.ne.s32.totalorder %s181, %s182
      %p196 = scmp.eq.s32.totalorder %s22, 1
      %p197 = por %p195, %p196
      %p199 = scmp.ne.s32.totalorder %s182, %s198
      %p200 = scmp.eq.s32.totalorder %s22, 0
      %p201 = por %p199, %p200
      %p202 = scmp.le.s32.totalorder 1, %s16
      %p203 = scmp.lt.s32.totalorder %s16, 3
      %p204 = pnand %p202, %p203
      %p205 = pneg %p204
      // Predicated region
      $region9: #{transformer_gen.11} parent=5 // pred_check
        _
      $region10: #{transformer_gen.11} parent=5 // pred_check_branch
        %207 = sbr.rel (%p204) target = $region12
      $region11: #{transformer_gen.11} parent=5 // pred_region
        %s208 = ssub.s32 %s16, 1
        // Predicated region
        $region13: #{transformer_gen.11} parent=11 // pred_check
          %p209 = pneg %p63
        $region14: #{transformer_gen.11} parent=11 // pred_check_branch
          %211 = sbr.rel (%p209) target = $region16
        $region15: #{transformer_gen.11} parent=11 // pred_region
          _
        $region16: #{transformer_gen.11} parent=11 // pred_fallthru
          _
        // Predicated region
        $region17: #{transformer_gen.11} parent=11 // pred_check
          %p212 = pneg %p84
        $region18: #{transformer_gen.11} parent=11 // pred_check_branch
          %214 = sbr.rel (%p212) target = $region20
        $region19: #{transformer_gen.11} parent=11 // pred_region
          %s216 = ssub.s32 48, 48
          %217 = vsyncadd [#allocation3], %s216
          %s219 = sshll.u32 [#allocation2], 4
          %s220 = int_to_ptr.vmem [resolvable:$true] %s219
          %222 = dma.hbm_to_vmem [thread:$0]  %s2, 48, %s220, [#allocation3]
        $region20: #{transformer_gen.11} parent=11 // pred_fallthru
          _
        // Predicated region
        $region21: #{transformer_gen.11} parent=11 // pred_check
          %p223 = pneg %p105
        $region22: #{transformer_gen.11} parent=11 // pred_check_branch
          %225 = sbr.rel (%p223) target = $region24
        $region23: #{transformer_gen.11} parent=11 // pred_region
          _
        $region24: #{transformer_gen.11} parent=11 // pred_fallthru
          _
        // Predicated region
        $region25: #{transformer_gen.11} parent=11 // pred_check
          %p226 = pneg %p126
        $region26: #{transformer_gen.11} parent=11 // pred_check_branch
          %228 = sbr.rel (%p226) target = $region28
        $region27: #{transformer_gen.11} parent=11 // pred_region
          %s230 = ssub.s32 16, 16
          %231 = vsyncadd [#allocation5], %s230
          %s233 = sshll.u32 [#allocation4], 4
          %s234 = int_to_ptr.vmem [resolvable:$true] %s233
          %236 = dma.hbm_to_vmem [thread:$0]  %s4, 16, %s234, [#allocation5]
        $region28: #{transformer_gen.11} parent=11 // pred_fallthru
          _
        // Predicated region
        $region29: #{transformer_gen.11} parent=11 // pred_check
          %p237 = pneg %p147
        $region30: #{transformer_gen.11} parent=11 // pred_check_branch
          %239 = sbr.rel (%p237) target = $region32
        $region31: #{transformer_gen.11} parent=11 // pred_region
          %s241 = ssub.s32 16, 16
          %242 = vsyncadd [#allocation5], %s241
          %s244 = sshll.u32 [#allocation6], 4
          %s245 = int_to_ptr.vmem [resolvable:$true] %s244
          %247 = dma.hbm_to_vmem [thread:$0]  %s5, 16, %s245, [#allocation5]
        $region32: #{transformer_gen.11} parent=11 // pred_fallthru
          _
        // Predicated region
        $region33: #{transformer_gen.11} parent=11 // pred_check
          %p248 = pneg %p168
        $region34: #{transformer_gen.11} parent=11 // pred_check_branch
          %250 = sbr.rel (%p248) target = $region36
        $region35: #{transformer_gen.11} parent=11 // pred_region
          %s252 = ssub.s32 16, 16
          %253 = vsyncadd [#allocation8], %s252
          %s255 = sshll.u32 [#allocation7], 4
          %s256 = int_to_ptr.vmem [resolvable:$true] %s255
          %258 = dma.hbm_to_vmem [thread:$0]  %s6, 16, %s256, [#allocation8]
        $region36: #{transformer_gen.11} parent=11 // pred_fallthru
          _
      $region12: #{transformer_gen.11} parent=5 // pred_fallthru
        _
      %p259 = scmp.lt.s32.totalorder %s16, 2
      // Predicated region
      $region37: #{transformer_gen.11} parent=5 // pred_check
        %p260 = pneg %p259
      $region38: #{transformer_gen.11} parent=5 // pred_check_branch
        %262 = sbr.rel (%p260) target = $region40
      $region39: #{transformer_gen.11} parent=5 // pred_region
        // Predicated region
        $region41: #{transformer_gen.11} parent=39 // pred_check
          %p263 = pneg %p36
        $region42: #{transformer_gen.11} parent=39 // pred_check_branch
          %265 = sbr.rel (%p263) target = $region44
        $region43: #{transformer_gen.11} parent=39 // pred_region
          %p266 = scmp.lt.s32.totalorder %s16, 1
          %s267 = scalar_select %p266, %s16, 1
          %s268 = smul.addr %s267, 2
          %s269 = smul.addr %s268, 4
          %s270 = scalar_lea.vmem %s0, %s269
        $region44: #{transformer_gen.11} parent=39 // pred_fallthru
          _
      $region40: #{transformer_gen.11} parent=5 // pred_fallthru
        _
      %p271 = scmp.le.s32.totalorder 1, %s16
      %p272 = scmp.lt.s32.totalorder %s16, 3
      %p273 = pnand %p271, %p272
      %p274 = pneg %p273
      // Predicated region
      $region45: #{transformer_gen.11} parent=5 // pred_check
        _
      $region46: #{transformer_gen.11} parent=5 // pred_check_branch
        %276 = sbr.rel (%p273) target = $region48
      $region47: #{transformer_gen.11} parent=5 // pred_region
        %s277 = ssub.s32 %s16, 1
        // Predicated region
        $region49: #{transformer_gen.11} parent=47 // pred_check
          %p278 = pneg %p84
        $region50: #{transformer_gen.11} parent=47 // pred_check_branch
          %280 = sbr.rel (%p278) target = $region52
        $region51: #{transformer_gen.11} parent=47 // pred_region
          %281 = dma.done [#allocation3], 48
        $region52: #{transformer_gen.11} parent=47 // pred_fallthru
          _
        // Predicated region
        $region53: #{transformer_gen.11} parent=47 // pred_check
          %p282 = pneg %p126
        $region54: #{transformer_gen.11} parent=47 // pred_check_branch
          %284 = sbr.rel (%p282) target = $region56
        $region55: #{transformer_gen.11} parent=47 // pred_region
          %285 = dma.done [#allocation5], 16
        $region56: #{transformer_gen.11} parent=47 // pred_fallthru
          _
        // Predicated region
        $region57: #{transformer_gen.11} parent=47 // pred_check
          %p286 = pneg %p147
        $region58: #{transformer_gen.11} parent=47 // pred_check_branch
          %288 = sbr.rel (%p286) target = $region60
        $region59: #{transformer_gen.11} parent=47 // pred_region
          %289 = dma.done [#allocation5], 16
        $region60: #{transformer_gen.11} parent=47 // pred_fallthru
          _
        // Predicated region
        $region61: #{transformer_gen.11} parent=47 // pred_check
          %p290 = pneg %p168
        $region62: #{transformer_gen.11} parent=47 // pred_check_branch
          %292 = sbr.rel (%p290) target = $region64
        $region63: #{transformer_gen.11} parent=47 // pred_region
          %293 = dma.done [#allocation8], 16
        $region64: #{transformer_gen.11} parent=47 // pred_fallthru
          _
        %p294 = scmp.lt.s32.totalorder %s21, 1
        %s295 = scalar_select %p294, %s21, 1
        %s296 = smul.addr %s295, 2
        %s297 = smul.addr %s296, 4
        %s298 = scalar_lea.vmem %s0, %s297
        %p299 = pneg %p42
        %p300 = pneg %p39
        %p301 = pneg %p63
        %p302 = pneg %p60
        %p303 = pneg %p84
        %p304 = pneg %p81
        %p305 = pneg %p105
        %p306 = pneg %p102
        %p307 = pneg %p126
        %p308 = pneg %p123
        %p309 = pneg %p147
        %p310 = pneg %p144
        %p311 = pneg %p168
        %p312 = pneg %p165
        %p313 = pneg %p194
        %p314 = pneg %p191
        %p315 = scmp.lt.s32.totalorder %s21, 1
        %s316 = scalar_select %p315, %s21, 1
        %s317 = smul.addr %s316, 2
        %s318 = smul.addr %s317, 4
        %s319 = scalar_lea.vmem %s7, %s318
        %p320 = scmp.lt.s32.totalorder %s21, 1
        %s321 = scalar_select %p320, %s21, 1
        %s322 = smul.addr %s321, 2
        %s323 = smul.addr %s322, 4
        %s324 = scalar_lea.vmem %s0, %s323
        %p325 = scmp.lt.s32.totalorder %s21, 1
        %s326 = scalar_select %p325, %s21, 1
        %s327 = smul.addr %s326, 2
        %s328 = smul.addr %s327, 4
        %s329 = scalar_lea.vmem %s7, %s328
        %v331 = vld [vmem:[%s324] sm:$0xf]
        %v332 = vld [vmem:[%s324 + $0x4] sm:$0xf]
        %v333 = vld [vmem:[%s1] sm:$0xff]
        %v334 = vld [vmem:[%s1 + $0x8] sm:$0xf]
        %v335 = vld [vmem:[%s1 + $0xc] sm:$0xff]
        %v336 = vld [vmem:[%s1 + $0x14] sm:$0xf]
        %v337 = vld [vmem:[%s1 + $0x18] sm:$0xff]
        %v338 = vld [vmem:[%s1 + $0x20] sm:$0xf]
        %v339 = vld [vmem:[%s1 + $0x24] sm:$0xff]
        %v340 = vld [vmem:[%s1 + $0x2c] sm:$0xf]
        %v341 = vld [vmem:[%s1 + $0x30] sm:$0xff]
        %v342 = vld [vmem:[%s1 + $0x38] sm:$0xf]
        %v343 = vld [vmem:[%s1 + $0x3c] sm:$0xff]
        %v344 = vld [vmem:[%s1 + $0x44] sm:$0xf]
        %v345 = vld [vmem:[%s1 + $0x48] sm:$0xff]
        %v346 = vld [vmem:[%s1 + $0x50] sm:$0xf]
        %v347 = vld [vmem:[%s1 + $0x54] sm:$0xff]
        %v348 = vld [vmem:[%s1 + $0x5c] sm:$0xf]
        %v349 = vld [vmem:[%s1 + $0x60] sm:$0xff]
        %v350 = vld [vmem:[%s1 + $0x68] sm:$0xf]
        %v351 = vld [vmem:[%s1 + $0x6c] sm:$0xff]
        %v352 = vld [vmem:[%s1 + $0x74] sm:$0xf]
        %v353 = vld [vmem:[%s1 + $0x78] sm:$0xff]
        %v354 = vld [vmem:[%s1 + $0x80] sm:$0xf]
        %v355 = vld [vmem:[%s1 + $0x84] sm:$0xff]
        %v356 = vld [vmem:[%s1 + $0x8c] sm:$0xf]
        %v357 = vld [vmem:[%s1 + $0x90] sm:$0xff]
        %v358 = vld [vmem:[%s1 + $0x98] sm:$0xf]
        %v359 = vld [vmem:[%s1 + $0x9c] sm:$0xff]
        %v360 = vld [vmem:[%s1 + $0xa4] sm:$0xf]
        %v361 = vld [vmem:[%s1 + $0xa8] sm:$0xff]
        %v362 = vld [vmem:[%s1 + $0xb0] sm:$0xf]
        %v363 = vld [vmem:[%s1 + $0xb4] sm:$0xff]
        %v364 = vld [vmem:[%s1 + $0xbc] sm:$0xf]
        %v365 = vld [vmem:[#allocation2] sm:$0x7]
        %v367 = vlaneseq
        %v368 = vshrl.u32 %v367, 7
        %v369 = vsub.s32 0, %v368
        %v370 = vrot.slane %v365, %v369
        %v371 = vlaneseq
        %v372 = vshrl.u32 %v371, 7
        %v373 = vsub.s32 1, %v372
        %v374 = vrot.slane %v365, %v373
        %v375 = vlaneseq
        %v376 = vshrl.u32 %v375, 7
        %v377 = vsub.s32 2, %v376
        %v378 = vrot.slane %v365, %v377
        %v384 = vunpack.c.l.b16 %v331
        %v385 = vunpack.c.l.b16 %v332
        %v386 = vpack.c.b16 %v385, %v384
        %v420 = vunpack.c.l.b16 %v333
        %v421 = vunpack.c.h.b16 %v333
        %v422 = vunpack.c.l.b16 %v334
        %v423 = vunpack.c.l.b16 %v335
        %v424 = vunpack.c.h.b16 %v335
        %v425 = vunpack.c.l.b16 %v336
        %v426 = vunpack.c.l.b16 %v337
        %v427 = vunpack.c.h.b16 %v337
        %v428 = vunpack.c.l.b16 %v338
        %v429 = vunpack.c.l.b16 %v339
        %v430 = vunpack.c.h.b16 %v339
        %v431 = vunpack.c.l.b16 %v340
        %v432 = vunpack.c.l.b16 %v341
        %v433 = vunpack.c.h.b16 %v341
        %v434 = vunpack.c.l.b16 %v342
        %v435 = vunpack.c.l.b16 %v343
        %v436 = vunpack.c.h.b16 %v343
        %v437 = vunpack.c.l.b16 %v344
        %v438 = vunpack.c.l.b16 %v345
        %v439 = vunpack.c.h.b16 %v345
        %v440 = vunpack.c.l.b16 %v346
        %v441 = vunpack.c.l.b16 %v347
        %v442 = vunpack.c.h.b16 %v347
        %v443 = vunpack.c.l.b16 %v348
        %v444 = vunpack.c.l.b16 %v349
        %v445 = vunpack.c.h.b16 %v349
        %v446 = vunpack.c.l.b16 %v350
        %v447 = vunpack.c.l.b16 %v351
        %v448 = vunpack.c.h.b16 %v351
        %v449 = vunpack.c.l.b16 %v352
        %v450 = vunpack.c.l.b16 %v353
        %v451 = vunpack.c.h.b16 %v353
        %v452 = vunpack.c.l.b16 %v354
        %v453 = vunpack.c.l.b16 %v355
        %v454 = vunpack.c.h.b16 %v355
        %v455 = vunpack.c.l.b16 %v356
        %v456 = vunpack.c.l.b16 %v357
        %v457 = vunpack.c.h.b16 %v357
        %v458 = vunpack.c.l.b16 %v358
        %v459 = vunpack.c.l.b16 %v359
        %v460 = vunpack.c.h.b16 %v359
        %v461 = vunpack.c.l.b16 %v360
        %v462 = vunpack.c.l.b16 %v361
        %v463 = vunpack.c.h.b16 %v361
        %v464 = vunpack.c.l.b16 %v362
        %v465 = vunpack.c.l.b16 %v363
        %v466 = vunpack.c.h.b16 %v363
        %v467 = vunpack.c.l.b16 %v364
        %v468 = vpack.c.b16 %v423, %v420
        %v469 = vpack.c.b16 %v424, %v421
        %v470 = vpack.c.b16 %v425, %v422
        %v471 = vpack.c.b16 %v429, %v426
        %v472 = vpack.c.b16 %v430, %v427
        %v473 = vpack.c.b16 %v431, %v428
        %v474 = vpack.c.b16 %v435, %v432
        %v475 = vpack.c.b16 %v436, %v433
        %v476 = vpack.c.b16 %v437, %v434
        %v477 = vpack.c.b16 %v441, %v438
        %v478 = vpack.c.b16 %v442, %v439
        %v479 = vpack.c.b16 %v443, %v440
        %v480 = vpack.c.b16 %v447, %v444
        %v481 = vpack.c.b16 %v448, %v445
        %v482 = vpack.c.b16 %v449, %v446
        %v483 = vpack.c.b16 %v453, %v450
        %v484 = vpack.c.b16 %v454, %v451
        %v485 = vpack.c.b16 %v455, %v452
        %v486 = vpack.c.b16 %v459, %v456
        %v487 = vpack.c.b16 %v460, %v457
        %v488 = vpack.c.b16 %v461, %v458
        %v489 = vpack.c.b16 %v465, %v462
        %v490 = vpack.c.b16 %v466, %v463
        %v491 = vpack.c.b16 %v467, %v464
        %516 = vmatprep.subr.bf16.mxu0 %v469
        %517 = vmatpush1.bf16.msra.mxu0 %v468
        %518 = vmatprep.subr.bf16.mxu0 %v472
        %519 = vmatpush1.bf16.msra.mxu0 %v471
        %520 = vmatprep.subr.bf16.mxu0 %v475
        %521 = vmatpush1.bf16.msra.mxu0 %v474
        %522 = vmatprep.subr.bf16.mxu0 %v478
        %523 = vmatpush1.bf16.msra.mxu0 %v477
        %524 = vmatprep.subr.bf16.mxu0 %v481
        %525 = vmatpush1.bf16.msra.mxu0 %v480
        %526 = vmatprep.subr.bf16.mxu0 %v484
        %527 = vmatpush1.bf16.msra.mxu0 %v483
        %528 = vmatprep.subr.bf16.mxu0 %v487
        %529 = vmatpush1.bf16.msra.mxu0 %v486
        %530 = vmatprep.subr.bf16.mxu0 %v490
        %531 = vmatpush1.bf16.msra.mxu0 %v489
        %532 = vmatprep.subr.bf16.mxu0 0
        %533 = vmatpush1.bf16.msra.mxu0 0
        %534 = vmatprep.subr.bf16.mxu0 0
        %535 = vmatpush1.bf16.msra.mxu0 0
        %536 = vmatprep.subr.bf16.mxu0 0
        %537 = vmatpush1.bf16.msra.mxu0 0
        %538 = vmatprep.subr.bf16.mxu0 0
        %539 = vmatpush1.bf16.msra.mxu0 0
        %540 = vmatprep.subr.bf16.mxu0 0
        %541 = vmatpush1.bf16.msra.mxu0 0
        %542 = vmatprep.subr.bf16.mxu0 0
        %543 = vmatpush1.bf16.msra.mxu0 0
        %544 = vmatprep.subr.bf16.mxu0 0
        %545 = vmatpush1.bf16.msra.mxu0 0
        %546 = vmatprep.subr.bf16.mxu0 0
        %547 = vmatpush1.bf16.msra.mxu0 0
        %548 = vmatprep.mubr.bf16.mxu0 0
        %549 = vmatmul.mubr.bf16.gmra.mrb[0].mxu0 %v386
        %v550 = vpop.f32.mrb[0].mxu0
        %v551 = vadd.f32 %v370, %v550
        %v552 = vpop.f32.mrb[0].mxu0
        %v553 = vadd.f32 %v374, %v552
        %v554 = vpop.f32.mrb[0].mxu0
        %v555 = vadd.f32 %v370, %v554
        %v556 = vpop.f32.mrb[0].mxu0
        %v557 = vadd.f32 %v374, %v556
        %558 = vdwg.mxu0
        %559 = vmatprep.subr.bf16.mxu0 0
        %560 = vmatpush1.bf16.msra.mxu0 %v470
        %561 = vmatprep.subr.bf16.mxu0 0
        %562 = vmatpush1.bf16.msra.mxu0 %v473
        %563 = vmatprep.subr.bf16.mxu0 0
        %564 = vmatpush1.bf16.msra.mxu0 %v476
        %565 = vmatprep.subr.bf16.mxu0 0
        %566 = vmatpush1.bf16.msra.mxu0 %v479
        %567 = vmatprep.subr.bf16.mxu0 0
        %568 = vmatpush1.bf16.msra.mxu0 %v482
        %569 = vmatprep.subr.bf16.mxu0 0
        %570 = vmatpush1.bf16.msra.mxu0 %v485
        %571 = vmatprep.subr.bf16.mxu0 0
        %572 = vmatpush1.bf16.msra.mxu0 %v488
        %573 = vmatprep.subr.bf16.mxu0 0
        %574 = vmatpush1.bf16.msra.mxu0 %v491
        %575 = vmatprep.subr.bf16.mxu0 0
        %576 = vmatpush1.bf16.msra.mxu0 0
        %577 = vmatprep.subr.bf16.mxu0 0
        %578 = vmatpush1.bf16.msra.mxu0 0
        %579 = vmatprep.subr.bf16.mxu0 0
        %580 = vmatpush1.bf16.msra.mxu0 0
        %581 = vmatprep.subr.bf16.mxu0 0
        %582 = vmatpush1.bf16.msra.mxu0 0
        %583 = vmatprep.subr.bf16.mxu0 0
        %584 = vmatpush1.bf16.msra.mxu0 0
        %585 = vmatprep.subr.bf16.mxu0 0
        %586 = vmatpush1.bf16.msra.mxu0 0
        %587 = vmatprep.subr.bf16.mxu0 0
        %588 = vmatpush1.bf16.msra.mxu0 0
        %589 = vmatprep.subr.bf16.mxu0 0
        %590 = vmatpush1.bf16.msra.mxu0 0
        %591 = vmatprep.mubr.bf16.mxu0 0
        %592 = vmatmul.mubr.bf16.gmra.mrb[0].mxu0 %v386
        %v593 = vpop.f32.mrb[0].mxu0
        %v594 = vadd.f32 %v378, %v593
        %v595 = vpop.f32.mrb[0].mxu0
        %v596 = vpop.f32.mrb[0].mxu0
        %v597 = vadd.f32 %v378, %v596
        %v598 = vpop.f32.mrb[0].mxu0
        %599 = vdwg.mxu0
        %v600 = vpack.c.bf16 %v555, %v551
        %v601 = vpack.c.bf16 %v557, %v553
        %v602 = vpack.c.bf16 %v597, %v594
        %v603 = vld [vmem:[%s3] sm:$0xf]
        %v604 = vld [vmem:[%s3 + $0x4] sm:$0xf]
        %v605 = vld [vmem:[%s3 + $0x8] sm:$0xf]
        %v606 = vld [vmem:[%s3 + $0xc] sm:$0xf]
        %v607 = vld [vmem:[%s3 + $0x10] sm:$0xf]
        %v608 = vld [vmem:[%s3 + $0x14] sm:$0xf]
        %v609 = vld [vmem:[%s3 + $0x18] sm:$0xf]
        %v610 = vld [vmem:[%s3 + $0x1c] sm:$0xf]
        %v611 = vld [vmem:[%s3 + $0x20] sm:$0xf]
        %v612 = vld [vmem:[%s3 + $0x24] sm:$0xf]
        %v613 = vld [vmem:[%s3 + $0x28] sm:$0xf]
        %v614 = vld [vmem:[%s3 + $0x2c] sm:$0xf]
        %v615 = vld [vmem:[%s3 + $0x30] sm:$0xf]
        %v616 = vld [vmem:[%s3 + $0x34] sm:$0xf]
        %v617 = vld [vmem:[%s3 + $0x38] sm:$0xf]
        %v618 = vld [vmem:[%s3 + $0x3c] sm:$0xf]
        %v619 = vld [vmem:[#allocation4] sm:$0x1]
        %vm620 = vcmask 261120
        %v622 = vsel %vm620, %v600, 0
        %v625 = vsel %vm620, %v601, 0
        %627 = vmatprep.subr.bf16.mxu0 0
        %628 = vmatpush1.bf16.xpose.msra.mxu0 %v625
        %629 = vmatprep.subr.bf16.mxu0 0
        %630 = vmatpush1.bf16.xpose.msra.mxu0 0
        %631 = vmatprep.subr.bf16.mxu0 0
        %632 = vmatpush1.bf16.xpose.msra.mxu0 0
        %633 = vmatprep.subr.bf16.mxu0 0
        %634 = vmatpush1.bf16.xpose.msra.mxu0 0
        %635 = vmatprep.subr.bf16.mxu0 0
        %636 = vmatpush1.bf16.xpose.msra.mxu0 0
        %637 = vmatprep.subr.bf16.mxu0 0
        %638 = vmatpush1.bf16.xpose.msra.mxu0 0
        %639 = vmatprep.subr.bf16.mxu0 0
        %640 = vmatpush1.bf16.xpose.msra.mxu0 0
        %641 = vmatprep.subr.bf16.mxu0 0
        %642 = vmatpush1.bf16.xpose.msra.mxu0 0
        %643 = vmatprep.subr.bf16.mxu0 0
        %644 = vmatpush1.bf16.xpose.msra.mxu0 0
        %645 = vmatprep.subr.bf16.mxu0 0
        %646 = vmatpush1.bf16.xpose.msra.mxu0 0
        %647 = vmatprep.subr.bf16.mxu0 0
        %648 = vmatpush1.bf16.xpose.msra.mxu0 0
        %649 = vmatprep.subr.bf16.mxu0 0
        %650 = vmatpush1.bf16.xpose.msra.mxu0 0
        %651 = vmatprep.subr.bf16.mxu0 0
        %652 = vmatpush1.bf16.xpose.msra.mxu0 0
        %653 = vmatprep.subr.bf16.mxu0 0
        %654 = vmatpush1.bf16.xpose.msra.mxu0 0
        %655 = vmatprep.subr.bf16.mxu0 0
        %656 = vmatpush1.bf16.xpose.msra.mxu0 0
        %657 = vmatprep.subr.bf16.mxu0 0
        %658 = vmatpush1.bf16.xpose.msra.mxu0 0
        %659 = vmatprep.mubr.bf16.mxu0 0
        %660 = vmatmul.mubr.bf16.gmra.mrb[0].mxu0 %v622
        %v661 = vpop.f32.mrb[0].mxu0
        %v662 = vadd.f32 0.0, %v661
        %v663 = vpop.f32.mrb[0].mxu0
        %v664 = vpop.f32.mrb[0].mxu0
        %v665 = vadd.f32 0.0, %v664
        %v666 = vpop.f32.mrb[0].mxu0
        %667 = vdwg.mxu0
        %vm668 = vcmask 130048
        %v669 = vsel %vm668, %v662, -inf
        %670 = vmax.xlane.f32.xlu0 %v669
        %v671 = vpop.xlane.xlu0 %670
        %v672 = vsel %vm668, %v665, -inf
        %673 = vmax.xlane.f32.xlu0 %v672
        %v674 = vpop.xlane.xlu0 %673
        %v675 = vsub.f32 %v662, %v671
        %v676 = vsub.f32 %v665, %v674
        %v677 = vmul.f32 %v675, 1.442695
        %v678 = vpow.pop %v677
        %v679 = vmul.f32 %v676, 1.442695
        %v680 = vpow.pop %v679
        %v681 = vsel %vm668, %v678, 0.0
        %682 = vadd.xlane.f32.xlu0 %v681
        %v683 = vpop.xlane.xlu0 %682
        %v684 = vsel %vm668, %v680, 0.0
        %685 = vadd.xlane.f32.xlu0 %v684
        %v686 = vpop.xlane.xlu0 %685
        %v687 = vpack.c.bf16 %v680, %v678
        %v689 = vsel %vm668, %v687, 0
        %691 = vmatprep.subr.bf16.mxu0 0
        %692 = vmatpush1.bf16.msra.mxu0 %v602
        %693 = vmatprep.subr.bf16.mxu0 0
        %694 = vmatpush1.bf16.msra.mxu0 0
        %695 = vmatprep.subr.bf16.mxu0 0
        %696 = vmatpush1.bf16.msra.mxu0 0
        %697 = vmatprep.subr.bf16.mxu0 0
        %698 = vmatpush1.bf16.msra.mxu0 0
        %699 = vmatprep.subr.bf16.mxu0 0
        %700 = vmatpush1.bf16.msra.mxu0 0
        %701 = vmatprep.subr.bf16.mxu0 0
        %702 = vmatpush1.bf16.msra.mxu0 0
        %703 = vmatprep.subr.bf16.mxu0 0
        %704 = vmatpush1.bf16.msra.mxu0 0
        %705 = vmatprep.subr.bf16.mxu0 0
        %706 = vmatpush1.bf16.msra.mxu0 0
        %707 = vmatprep.subr.bf16.mxu0 0
        %708 = vmatpush1.bf16.msra.mxu0 0
        %709 = vmatprep.subr.bf16.mxu0 0
        %710 = vmatpush1.bf16.msra.mxu0 0
        %711 = vmatprep.subr.bf16.mxu0 0
        %712 = vmatpush1.bf16.msra.mxu0 0
        %713 = vmatprep.subr.bf16.mxu0 0
        %714 = vmatpush1.bf16.msra.mxu0 0
        %715 = vmatprep.subr.bf16.mxu0 0
        %716 = vmatpush1.bf16.msra.mxu0 0
        %717 = vmatprep.subr.bf16.mxu0 0
        %718 = vmatpush1.bf16.msra.mxu0 0
        %719 = vmatprep.subr.bf16.mxu0 0
        %720 = vmatpush1.bf16.msra.mxu0 0
        %721 = vmatprep.subr.bf16.mxu0 0
        %722 = vmatpush1.bf16.msra.mxu0 0
        %723 = vmatprep.mubr.bf16.mxu0 0
        %724 = vmatmul.mubr.bf16.gmra.mrb[0].mxu0 %v689
        %v725 = vpop.f32.mrb[0].mxu0
        %v726 = vadd.f32 0.0, %v725
        %v727 = vpop.f32.mrb[0].mxu0
        %v728 = vpop.f32.mrb[0].mxu0
        %v729 = vadd.f32 0.0, %v728
        %v730 = vpop.f32.mrb[0].mxu0
        %731 = vdwg.mxu0
        %v732 = vrcp.pop %v683
        %v733 = vrcp.pop %v686
        %v734 = vmul.f32 %v726, %v732
        %v735 = vmul.f32 %v729, %v733
        %v736 = vpack.c.bf16 %v735, %v734
        %738 = vrot.lane.b32.xlu0 %v600, 96
        %v739 = vpop.permute.xlu0 %738
        %741 = vrot.lane.b32.xlu0 %v601, 96
        %v742 = vpop.permute.xlu0 %741
        %v744 = vsel %vm620, %v739, 0
        %v747 = vsel %vm620, %v742, 0
        %749 = vmatprep.subr.bf16.mxu0 0
        %750 = vmatpush1.bf16.xpose.msra.mxu0 %v747
        %751 = vmatprep.subr.bf16.mxu0 0
        %752 = vmatpush1.bf16.xpose.msra.mxu0 0
        %753 = vmatprep.subr.bf16.mxu0 0
        %754 = vmatpush1.bf16.xpose.msra.mxu0 0
        %755 = vmatprep.subr.bf16.mxu0 0
        %756 = vmatpush1.bf16.xpose.msra.mxu0 0
        %757 = vmatprep.subr.bf16.mxu0 0
        %758 = vmatpush1.bf16.xpose.msra.mxu0 0
        %759 = vmatprep.subr.bf16.mxu0 0
        %760 = vmatpush1.bf16.xpose.msra.mxu0 0
        %761 = vmatprep.subr.bf16.mxu0 0
        %762 = vmatpush1.bf16.xpose.msra.mxu0 0
        %763 = vmatprep.subr.bf16.mxu0 0
        %764 = vmatpush1.bf16.xpose.msra.mxu0 0
        %765 = vmatprep.subr.bf16.mxu0 0
        %766 = vmatpush1.bf16.xpose.msra.mxu0 0
        %767 = vmatprep.subr.bf16.mxu0 0
        %768 = vmatpush1.bf16.xpose.msra.mxu0 0
        %769 = vmatprep.subr.bf16.mxu0 0
        %770 = vmatpush1.bf16.xpose.msra.mxu0 0
        %771 = vmatprep.subr.bf16.mxu0 0
        %772 = vmatpush1.bf16.xpose.msra.mxu0 0
        %773 = vmatprep.subr.bf16.mxu0 0
        %774 = vmatpush1.bf16.xpose.msra.mxu0 0
        %775 = vmatprep.subr.bf16.mxu0 0
        %776 = vmatpush1.bf16.xpose.msra.mxu0 0
        %777 = vmatprep.subr.bf16.mxu0 0
        %778 = vmatpush1.bf16.xpose.msra.mxu0 0
        %779 = vmatprep.subr.bf16.mxu0 0
        %780 = vmatpush1.bf16.xpose.msra.mxu0 0
        %781 = vmatprep.mubr.bf16.mxu0 0
        %782 = vmatmul.mubr.bf16.gmra.mrb[0].mxu0 %v744
        %v783 = vpop.f32.mrb[0].mxu0
        %v784 = vadd.f32 0.0, %v783
        %v785 = vpop.f32.mrb[0].mxu0
        %v786 = vpop.f32.mrb[0].mxu0
        %v787 = vadd.f32 0.0, %v786
        %v788 = vpop.f32.mrb[0].mxu0
        %789 = vdwg.mxu0
        %v790 = vsel %vm668, %v784, -inf
        %791 = vmax.xlane.f32.xlu0 %v790
        %v792 = vpop.xlane.xlu0 %791
        %v793 = vsel %vm668, %v787, -inf
        %794 = vmax.xlane.f32.xlu0 %v793
        %v795 = vpop.xlane.xlu0 %794
        %v796 = vsub.f32 %v784, %v792
        %v797 = vsub.f32 %v787, %v795
        %v798 = vmul.f32 %v796, 1.442695
        %v799 = vpow.pop %v798
        %v800 = vmul.f32 %v797, 1.442695
        %v801 = vpow.pop %v800
        %v802 = vsel %vm668, %v799, 0.0
        %803 = vadd.xlane.f32.xlu0 %v802
        %v804 = vpop.xlane.xlu0 %803
        %v805 = vsel %vm668, %v801, 0.0
        %806 = vadd.xlane.f32.xlu0 %v805
        %v807 = vpop.xlane.xlu0 %806
        %v808 = vpack.c.bf16 %v801, %v799
        %810 = vrot.lane.b32.xlu0 %v602, 96
        %v811 = vpop.permute.xlu0 %810
        %v814 = vsel %vm668, %v808, 0
        %816 = vmatprep.subr.bf16.mxu0 0
        %817 = vmatpush1.bf16.msra.mxu0 %v811
        %818 = vmatprep.subr.bf16.mxu0 0
        %819 = vmatpush1.bf16.msra.mxu0 0
        %820 = vmatprep.subr.bf16.mxu0 0
        %821 = vmatpush1.bf16.msra.mxu0 0
        %822 = vmatprep.subr.bf16.mxu0 0
        %823 = vmatpush1.bf16.msra.mxu0 0
        %824 = vmatprep.subr.bf16.mxu0 0
        %825 = vmatpush1.bf16.msra.mxu0 0
        %826 = vmatprep.subr.bf16.mxu0 0
        %827 = vmatpush1.bf16.msra.mxu0 0
        %828 = vmatprep.subr.bf16.mxu0 0
        %829 = vmatpush1.bf16.msra.mxu0 0
        %830 = vmatprep.subr.bf16.mxu0 0
        %831 = vmatpush1.bf16.msra.mxu0 0
        %832 = vmatprep.subr.bf16.mxu0 0
        %833 = vmatpush1.bf16.msra.mxu0 0
        %834 = vmatprep.subr.bf16.mxu0 0
        %835 = vmatpush1.bf16.msra.mxu0 0
        %836 = vmatprep.subr.bf16.mxu0 0
        %837 = vmatpush1.bf16.msra.mxu0 0
        %838 = vmatprep.subr.bf16.mxu0 0
        %839 = vmatpush1.bf16.msra.mxu0 0
        %840 = vmatprep.subr.bf16.mxu0 0
        %841 = vmatpush1.bf16.msra.mxu0 0
        %842 = vmatprep.subr.bf16.mxu0 0
        %843 = vmatpush1.bf16.msra.mxu0 0
        %844 = vmatprep.subr.bf16.mxu0 0
        %845 = vmatpush1.bf16.msra.mxu0 0
        %846 = vmatprep.subr.bf16.mxu0 0
        %847 = vmatpush1.bf16.msra.mxu0 0
        %848 = vmatprep.mubr.bf16.mxu0 0
        %849 = vmatmul.mubr.bf16.gmra.mrb[0].mxu0 %v814
        %v850 = vpop.f32.mrb[0].mxu0
        %v851 = vadd.f32 0.0, %v850
        %v852 = vpop.f32.mrb[0].mxu0
        %v853 = vpop.f32.mrb[0].mxu0
        %v854 = vadd.f32 0.0, %v853
        %v855 = vpop.f32.mrb[0].mxu0
        %856 = vdwg.mxu0
        %v857 = vrcp.pop %v804
        %v858 = vrcp.pop %v807
        %v859 = vmul.f32 %v851, %v857
        %v860 = vmul.f32 %v854, %v858
        %v861 = vpack.c.bf16 %v860, %v859
        %v866 = vunpack.c.l.b16 %v607
        %v867 = vunpack.c.l.b16 %v608
        %v868 = vunpack.c.l.b16 %v609
        %v869 = vunpack.c.l.b16 %v610
        %v870 = vpack.c.b16 %v867, %v866
        %v871 = vpack.c.b16 %v869, %v868
        %v875 = vsel %vm620, %v861, 0
        %877 = vmatprep.subr.bf16.mxu0 0
        %878 = vmatpush1.bf16.msra.mxu0 %v870
        %879 = vmatprep.subr.bf16.mxu0 0
        %880 = vmatpush1.bf16.msra.mxu0 %v871
        %881 = vmatprep.subr.bf16.mxu0 0
        %882 = vmatpush1.bf16.msra.mxu0 0
        %883 = vmatprep.subr.bf16.mxu0 0
        %884 = vmatpush1.bf16.msra.mxu0 0
        %885 = vmatprep.subr.bf16.mxu0 0
        %886 = vmatpush1.bf16.msra.mxu0 0
        %887 = vmatprep.subr.bf16.mxu0 0
        %888 = vmatpush1.bf16.msra.mxu0 0
        %889 = vmatprep.subr.bf16.mxu0 0
        %890 = vmatpush1.bf16.msra.mxu0 0
        %891 = vmatprep.subr.bf16.mxu0 0
        %892 = vmatpush1.bf16.msra.mxu0 0
        %893 = vmatprep.subr.bf16.mxu0 0
        %894 = vmatpush1.bf16.msra.mxu0 0
        %895 = vmatprep.subr.bf16.mxu0 0
        %896 = vmatpush1.bf16.msra.mxu0 0
        %897 = vmatprep.subr.bf16.mxu0 0
        %898 = vmatpush1.bf16.msra.mxu0 0
        %899 = vmatprep.subr.bf16.mxu0 0
        %900 = vmatpush1.bf16.msra.mxu0 0
        %901 = vmatprep.subr.bf16.mxu0 0
        %902 = vmatpush1.bf16.msra.mxu0 0
        %903 = vmatprep.subr.bf16.mxu0 0
        %904 = vmatpush1.bf16.msra.mxu0 0
        %905 = vmatprep.subr.bf16.mxu0 0
        %906 = vmatpush1.bf16.msra.mxu0 0
        %907 = vmatprep.subr.bf16.mxu0 0
        %908 = vmatpush1.bf16.msra.mxu0 0
        %909 = vmatprep.mubr.bf16.mxu0 0
        %910 = vmatmul.mubr.bf16.gmra.mrb[0].mxu0 %v875
        %v911 = vpop.f32.mrb[0].mxu0
        %v912 = vadd.f32 0.0, %v911
        %v913 = vpop.f32.mrb[0].mxu0
        %v914 = vpop.f32.mrb[0].mxu0
        %v915 = vadd.f32 0.0, %v914
        %v916 = vpop.f32.mrb[0].mxu0
        %917 = vdwg.mxu0
        %v922 = vunpack.c.l.b16 %v603
        %v923 = vunpack.c.l.b16 %v604
        %v924 = vunpack.c.l.b16 %v605
        %v925 = vunpack.c.l.b16 %v606
        %v926 = vpack.c.b16 %v923, %v922
        %v927 = vpack.c.b16 %v925, %v924
        %v931 = vsel %vm620, %v736, 0
        %933 = vmatprep.subr.bf16.mxu0 0
        %934 = vmatpush1.bf16.msra.mxu0 %v926
        %935 = vmatprep.subr.bf16.mxu0 0
        %936 = vmatpush1.bf16.msra.mxu0 %v927
        %937 = vmatprep.subr.bf16.mxu0 0
        %938 = vmatpush1.bf16.msra.mxu0 0
        %939 = vmatprep.subr.bf16.mxu0 0
        %940 = vmatpush1.bf16.msra.mxu0 0
        %941 = vmatprep.subr.bf16.mxu0 0
        %942 = vmatpush1.bf16.msra.mxu0 0
        %943 = vmatprep.subr.bf16.mxu0 0
        %944 = vmatpush1.bf16.msra.mxu0 0
        %945 = vmatprep.subr.bf16.mxu0 0
        %946 = vmatpush1.bf16.msra.mxu0 0
        %947 = vmatprep.subr.bf16.mxu0 0
        %948 = vmatpush1.bf16.msra.mxu0 0
        %949 = vmatprep.subr.bf16.mxu0 0
        %950 = vmatpush1.bf16.msra.mxu0 0
        %951 = vmatprep.subr.bf16.mxu0 0
        %952 = vmatpush1.bf16.msra.mxu0 0
        %953 = vmatprep.subr.bf16.mxu0 0
        %954 = vmatpush1.bf16.msra.mxu0 0
        %955 = vmatprep.subr.bf16.mxu0 0
        %956 = vmatpush1.bf16.msra.mxu0 0
        %957 = vmatprep.subr.bf16.mxu0 0
        %958 = vmatpush1.bf16.msra.mxu0 0
        %959 = vmatprep.subr.bf16.mxu0 0
        %960 = vmatpush1.bf16.msra.mxu0 0
        %961 = vmatprep.subr.bf16.mxu0 0
        %962 = vmatpush1.bf16.msra.mxu0 0
        %963 = vmatprep.subr.bf16.mxu0 0
        %964 = vmatpush1.bf16.msra.mxu0 0
        %965 = vmatprep.mubr.bf16.mxu0 0
        %966 = vmatmul.mubr.bf16.gmra.mrb[0].mxu0 %v931
        %v967 = vpop.f32.mrb[0].mxu0
        %v968 = vadd.f32 %v912, %v967
        %v969 = vpop.f32.mrb[0].mxu0
        %v970 = vpop.f32.mrb[0].mxu0
        %v971 = vadd.f32 %v915, %v970
        %v972 = vpop.f32.mrb[0].mxu0
        %973 = vdwg.mxu0
        %974 = vrot.lane.b32.xlu0 %v600, 64
        %v975 = vpop.permute.xlu0 %974
        %976 = vrot.lane.b32.xlu0 %v601, 64
        %v977 = vpop.permute.xlu0 %976
        %v979 = vsel %vm620, %v975, 0
        %v982 = vsel %vm620, %v977, 0
        %984 = vmatprep.subr.bf16.mxu0 0
        %985 = vmatpush1.bf16.xpose.msra.mxu0 %v982
        %986 = vmatprep.subr.bf16.mxu0 0
        %987 = vmatpush1.bf16.xpose.msra.mxu0 0
        %988 = vmatprep.subr.bf16.mxu0 0
        %989 = vmatpush1.bf16.xpose.msra.mxu0 0
        %990 = vmatprep.subr.bf16.mxu0 0
        %991 = vmatpush1.bf16.xpose.msra.mxu0 0
        %992 = vmatprep.subr.bf16.mxu0 0
        %993 = vmatpush1.bf16.xpose.msra.mxu0 0
        %994 = vmatprep.subr.bf16.mxu0 0
        %995 = vmatpush1.bf16.xpose.msra.mxu0 0
        %996 = vmatprep.subr.bf16.mxu0 0
        %997 = vmatpush1.bf16.xpose.msra.mxu0 0
        %998 = vmatprep.subr.bf16.mxu0 0
        %999 = vmatpush1.bf16.xpose.msra.mxu0 0
        %1000 = vmatprep.subr.bf16.mxu0 0
        %1001 = vmatpush1.bf16.xpose.msra.mxu0 0
        %1002 = vmatprep.subr.bf16.mxu0 0
        %1003 = vmatpush1.bf16.xpose.msra.mxu0 0
        %1004 = vmatprep.subr.bf16.mxu0 0
        %1005 = vmatpush1.bf16.xpose.msra.mxu0 0
        %1006 = vmatprep.subr.bf16.mxu0 0
        %1007 = vmatpush1.bf16.xpose.msra.mxu0 0
        %1008 = vmatprep.subr.bf16.mxu0 0
        %1009 = vmatpush1.bf16.xpose.msra.mxu0 0
        %1010 = vmatprep.subr.bf16.mxu0 0
        %1011 = vmatpush1.bf16.xpose.msra.mxu0 0
        %1012 = vmatprep.subr.bf16.mxu0 0
        %1013 = vmatpush1.bf16.xpose.msra.mxu0 0
        %1014 = vmatprep.subr.bf16.mxu0 0
        %1015 = vmatpush1.bf16.xpose.msra.mxu0 0
        %1016 = vmatprep.mubr.bf16.mxu0 0
        %1017 = vmatmul.mubr.bf16.gmra.mrb[0].mxu0 %v979
        %v1018 = vpop.f32.mrb[0].mxu0
        %v1019 = vadd.f32 0.0, %v1018
        %v1020 = vpop.f32.mrb[0].mxu0
        %v1021 = vpop.f32.mrb[0].mxu0
        %v1022 = vadd.f32 0.0, %v1021
        %v1023 = vpop.f32.mrb[0].mxu0
        %1024 = vdwg.mxu0
        %v1025 = vsel %vm668, %v1019, -inf
        %1026 = vmax.xlane.f32.xlu0 %v1025
        %v1027 = vpop.xlane.xlu0 %1026
        %v1028 = vsel %vm668, %v1022, -inf
        %1029 = vmax.xlane.f32.xlu0 %v1028
        %v1030 = vpop.xlane.xlu0 %1029
        %v1031 = vsub.f32 %v1019, %v1027
        %v1032 = vsub.f32 %v1022, %v1030
        %v1033 = vmul.f32 %v1031, 1.442695
        %v1034 = vpow.pop %v1033
        %v1035 = vmul.f32 %v1032, 1.442695
        %v1036 = vpow.pop %v1035
        %v1037 = vsel %vm668, %v1034, 0.0
        %1038 = vadd.xlane.f32.xlu0 %v1037
        %v1039 = vpop.xlane.xlu0 %1038
        %v1040 = vsel %vm668, %v1036, 0.0
        %1041 = vadd.xlane.f32.xlu0 %v1040
        %v1042 = vpop.xlane.xlu0 %1041
        %v1043 = vpack.c.bf16 %v1036, %v1034
        %1044 = vrot.lane.b32.xlu0 %v602, 64
        %v1045 = vpop.permute.xlu0 %1044
        %v1048 = vsel %vm668, %v1043, 0
        %1050 = vmatprep.subr.bf16.mxu0 0
        %1051 = vmatpush1.bf16.msra.mxu0 %v1045
        %1052 = vmatprep.subr.bf16.mxu0 0
        %1053 = vmatpush1.bf16.msra.mxu0 0
        %1054 = vmatprep.subr.bf16.mxu0 0
        %1055 = vmatpush1.bf16.msra.mxu0 0
        %1056 = vmatprep.subr.bf16.mxu0 0
        %1057 = vmatpush1.bf16.msra.mxu0 0
        %1058 = vmatprep.subr.bf16.mxu0 0
        %1059 = vmatpush1.bf16.msra.mxu0 0
        %1060 = vmatprep.subr.bf16.mxu0 0
        %1061 = vmatpush1.bf16.msra.mxu0 0
        %1062 = vmatprep.subr.bf16.mxu0 0
        %1063 = vmatpush1.bf16.msra.mxu0 0
        %1064 = vmatprep.subr.bf16.mxu0 0
        %1065 = vmatpush1.bf16.msra.mxu0 0
        %1066 = vmatprep.subr.bf16.mxu0 0
        %1067 = vmatpush1.bf16.msra.mxu0 0
        %1068 = vmatprep.subr.bf16.mxu0 0
        %1069 = vmatpush1.bf16.msra.mxu0 0
        %1070 = vmatprep.subr.bf16.mxu0 0
        %1071 = vmatpush1.bf16.msra.mxu0 0
        %1072 = vmatprep.subr.bf16.mxu0 0
        %1073 = vmatpush1.bf16.msra.mxu0 0
        %1074 = vmatprep.subr.bf16.mxu0 0
        %1075 = vmatpush1.bf16.msra.mxu0 0
        %1076 = vmatprep.subr.bf16.mxu0 0
        %1077 = vmatpush1.bf16.msra.mxu0 0
        %1078 = vmatprep.subr.bf16.mxu0 0
        %1079 = vmatpush1.bf16.msra.mxu0 0
        %1080 = vmatprep.subr.bf16.mxu0 0
        %1081 = vmatpush1.bf16.msra.mxu0 0
        %1082 = vmatprep.mubr.bf16.mxu0 0
        %1083 = vmatmul.mubr.bf16.gmra.mrb[0].mxu0 %v1048
        %v1084 = vpop.f32.mrb[0].mxu0
        %v1085 = vadd.f32 0.0, %v1084
        %v1086 = vpop.f32.mrb[0].mxu0
        %v1087 = vpop.f32.mrb[0].mxu0
        %v1088 = vadd.f32 0.0, %v1087
        %v1089 = vpop.f32.mrb[0].mxu0
        %1090 = vdwg.mxu0
        %v1091 = vrcp.pop %v1039
        %v1092 = vrcp.pop %v1042
        %v1093 = vmul.f32 %v1085, %v1091
        %v1094 = vmul.f32 %v1088, %v1092
        %v1095 = vpack.c.bf16 %v1094, %v1093
        %v1100 = vunpack.c.l.b16 %v611
        %v1101 = vunpack.c.l.b16 %v612
        %v1102 = vunpack.c.l.b16 %v613
        %v1103 = vunpack.c.l.b16 %v614
        %v1104 = vpack.c.b16 %v1101, %v1100
        %v1105 = vpack.c.b16 %v1103, %v1102
        %v1109 = vsel %vm620, %v1095, 0
        %1111 = vmatprep.subr.bf16.mxu0 0
        %1112 = vmatpush1.bf16.msra.mxu0 %v1104
        %1113 = vmatprep.subr.bf16.mxu0 0
        %1114 = vmatpush1.bf16.msra.mxu0 %v1105
        %1115 = vmatprep.subr.bf16.mxu0 0
        %1116 = vmatpush1.bf16.msra.mxu0 0
        %1117 = vmatprep.subr.bf16.mxu0 0
        %1118 = vmatpush1.bf16.msra.mxu0 0
        %1119 = vmatprep.subr.bf16.mxu0 0
        %1120 = vmatpush1.bf16.msra.mxu0 0
        %1121 = vmatprep.subr.bf16.mxu0 0
        %1122 = vmatpush1.bf16.msra.mxu0 0
        %1123 = vmatprep.subr.bf16.mxu0 0
        %1124 = vmatpush1.bf16.msra.mxu0 0
        %1125 = vmatprep.subr.bf16.mxu0 0
        %1126 = vmatpush1.bf16.msra.mxu0 0
        %1127 = vmatprep.subr.bf16.mxu0 0
        %1128 = vmatpush1.bf16.msra.mxu0 0
        %1129 = vmatprep.subr.bf16.mxu0 0
        %1130 = vmatpush1.bf16.msra.mxu0 0
        %1131 = vmatprep.subr.bf16.mxu0 0
        %1132 = vmatpush1.bf16.msra.mxu0 0
        %1133 = vmatprep.subr.bf16.mxu0 0
        %1134 = vmatpush1.bf16.msra.mxu0 0
        %1135 = vmatprep.subr.bf16.mxu0 0
        %1136 = vmatpush1.bf16.msra.mxu0 0
        %1137 = vmatprep.subr.bf16.mxu0 0
        %1138 = vmatpush1.bf16.msra.mxu0 0
        %1139 = vmatprep.subr.bf16.mxu0 0
        %1140 = vmatpush1.bf16.msra.mxu0 0
        %1141 = vmatprep.subr.bf16.mxu0 0
        %1142 = vmatpush1.bf16.msra.mxu0 0
        %1143 = vmatprep.mubr.bf16.mxu0 0
        %1144 = vmatmul.mubr.bf16.gmra.mrb[0].mxu0 %v1109
        %v1145 = vpop.f32.mrb[0].mxu0
        %v1146 = vadd.f32 0.0, %v1145
        %v1147 = vpop.f32.mrb[0].mxu0
        %v1148 = vpop.f32.mrb[0].mxu0
        %v1149 = vadd.f32 0.0, %v1148
        %v1150 = vpop.f32.mrb[0].mxu0
        %1151 = vdwg.mxu0
        %v1152 = vadd.f32 %v968, %v1146
        %v1153 = vadd.f32 %v971, %v1149
        %1154 = vrot.lane.b32.xlu0 %v600, 32
        %v1155 = vpop.permute.xlu0 %1154
        %1156 = vrot.lane.b32.xlu0 %v601, 32
        %v1157 = vpop.permute.xlu0 %1156
        %v1159 = vsel %vm620, %v1155, 0
        %v1162 = vsel %vm620, %v1157, 0
        %1164 = vmatprep.subr.bf16.mxu0 0
        %1165 = vmatpush1.bf16.xpose.msra.mxu0 %v1162
        %1166 = vmatprep.subr.bf16.mxu0 0
        %1167 = vmatpush1.bf16.xpose.msra.mxu0 0
        %1168 = vmatprep.subr.bf16.mxu0 0
        %1169 = vmatpush1.bf16.xpose.msra.mxu0 0
        %1170 = vmatprep.subr.bf16.mxu0 0
        %1171 = vmatpush1.bf16.xpose.msra.mxu0 0
        %1172 = vmatprep.subr.bf16.mxu0 0
        %1173 = vmatpush1.bf16.xpose.msra.mxu0 0
        %1174 = vmatprep.subr.bf16.mxu0 0
        %1175 = vmatpush1.bf16.xpose.msra.mxu0 0
        %1176 = vmatprep.subr.bf16.mxu0 0
        %1177 = vmatpush1.bf16.xpose.msra.mxu0 0
        %1178 = vmatprep.subr.bf16.mxu0 0
        %1179 = vmatpush1.bf16.xpose.msra.mxu0 0
        %1180 = vmatprep.subr.bf16.mxu0 0
        %1181 = vmatpush1.bf16.xpose.msra.mxu0 0
        %1182 = vmatprep.subr.bf16.mxu0 0
        %1183 = vmatpush1.bf16.xpose.msra.mxu0 0
        %1184 = vmatprep.subr.bf16.mxu0 0
        %1185 = vmatpush1.bf16.xpose.msra.mxu0 0
        %1186 = vmatprep.subr.bf16.mxu0 0
        %1187 = vmatpush1.bf16.xpose.msra.mxu0 0
        %1188 = vmatprep.subr.bf16.mxu0 0
        %1189 = vmatpush1.bf16.xpose.msra.mxu0 0
        %1190 = vmatprep.subr.bf16.mxu0 0
        %1191 = vmatpush1.bf16.xpose.msra.mxu0 0
        %1192 = vmatprep.subr.bf16.mxu0 0
        %1193 = vmatpush1.bf16.xpose.msra.mxu0 0
        %1194 = vmatprep.subr.bf16.mxu0 0
        %1195 = vmatpush1.bf16.xpose.msra.mxu0 0
        %1196 = vmatprep.mubr.bf16.mxu0 0
        %1197 = vmatmul.mubr.bf16.gmra.mrb[0].mxu0 %v1159
        %v1198 = vpop.f32.mrb[0].mxu0
        %v1199 = vadd.f32 0.0, %v1198
        %v1200 = vpop.f32.mrb[0].mxu0
        %v1201 = vpop.f32.mrb[0].mxu0
        %v1202 = vadd.f32 0.0, %v1201
        %v1203 = vpop.f32.mrb[0].mxu0
        %1204 = vdwg.mxu0
        %v1205 = vsel %vm668, %v1199, -inf
        %1206 = vmax.xlane.f32.xlu0 %v1205
        %v1207 = vpop.xlane.xlu0 %1206
        %v1208 = vsel %vm668, %v1202, -inf
        %1209 = vmax.xlane.f32.xlu0 %v1208
        %v1210 = vpop.xlane.xlu0 %1209
        %v1211 = vsub.f32 %v1199, %v1207
        %v1212 = vsub.f32 %v1202, %v1210
        %v1213 = vmul.f32 %v1211, 1.442695
        %v1214 = vpow.pop %v1213
        %v1215 = vmul.f32 %v1212, 1.442695
        %v1216 = vpow.pop %v1215
        %v1217 = vsel %vm668, %v1214, 0.0
        %1218 = vadd.xlane.f32.xlu0 %v1217
        %v1219 = vpop.xlane.xlu0 %1218
        %v1220 = vsel %vm668, %v1216, 0.0
        %1221 = vadd.xlane.f32.xlu0 %v1220
        %v1222 = vpop.xlane.xlu0 %1221
        %v1223 = vpack.c.bf16 %v1216, %v1214
        %1224 = vrot.lane.b32.xlu0 %v602, 32
        %v1225 = vpop.permute.xlu0 %1224
        %v1228 = vsel %vm668, %v1223, 0
        %1230 = vmatprep.subr.bf16.mxu0 0
        %1231 = vmatpush1.bf16.msra.mxu0 %v1225
        %1232 = vmatprep.subr.bf16.mxu0 0
        %1233 = vmatpush1.bf16.msra.mxu0 0
        %1234 = vmatprep.subr.bf16.mxu0 0
        %1235 = vmatpush1.bf16.msra.mxu0 0
        %1236 = vmatprep.subr.bf16.mxu0 0
        %1237 = vmatpush1.bf16.msra.mxu0 0
        %1238 = vmatprep.subr.bf16.mxu0 0
        %1239 = vmatpush1.bf16.msra.mxu0 0
        %1240 = vmatprep.subr.bf16.mxu0 0
        %1241 = vmatpush1.bf16.msra.mxu0 0
        %1242 = vmatprep.subr.bf16.mxu0 0
        %1243 = vmatpush1.bf16.msra.mxu0 0
        %1244 = vmatprep.subr.bf16.mxu0 0
        %1245 = vmatpush1.bf16.msra.mxu0 0
        %1246 = vmatprep.subr.bf16.mxu0 0
        %1247 = vmatpush1.bf16.msra.mxu0 0
        %1248 = vmatprep.subr.bf16.mxu0 0
        %1249 = vmatpush1.bf16.msra.mxu0 0
        %1250 = vmatprep.subr.bf16.mxu0 0
        %1251 = vmatpush1.bf16.msra.mxu0 0
        %1252 = vmatprep.subr.bf16.mxu0 0
        %1253 = vmatpush1.bf16.msra.mxu0 0
        %1254 = vmatprep.subr.bf16.mxu0 0
        %1255 = vmatpush1.bf16.msra.mxu0 0
        %1256 = vmatprep.subr.bf16.mxu0 0
        %1257 = vmatpush1.bf16.msra.mxu0 0
        %1258 = vmatprep.subr.bf16.mxu0 0
        %1259 = vmatpush1.bf16.msra.mxu0 0
        %1260 = vmatprep.subr.bf16.mxu0 0
        %1261 = vmatpush1.bf16.msra.mxu0 0
        %1262 = vmatprep.mubr.bf16.mxu0 0
        %1263 = vmatmul.mubr.bf16.gmra.mrb[0].mxu0 %v1228
        %v1264 = vpop.f32.mrb[0].mxu0
        %v1265 = vadd.f32 0.0, %v1264
        %v1266 = vpop.f32.mrb[0].mxu0
        %v1267 = vpop.f32.mrb[0].mxu0
        %v1268 = vadd.f32 0.0, %v1267
        %v1269 = vpop.f32.mrb[0].mxu0
        %1270 = vdwg.mxu0
        %v1271 = vrcp.pop %v1219
        %v1272 = vrcp.pop %v1222
        %v1273 = vmul.f32 %v1265, %v1271
        %v1274 = vmul.f32 %v1268, %v1272
        %v1275 = vpack.c.bf16 %v1274, %v1273
        %v1280 = vunpack.c.l.b16 %v615
        %v1281 = vunpack.c.l.b16 %v616
        %v1282 = vunpack.c.l.b16 %v617
        %v1283 = vunpack.c.l.b16 %v618
        %v1284 = vpack.c.b16 %v1281, %v1280
        %v1285 = vpack.c.b16 %v1283, %v1282
        %v1289 = vsel %vm620, %v1275, 0
        %1291 = vmatprep.subr.bf16.mxu0 0
        %1292 = vmatpush1.bf16.msra.mxu0 %v1284
        %1293 = vmatprep.subr.bf16.mxu0 0
        %1294 = vmatpush1.bf16.msra.mxu0 %v1285
        %1295 = vmatprep.subr.bf16.mxu0 0
        %1296 = vmatpush1.bf16.msra.mxu0 0
        %1297 = vmatprep.subr.bf16.mxu0 0
        %1298 = vmatpush1.bf16.msra.mxu0 0
        %1299 = vmatprep.subr.bf16.mxu0 0
        %1300 = vmatpush1.bf16.msra.mxu0 0
        %1301 = vmatprep.subr.bf16.mxu0 0
        %1302 = vmatpush1.bf16.msra.mxu0 0
        %1303 = vmatprep.subr.bf16.mxu0 0
        %1304 = vmatpush1.bf16.msra.mxu0 0
        %1305 = vmatprep.subr.bf16.mxu0 0
        %1306 = vmatpush1.bf16.msra.mxu0 0
        %1307 = vmatprep.subr.bf16.mxu0 0
        %1308 = vmatpush1.bf16.msra.mxu0 0
        %1309 = vmatprep.subr.bf16.mxu0 0
        %1310 = vmatpush1.bf16.msra.mxu0 0
        %1311 = vmatprep.subr.bf16.mxu0 0
        %1312 = vmatpush1.bf16.msra.mxu0 0
        %1313 = vmatprep.subr.bf16.mxu0 0
        %1314 = vmatpush1.bf16.msra.mxu0 0
        %1315 = vmatprep.subr.bf16.mxu0 0
        %1316 = vmatpush1.bf16.msra.mxu0 0
        %1317 = vmatprep.subr.bf16.mxu0 0
        %1318 = vmatpush1.bf16.msra.mxu0 0
        %1319 = vmatprep.subr.bf16.mxu0 0
        %1320 = vmatpush1.bf16.msra.mxu0 0
        %1321 = vmatprep.subr.bf16.mxu0 0
        %1322 = vmatpush1.bf16.msra.mxu0 0
        %1323 = vmatprep.mubr.bf16.mxu0 0
        %1324 = vmatmul.mubr.bf16.gmra.mrb[0].mxu0 %v1289
        %v1325 = vpop.f32.mrb[0].mxu0
        %v1326 = vadd.f32 0.0, %v1325
        %v1327 = vpop.f32.mrb[0].mxu0
        %v1328 = vpop.f32.mrb[0].mxu0
        %v1329 = vadd.f32 0.0, %v1328
        %v1330 = vpop.f32.mrb[0].mxu0
        %1331 = vdwg.mxu0
        %v1332 = vadd.f32 %v1152, %v1326
        %v1333 = vadd.f32 %v1153, %v1329
        %v1335 = vlaneseq
        %v1336 = vshrl.u32 %v1335, 7
        %v1337 = vsub.s32 0, %v1336
        %v1338 = vrot.slane %v619, %v1337
        %v1340 = vadd.f32 %v1332, %v1338
        %v1341 = vadd.f32 %v1333, %v1338
        %v1342 = vunpack.c.l.bf16 %v331
        %v1343 = vunpack.c.l.bf16 %v332
        %v1344 = vadd.f32 %v1340, %v1342
        %v1345 = vadd.f32 %v1341, %v1343
        %v1346 = vld [vmem:[#allocation6] sm:$0x1]
        %v1347 = vld [vmem:[#allocation7] sm:$0x1]
        %1348 = vadd.xlane.f32.xlu0 %v1344
        %v1349 = vpop.xlane.xlu0 %1348
        %1350 = vadd.xlane.f32.xlu0 %v1345
        %v1351 = vpop.xlane.xlu0 %1350
        %v1352 = vrcp.pop 128.0
        %v1353 = vmul.f32 %v1349, %v1352
        %v1354 = vmul.f32 %v1351, %v1352
        %v1355 = vsub.f32 %v1344, %v1353
        %v1356 = vsub.f32 %v1345, %v1354
        %v1357 = vmul.f32 %v1355, %v1355
        %v1358 = vmul.f32 %v1356, %v1356
        %1359 = vadd.xlane.f32.xlu0 %v1357
        %v1360 = vpop.xlane.xlu0 %1359
        %1361 = vadd.xlane.f32.xlu0 %v1358
        %v1362 = vpop.xlane.xlu0 %1361
        %v1363 = vmul.f32 %v1360, %v1352
        %v1364 = vmul.f32 %v1362, %v1352
        %v1365 = vadd.f32 %v1363, 1e-05
        %v1366 = vadd.f32 %v1364, 1e-05
        %v1367 = vrsqrt.pop %v1365
        %v1368 = vrsqrt.pop %v1366
        %v1369 = vmul.f32 %v1355, %v1367
        %v1370 = vmul.f32 %v1356, %v1368
        %v1372 = vlaneseq
        %v1373 = vshrl.u32 %v1372, 7
        %v1374 = vsub.s32 0, %v1373
        %v1375 = vrot.slane %v1346, %v1374
        %v1377 = vmul.f32 %v1369, %v1375
        %v1378 = vmul.f32 %v1370, %v1375
        %v1380 = vlaneseq
        %v1381 = vshrl.u32 %v1380, 7
        %v1382 = vsub.s32 0, %v1381
        %v1383 = vrot.slane %v1347, %v1382
        %v1385 = vadd.f32 %v1377, %v1383
        %v1386 = vadd.f32 %v1378, %v1383
        %v1387 = vpack.c.bf16 %v1386, %v1385
        %v1389 = vunpack.c.l.b16 %v1387
        %v1390 = vunpack.c.h.b16 %v1387
        %v1391 = vpack.c.b16 %v1389, %v1389
        %v1392 = vpack.c.b16 %v1390, %v1390
        %1395 = vst [vmem:[%s329] sm:$0xf] %v1391
        %1396 = vst [vmem:[%s329 + $0x4] sm:$0xf] %v1392
        %p1397 = scmp.lt.s32.totalorder %s21, 1
        %s1398 = scalar_select %p1397, %s21, 1
        %s1399 = smul.addr %s1398, 2
        %s1400 = smul.addr %s1399, 4
        %s1401 = scalar_lea.vmem %s7, %s1400
        // Predicated region
        $region65: #{transformer_gen.11} parent=47 // pred_check
          %p1402 = pneg %p191
        $region66: #{transformer_gen.11} parent=47 // pred_check_branch
          %1404 = sbr.rel (%p1402) target = $region68
        $region67: #{transformer_gen.11} parent=47 // pred_region
          _
        $region68: #{transformer_gen.11} parent=47 // pred_fallthru
          _
      $region48: #{transformer_gen.11} parent=5 // pred_fallthru
        _
      %p1405 = scmp.le.s32.totalorder 2, %s16
      // Predicated region
      $region69: #{transformer_gen.11} parent=5 // pred_check
        %p1406 = pneg %p1405
      $region70: #{transformer_gen.11} parent=5 // pred_check_branch
        %1408 = sbr.rel (%p1406) target = $region72
      $region71: #{transformer_gen.11} parent=5 // pred_region
        %s1409 = ssub.s32 %s16, 2
        // Predicated region
        $region73: #{transformer_gen.11} parent=71 // pred_check
          %p1410 = pneg %p197
        $region74: #{transformer_gen.11} parent=71 // pred_check_branch
          %1412 = sbr.rel (%p1410) target = $region76
        $region75: #{transformer_gen.11} parent=71 // pred_region
          %p1413 = scmp.lt.s32.totalorder %s22, 1
          %s1414 = scalar_select %p1413, %s22, 1
          %s1415 = smul.addr %s1414, 2
          %s1416 = smul.addr %s1415, 4
          %s1417 = scalar_lea.vmem %s7, %s1416
        $region76: #{transformer_gen.11} parent=71 // pred_fallthru
          _
      $region72: #{transformer_gen.11} parent=5 // pred_fallthru
        _
    $region6: #{transformer_gen.11} parent=1 // loop_footer
      %s20 = sadd.s32 1, %s16
    $region7: #{transformer_gen.11} parent=1 // loop_footer_branch
      %15 = sbr.rel target = $region3
    $region8: #{transformer_gen.11} parent=1 // loop_exit
      _
    %1418 = vsyncpa [#allocation3], 1
    %s1419 = scalar_lea.sflag [#allocation3], 1
    %1420 = vsyncpa %s1419, 1
    %1421 = vsyncpa [#allocation5], 1
    %1422 = vsyncpa [#allocation8], 1

// kernel: transformer_gen.14
$region0: #{transformer_gen.14}
  #allocation0 [shape = 'u32[]', space=smem, size = 0x4, offset = 0x4, fixed_abs, tag = 'smem constant byte address 0x4 - core index']
  #allocation1 [shape = 'u32[144,128]{1,0:T(1,128)}', space=vmem, size = 0x12000, scoped, tag = 'internal scratch']
  %s0 = inlined_call_operand.vmem [shape: bf16[32,128], index: 0, kind: input, shape index: {}]
  %s1 = inlined_call_operand.vmem [shape: bf16[128,256], index: 1, kind: input, shape index: {}]
  %s2 = inlined_call_operand.vmem [shape: f32[1,256], index: 2, kind: input, shape index: {}]
  %s3 = inlined_call_operand.vmem [shape: bf16[256,128], index: 3, kind: input, shape index: {}]
  %s4 = inlined_call_operand.vmem [shape: f32[1,128], index: 4, kind: input, shape index: {}]
  %s5 = inlined_call_operand.vmem [shape: f32[1,128], index: 5, kind: input, shape index: {}]
  %s6 = inlined_call_operand.vmem [shape: f32[1,128], index: 6, kind: input, shape index: {}]
  %s7 = inlined_call_operand.vmem [shape: f32[1,128], index: 7, kind: input, shape index: {}]
  %s8 = inlined_call_operand.vmem [shape: f32[1,128], index: 8, kind: input, shape index: {}]
  %s9 = inlined_call_operand.vmem [shape: bf16[32,128], index: 9, kind: output, shape index: {}]
  %s10 = sld [smem:[#allocation0]]
  $region46: #{transformer_gen.14} parent=0
    _
  %s12 = ssub.s32 1, %s10
  %s13 = scalar_select 0, %s12, %s10
  // Predicated region
  $region2: #{transformer_gen.14} parent=0 // pred_check
    _
  $region3: #{transformer_gen.14} parent=0 // pred_check_branch
    %15 = sbr.rel (0) target = $region5
  $region4: #{transformer_gen.14} parent=0 // pred_region
    _
  $region5: #{transformer_gen.14} parent=0 // pred_fallthru
    _
  // Predicated region
  $region6: #{transformer_gen.14} parent=0 // pred_check
    _
  $region7: #{transformer_gen.14} parent=0 // pred_check_branch
    %17 = sbr.rel (0) target = $region9
  $region8: #{transformer_gen.14} parent=0 // pred_region
    _
  $region9: #{transformer_gen.14} parent=0 // pred_fallthru
    _
  // Predicated region
  $region10: #{transformer_gen.14} parent=0 // pred_check
    _
  $region11: #{transformer_gen.14} parent=0 // pred_check_branch
    %19 = sbr.rel (0) target = $region13
  $region12: #{transformer_gen.14} parent=0 // pred_region
    _
  $region13: #{transformer_gen.14} parent=0 // pred_fallthru
    _
  // Predicated region
  $region14: #{transformer_gen.14} parent=0 // pred_check
    _
  $region15: #{transformer_gen.14} parent=0 // pred_check_branch
    %21 = sbr.rel (0) target = $region17
  $region16: #{transformer_gen.14} parent=0 // pred_region
    _
  $region17: #{transformer_gen.14} parent=0 // pred_fallthru
    _
  // Predicated region
  $region18: #{transformer_gen.14} parent=0 // pred_check
    _
  $region19: #{transformer_gen.14} parent=0 // pred_check_branch
    %23 = sbr.rel (0) target = $region21
  $region20: #{transformer_gen.14} parent=0 // pred_region
    _
  $region21: #{transformer_gen.14} parent=0 // pred_fallthru
    _
  // Predicated region
  $region22: #{transformer_gen.14} parent=0 // pred_check
    _
  $region23: #{transformer_gen.14} parent=0 // pred_check_branch
    %25 = sbr.rel (0) target = $region25
  $region24: #{transformer_gen.14} parent=0 // pred_region
    _
  $region25: #{transformer_gen.14} parent=0 // pred_fallthru
    _
  // Predicated region
  $region26: #{transformer_gen.14} parent=0 // pred_check
    _
  $region27: #{transformer_gen.14} parent=0 // pred_check_branch
    %27 = sbr.rel (0) target = $region29
  $region28: #{transformer_gen.14} parent=0 // pred_region
    _
  $region29: #{transformer_gen.14} parent=0 // pred_fallthru
    _
  // Predicated region
  $region30: #{transformer_gen.14} parent=0 // pred_check
    _
  $region31: #{transformer_gen.14} parent=0 // pred_check_branch
    %29 = sbr.rel (0) target = $region33
  $region32: #{transformer_gen.14} parent=0 // pred_region
    _
  $region33: #{transformer_gen.14} parent=0 // pred_fallthru
    _
  // Predicated region
  $region34: #{transformer_gen.14} parent=0 // pred_check
    _
  $region35: #{transformer_gen.14} parent=0 // pred_check_branch
    %31 = sbr.rel (0) target = $region37
  $region36: #{transformer_gen.14} parent=0 // pred_region
    _
  $region37: #{transformer_gen.14} parent=0 // pred_fallthru
    _
  %v33 = vld [vmem:[%s0] sm:$0xf]
  %v34 = vld [vmem:[%s0 + $0x4] sm:$0xf]
  %v35 = vld [vmem:[%s0 + $0x8] sm:$0xf]
  %v36 = vld [vmem:[%s0 + $0xc] sm:$0xf]
  %v37 = vld [vmem:[%s1] sm:$0xff]
  %v38 = vld [vmem:[%s1 + $0x8] sm:$0xff]
  %v39 = vld [vmem:[%s1 + $0x10] sm:$0xff]
  %v40 = vld [vmem:[%s1 + $0x18] sm:$0xff]
  %v41 = vld [vmem:[%s1 + $0x20] sm:$0xff]
  %v42 = vld [vmem:[%s1 + $0x28] sm:$0xff]
  %v43 = vld [vmem:[%s1 + $0x30] sm:$0xff]
  %v44 = vld [vmem:[%s1 + $0x38] sm:$0xff]
  %v45 = vld [vmem:[%s1 + $0x40] sm:$0xff]
  %v46 = vld [vmem:[%s1 + $0x48] sm:$0xff]
  %v47 = vld [vmem:[%s1 + $0x50] sm:$0xff]
  %v48 = vld [vmem:[%s1 + $0x58] sm:$0xff]
  %v49 = vld [vmem:[%s1 + $0x60] sm:$0xff]
  %v50 = vld [vmem:[%s1 + $0x68] sm:$0xff]
  %v51 = vld [vmem:[%s1 + $0x70] sm:$0xff]
  %v52 = vld [vmem:[%s1 + $0x78] sm:$0xff]
  %v53 = vld [vmem:[%s2] sm:$0x3]
  %v55 = vlaneseq
  %v56 = vshrl.u32 %v55, 7
  %v57 = vsub.s32 0, %v56
  %v58 = vrot.slane %v53, %v57
  %v59 = vlaneseq
  %v60 = vshrl.u32 %v59, 7
  %v61 = vsub.s32 1, %v60
  %v62 = vrot.slane %v53, %v61
  %v69 = vunpack.c.l.b16 %v33
  %v70 = vunpack.c.l.b16 %v34
  %v71 = vunpack.c.l.b16 %v35
  %v72 = vunpack.c.l.b16 %v36
  %v73 = vpack.c.b16 %v70, %v69
  %v74 = vpack.c.b16 %v72, %v71
  %v93 = vunpack.c.l.b16 %v37
  %v94 = vunpack.c.h.b16 %v37
  %v95 = vunpack.c.l.b16 %v38
  %v96 = vunpack.c.h.b16 %v38
  %v97 = vunpack.c.l.b16 %v39
  %v98 = vunpack.c.h.b16 %v39
  %v99 = vunpack.c.l.b16 %v40
  %v100 = vunpack.c.h.b16 %v40
  %v101 = vunpack.c.l.b16 %v41
  %v102 = vunpack.c.h.b16 %v41
  %v103 = vunpack.c.l.b16 %v42
  %v104 = vunpack.c.h.b16 %v42
  %v105 = vunpack.c.l.b16 %v43
  %v106 = vunpack.c.h.b16 %v43
  %v107 = vunpack.c.l.b16 %v44
  %v108 = vunpack.c.h.b16 %v44
  %v109 = vunpack.c.l.b16 %v45
  %v110 = vunpack.c.h.b16 %v45
  %v111 = vunpack.c.l.b16 %v46
  %v112 = vunpack.c.h.b16 %v46
  %v113 = vunpack.c.l.b16 %v47
  %v114 = vunpack.c.h.b16 %v47
  %v115 = vunpack.c.l.b16 %v48
  %v116 = vunpack.c.h.b16 %v48
  %v117 = vunpack.c.l.b16 %v49
  %v118 = vunpack.c.h.b16 %v49
  %v119 = vunpack.c.l.b16 %v50
  %v120 = vunpack.c.h.b16 %v50
  %v121 = vunpack.c.l.b16 %v51
  %v122 = vunpack.c.h.b16 %v51
  %v123 = vunpack.c.l.b16 %v52
  %v124 = vunpack.c.h.b16 %v52
  %v125 = vpack.c.b16 %v95, %v93
  %v126 = vpack.c.b16 %v96, %v94
  %v127 = vpack.c.b16 %v99, %v97
  %v128 = vpack.c.b16 %v100, %v98
  %v129 = vpack.c.b16 %v103, %v101
  %v130 = vpack.c.b16 %v104, %v102
  %v131 = vpack.c.b16 %v107, %v105
  %v132 = vpack.c.b16 %v108, %v106
  %v133 = vpack.c.b16 %v111, %v109
  %v134 = vpack.c.b16 %v112, %v110
  %v135 = vpack.c.b16 %v115, %v113
  %v136 = vpack.c.b16 %v116, %v114
  %v137 = vpack.c.b16 %v119, %v117
  %v138 = vpack.c.b16 %v120, %v118
  %v139 = vpack.c.b16 %v123, %v121
  %v140 = vpack.c.b16 %v124, %v122
  %157 = vmatprep.subr.bf16.mxu0 %v126
  %158 = vmatpush1.bf16.msra.mxu0 %v125
  %159 = vmatprep.subr.bf16.mxu0 %v128
  %160 = vmatpush1.bf16.msra.mxu0 %v127
  %161 = vmatprep.subr.bf16.mxu0 %v130
  %162 = vmatpush1.bf16.msra.mxu0 %v129
  %163 = vmatprep.subr.bf16.mxu0 %v132
  %164 = vmatpush1.bf16.msra.mxu0 %v131
  %165 = vmatprep.subr.bf16.mxu0 %v134
  %166 = vmatpush1.bf16.msra.mxu0 %v133
  %167 = vmatprep.subr.bf16.mxu0 %v136
  %168 = vmatpush1.bf16.msra.mxu0 %v135
  %169 = vmatprep.subr.bf16.mxu0 %v138
  %170 = vmatpush1.bf16.msra.mxu0 %v137
  %171 = vmatprep.subr.bf16.mxu0 %v140
  %172 = vmatpush1.bf16.msra.mxu0 %v139
  %173 = vmatprep.subr.bf16.mxu0 0
  %174 = vmatpush1.bf16.msra.mxu0 0
  %175 = vmatprep.subr.bf16.mxu0 0
  %176 = vmatpush1.bf16.msra.mxu0 0
  %177 = vmatprep.subr.bf16.mxu0 0
  %178 = vmatpush1.bf16.msra.mxu0 0
  %179 = vmatprep.subr.bf16.mxu0 0
  %180 = vmatpush1.bf16.msra.mxu0 0
  %181 = vmatprep.subr.bf16.mxu0 0
  %182 = vmatpush1.bf16.msra.mxu0 0
  %183 = vmatprep.subr.bf16.mxu0 0
  %184 = vmatpush1.bf16.msra.mxu0 0
  %185 = vmatprep.subr.bf16.mxu0 0
  %186 = vmatpush1.bf16.msra.mxu0 0
  %187 = vmatprep.subr.bf16.mxu0 0
  %188 = vmatpush1.bf16.msra.mxu0 0
  %189 = vmatprep.mubr.bf16.mxu0 0
  %190 = vmatmul.mubr.bf16.gmra.mrb[0].mxu0 %v73
  %v191 = vpop.f32.mrb[0].mxu0
  %v192 = vadd.f32 %v58, %v191
  %v193 = vpop.f32.mrb[0].mxu0
  %v194 = vadd.f32 %v62, %v193
  %v195 = vpop.f32.mrb[0].mxu0
  %v196 = vadd.f32 %v58, %v195
  %v197 = vpop.f32.mrb[0].mxu0
  %v198 = vadd.f32 %v62, %v197
  %199 = vmatprep.mubr.bf16.mxu0 0
  %200 = vmatmul.mubr.bf16.gmra.mrb[0].mxu0 %v74
  %v201 = vpop.f32.mrb[0].mxu0
  %v202 = vadd.f32 %v58, %v201
  %v203 = vpop.f32.mrb[0].mxu0
  %v204 = vadd.f32 %v62, %v203
  %v205 = vpop.f32.mrb[0].mxu0
  %v206 = vadd.f32 %v58, %v205
  %v207 = vpop.f32.mrb[0].mxu0
  %v208 = vadd.f32 %v62, %v207
  %209 = vdwg.mxu0
  %v210 = vmax.f32 %v192, 0.0
  %v211 = vmax.f32 %v194, 0.0
  %v212 = vmax.f32 %v196, 0.0
  %v213 = vmax.f32 %v198, 0.0
  %v214 = vmax.f32 %v202, 0.0
  %v215 = vmax.f32 %v204, 0.0
  %v216 = vmax.f32 %v206, 0.0
  %v217 = vmax.f32 %v208, 0.0
  %v218 = vpack.c.bf16 %v212, %v210
  %v219 = vpack.c.bf16 %v213, %v211
  %v220 = vpack.c.bf16 %v216, %v214
  %v221 = vpack.c.bf16 %v217, %v215
  %v222 = vld [vmem:[%s3] sm:$0xf]
  %v223 = vld [vmem:[%s3 + $0x4] sm:$0xf]
  %v224 = vld [vmem:[%s3 + $0x8] sm:$0xf]
  %v225 = vld [vmem:[%s3 + $0xc] sm:$0xf]
  %v226 = vld [vmem:[%s3 + $0x10] sm:$0xf]
  %v227 = vld [vmem:[%s3 + $0x14] sm:$0xf]
  %v228 = vld [vmem:[%s3 + $0x18] sm:$0xf]
  %v229 = vld [vmem:[%s3 + $0x1c] sm:$0xf]
  %v230 = vld [vmem:[%s3 + $0x20] sm:$0xf]
  %v231 = vld [vmem:[%s3 + $0x24] sm:$0xf]
  %v232 = vld [vmem:[%s3 + $0x28] sm:$0xf]
  %v233 = vld [vmem:[%s3 + $0x2c] sm:$0xf]
  %v234 = vld [vmem:[%s3 + $0x30] sm:$0xf]
  %v235 = vld [vmem:[%s3 + $0x34] sm:$0xf]
  %v236 = vld [vmem:[%s3 + $0x38] sm:$0xf]
  %v237 = vld [vmem:[%s3 + $0x3c] sm:$0xf]
  %v238 = vld [vmem:[%s3 + $0x40] sm:$0xf]
  %v239 = vld [vmem:[%s3 + $0x44] sm:$0xf]
  %v240 = vld [vmem:[%s3 + $0x48] sm:$0xf]
  %v241 = vld [vmem:[%s3 + $0x4c] sm:$0xf]
  %v242 = vld [vmem:[%s3 + $0x50] sm:$0xf]
  %v243 = vld [vmem:[%s3 + $0x54] sm:$0xf]
  %v244 = vld [vmem:[%s3 + $0x58] sm:$0xf]
  %v245 = vld [vmem:[%s3 + $0x5c] sm:$0xf]
  %v246 = vld [vmem:[%s3 + $0x60] sm:$0xf]
  %v247 = vld [vmem:[%s3 + $0x64] sm:$0xf]
  %v248 = vld [vmem:[%s3 + $0x68] sm:$0xf]
  %v249 = vld [vmem:[%s3 + $0x6c] sm:$0xf]
  %v250 = vld [vmem:[%s3 + $0x70] sm:$0xf]
  %v251 = vld [vmem:[%s3 + $0x74] sm:$0xf]
  %v252 = vld [vmem:[%s3 + $0x78] sm:$0xf]
  %v253 = vld [vmem:[%s3 + $0x7c] sm:$0xf]
  %v254 = vld [vmem:[%s4] sm:$0x1]
  %v256 = vlaneseq
  %v257 = vshrl.u32 %v256, 7
  %v258 = vsub.s32 0, %v257
  %v259 = vrot.slane %v254, %v258
  %v293 = vunpack.c.l.b16 %v222
  %v294 = vunpack.c.l.b16 %v223
  %v295 = vunpack.c.l.b16 %v224
  %v296 = vunpack.c.l.b16 %v225
  %v297 = vunpack.c.l.b16 %v226
  %v298 = vunpack.c.l.b16 %v227
  %v299 = vunpack.c.l.b16 %v228
  %v300 = vunpack.c.l.b16 %v229
  %v301 = vunpack.c.l.b16 %v230
  %v302 = vunpack.c.l.b16 %v231
  %v303 = vunpack.c.l.b16 %v232
  %v304 = vunpack.c.l.b16 %v233
  %v305 = vunpack.c.l.b16 %v234
  %v306 = vunpack.c.l.b16 %v235
  %v307 = vunpack.c.l.b16 %v236
  %v308 = vunpack.c.l.b16 %v237
  %v309 = vunpack.c.l.b16 %v238
  %v310 = vunpack.c.l.b16 %v239
  %v311 = vunpack.c.l.b16 %v240
  %v312 = vunpack.c.l.b16 %v241
  %v313 = vunpack.c.l.b16 %v242
  %v314 = vunpack.c.l.b16 %v243
  %v315 = vunpack.c.l.b16 %v244
  %v316 = vunpack.c.l.b16 %v245
  %v317 = vunpack.c.l.b16 %v246
  %v318 = vunpack.c.l.b16 %v247
  %v319 = vunpack.c.l.b16 %v248
  %v320 = vunpack.c.l.b16 %v249
  %v321 = vunpack.c.l.b16 %v250
  %v322 = vunpack.c.l.b16 %v251
  %v323 = vunpack.c.l.b16 %v252
  %v324 = vunpack.c.l.b16 %v253
  %v325 = vpack.c.b16 %v294, %v293
  %v326 = vpack.c.b16 %v296, %v295
  %v327 = vpack.c.b16 %v298, %v297
  %v328 = vpack.c.b16 %v300, %v299
  %v329 = vpack.c.b16 %v302, %v301
  %v330 = vpack.c.b16 %v304, %v303
  %v331 = vpack.c.b16 %v306, %v305
  %v332 = vpack.c.b16 %v308, %v307
  %v333 = vpack.c.b16 %v310, %v309
  %v334 = vpack.c.b16 %v312, %v311
  %v335 = vpack.c.b16 %v314, %v313
  %v336 = vpack.c.b16 %v316, %v315
  %v337 = vpack.c.b16 %v318, %v317
  %v338 = vpack.c.b16 %v320, %v319
  %v339 = vpack.c.b16 %v322, %v321
  %v340 = vpack.c.b16 %v324, %v323
  %357 = vmatprep.subr.bf16.mxu0 0
  %358 = vmatpush1.bf16.msra.mxu0 %v325
  %359 = vmatprep.subr.bf16.mxu0 0
  %360 = vmatpush1.bf16.msra.mxu0 %v326
  %361 = vmatprep.subr.bf16.mxu0 0
  %362 = vmatpush1.bf16.msra.mxu0 %v327
  %363 = vmatprep.subr.bf16.mxu0 0
  %364 = vmatpush1.bf16.msra.mxu0 %v328
  %365 = vmatprep.subr.bf16.mxu0 0
  %366 = vmatpush1.bf16.msra.mxu0 %v329
  %367 = vmatprep.subr.bf16.mxu0 0
  %368 = vmatpush1.bf16.msra.mxu0 %v330
  %369 = vmatprep.subr.bf16.mxu0 0
  %370 = vmatpush1.bf16.msra.mxu0 %v331
  %371 = vmatprep.subr.bf16.mxu0 0
  %372 = vmatpush1.bf16.msra.mxu0 %v332
  %373 = vmatprep.subr.bf16.mxu0 0
  %374 = vmatpush1.bf16.msra.mxu0 %v333
  %375 = vmatprep.subr.bf16.mxu0 0
  %376 = vmatpush1.bf16.msra.mxu0 %v334
  %377 = vmatprep.subr.bf16.mxu0 0
  %378 = vmatpush1.bf16.msra.mxu0 %v335
  %379 = vmatprep.subr.bf16.mxu0 0
  %380 = vmatpush1.bf16.msra.mxu0 %v336
  %381 = vmatprep.subr.bf16.mxu0 0
  %382 = vmatpush1.bf16.msra.mxu0 %v337
  %383 = vmatprep.subr.bf16.mxu0 0
  %384 = vmatpush1.bf16.msra.mxu0 %v338
  %385 = vmatprep.subr.bf16.mxu0 0
  %386 = vmatpush1.bf16.msra.mxu0 %v339
  %387 = vmatprep.subr.bf16.mxu0 0
  %388 = vmatpush1.bf16.msra.mxu0 %v340
  %389 = vmatprep.mubr.bf16.mxu0 %v219
  %390 = vmatmul.mubr.bf16.gmra.mrb[0].mxu0 %v218
  %v391 = vpop.f32.mrb[0].mxu0
  %v392 = vadd.f32 %v259, %v391
  %v393 = vpop.f32.mrb[0].mxu0
  %v394 = vpop.f32.mrb[0].mxu0
  %v395 = vadd.f32 %v259, %v394
  %v396 = vpop.f32.mrb[0].mxu0
  %397 = vmatprep.mubr.bf16.mxu0 %v221
  %398 = vmatmul.mubr.bf16.gmra.mrb[0].mxu0 %v220
  %v399 = vpop.f32.mrb[0].mxu0
  %v400 = vadd.f32 %v259, %v399
  %v401 = vpop.f32.mrb[0].mxu0
  %v402 = vpop.f32.mrb[0].mxu0
  %v403 = vadd.f32 %v259, %v402
  %v404 = vpop.f32.mrb[0].mxu0
  %405 = vdwg.mxu0
  %v406 = vunpack.c.l.bf16 %v33
  %v407 = vunpack.c.l.bf16 %v34
  %v408 = vunpack.c.l.bf16 %v35
  %v409 = vunpack.c.l.bf16 %v36
  %v410 = vadd.f32 %v392, %v406
  %v411 = vadd.f32 %v395, %v407
  %v412 = vadd.f32 %v400, %v408
  %v413 = vadd.f32 %v403, %v409
  %v414 = vld [vmem:[%s5] sm:$0x1]
  %v415 = vld [vmem:[%s6] sm:$0x1]
  %416 = vadd.xlane.f32.xlu0 %v410
  %v417 = vpop.xlane.xlu0 %416
  %418 = vadd.xlane.f32.xlu0 %v411
  %v419 = vpop.xlane.xlu0 %418
  %420 = vadd.xlane.f32.xlu0 %v412
  %v421 = vpop.xlane.xlu0 %420
  %422 = vadd.xlane.f32.xlu0 %v413
  %v423 = vpop.xlane.xlu0 %422
  %v424 = vrcp.pop 128.0
  %v425 = vmul.f32 %v417, %v424
  %v426 = vmul.f32 %v419, %v424
  %v427 = vmul.f32 %v421, %v424
  %v428 = vmul.f32 %v423, %v424
  %v429 = vsub.f32 %v410, %v425
  %v430 = vsub.f32 %v411, %v426
  %v431 = vsub.f32 %v412, %v427
  %v432 = vsub.f32 %v413, %v428
  %v433 = vmul.f32 %v429, %v429
  %v434 = vmul.f32 %v430, %v430
  %v435 = vmul.f32 %v431, %v431
  %v436 = vmul.f32 %v432, %v432
  %437 = vadd.xlane.f32.xlu0 %v433
  %v438 = vpop.xlane.xlu0 %437
  %439 = vadd.xlane.f32.xlu0 %v434
  %v440 = vpop.xlane.xlu0 %439
  %441 = vadd.xlane.f32.xlu0 %v435
  %v442 = vpop.xlane.xlu0 %441
  %443 = vadd.xlane.f32.xlu0 %v436
  %v444 = vpop.xlane.xlu0 %443
  %v445 = vmul.f32 %v438, %v424
  %v446 = vmul.f32 %v440, %v424
  %v447 = vmul.f32 %v442, %v424
  %v448 = vmul.f32 %v444, %v424
  %v449 = vadd.f32 %v445, 1e-05
  %v450 = vadd.f32 %v446, 1e-05
  %v451 = vadd.f32 %v447, 1e-05
  %v452 = vadd.f32 %v448, 1e-05
  %v453 = vrsqrt.pop %v449
  %v454 = vrsqrt.pop %v450
  %v455 = vrsqrt.pop %v451
  %v456 = vrsqrt.pop %v452
  %v457 = vmul.f32 %v429, %v453
  %v458 = vmul.f32 %v430, %v454
  %v459 = vmul.f32 %v431, %v455
  %v460 = vmul.f32 %v432, %v456
  %v462 = vlaneseq
  %v463 = vshrl.u32 %v462, 7
  %v464 = vsub.s32 0, %v463
  %v465 = vrot.slane %v414, %v464
  %v467 = vmul.f32 %v457, %v465
  %v468 = vmul.f32 %v458, %v465
  %v469 = vmul.f32 %v459, %v465
  %v470 = vmul.f32 %v460, %v465
  %v472 = vlaneseq
  %v473 = vshrl.u32 %v472, 7
  %v474 = vsub.s32 0, %v473
  %v475 = vrot.slane %v415, %v474
  %v477 = vadd.f32 %v467, %v475
  %v478 = vadd.f32 %v468, %v475
  %v479 = vadd.f32 %v469, %v475
  %v480 = vadd.f32 %v470, %v475
  %v481 = vld [vmem:[%s7] sm:$0x1]
  %v482 = vld [vmem:[%s8] sm:$0x1]
  %483 = vadd.xlane.f32.xlu0 %v477
  %v484 = vpop.xlane.xlu0 %483
  %485 = vadd.xlane.f32.xlu0 %v478
  %v486 = vpop.xlane.xlu0 %485
  %487 = vadd.xlane.f32.xlu0 %v479
  %v488 = vpop.xlane.xlu0 %487
  %489 = vadd.xlane.f32.xlu0 %v480
  %v490 = vpop.xlane.xlu0 %489
  %v491 = vmul.f32 %v484, %v424
  %v492 = vmul.f32 %v486, %v424
  %v493 = vmul.f32 %v488, %v424
  %v494 = vmul.f32 %v490, %v424
  %v495 = vsub.f32 %v477, %v491
  %v496 = vsub.f32 %v478, %v492
  %v497 = vsub.f32 %v479, %v493
  %v498 = vsub.f32 %v480, %v494
  %v499 = vmul.f32 %v495, %v495
  %v500 = vmul.f32 %v496, %v496
  %v501 = vmul.f32 %v497, %v497
  %v502 = vmul.f32 %v498, %v498
  %503 = vadd.xlane.f32.xlu0 %v499
  %v504 = vpop.xlane.xlu0 %503
  %505 = vadd.xlane.f32.xlu0 %v500
  %v506 = vpop.xlane.xlu0 %505
  %507 = vadd.xlane.f32.xlu0 %v501
  %v508 = vpop.xlane.xlu0 %507
  %509 = vadd.xlane.f32.xlu0 %v502
  %v510 = vpop.xlane.xlu0 %509
  %v511 = vmul.f32 %v504, %v424
  %v512 = vmul.f32 %v506, %v424
  %v513 = vmul.f32 %v508, %v424
  %v514 = vmul.f32 %v510, %v424
  %v515 = vadd.f32 %v511, 1e-05
  %v516 = vadd.f32 %v512, 1e-05
  %v517 = vadd.f32 %v513, 1e-05
  %v518 = vadd.f32 %v514, 1e-05
  %v519 = vrsqrt.pop %v515
  %v520 = vrsqrt.pop %v516
  %v521 = vrsqrt.pop %v517
  %v522 = vrsqrt.pop %v518
  %v523 = vmul.f32 %v495, %v519
  %v524 = vmul.f32 %v496, %v520
  %v525 = vmul.f32 %v497, %v521
  %v526 = vmul.f32 %v498, %v522
  %v528 = vlaneseq
  %v529 = vshrl.u32 %v528, 7
  %v530 = vsub.s32 0, %v529
  %v531 = vrot.slane %v481, %v530
  %v533 = vmul.f32 %v523, %v531
  %v534 = vmul.f32 %v524, %v531
  %v535 = vmul.f32 %v525, %v531
  %v536 = vmul.f32 %v526, %v531
  %v538 = vlaneseq
  %v539 = vshrl.u32 %v538, 7
  %v540 = vsub.s32 0, %v539
  %v541 = vrot.slane %v482, %v540
  %v543 = vadd.f32 %v533, %v541
  %v544 = vadd.f32 %v534, %v541
  %v545 = vadd.f32 %v535, %v541
  %v546 = vadd.f32 %v536, %v541
  %v547 = vpack.c.bf16 %v544, %v543
  %v548 = vpack.c.bf16 %v546, %v545
  %v551 = vunpack.c.l.b16 %v547
  %v552 = vunpack.c.h.b16 %v547
  %v553 = vunpack.c.l.b16 %v548
  %v554 = vunpack.c.h.b16 %v548
  %v555 = vpack.c.b16 %v551, %v551
  %v556 = vpack.c.b16 %v552, %v552
  %v557 = vpack.c.b16 %v553, %v553
  %v558 = vpack.c.b16 %v554, %v554
  %563 = vst [vmem:[%s9] sm:$0xf] %v555
  %564 = vst [vmem:[%s9 + $0x4] sm:$0xf] %v556
  %565 = vst [vmem:[%s9 + $0x8] sm:$0xf] %v557
  %566 = vst [vmem:[%s9 + $0xc] sm:$0xf] %v558
  // Predicated region
  $region38: #{transformer_gen.14} parent=0 // pred_check
    _
  $region39: #{transformer_gen.14} parent=0 // pred_check_branch
    %568 = sbr.rel (0) target = $region41
  $region40: #{transformer_gen.14} parent=0 // pred_region
    _
  $region41: #{transformer_gen.14} parent=0 // pred_fallthru
    _
  // Predicated region
  $region42: #{transformer_gen.14} parent=0 // pred_check
    _
  $region43: #{transformer_gen.14} parent=0 // pred_check_branch
    %570 = sbr.rel (0) target = $region45
  $region44: #{transformer_gen.14} parent=0 // pred_region
    _
  $region45: #{transformer_gen.14} parent=0 // pred_fallthru
    _

// kernel: transformer_gen.21
$region0: #{transformer_gen.21}
  #allocation0 [shape = 'u32[]', space=smem, size = 0x4, offset = 0x4, fixed_abs, tag = 'smem constant byte address 0x4 - core index']
  #allocation1 [shape = 'u32[144,128]{1,0:T(1,128)}', space=vmem, size = 0x12000, scoped, tag = 'internal scratch']
  %s0 = inlined_call_operand.vmem [shape: bf16[32,128], index: 0, kind: input, shape index: {}]
  %s1 = inlined_call_operand.vmem [shape: bf16[128,128], index: 1, kind: input, shape index: {}]
  %s2 = inlined_call_operand.vmem [shape: f32[1,128], index: 2, kind: input, shape index: {}]
  %s3 = inlined_call_operand.hbm [shape: f32[32,128], index: 3, kind: output, shape index: {}]
  %s4 = sld [smem:[#allocation0]]
  $region22: #{transformer_gen.21} parent=0
    _
  %s6 = ssub.s32 1, %s4
  %s7 = scalar_select 0, %s6, %s4
  $region1: #{transformer_gen.21} parent=0
    #allocation2 [shape = 'u8[16384]{0}', space=vmem, size = 0x4000, scoped, tag = 'output window, operand 0, single buffered']
    #allocation3 [shape = 's32[1]{0}', space=sflag, size = 0x4, scoped, tag = 'scoped memory for transformer_gen.21']
    %8 = vsyncpa [#allocation3], 0
    // Predicated region
    $region2: #{transformer_gen.21} parent=1 // pred_check
      _
    $region3: #{transformer_gen.21} parent=1 // pred_check_branch
      %10 = sbr.rel (0) target = $region5
    $region4: #{transformer_gen.21} parent=1 // pred_region
      _
    $region5: #{transformer_gen.21} parent=1 // pred_fallthru
      _
    // Predicated region
    $region6: #{transformer_gen.21} parent=1 // pred_check
      _
    $region7: #{transformer_gen.21} parent=1 // pred_check_branch
      %12 = sbr.rel (0) target = $region9
    $region8: #{transformer_gen.21} parent=1 // pred_region
      _
    $region9: #{transformer_gen.21} parent=1 // pred_fallthru
      _
    // Predicated region
    $region10: #{transformer_gen.21} parent=1 // pred_check
      _
    $region11: #{transformer_gen.21} parent=1 // pred_check_branch
      %14 = sbr.rel (0) target = $region13
    $region12: #{transformer_gen.21} parent=1 // pred_region
      _
    $region13: #{transformer_gen.21} parent=1 // pred_fallthru
      _
    %v16 = vld [vmem:[%s0] sm:$0xf]
    %v17 = vld [vmem:[%s0 + $0x4] sm:$0xf]
    %v18 = vld [vmem:[%s0 + $0x8] sm:$0xf]
    %v19 = vld [vmem:[%s0 + $0xc] sm:$0xf]
    %v20 = vld [vmem:[%s1] sm:$0xf]
    %v21 = vld [vmem:[%s1 + $0x4] sm:$0xf]
    %v22 = vld [vmem:[%s1 + $0x8] sm:$0xf]
    %v23 = vld [vmem:[%s1 + $0xc] sm:$0xf]
    %v24 = vld [vmem:[%s1 + $0x10] sm:$0xf]
    %v25 = vld [vmem:[%s1 + $0x14] sm:$0xf]
    %v26 = vld [vmem:[%s1 + $0x18] sm:$0xf]
    %v27 = vld [vmem:[%s1 + $0x1c] sm:$0xf]
    %v28 = vld [vmem:[%s1 + $0x20] sm:$0xf]
    %v29 = vld [vmem:[%s1 + $0x24] sm:$0xf]
    %v30 = vld [vmem:[%s1 + $0x28] sm:$0xf]
    %v31 = vld [vmem:[%s1 + $0x2c] sm:$0xf]
    %v32 = vld [vmem:[%s1 + $0x30] sm:$0xf]
    %v33 = vld [vmem:[%s1 + $0x34] sm:$0xf]
    %v34 = vld [vmem:[%s1 + $0x38] sm:$0xf]
    %v35 = vld [vmem:[%s1 + $0x3c] sm:$0xf]
    %v36 = vld [vmem:[%s2] sm:$0x1]
    %v38 = vlaneseq
    %v39 = vshrl.u32 %v38, 7
    %v40 = vsub.s32 0, %v39
    %v41 = vrot.slane %v36, %v40
    %v47 = vunpack.c.l.b16 %v16
    %v48 = vunpack.c.l.b16 %v17
    %v49 = vunpack.c.l.b16 %v18
    %v50 = vunpack.c.l.b16 %v19
    %v51 = vpack.c.b16 %v48, %v47
    %v52 = vpack.c.b16 %v50, %v49
    %v71 = vunpack.c.l.b16 %v20
    %v72 = vunpack.c.l.b16 %v21
    %v73 = vunpack.c.l.b16 %v22
    %v74 = vunpack.c.l.b16 %v23
    %v75 = vunpack.c.l.b16 %v24
    %v76 = vunpack.c.l.b16 %v25
    %v77 = vunpack.c.l.b16 %v26
    %v78 = vunpack.c.l.b16 %v27
    %v79 = vunpack.c.l.b16 %v28
    %v80 = vunpack.c.l.b16 %v29
    %v81 = vunpack.c.l.b16 %v30
    %v82 = vunpack.c.l.b16 %v31
    %v83 = vunpack.c.l.b16 %v32
    %v84 = vunpack.c.l.b16 %v33
    %v85 = vunpack.c.l.b16 %v34
    %v86 = vunpack.c.l.b16 %v35
    %v87 = vpack.c.b16 %v72, %v71
    %v88 = vpack.c.b16 %v74, %v73
    %v89 = vpack.c.b16 %v76, %v75
    %v90 = vpack.c.b16 %v78, %v77
    %v91 = vpack.c.b16 %v80, %v79
    %v92 = vpack.c.b16 %v82, %v81
    %v93 = vpack.c.b16 %v84, %v83
    %v94 = vpack.c.b16 %v86, %v85
    %103 = vmatprep.subr.bf16.mxu0 0
    %104 = vmatpush1.bf16.msra.mxu0 %v87
    %105 = vmatprep.subr.bf16.mxu0 0
    %106 = vmatpush1.bf16.msra.mxu0 %v88
    %107 = vmatprep.subr.bf16.mxu0 0
    %108 = vmatpush1.bf16.msra.mxu0 %v89
    %109 = vmatprep.subr.bf16.mxu0 0
    %110 = vmatpush1.bf16.msra.mxu0 %v90
    %111 = vmatprep.subr.bf16.mxu0 0
    %112 = vmatpush1.bf16.msra.mxu0 %v91
    %113 = vmatprep.subr.bf16.mxu0 0
    %114 = vmatpush1.bf16.msra.mxu0 %v92
    %115 = vmatprep.subr.bf16.mxu0 0
    %116 = vmatpush1.bf16.msra.mxu0 %v93
    %117 = vmatprep.subr.bf16.mxu0 0
    %118 = vmatpush1.bf16.msra.mxu0 %v94
    %119 = vmatprep.subr.bf16.mxu0 0
    %120 = vmatpush1.bf16.msra.mxu0 0
    %121 = vmatprep.subr.bf16.mxu0 0
    %122 = vmatpush1.bf16.msra.mxu0 0
    %123 = vmatprep.subr.bf16.mxu0 0
    %124 = vmatpush1.bf16.msra.mxu0 0
    %125 = vmatprep.subr.bf16.mxu0 0
    %126 = vmatpush1.bf16.msra.mxu0 0
    %127 = vmatprep.subr.bf16.mxu0 0
    %128 = vmatpush1.bf16.msra.mxu0 0
    %129 = vmatprep.subr.bf16.mxu0 0
    %130 = vmatpush1.bf16.msra.mxu0 0
    %131 = vmatprep.subr.bf16.mxu0 0
    %132 = vmatpush1.bf16.msra.mxu0 0
    %133 = vmatprep.subr.bf16.mxu0 0
    %134 = vmatpush1.bf16.msra.mxu0 0
    %135 = vmatprep.mubr.bf16.mxu0 0
    %136 = vmatmul.mubr.bf16.gmra.mrb[0].mxu0 %v51
    %v137 = vpop.f32.mrb[0].mxu0
    %v138 = vadd.f32 %v41, %v137
    %v139 = vpop.f32.mrb[0].mxu0
    %v140 = vpop.f32.mrb[0].mxu0
    %v141 = vadd.f32 %v41, %v140
    %v142 = vpop.f32.mrb[0].mxu0
    %143 = vmatprep.mubr.bf16.mxu0 0
    %144 = vmatmul.mubr.bf16.gmra.mrb[0].mxu0 %v52
    %v145 = vpop.f32.mrb[0].mxu0
    %v146 = vadd.f32 %v41, %v145
    %v147 = vpop.f32.mrb[0].mxu0
    %v148 = vpop.f32.mrb[0].mxu0
    %v149 = vadd.f32 %v41, %v148
    %v150 = vpop.f32.mrb[0].mxu0
    %151 = vdwg.mxu0
    %152 = vst [vmem:[#allocation2] sm:$0xff] %v138
    %153 = vst [vmem:[#allocation2 + $0x8] sm:$0xff] %v141
    %154 = vst [vmem:[#allocation2 + $0x10] sm:$0xff] %v146
    %155 = vst [vmem:[#allocation2 + $0x18] sm:$0xff] %v149
    // Predicated region
    $region14: #{transformer_gen.21} parent=1 // pred_check
      _
    $region15: #{transformer_gen.21} parent=1 // pred_check_branch
      %157 = sbr.rel (0) target = $region17
    $region16: #{transformer_gen.21} parent=1 // pred_region
      %s159 = ssub.s32 512, 512
      %160 = vsyncadd [#allocation3], %s159
      %s161 = sshll.u32 [#allocation2], 4
      %s162 = int_to_ptr.vmem [resolvable:$true] %s161
      %167 = dma.vmem_to_hbm [thread:$0]  %s162, 512, %s3, [#allocation3], 128, 128, 8
    $region17: #{transformer_gen.21} parent=1 // pred_fallthru
      _
    // Predicated region
    $region18: #{transformer_gen.21} parent=1 // pred_check
      _
    $region19: #{transformer_gen.21} parent=1 // pred_check_branch
      %169 = sbr.rel (0) target = $region21
    $region20: #{transformer_gen.21} parent=1 // pred_region
      %170 = dma.done [#allocation3], 512
    $region21: #{transformer_gen.21} parent=1 // pred_fallthru
      _
    %171 = vsyncpa [#allocation3], 1

// kernel: transformer_gen.16
$region0: #{transformer_gen.16}
  #allocation0 [shape = 'u32[]', space=smem, size = 0x4, offset = 0x4, fixed_abs, tag = 'smem constant byte address 0x4 - core index']
  #allocation1 [shape = 'u32[144,128]{1,0:T(1,128)}', space=vmem, size = 0x12000, scoped, tag = 'internal scratch']
  %s0 = inlined_call_operand.vmem [shape: bf16[2,16,128], index: 0, kind: input, shape index: {}]
  %s1 = inlined_call_operand.vmem [shape: bf16[2,16,128], index: 1, kind: input, shape index: {}]
  %s2 = inlined_call_operand.vmem [shape: bf16[128,128], index: 2, kind: input, shape index: {}]
  %s3 = inlined_call_operand.vmem [shape: f32[1,128], index: 3, kind: input, shape index: {}]
  %s4 = inlined_call_operand.vmem [shape: bf16[128,256], index: 4, kind: input, shape index: {}]
  %s5 = inlined_call_operand.vmem [shape: f32[1,256], index: 5, kind: input, shape index: {}]
  %s6 = inlined_call_operand.vmem [shape: bf16[128,128], index: 6, kind: input, shape index: {}]
  %s7 = inlined_call_operand.vmem [shape: f32[1,128], index: 7, kind: input, shape index: {}]
  %s8 = inlined_call_operand.vmem [shape: f32[1,128], index: 8, kind: input, shape index: {}]
  %s9 = inlined_call_operand.vmem [shape: f32[1,128], index: 9, kind: input, shape index: {}]
  %s10 = inlined_call_operand.vmem [shape: bf16[2,16,128], index: 10, kind: output, shape index: {}]
  %s11 = sld [smem:[#allocation0]]
  $region73: #{transformer_gen.16} parent=0
    _
  %s13 = ssub.s32 1, %s11
  %s14 = scalar_select 0, %s13, %s11
  loop: start=0, step=1, limit=4
  $region2: #{transformer_gen.16} parent=0 // loop_pre_header
    _
  $region3: #{transformer_gen.16} parent=0 // loop_header
    %s16 = sphi 0, %s20
    %p17 = scmp.ge.s32.totalorder %s16, 4
    %s26 = sphi 0, %s28
    %s29 = sphi 0, %s26
    %s30 = sphi 0, %s29
    %s46 = sphi 0, %s30
    %s52 = sphi 0, %s54
    %s55 = sphi 0, %s52
    %s56 = sphi 0, %s55
    %s72 = sphi 0, %s56
    %s76 = sphi 0, %s76
    %s78 = sphi 0, %s76
    %s79 = sphi 0, %s78
    %s93 = sphi 0, %s79
    %s97 = sphi 0, %s97
    %s99 = sphi 0, %s97
    %s100 = sphi 0, %s99
    %s114 = sphi 0, %s100
    %s118 = sphi 0, %s118
    %s120 = sphi 0, %s118
    %s121 = sphi 0, %s120
    %s135 = sphi 0, %s121
    %s139 = sphi 0, %s139
    %s141 = sphi 0, %s139
    %s142 = sphi 0, %s141
    %s156 = sphi 0, %s142
    %s160 = sphi 0, %s160
    %s162 = sphi 0, %s160
    %s163 = sphi 0, %s162
    %s177 = sphi 0, %s163
    %s181 = sphi 0, %s181
    %s183 = sphi 0, %s181
    %s184 = sphi 0, %s183
    %s198 = sphi 0, %s184
    %s202 = sphi 0, %s202
    %s204 = sphi 0, %s202
    %s205 = sphi 0, %s204
    %s219 = sphi 0, %s205
    %s223 = sphi 0, %s223
    %s225 = sphi 0, %s223
    %s226 = sphi 0, %s225
    %s240 = sphi 0, %s226
    %s246 = sphi 0, %s248
    %s249 = sphi 0, %s246
    %s250 = sphi 0, %s249
    %s266 = sphi 0, %s250
  $region4: #{transformer_gen.16} parent=0 // loop_header_branch
    %19 = sbr.rel (%p17) target = $region8
  $region5: #{transformer_gen.16} parent=0 // loop_body
    %s21 = ssub.s32 %s16, 1
    %s22 = ssub.s32 %s16, 2
    %s23 = sadd.s32 %s16, 1
    %s24 = ssub.s32 %s16, %s23
    %p25 = scmp.eq.s32.totalorder %s24, 0
    %s27 = sadd.s32 %s26, 1
    %s28 = scalar_select %p25, %s26, %s27
    %p31 = pneg %p25
    %p32 = scmp.eq.s32.totalorder %s16, 1
    %p33 = por %p31, %p32
    %p34 = scmp.ne.s32.totalorder %s26, %s29
    %p35 = scmp.eq.s32.totalorder %s16, 0
    %p36 = por %p34, %p35
    %p37 = scmp.ne.s32.totalorder %s26, %s29
    %p38 = scmp.eq.s32.totalorder %s21, 1
    %p39 = por %p37, %p38
    %p40 = scmp.ne.s32.totalorder %s29, %s30
    %p41 = scmp.eq.s32.totalorder %s21, 0
    %p42 = por %p40, %p41
    %p43 = scmp.ne.s32.totalorder %s29, %s30
    %p44 = scmp.eq.s32.totalorder %s22, 1
    %p45 = por %p43, %p44
    %p47 = scmp.ne.s32.totalorder %s30, %s46
    %p48 = scmp.eq.s32.totalorder %s22, 0
    %p49 = por %p47, %p48
    %s50 = ssub.s32 %s16, %s23
    %p51 = scmp.eq.s32.totalorder %s50, 0
    %s53 = sadd.s32 %s52, 1
    %s54 = scalar_select %p51, %s52, %s53
    %p57 = pneg %p51
    %p58 = scmp.eq.s32.totalorder %s16, 1
    %p59 = por %p57, %p58
    %p60 = scmp.ne.s32.totalorder %s52, %s55
    %p61 = scmp.eq.s32.totalorder %s16, 0
    %p62 = por %p60, %p61
    %p63 = scmp.ne.s32.totalorder %s52, %s55
    %p64 = scmp.eq.s32.totalorder %s21, 1
    %p65 = por %p63, %p64
    %p66 = scmp.ne.s32.totalorder %s55, %s56
    %p67 = scmp.eq.s32.totalorder %s21, 0
    %p68 = por %p66, %p67
    %p69 = scmp.ne.s32.totalorder %s55, %s56
    %p70 = scmp.eq.s32.totalorder %s22, 1
    %p71 = por %p69, %p70
    %p73 = scmp.ne.s32.totalorder %s56, %s72
    %p74 = scmp.eq.s32.totalorder %s22, 0
    %p75 = por %p73, %p74
    %s77 = sadd.s32 %s76, 1
    %p80 = scmp.eq.s32.totalorder %s16, 1
    %p81 = scmp.ne.s32.totalorder %s76, %s78
    %p82 = scmp.eq.s32.totalorder %s16, 0
    %p83 = por %p81, %p82
    %p84 = scmp.ne.s32.totalorder %s76, %s78
    %p85 = scmp.eq.s32.totalorder %s21, 1
    %p86 = por %p84, %p85
    %p87 = scmp.ne.s32.totalorder %s78, %s79
    %p88 = scmp.eq.s32.totalorder %s21, 0
    %p89 = por %p87, %p88
    %p90 = scmp.ne.s32.totalorder %s78, %s79
    %p91 = scmp.eq.s32.totalorder %s22, 1
    %p92 = por %p90, %p91
    %p94 = scmp.ne.s32.totalorder %s79, %s93
    %p95 = scmp.eq.s32.totalorder %s22, 0
    %p96 = por %p94, %p95
    %s98 = sadd.s32 %s97, 1
    %p101 = scmp.eq.s32.totalorder %s16, 1
    %p102 = scmp.ne.s32.totalorder %s97, %s99
    %p103 = scmp.eq.s32.totalorder %s16, 0
    %p104 = por %p102, %p103
    %p105 = scmp.ne.s32.totalorder %s97, %s99
    %p106 = scmp.eq.s32.totalorder %s21, 1
    %p107 = por %p105, %p106
    %p108 = scmp.ne.s32.totalorder %s99, %s100
    %p109 = scmp.eq.s32.totalorder %s21, 0
    %p110 = por %p108, %p109
    %p111 = scmp.ne.s32.totalorder %s99, %s100
    %p112 = scmp.eq.s32.totalorder %s22, 1
    %p113 = por %p111, %p112
    %p115 = scmp.ne.s32.totalorder %s100, %s114
    %p116 = scmp.eq.s32.totalorder %s22, 0
    %p117 = por %p115, %p116
    %s119 = sadd.s32 %s118, 1
    %p122 = scmp.eq.s32.totalorder %s16, 1
    %p123 = scmp.ne.s32.totalorder %s118, %s120
    %p124 = scmp.eq.s32.totalorder %s16, 0
    %p125 = por %p123, %p124
    %p126 = scmp.ne.s32.totalorder %s118, %s120
    %p127 = scmp.eq.s32.totalorder %s21, 1
    %p128 = por %p126, %p127
    %p129 = scmp.ne.s32.totalorder %s120, %s121
    %p130 = scmp.eq.s32.totalorder %s21, 0
    %p131 = por %p129, %p130
    %p132 = scmp.ne.s32.totalorder %s120, %s121
    %p133 = scmp.eq.s32.totalorder %s22, 1
    %p134 = por %p132, %p133
    %p136 = scmp.ne.s32.totalorder %s121, %s135
    %p137 = scmp.eq.s32.totalorder %s22, 0
    %p138 = por %p136, %p137
    %s140 = sadd.s32 %s139, 1
    %p143 = scmp.eq.s32.totalorder %s16, 1
    %p144 = scmp.ne.s32.totalorder %s139, %s141
    %p145 = scmp.eq.s32.totalorder %s16, 0
    %p146 = por %p144, %p145
    %p147 = scmp.ne.s32.totalorder %s139, %s141
    %p148 = scmp.eq.s32.totalorder %s21, 1
    %p149 = por %p147, %p148
    %p150 = scmp.ne.s32.totalorder %s141, %s142
    %p151 = scmp.eq.s32.totalorder %s21, 0
    %p152 = por %p150, %p151
    %p153 = scmp.ne.s32.totalorder %s141, %s142
    %p154 = scmp.eq.s32.totalorder %s22, 1
    %p155 = por %p153, %p154
    %p157 = scmp.ne.s32.totalorder %s142, %s156
    %p158 = scmp.eq.s32.totalorder %s22, 0
    %p159 = por %p157, %p158
    %s161 = sadd.s32 %s160, 1
    %p164 = scmp.eq.s32.totalorder %s16, 1
    %p165 = scmp.ne.s32.totalorder %s160, %s162
    %p166 = scmp.eq.s32.totalorder %s16, 0
    %p167 = por %p165, %p166
    %p168 = scmp.ne.s32.totalorder %s160, %s162
    %p169 = scmp.eq.s32.totalorder %s21, 1
    %p170 = por %p168, %p169
    %p171 = scmp.ne.s32.totalorder %s162, %s163
    %p172 = scmp.eq.s32.totalorder %s21, 0
    %p173 = por %p171, %p172
    %p174 = scmp.ne.s32.totalorder %s162, %s163
    %p175 = scmp.eq.s32.totalorder %s22, 1
    %p176 = por %p174, %p175
    %p178 = scmp.ne.s32.totalorder %s163, %s177
    %p179 = scmp.eq.s32.totalorder %s22, 0
    %p180 = por %p178, %p179
    %s182 = sadd.s32 %s181, 1
    %p185 = scmp.eq.s32.totalorder %s16, 1
    %p186 = scmp.ne.s32.totalorder %s181, %s183
    %p187 = scmp.eq.s32.totalorder %s16, 0
    %p188 = por %p186, %p187
    %p189 = scmp.ne.s32.totalorder %s181, %s183
    %p190 = scmp.eq.s32.totalorder %s21, 1
    %p191 = por %p189, %p190
    %p192 = scmp.ne.s32.totalorder %s183, %s184
    %p193 = scmp.eq.s32.totalorder %s21, 0
    %p194 = por %p192, %p193
    %p195 = scmp.ne.s32.totalorder %s183, %s184
    %p196 = scmp.eq.s32.totalorder %s22, 1
    %p197 = por %p195, %p196
    %p199 = scmp.ne.s32.totalorder %s184, %s198
    %p200 = scmp.eq.s32.totalorder %s22, 0
    %p201 = por %p199, %p200
    %s203 = sadd.s32 %s202, 1
    %p206 = scmp.eq.s32.totalorder %s16, 1
    %p207 = scmp.ne.s32.totalorder %s202, %s204
    %p208 = scmp.eq.s32.totalorder %s16, 0
    %p209 = por %p207, %p208
    %p210 = scmp.ne.s32.totalorder %s202, %s204
    %p211 = scmp.eq.s32.totalorder %s21, 1
    %p212 = por %p210, %p211
    %p213 = scmp.ne.s32.totalorder %s204, %s205
    %p214 = scmp.eq.s32.totalorder %s21, 0
    %p215 = por %p213, %p214
    %p216 = scmp.ne.s32.totalorder %s204, %s205
    %p217 = scmp.eq.s32.totalorder %s22, 1
    %p218 = por %p216, %p217
    %p220 = scmp.ne.s32.totalorder %s205, %s219
    %p221 = scmp.eq.s32.totalorder %s22, 0
    %p222 = por %p220, %p221
    %s224 = sadd.s32 %s223, 1
    %p227 = scmp.eq.s32.totalorder %s16, 1
    %p228 = scmp.ne.s32.totalorder %s223, %s225
    %p229 = scmp.eq.s32.totalorder %s16, 0
    %p230 = por %p228, %p229
    %p231 = scmp.ne.s32.totalorder %s223, %s225
    %p232 = scmp.eq.s32.totalorder %s21, 1
    %p233 = por %p231, %p232
    %p234 = scmp.ne.s32.totalorder %s225, %s226
    %p235 = scmp.eq.s32.totalorder %s21, 0
    %p236 = por %p234, %p235
    %p237 = scmp.ne.s32.totalorder %s225, %s226
    %p238 = scmp.eq.s32.totalorder %s22, 1
    %p239 = por %p237, %p238
    %p241 = scmp.ne.s32.totalorder %s226, %s240
    %p242 = scmp.eq.s32.totalorder %s22, 0
    %p243 = por %p241, %p242
    %s244 = ssub.s32 %s16, %s23
    %p245 = scmp.eq.s32.totalorder %s244, 0
    %s247 = sadd.s32 %s246, 1
    %s248 = scalar_select %p245, %s246, %s247
    %p251 = pneg %p245
    %p252 = scmp.eq.s32.totalorder %s16, 1
    %p253 = por %p251, %p252
    %p254 = scmp.ne.s32.totalorder %s246, %s249
    %p255 = scmp.eq.s32.totalorder %s16, 0
    %p256 = por %p254, %p255
    %p257 = scmp.ne.s32.totalorder %s246, %s249
    %p258 = scmp.eq.s32.totalorder %s21, 1
    %p259 = por %p257, %p258
    %p260 = scmp.ne.s32.totalorder %s249, %s250
    %p261 = scmp.eq.s32.totalorder %s21, 0
    %p262 = por %p260, %p261
    %p263 = scmp.ne.s32.totalorder %s249, %s250
    %p264 = scmp.eq.s32.totalorder %s22, 1
    %p265 = por %p263, %p264
    %p267 = scmp.ne.s32.totalorder %s250, %s266
    %p268 = scmp.eq.s32.totalorder %s22, 0
    %p269 = por %p267, %p268
    %p270 = scmp.le.s32.totalorder 1, %s16
    %p271 = scmp.lt.s32.totalorder %s16, 3
    %p272 = pnand %p270, %p271
    %p273 = pneg %p272
    // Predicated region
    $region9: #{transformer_gen.16} parent=5 // pred_check
      _
    $region10: #{transformer_gen.16} parent=5 // pred_check_branch
      %275 = sbr.rel (%p272) target = $region12
    $region11: #{transformer_gen.16} parent=5 // pred_region
      %s276 = ssub.s32 %s16, 1
      // Predicated region
      $region13: #{transformer_gen.16} parent=11 // pred_check
        %p277 = pneg %p89
      $region14: #{transformer_gen.16} parent=11 // pred_check_branch
        %279 = sbr.rel (%p277) target = $region16
      $region15: #{transformer_gen.16} parent=11 // pred_region
        _
      $region16: #{transformer_gen.16} parent=11 // pred_fallthru
        _
      // Predicated region
      $region17: #{transformer_gen.16} parent=11 // pred_check
        %p280 = pneg %p110
      $region18: #{transformer_gen.16} parent=11 // pred_check_branch
        %282 = sbr.rel (%p280) target = $region20
      $region19: #{transformer_gen.16} parent=11 // pred_region
        _
      $region20: #{transformer_gen.16} parent=11 // pred_fallthru
        _
      // Predicated region
      $region21: #{transformer_gen.16} parent=11 // pred_check
        %p283 = pneg %p131
      $region22: #{transformer_gen.16} parent=11 // pred_check_branch
        %285 = sbr.rel (%p283) target = $region24
      $region23: #{transformer_gen.16} parent=11 // pred_region
        _
      $region24: #{transformer_gen.16} parent=11 // pred_fallthru
        _
      // Predicated region
      $region25: #{transformer_gen.16} parent=11 // pred_check
        %p286 = pneg %p152
      $region26: #{transformer_gen.16} parent=11 // pred_check_branch
        %288 = sbr.rel (%p286) target = $region28
      $region27: #{transformer_gen.16} parent=11 // pred_region
        _
      $region28: #{transformer_gen.16} parent=11 // pred_fallthru
        _
      // Predicated region
      $region29: #{transformer_gen.16} parent=11 // pred_check
        %p289 = pneg %p173
      $region30: #{transformer_gen.16} parent=11 // pred_check_branch
        %291 = sbr.rel (%p289) target = $region32
      $region31: #{transformer_gen.16} parent=11 // pred_region
        _
      $region32: #{transformer_gen.16} parent=11 // pred_fallthru
        _
      // Predicated region
      $region33: #{transformer_gen.16} parent=11 // pred_check
        %p292 = pneg %p194
      $region34: #{transformer_gen.16} parent=11 // pred_check_branch
        %294 = sbr.rel (%p292) target = $region36
      $region35: #{transformer_gen.16} parent=11 // pred_region
        _
      $region36: #{transformer_gen.16} parent=11 // pred_fallthru
        _
      // Predicated region
      $region37: #{transformer_gen.16} parent=11 // pred_check
        %p295 = pneg %p215
      $region38: #{transformer_gen.16} parent=11 // pred_check_branch
        %297 = sbr.rel (%p295) target = $region40
      $region39: #{transformer_gen.16} parent=11 // pred_region
        _
      $region40: #{transformer_gen.16} parent=11 // pred_fallthru
        _
      // Predicated region
      $region41: #{transformer_gen.16} parent=11 // pred_check
        %p298 = pneg %p236
      $region42: #{transformer_gen.16} parent=11 // pred_check_branch
        %300 = sbr.rel (%p298) target = $region44
      $region43: #{transformer_gen.16} parent=11 // pred_region
        _
      $region44: #{transformer_gen.16} parent=11 // pred_fallthru
        _
    $region12: #{transformer_gen.16} parent=5 // pred_fallthru
      _
    %p301 = scmp.lt.s32.totalorder %s16, 2
    // Predicated region
    $region45: #{transformer_gen.16} parent=5 // pred_check
      %p302 = pneg %p301
    $region46: #{transformer_gen.16} parent=5 // pred_check_branch
      %304 = sbr.rel (%p302) target = $region48
    $region47: #{transformer_gen.16} parent=5 // pred_region
      // Predicated region
      $region49: #{transformer_gen.16} parent=47 // pred_check
        %p305 = pneg %p36
      $region50: #{transformer_gen.16} parent=47 // pred_check_branch
        %307 = sbr.rel (%p305) target = $region52
      $region51: #{transformer_gen.16} parent=47 // pred_region
        %p308 = scmp.lt.s32.totalorder %s16, 1
        %s309 = scalar_select %p308, %s16, 1
        %s310 = smul.addr %s309, 2
        %s311 = smul.addr %s310, 4
        %s312 = scalar_lea.vmem %s0, %s311
      $region52: #{transformer_gen.16} parent=47 // pred_fallthru
        _
      // Predicated region
      $region53: #{transformer_gen.16} parent=47 // pred_check
        %p313 = pneg %p62
      $region54: #{transformer_gen.16} parent=47 // pred_check_branch
        %315 = sbr.rel (%p313) target = $region56
      $region55: #{transformer_gen.16} parent=47 // pred_region
        %p316 = scmp.lt.s32.totalorder %s16, 1
        %s317 = scalar_select %p316, %s16, 1
        %s318 = smul.addr %s317, 2
        %s319 = smul.addr %s318, 4
        %s320 = scalar_lea.vmem %s1, %s319
      $region56: #{transformer_gen.16} parent=47 // pred_fallthru
        _
    $region48: #{transformer_gen.16} parent=5 // pred_fallthru
      _
    %p321 = scmp.le.s32.totalorder 1, %s16
    %p322 = scmp.lt.s32.totalorder %s16, 3
    %p323 = pnand %p321, %p322
    %p324 = pneg %p323
    // Predicated region
    $region57: #{transformer_gen.16} parent=5 // pred_check
      _
    $region58: #{transformer_gen.16} parent=5 // pred_check_branch
      %326 = sbr.rel (%p323) target = $region60
    $region59: #{transformer_gen.16} parent=5 // pred_region
      %s327 = ssub.s32 %s16, 1
      %p328 = scmp.lt.s32.totalorder %s21, 1
      %s329 = scalar_select %p328, %s21, 1
      %s330 = smul.addr %s329, 2
      %s331 = smul.addr %s330, 4
      %s332 = scalar_lea.vmem %s0, %s331
      %p333 = pneg %p42
      %p334 = pneg %p39
      %p335 = scmp.lt.s32.totalorder %s21, 1
      %s336 = scalar_select %p335, %s21, 1
      %s337 = smul.addr %s336, 2
      %s338 = smul.addr %s337, 4
      %s339 = scalar_lea.vmem %s1, %s338
      %p340 = pneg %p68
      %p341 = pneg %p65
      %p342 = pneg %p89
      %p343 = pneg %p86
      %p344 = pneg %p110
      %p345 = pneg %p107
      %p346 = pneg %p131
      %p347 = pneg %p128
      %p348 = pneg %p152
      %p349 = pneg %p149
      %p350 = pneg %p173
      %p351 = pneg %p170
      %p352 = pneg %p194
      %p353 = pneg %p191
      %p354 = pneg %p215
      %p355 = pneg %p212
      %p356 = pneg %p236
      %p357 = pneg %p233
      %p358 = pneg %p262
      %p359 = pneg %p259
      %p360 = scmp.lt.s32.totalorder %s21, 1
      %s361 = scalar_select %p360, %s21, 1
      %s362 = smul.addr %s361, 2
      %s363 = smul.addr %s362, 4
      %s364 = scalar_lea.vmem %s10, %s363
      %p365 = scmp.lt.s32.totalorder %s21, 1
      %s366 = scalar_select %p365, %s21, 1
      %s367 = smul.addr %s366, 2
      %s368 = smul.addr %s367, 4
      %s369 = scalar_lea.vmem %s0, %s368
      %p370 = scmp.lt.s32.totalorder %s21, 1
      %s371 = scalar_select %p370, %s21, 1
      %s372 = smul.addr %s371, 2
      %s373 = smul.addr %s372, 4
      %s374 = scalar_lea.vmem %s1, %s373
      %p375 = scmp.lt.s32.totalorder %s21, 1
      %s376 = scalar_select %p375, %s21, 1
      %s377 = smul.addr %s376, 2
      %s378 = smul.addr %s377, 4
      %s379 = scalar_lea.vmem %s10, %s378
      %v381 = vld [vmem:[%s369] sm:$0xf]
      %v382 = vld [vmem:[%s369 + $0x4] sm:$0xf]
      %v383 = vld [vmem:[%s374] sm:$0xf]
      %v384 = vld [vmem:[%s374 + $0x4] sm:$0xf]
      %v385 = vld [vmem:[%s2] sm:$0xf]
      %v386 = vld [vmem:[%s2 + $0x4] sm:$0xf]
      %v387 = vld [vmem:[%s2 + $0x8] sm:$0xf]
      %v388 = vld [vmem:[%s2 + $0xc] sm:$0xf]
      %v389 = vld [vmem:[%s2 + $0x10] sm:$0xf]
      %v390 = vld [vmem:[%s2 + $0x14] sm:$0xf]
      %v391 = vld [vmem:[%s2 + $0x18] sm:$0xf]
      %v392 = vld [vmem:[%s2 + $0x1c] sm:$0xf]
      %v393 = vld [vmem:[%s2 + $0x20] sm:$0xf]
      %v394 = vld [vmem:[%s2 + $0x24] sm:$0xf]
      %v395 = vld [vmem:[%s2 + $0x28] sm:$0xf]
      %v396 = vld [vmem:[%s2 + $0x2c] sm:$0xf]
      %v397 = vld [vmem:[%s2 + $0x30] sm:$0xf]
      %v398 = vld [vmem:[%s2 + $0x34] sm:$0xf]
      %v399 = vld [vmem:[%s2 + $0x38] sm:$0xf]
      %v400 = vld [vmem:[%s2 + $0x3c] sm:$0xf]
      %v401 = vld [vmem:[%s3] sm:$0x1]
      %v403 = vlaneseq
      %v404 = vshrl.u32 %v403, 7
      %v405 = vsub.s32 0, %v404
      %v406 = vrot.slane %v401, %v405
      %v410 = vunpack.c.l.b16 %v381
      %v411 = vunpack.c.l.b16 %v382
      %v412 = vpack.c.b16 %v411, %v410
      %v430 = vunpack.c.l.b16 %v385
      %v431 = vunpack.c.l.b16 %v386
      %v432 = vunpack.c.l.b16 %v387
      %v433 = vunpack.c.l.b16 %v388
      %v434 = vunpack.c.l.b16 %v389
      %v435 = vunpack.c.l.b16 %v390
      %v436 = vunpack.c.l.b16 %v391
      %v437 = vunpack.c.l.b16 %v392
      %v438 = vunpack.c.l.b16 %v393
      %v439 = vunpack.c.l.b16 %v394
      %v440 = vunpack.c.l.b16 %v395
      %v441 = vunpack.c.l.b16 %v396
      %v442 = vunpack.c.l.b16 %v397
      %v443 = vunpack.c.l.b16 %v398
      %v444 = vunpack.c.l.b16 %v399
      %v445 = vunpack.c.l.b16 %v400
      %v446 = vpack.c.b16 %v431, %v430
      %v447 = vpack.c.b16 %v433, %v432
      %v448 = vpack.c.b16 %v435, %v434
      %v449 = vpack.c.b16 %v437, %v436
      %v450 = vpack.c.b16 %v439, %v438
      %v451 = vpack.c.b16 %v441, %v440
      %v452 = vpack.c.b16 %v443, %v442
      %v453 = vpack.c.b16 %v445, %v444
      %462 = vmatprep.subr.bf16.mxu0 0
      %463 = vmatpush1.bf16.msra.mxu0 %v446
      %464 = vmatprep.subr.bf16.mxu0 0
      %465 = vmatpush1.bf16.msra.mxu0 %v447
      %466 = vmatprep.subr.bf16.mxu0 0
      %467 = vmatpush1.bf16.msra.mxu0 %v448
      %468 = vmatprep.subr.bf16.mxu0 0
      %469 = vmatpush1.bf16.msra.mxu0 %v449
      %470 = vmatprep.subr.bf16.mxu0 0
      %471 = vmatpush1.bf16.msra.mxu0 %v450
      %472 = vmatprep.subr.bf16.mxu0 0
      %473 = vmatpush1.bf16.msra.mxu0 %v451
      %474 = vmatprep.subr.bf16.mxu0 0
      %475 = vmatpush1.bf16.msra.mxu0 %v452
      %476 = vmatprep.subr.bf16.mxu0 0
      %477 = vmatpush1.bf16.msra.mxu0 %v453
      %478 = vmatprep.subr.bf16.mxu0 0
      %479 = vmatpush1.bf16.msra.mxu0 0
      %480 = vmatprep.subr.bf16.mxu0 0
      %481 = vmatpush1.bf16.msra.mxu0 0
      %482 = vmatprep.subr.bf16.mxu0 0
      %483 = vmatpush1.bf16.msra.mxu0 0
      %484 = vmatprep.subr.bf16.mxu0 0
      %485 = vmatpush1.bf16.msra.mxu0 0
      %486 = vmatprep.subr.bf16.mxu0 0
      %487 = vmatpush1.bf16.msra.mxu0 0
      %488 = vmatprep.subr.bf16.mxu0 0
      %489 = vmatpush1.bf16.msra.mxu0 0
      %490 = vmatprep.subr.bf16.mxu0 0
      %491 = vmatpush1.bf16.msra.mxu0 0
      %492 = vmatprep.subr.bf16.mxu0 0
      %493 = vmatpush1.bf16.msra.mxu0 0
      %494 = vmatprep.mubr.bf16.mxu0 0
      %495 = vmatmul.mubr.bf16.gmra.mrb[0].mxu0 %v412
      %v496 = vpop.f32.mrb[0].mxu0
      %v497 = vadd.f32 %v406, %v496
      %v498 = vpop.f32.mrb[0].mxu0
      %v499 = vpop.f32.mrb[0].mxu0
      %v500 = vadd.f32 %v406, %v499
      %v501 = vpop.f32.mrb[0].mxu0
      %502 = vdwg.mxu0
      %v503 = vpack.c.bf16 %v500, %v497
      %v504 = vld [vmem:[%s4] sm:$0xff]
      %v505 = vld [vmem:[%s4 + $0x8] sm:$0xff]
      %v506 = vld [vmem:[%s4 + $0x10] sm:$0xff]
      %v507 = vld [vmem:[%s4 + $0x18] sm:$0xff]
      %v508 = vld [vmem:[%s4 + $0x20] sm:$0xff]
      %v509 = vld [vmem:[%s4 + $0x28] sm:$0xff]
      %v510 = vld [vmem:[%s4 + $0x30] sm:$0xff]
      %v511 = vld [vmem:[%s4 + $0x38] sm:$0xff]
      %v512 = vld [vmem:[%s4 + $0x40] sm:$0xff]
      %v513 = vld [vmem:[%s4 + $0x48] sm:$0xff]
      %v514 = vld [vmem:[%s4 + $0x50] sm:$0xff]
      %v515 = vld [vmem:[%s4 + $0x58] sm:$0xff]
      %v516 = vld [vmem:[%s4 + $0x60] sm:$0xff]
      %v517 = vld [vmem:[%s4 + $0x68] sm:$0xff]
      %v518 = vld [vmem:[%s4 + $0x70] sm:$0xff]
      %v519 = vld [vmem:[%s4 + $0x78] sm:$0xff]
      %v520 = vld [vmem:[%s5] sm:$0x3]
      %v522 = vlaneseq
      %v523 = vshrl.u32 %v522, 7
      %v524 = vsub.s32 0, %v523
      %v525 = vrot.slane %v520, %v524
      %v526 = vlaneseq
      %v527 = vshrl.u32 %v526, 7
      %v528 = vsub.s32 1, %v527
      %v529 = vrot.slane %v520, %v528
      %v534 = vunpack.c.l.b16 %v383
      %v535 = vunpack.c.l.b16 %v384
      %v536 = vpack.c.b16 %v535, %v534
      %v554 = vunpack.c.l.b16 %v504
      %v555 = vunpack.c.h.b16 %v504
      %v556 = vunpack.c.l.b16 %v505
      %v557 = vunpack.c.h.b16 %v505
      %v558 = vunpack.c.l.b16 %v506
      %v559 = vunpack.c.h.b16 %v506
      %v560 = vunpack.c.l.b16 %v507
      %v561 = vunpack.c.h.b16 %v507
      %v562 = vunpack.c.l.b16 %v508
      %v563 = vunpack.c.h.b16 %v508
      %v564 = vunpack.c.l.b16 %v509
      %v565 = vunpack.c.h.b16 %v509
      %v566 = vunpack.c.l.b16 %v510
      %v567 = vunpack.c.h.b16 %v510
      %v568 = vunpack.c.l.b16 %v511
      %v569 = vunpack.c.h.b16 %v511
      %v570 = vunpack.c.l.b16 %v512
      %v571 = vunpack.c.h.b16 %v512
      %v572 = vunpack.c.l.b16 %v513
      %v573 = vunpack.c.h.b16 %v513
      %v574 = vunpack.c.l.b16 %v514
      %v575 = vunpack.c.h.b16 %v514
      %v576 = vunpack.c.l.b16 %v515
      %v577 = vunpack.c.h.b16 %v515
      %v578 = vunpack.c.l.b16 %v516
      %v579 = vunpack.c.h.b16 %v516
      %v580 = vunpack.c.l.b16 %v517
      %v581 = vunpack.c.h.b16 %v517
      %v582 = vunpack.c.l.b16 %v518
      %v583 = vunpack.c.h.b16 %v518
      %v584 = vunpack.c.l.b16 %v519
      %v585 = vunpack.c.h.b16 %v519
      %v586 = vpack.c.b16 %v556, %v554
      %v587 = vpack.c.b16 %v557, %v555
      %v588 = vpack.c.b16 %v560, %v558
      %v589 = vpack.c.b16 %v561, %v559
      %v590 = vpack.c.b16 %v564, %v562
      %v591 = vpack.c.b16 %v565, %v563
      %v592 = vpack.c.b16 %v568, %v566
      %v593 = vpack.c.b16 %v569, %v567
      %v594 = vpack.c.b16 %v572, %v570
      %v595 = vpack.c.b16 %v573, %v571
      %v596 = vpack.c.b16 %v576, %v574
      %v597 = vpack.c.b16 %v577, %v575
      %v598 = vpack.c.b16 %v580, %v578
      %v599 = vpack.c.b16 %v581, %v579
      %v600 = vpack.c.b16 %v584, %v582
      %v601 = vpack.c.b16 %v585, %v583
      %618 = vmatprep.subr.bf16.mxu0 %v587
      %619 = vmatpush1.bf16.msra.mxu0 %v586
      %620 = vmatprep.subr.bf16.mxu0 %v589
      %621 = vmatpush1.bf16.msra.mxu0 %v588
      %622 = vmatprep.subr.bf16.mxu0 %v591
      %623 = vmatpush1.bf16.msra.mxu0 %v590
      %624 = vmatprep.subr.bf16.mxu0 %v593
      %625 = vmatpush1.bf16.msra.mxu0 %v592
      %626 = vmatprep.subr.bf16.mxu0 %v595
      %627 = vmatpush1.bf16.msra.mxu0 %v594
      %628 = vmatprep.subr.bf16.mxu0 %v597
      %629 = vmatpush1.bf16.msra.mxu0 %v596
      %630 = vmatprep.subr.bf16.mxu0 %v599
      %631 = vmatpush1.bf16.msra.mxu0 %v598
      %632 = vmatprep.subr.bf16.mxu0 %v601
      %633 = vmatpush1.bf16.msra.mxu0 %v600
      %634 = vmatprep.subr.bf16.mxu0 0
      %635 = vmatpush1.bf16.msra.mxu0 0
      %636 = vmatprep.subr.bf16.mxu0 0
      %637 = vmatpush1.bf16.msra.mxu0 0
      %638 = vmatprep.subr.bf16.mxu0 0
      %639 = vmatpush1.bf16.msra.mxu0 0
      %640 = vmatprep.subr.bf16.mxu0 0
      %641 = vmatpush1.bf16.msra.mxu0 0
      %642 = vmatprep.subr.bf16.mxu0 0
      %643 = vmatpush1.bf16.msra.mxu0 0
      %644 = vmatprep.subr.bf16.mxu0 0
      %645 = vmatpush1.bf16.msra.mxu0 0
      %646 = vmatprep.subr.bf16.mxu0 0
      %647 = vmatpush1.bf16.msra.mxu0 0
      %648 = vmatprep.subr.bf16.mxu0 0
      %649 = vmatpush1.bf16.msra.mxu0 0
      %650 = vmatprep.mubr.bf16.mxu0 0
      %651 = vmatmul.mubr.bf16.gmra.mrb[0].mxu0 %v536
      %v652 = vpop.f32.mrb[0].mxu0
      %v653 = vadd.f32 %v525, %v652
      %v654 = vpop.f32.mrb[0].mxu0
      %v655 = vadd.f32 %v529, %v654
      %v656 = vpop.f32.mrb[0].mxu0
      %v657 = vadd.f32 %v525, %v656
      %v658 = vpop.f32.mrb[0].mxu0
      %v659 = vadd.f32 %v529, %v658
      %660 = vdwg.mxu0
      %v661 = vpack.c.bf16 %v657, %v653
      %v662 = vpack.c.bf16 %v659, %v655
      %v663 = vld [vmem:[%s6] sm:$0xf]
      %v664 = vld [vmem:[%s6 + $0x4] sm:$0xf]
      %v665 = vld [vmem:[%s6 + $0x8] sm:$0xf]
      %v666 = vld [vmem:[%s6 + $0xc] sm:$0xf]
      %v667 = vld [vmem:[%s6 + $0x10] sm:$0xf]
      %v668 = vld [vmem:[%s6 + $0x14] sm:$0xf]
      %v669 = vld [vmem:[%s6 + $0x18] sm:$0xf]
      %v670 = vld [vmem:[%s6 + $0x1c] sm:$0xf]
      %v671 = vld [vmem:[%s6 + $0x20] sm:$0xf]
      %v672 = vld [vmem:[%s6 + $0x24] sm:$0xf]
      %v673 = vld [vmem:[%s6 + $0x28] sm:$0xf]
      %v674 = vld [vmem:[%s6 + $0x2c] sm:$0xf]
      %v675 = vld [vmem:[%s6 + $0x30] sm:$0xf]
      %v676 = vld [vmem:[%s6 + $0x34] sm:$0xf]
      %v677 = vld [vmem:[%s6 + $0x38] sm:$0xf]
      %v678 = vld [vmem:[%s6 + $0x3c] sm:$0xf]
      %v679 = vld [vmem:[%s7] sm:$0x1]
      %vm680 = vcmask 261120
      %v682 = vsel %vm680, %v503, 0
      %v685 = vsel %vm680, %v661, 0
      %687 = vmatprep.subr.bf16.mxu0 0
      %688 = vmatpush1.bf16.xpose.msra.mxu0 %v685
      %689 = vmatprep.subr.bf16.mxu0 0
      %690 = vmatpush1.bf16.xpose.msra.mxu0 0
      %691 = vmatprep.subr.bf16.mxu0 0
      %692 = vmatpush1.bf16.xpose.msra.mxu0 0
      %693 = vmatprep.subr.bf16.mxu0 0
      %694 = vmatpush1.bf16.xpose.msra.mxu0 0
      %695 = vmatprep.subr.bf16.mxu0 0
      %696 = vmatpush1.bf16.xpose.msra.mxu0 0
      %697 = vmatprep.subr.bf16.mxu0 0
      %698 = vmatpush1.bf16.xpose.msra.mxu0 0
      %699 = vmatprep.subr.bf16.mxu0 0
      %700 = vmatpush1.bf16.xpose.msra.mxu0 0
      %701 = vmatprep.subr.bf16.mxu0 0
      %702 = vmatpush1.bf16.xpose.msra.mxu0 0
      %703 = vmatprep.subr.bf16.mxu0 0
      %704 = vmatpush1.bf16.xpose.msra.mxu0 0
      %705 = vmatprep.subr.bf16.mxu0 0
      %706 = vmatpush1.bf16.xpose.msra.mxu0 0
      %707 = vmatprep.subr.bf16.mxu0 0
      %708 = vmatpush1.bf16.xpose.msra.mxu0 0
      %709 = vmatprep.subr.bf16.mxu0 0
      %710 = vmatpush1.bf16.xpose.msra.mxu0 0
      %711 = vmatprep.subr.bf16.mxu0 0
      %712 = vmatpush1.bf16.xpose.msra.mxu0 0
      %713 = vmatprep.subr.bf16.mxu0 0
      %714 = vmatpush1.bf16.xpose.msra.mxu0 0
      %715 = vmatprep.subr.bf16.mxu0 0
      %716 = vmatpush1.bf16.xpose.msra.mxu0 0
      %717 = vmatprep.subr.bf16.mxu0 0
      %718 = vmatpush1.bf16.xpose.msra.mxu0 0
      %719 = vmatprep.mubr.bf16.mxu0 0
      %720 = vmatmul.mubr.bf16.gmra.mrb[0].mxu0 %v682
      %v721 = vpop.f32.mrb[0].mxu0
      %v722 = vadd.f32 0.0, %v721
      %v723 = vpop.f32.mrb[0].mxu0
      %v724 = vpop.f32.mrb[0].mxu0
      %v725 = vadd.f32 0.0, %v724
      %v726 = vpop.f32.mrb[0].mxu0
      %727 = vdwg.mxu0
      %vm728 = vcmask 130048
      %v729 = vsel %vm728, %v722, -inf
      %730 = vmax.xlane.f32.xlu0 %v729
      %v731 = vpop.xlane.xlu0 %730
      %v732 = vsel %vm728, %v725, -inf
      %733 = vmax.xlane.f32.xlu0 %v732
      %v734 = vpop.xlane.xlu0 %733
      %v735 = vsub.f32 %v722, %v731
      %v736 = vsub.f32 %v725, %v734
      %v737 = vmul.f32 %v735, 1.442695
      %v738 = vpow.pop %v737
      %v739 = vmul.f32 %v736, 1.442695
      %v740 = vpow.pop %v739
      %v741 = vsel %vm728, %v738, 0.0
      %742 = vadd.xlane.f32.xlu0 %v741
      %v743 = vpop.xlane.xlu0 %742
      %v744 = vsel %vm728, %v740, 0.0
      %745 = vadd.xlane.f32.xlu0 %v744
      %v746 = vpop.xlane.xlu0 %745
      %v747 = vpack.c.bf16 %v740, %v738
      %v749 = vsel %vm728, %v747, 0
      %751 = vmatprep.subr.bf16.mxu0 0
      %752 = vmatpush1.bf16.msra.mxu0 %v662
      %753 = vmatprep.subr.bf16.mxu0 0
      %754 = vmatpush1.bf16.msra.mxu0 0
      %755 = vmatprep.subr.bf16.mxu0 0
      %756 = vmatpush1.bf16.msra.mxu0 0
      %757 = vmatprep.subr.bf16.mxu0 0
      %758 = vmatpush1.bf16.msra.mxu0 0
      %759 = vmatprep.subr.bf16.mxu0 0
      %760 = vmatpush1.bf16.msra.mxu0 0
      %761 = vmatprep.subr.bf16.mxu0 0
      %762 = vmatpush1.bf16.msra.mxu0 0
      %763 = vmatprep.subr.bf16.mxu0 0
      %764 = vmatpush1.bf16.msra.mxu0 0
      %765 = vmatprep.subr.bf16.mxu0 0
      %766 = vmatpush1.bf16.msra.mxu0 0
      %767 = vmatprep.subr.bf16.mxu0 0
      %768 = vmatpush1.bf16.msra.mxu0 0
      %769 = vmatprep.subr.bf16.mxu0 0
      %770 = vmatpush1.bf16.msra.mxu0 0
      %771 = vmatprep.subr.bf16.mxu0 0
      %772 = vmatpush1.bf16.msra.mxu0 0
      %773 = vmatprep.subr.bf16.mxu0 0
      %774 = vmatpush1.bf16.msra.mxu0 0
      %775 = vmatprep.subr.bf16.mxu0 0
      %776 = vmatpush1.bf16.msra.mxu0 0
      %777 = vmatprep.subr.bf16.mxu0 0
      %778 = vmatpush1.bf16.msra.mxu0 0
      %779 = vmatprep.subr.bf16.mxu0 0
      %780 = vmatpush1.bf16.msra.mxu0 0
      %781 = vmatprep.subr.bf16.mxu0 0
      %782 = vmatpush1.bf16.msra.mxu0 0
      %783 = vmatprep.mubr.bf16.mxu0 0
      %784 = vmatmul.mubr.bf16.gmra.mrb[0].mxu0 %v749
      %v785 = vpop.f32.mrb[0].mxu0
      %v786 = vadd.f32 0.0, %v785
      %v787 = vpop.f32.mrb[0].mxu0
      %v788 = vpop.f32.mrb[0].mxu0
      %v789 = vadd.f32 0.0, %v788
      %v790 = vpop.f32.mrb[0].mxu0
      %791 = vdwg.mxu0
      %v792 = vrcp.pop %v743
      %v793 = vrcp.pop %v746
      %v794 = vmul.f32 %v786, %v792
      %v795 = vmul.f32 %v789, %v793
      %v796 = vpack.c.bf16 %v795, %v794
      %798 = vrot.lane.b32.xlu0 %v503, 96
      %v799 = vpop.permute.xlu0 %798
      %801 = vrot.lane.b32.xlu0 %v661, 96
      %v802 = vpop.permute.xlu0 %801
      %v804 = vsel %vm680, %v799, 0
      %v807 = vsel %vm680, %v802, 0
      %809 = vmatprep.subr.bf16.mxu0 0
      %810 = vmatpush1.bf16.xpose.msra.mxu0 %v807
      %811 = vmatprep.subr.bf16.mxu0 0
      %812 = vmatpush1.bf16.xpose.msra.mxu0 0
      %813 = vmatprep.subr.bf16.mxu0 0
      %814 = vmatpush1.bf16.xpose.msra.mxu0 0
      %815 = vmatprep.subr.bf16.mxu0 0
      %816 = vmatpush1.bf16.xpose.msra.mxu0 0
      %817 = vmatprep.subr.bf16.mxu0 0
      %818 = vmatpush1.bf16.xpose.msra.mxu0 0
      %819 = vmatprep.subr.bf16.mxu0 0
      %820 = vmatpush1.bf16.xpose.msra.mxu0 0
      %821 = vmatprep.subr.bf16.mxu0 0
      %822 = vmatpush1.bf16.xpose.msra.mxu0 0
      %823 = vmatprep.subr.bf16.mxu0 0
      %824 = vmatpush1.bf16.xpose.msra.mxu0 0
      %825 = vmatprep.subr.bf16.mxu0 0
      %826 = vmatpush1.bf16.xpose.msra.mxu0 0
      %827 = vmatprep.subr.bf16.mxu0 0
      %828 = vmatpush1.bf16.xpose.msra.mxu0 0
      %829 = vmatprep.subr.bf16.mxu0 0
      %830 = vmatpush1.bf16.xpose.msra.mxu0 0
      %831 = vmatprep.subr.bf16.mxu0 0
      %832 = vmatpush1.bf16.xpose.msra.mxu0 0
      %833 = vmatprep.subr.bf16.mxu0 0
      %834 = vmatpush1.bf16.xpose.msra.mxu0 0
      %835 = vmatprep.subr.bf16.mxu0 0
      %836 = vmatpush1.bf16.xpose.msra.mxu0 0
      %837 = vmatprep.subr.bf16.mxu0 0
      %838 = vmatpush1.bf16.xpose.msra.mxu0 0
      %839 = vmatprep.subr.bf16.mxu0 0
      %840 = vmatpush1.bf16.xpose.msra.mxu0 0
      %841 = vmatprep.mubr.bf16.mxu0 0
      %842 = vmatmul.mubr.bf16.gmra.mrb[0].mxu0 %v804
      %v843 = vpop.f32.mrb[0].mxu0
      %v844 = vadd.f32 0.0, %v843
      %v845 = vpop.f32.mrb[0].mxu0
      %v846 = vpop.f32.mrb[0].mxu0
      %v847 = vadd.f32 0.0, %v846
      %v848 = vpop.f32.mrb[0].mxu0
      %849 = vdwg.mxu0
      %v850 = vsel %vm728, %v844, -inf
      %851 = vmax.xlane.f32.xlu0 %v850
      %v852 = vpop.xlane.xlu0 %851
      %v853 = vsel %vm728, %v847, -inf
      %854 = vmax.xlane.f32.xlu0 %v853
      %v855 = vpop.xlane.xlu0 %854
      %v856 = vsub.f32 %v844, %v852
      %v857 = vsub.f32 %v847, %v855
      %v858 = vmul.f32 %v856, 1.442695
      %v859 = vpow.pop %v858
      %v860 = vmul.f32 %v857, 1.442695
      %v861 = vpow.pop %v860
      %v862 = vsel %vm728, %v859, 0.0
      %863 = vadd.xlane.f32.xlu0 %v862
      %v864 = vpop.xlane.xlu0 %863
      %v865 = vsel %vm728, %v861, 0.0
      %866 = vadd.xlane.f32.xlu0 %v865
      %v867 = vpop.xlane.xlu0 %866
      %v868 = vpack.c.bf16 %v861, %v859
      %870 = vrot.lane.b32.xlu0 %v662, 96
      %v871 = vpop.permute.xlu0 %870
      %v874 = vsel %vm728, %v868, 0
      %876 = vmatprep.subr.bf16.mxu0 0
      %877 = vmatpush1.bf16.msra.mxu0 %v871
      %878 = vmatprep.subr.bf16.mxu0 0
      %879 = vmatpush1.bf16.msra.mxu0 0
      %880 = vmatprep.subr.bf16.mxu0 0
      %881 = vmatpush1.bf16.msra.mxu0 0
      %882 = vmatprep.subr.bf16.mxu0 0
      %883 = vmatpush1.bf16.msra.mxu0 0
      %884 = vmatprep.subr.bf16.mxu0 0
      %885 = vmatpush1.bf16.msra.mxu0 0
      %886 = vmatprep.subr.bf16.mxu0 0
      %887 = vmatpush1.bf16.msra.mxu0 0
      %888 = vmatprep.subr.bf16.mxu0 0
      %889 = vmatpush1.bf16.msra.mxu0 0
      %890 = vmatprep.subr.bf16.mxu0 0
      %891 = vmatpush1.bf16.msra.mxu0 0
      %892 = vmatprep.subr.bf16.mxu0 0
      %893 = vmatpush1.bf16.msra.mxu0 0
      %894 = vmatprep.subr.bf16.mxu0 0
      %895 = vmatpush1.bf16.msra.mxu0 0
      %896 = vmatprep.subr.bf16.mxu0 0
      %897 = vmatpush1.bf16.msra.mxu0 0
      %898 = vmatprep.subr.bf16.mxu0 0
      %899 = vmatpush1.bf16.msra.mxu0 0
      %900 = vmatprep.subr.bf16.mxu0 0
      %901 = vmatpush1.bf16.msra.mxu0 0
      %902 = vmatprep.subr.bf16.mxu0 0
      %903 = vmatpush1.bf16.msra.mxu0 0
      %904 = vmatprep.subr.bf16.mxu0 0
      %905 = vmatpush1.bf16.msra.mxu0 0
      %906 = vmatprep.subr.bf16.mxu0 0
      %907 = vmatpush1.bf16.msra.mxu0 0
      %908 = vmatprep.mubr.bf16.mxu0 0
      %909 = vmatmul.mubr.bf16.gmra.mrb[0].mxu0 %v874
      %v910 = vpop.f32.mrb[0].mxu0
      %v911 = vadd.f32 0.0, %v910
      %v912 = vpop.f32.mrb[0].mxu0
      %v913 = vpop.f32.mrb[0].mxu0
      %v914 = vadd.f32 0.0, %v913
      %v915 = vpop.f32.mrb[0].mxu0
      %916 = vdwg.mxu0
      %v917 = vrcp.pop %v864
      %v918 = vrcp.pop %v867
      %v919 = vmul.f32 %v911, %v917
      %v920 = vmul.f32 %v914, %v918
      %v921 = vpack.c.bf16 %v920, %v919
      %v926 = vunpack.c.l.b16 %v667
      %v927 = vunpack.c.l.b16 %v668
      %v928 = vunpack.c.l.b16 %v669
      %v929 = vunpack.c.l.b16 %v670
      %v930 = vpack.c.b16 %v927, %v926
      %v931 = vpack.c.b16 %v929, %v928
      %v935 = vsel %vm680, %v921, 0
      %937 = vmatprep.subr.bf16.mxu0 0
      %938 = vmatpush1.bf16.msra.mxu0 %v930
      %939 = vmatprep.subr.bf16.mxu0 0
      %940 = vmatpush1.bf16.msra.mxu0 %v931
      %941 = vmatprep.subr.bf16.mxu0 0
      %942 = vmatpush1.bf16.msra.mxu0 0
      %943 = vmatprep.subr.bf16.mxu0 0
      %944 = vmatpush1.bf16.msra.mxu0 0
      %945 = vmatprep.subr.bf16.mxu0 0
      %946 = vmatpush1.bf16.msra.mxu0 0
      %947 = vmatprep.subr.bf16.mxu0 0
      %948 = vmatpush1.bf16.msra.mxu0 0
      %949 = vmatprep.subr.bf16.mxu0 0
      %950 = vmatpush1.bf16.msra.mxu0 0
      %951 = vmatprep.subr.bf16.mxu0 0
      %952 = vmatpush1.bf16.msra.mxu0 0
      %953 = vmatprep.subr.bf16.mxu0 0
      %954 = vmatpush1.bf16.msra.mxu0 0
      %955 = vmatprep.subr.bf16.mxu0 0
      %956 = vmatpush1.bf16.msra.mxu0 0
      %957 = vmatprep.subr.bf16.mxu0 0
      %958 = vmatpush1.bf16.msra.mxu0 0
      %959 = vmatprep.subr.bf16.mxu0 0
      %960 = vmatpush1.bf16.msra.mxu0 0
      %961 = vmatprep.subr.bf16.mxu0 0
      %962 = vmatpush1.bf16.msra.mxu0 0
      %963 = vmatprep.subr.bf16.mxu0 0
      %964 = vmatpush1.bf16.msra.mxu0 0
      %965 = vmatprep.subr.bf16.mxu0 0
      %966 = vmatpush1.bf16.msra.mxu0 0
      %967 = vmatprep.subr.bf16.mxu0 0
      %968 = vmatpush1.bf16.msra.mxu0 0
      %969 = vmatprep.mubr.bf16.mxu0 0
      %970 = vmatmul.mubr.bf16.gmra.mrb[0].mxu0 %v935
      %v971 = vpop.f32.mrb[0].mxu0
      %v972 = vadd.f32 0.0, %v971
      %v973 = vpop.f32.mrb[0].mxu0
      %v974 = vpop.f32.mrb[0].mxu0
      %v975 = vadd.f32 0.0, %v974
      %v976 = vpop.f32.mrb[0].mxu0
      %977 = vdwg.mxu0
      %v982 = vunpack.c.l.b16 %v663
      %v983 = vunpack.c.l.b16 %v664
      %v984 = vunpack.c.l.b16 %v665
      %v985 = vunpack.c.l.b16 %v666
      %v986 = vpack.c.b16 %v983, %v982
      %v987 = vpack.c.b16 %v985, %v984
      %v991 = vsel %vm680, %v796, 0
      %993 = vmatprep.subr.bf16.mxu0 0
      %994 = vmatpush1.bf16.msra.mxu0 %v986
      %995 = vmatprep.subr.bf16.mxu0 0
      %996 = vmatpush1.bf16.msra.mxu0 %v987
      %997 = vmatprep.subr.bf16.mxu0 0
      %998 = vmatpush1.bf16.msra.mxu0 0
      %999 = vmatprep.subr.bf16.mxu0 0
      %1000 = vmatpush1.bf16.msra.mxu0 0
      %1001 = vmatprep.subr.bf16.mxu0 0
      %1002 = vmatpush1.bf16.msra.mxu0 0
      %1003 = vmatprep.subr.bf16.mxu0 0
      %1004 = vmatpush1.bf16.msra.mxu0 0
      %1005 = vmatprep.subr.bf16.mxu0 0
      %1006 = vmatpush1.bf16.msra.mxu0 0
      %1007 = vmatprep.subr.bf16.mxu0 0
      %1008 = vmatpush1.bf16.msra.mxu0 0
      %1009 = vmatprep.subr.bf16.mxu0 0
      %1010 = vmatpush1.bf16.msra.mxu0 0
      %1011 = vmatprep.subr.bf16.mxu0 0
      %1012 = vmatpush1.bf16.msra.mxu0 0
      %1013 = vmatprep.subr.bf16.mxu0 0
      %1014 = vmatpush1.bf16.msra.mxu0 0
      %1015 = vmatprep.subr.bf16.mxu0 0
      %1016 = vmatpush1.bf16.msra.mxu0 0
      %1017 = vmatprep.subr.bf16.mxu0 0
      %1018 = vmatpush1.bf16.msra.mxu0 0
      %1019 = vmatprep.subr.bf16.mxu0 0
      %1020 = vmatpush1.bf16.msra.mxu0 0
      %1021 = vmatprep.subr.bf16.mxu0 0
      %1022 = vmatpush1.bf16.msra.mxu0 0
      %1023 = vmatprep.subr.bf16.mxu0 0
      %1024 = vmatpush1.bf16.msra.mxu0 0
      %1025 = vmatprep.mubr.bf16.mxu0 0
      %1026 = vmatmul.mubr.bf16.gmra.mrb[0].mxu0 %v991
      %v1027 = vpop.f32.mrb[0].mxu0
      %v1028 = vadd.f32 %v972, %v1027
      %v1029 = vpop.f32.mrb[0].mxu0
      %v1030 = vpop.f32.mrb[0].mxu0
      %v1031 = vadd.f32 %v975, %v1030
      %v1032 = vpop.f32.mrb[0].mxu0
      %1033 = vdwg.mxu0
      %1034 = vrot.lane.b32.xlu0 %v503, 64
      %v1035 = vpop.permute.xlu0 %1034
      %1036 = vrot.lane.b32.xlu0 %v661, 64
      %v1037 = vpop.permute.xlu0 %1036
      %v1039 = vsel %vm680, %v1035, 0
      %v1042 = vsel %vm680, %v1037, 0
      %1044 = vmatprep.subr.bf16.mxu0 0
      %1045 = vmatpush1.bf16.xpose.msra.mxu0 %v1042
      %1046 = vmatprep.subr.bf16.mxu0 0
      %1047 = vmatpush1.bf16.xpose.msra.mxu0 0
      %1048 = vmatprep.subr.bf16.mxu0 0
      %1049 = vmatpush1.bf16.xpose.msra.mxu0 0
      %1050 = vmatprep.subr.bf16.mxu0 0
      %1051 = vmatpush1.bf16.xpose.msra.mxu0 0
      %1052 = vmatprep.subr.bf16.mxu0 0
      %1053 = vmatpush1.bf16.xpose.msra.mxu0 0
      %1054 = vmatprep.subr.bf16.mxu0 0
      %1055 = vmatpush1.bf16.xpose.msra.mxu0 0
      %1056 = vmatprep.subr.bf16.mxu0 0
      %1057 = vmatpush1.bf16.xpose.msra.mxu0 0
      %1058 = vmatprep.subr.bf16.mxu0 0
      %1059 = vmatpush1.bf16.xpose.msra.mxu0 0
      %1060 = vmatprep.subr.bf16.mxu0 0
      %1061 = vmatpush1.bf16.xpose.msra.mxu0 0
      %1062 = vmatprep.subr.bf16.mxu0 0
      %1063 = vmatpush1.bf16.xpose.msra.mxu0 0
      %1064 = vmatprep.subr.bf16.mxu0 0
      %1065 = vmatpush1.bf16.xpose.msra.mxu0 0
      %1066 = vmatprep.subr.bf16.mxu0 0
      %1067 = vmatpush1.bf16.xpose.msra.mxu0 0
      %1068 = vmatprep.subr.bf16.mxu0 0
      %1069 = vmatpush1.bf16.xpose.msra.mxu0 0
      %1070 = vmatprep.subr.bf16.mxu0 0
      %1071 = vmatpush1.bf16.xpose.msra.mxu0 0
      %1072 = vmatprep.subr.bf16.mxu0 0
      %1073 = vmatpush1.bf16.xpose.msra.mxu0 0
      %1074 = vmatprep.subr.bf16.mxu0 0
      %1075 = vmatpush1.bf16.xpose.msra.mxu0 0
      %1076 = vmatprep.mubr.bf16.mxu0 0
      %1077 = vmatmul.mubr.bf16.gmra.mrb[0].mxu0 %v1039
      %v1078 = vpop.f32.mrb[0].mxu0
      %v1079 = vadd.f32 0.0, %v1078
      %v1080 = vpop.f32.mrb[0].mxu0
      %v1081 = vpop.f32.mrb[0].mxu0
      %v1082 = vadd.f32 0.0, %v1081
      %v1083 = vpop.f32.mrb[0].mxu0
      %1084 = vdwg.mxu0
      %v1085 = vsel %vm728, %v1079, -inf
      %1086 = vmax.xlane.f32.xlu0 %v1085
      %v1087 = vpop.xlane.xlu0 %1086
      %v1088 = vsel %vm728, %v1082, -inf
      %1089 = vmax.xlane.f32.xlu0 %v1088
      %v1090 = vpop.xlane.xlu0 %1089
      %v1091 = vsub.f32 %v1079, %v1087
      %v1092 = vsub.f32 %v1082, %v1090
      %v1093 = vmul.f32 %v1091, 1.442695
      %v1094 = vpow.pop %v1093
      %v1095 = vmul.f32 %v1092, 1.442695
      %v1096 = vpow.pop %v1095
      %v1097 = vsel %vm728, %v1094, 0.0
      %1098 = vadd.xlane.f32.xlu0 %v1097
      %v1099 = vpop.xlane.xlu0 %1098
      %v1100 = vsel %vm728, %v1096, 0.0
      %1101 = vadd.xlane.f32.xlu0 %v1100
      %v1102 = vpop.xlane.xlu0 %1101
      %v1103 = vpack.c.bf16 %v1096, %v1094
      %1104 = vrot.lane.b32.xlu0 %v662, 64
      %v1105 = vpop.permute.xlu0 %1104
      %v1108 = vsel %vm728, %v1103, 0
      %1110 = vmatprep.subr.bf16.mxu0 0
      %1111 = vmatpush1.bf16.msra.mxu0 %v1105
      %1112 = vmatprep.subr.bf16.mxu0 0
      %1113 = vmatpush1.bf16.msra.mxu0 0
      %1114 = vmatprep.subr.bf16.mxu0 0
      %1115 = vmatpush1.bf16.msra.mxu0 0
      %1116 = vmatprep.subr.bf16.mxu0 0
      %1117 = vmatpush1.bf16.msra.mxu0 0
      %1118 = vmatprep.subr.bf16.mxu0 0
      %1119 = vmatpush1.bf16.msra.mxu0 0
      %1120 = vmatprep.subr.bf16.mxu0 0
      %1121 = vmatpush1.bf16.msra.mxu0 0
      %1122 = vmatprep.subr.bf16.mxu0 0
      %1123 = vmatpush1.bf16.msra.mxu0 0
      %1124 = vmatprep.subr.bf16.mxu0 0
      %1125 = vmatpush1.bf16.msra.mxu0 0
      %1126 = vmatprep.subr.bf16.mxu0 0
      %1127 = vmatpush1.bf16.msra.mxu0 0
      %1128 = vmatprep.subr.bf16.mxu0 0
      %1129 = vmatpush1.bf16.msra.mxu0 0
      %1130 = vmatprep.subr.bf16.mxu0 0
      %1131 = vmatpush1.bf16.msra.mxu0 0
      %1132 = vmatprep.subr.bf16.mxu0 0
      %1133 = vmatpush1.bf16.msra.mxu0 0
      %1134 = vmatprep.subr.bf16.mxu0 0
      %1135 = vmatpush1.bf16.msra.mxu0 0
      %1136 = vmatprep.subr.bf16.mxu0 0
      %1137 = vmatpush1.bf16.msra.mxu0 0
      %1138 = vmatprep.subr.bf16.mxu0 0
      %1139 = vmatpush1.bf16.msra.mxu0 0
      %1140 = vmatprep.subr.bf16.mxu0 0
      %1141 = vmatpush1.bf16.msra.mxu0 0
      %1142 = vmatprep.mubr.bf16.mxu0 0
      %1143 = vmatmul.mubr.bf16.gmra.mrb[0].mxu0 %v1108
      %v1144 = vpop.f32.mrb[0].mxu0
      %v1145 = vadd.f32 0.0, %v1144
      %v1146 = vpop.f32.mrb[0].mxu0
      %v1147 = vpop.f32.mrb[0].mxu0
      %v1148 = vadd.f32 0.0, %v1147
      %v1149 = vpop.f32.mrb[0].mxu0
      %1150 = vdwg.mxu0
      %v1151 = vrcp.pop %v1099
      %v1152 = vrcp.pop %v1102
      %v1153 = vmul.f32 %v1145, %v1151
      %v1154 = vmul.f32 %v1148, %v1152
      %v1155 = vpack.c.bf16 %v1154, %v1153
      %v1160 = vunpack.c.l.b16 %v671
      %v1161 = vunpack.c.l.b16 %v672
      %v1162 = vunpack.c.l.b16 %v673
      %v1163 = vunpack.c.l.b16 %v674
      %v1164 = vpack.c.b16 %v1161, %v1160
      %v1165 = vpack.c.b16 %v1163, %v1162
      %v1169 = vsel %vm680, %v1155, 0
      %1171 = vmatprep.subr.bf16.mxu0 0
      %1172 = vmatpush1.bf16.msra.mxu0 %v1164
      %1173 = vmatprep.subr.bf16.mxu0 0
      %1174 = vmatpush1.bf16.msra.mxu0 %v1165
      %1175 = vmatprep.subr.bf16.mxu0 0
      %1176 = vmatpush1.bf16.msra.mxu0 0
      %1177 = vmatprep.subr.bf16.mxu0 0
      %1178 = vmatpush1.bf16.msra.mxu0 0
      %1179 = vmatprep.subr.bf16.mxu0 0
      %1180 = vmatpush1.bf16.msra.mxu0 0
      %1181 = vmatprep.subr.bf16.mxu0 0
      %1182 = vmatpush1.bf16.msra.mxu0 0
      %1183 = vmatprep.subr.bf16.mxu0 0
      %1184 = vmatpush1.bf16.msra.mxu0 0
      %1185 = vmatprep.subr.bf16.mxu0 0
      %1186 = vmatpush1.bf16.msra.mxu0 0
      %1187 = vmatprep.subr.bf16.mxu0 0
      %1188 = vmatpush1.bf16.msra.mxu0 0
      %1189 = vmatprep.subr.bf16.mxu0 0
      %1190 = vmatpush1.bf16.msra.mxu0 0
      %1191 = vmatprep.subr.bf16.mxu0 0
      %1192 = vmatpush1.bf16.msra.mxu0 0
      %1193 = vmatprep.subr.bf16.mxu0 0
      %1194 = vmatpush1.bf16.msra.mxu0 0
      %1195 = vmatprep.subr.bf16.mxu0 0
      %1196 = vmatpush1.bf16.msra.mxu0 0
      %1197 = vmatprep.subr.bf16.mxu0 0
      %1198 = vmatpush1.bf16.msra.mxu0 0
      %1199 = vmatprep.subr.bf16.mxu0 0
      %1200 = vmatpush1.bf16.msra.mxu0 0
      %1201 = vmatprep.subr.bf16.mxu0 0
      %1202 = vmatpush1.bf16.msra.mxu0 0
      %1203 = vmatprep.mubr.bf16.mxu0 0
      %1204 = vmatmul.mubr.bf16.gmra.mrb[0].mxu0 %v1169
      %v1205 = vpop.f32.mrb[0].mxu0
      %v1206 = vadd.f32 0.0, %v1205
      %v1207 = vpop.f32.mrb[0].mxu0
      %v1208 = vpop.f32.mrb[0].mxu0
      %v1209 = vadd.f32 0.0, %v1208
      %v1210 = vpop.f32.mrb[0].mxu0
      %1211 = vdwg.mxu0
      %v1212 = vadd.f32 %v1028, %v1206
      %v1213 = vadd.f32 %v1031, %v1209
      %1214 = vrot.lane.b32.xlu0 %v503, 32
      %v1215 = vpop.permute.xlu0 %1214
      %1216 = vrot.lane.b32.xlu0 %v661, 32
      %v1217 = vpop.permute.xlu0 %1216
      %v1219 = vsel %vm680, %v1215, 0
      %v1222 = vsel %vm680, %v1217, 0
      %1224 = vmatprep.subr.bf16.mxu0 0
      %1225 = vmatpush1.bf16.xpose.msra.mxu0 %v1222
      %1226 = vmatprep.subr.bf16.mxu0 0
      %1227 = vmatpush1.bf16.xpose.msra.mxu0 0
      %1228 = vmatprep.subr.bf16.mxu0 0
      %1229 = vmatpush1.bf16.xpose.msra.mxu0 0
      %1230 = vmatprep.subr.bf16.mxu0 0
      %1231 = vmatpush1.bf16.xpose.msra.mxu0 0
      %1232 = vmatprep.subr.bf16.mxu0 0
      %1233 = vmatpush1.bf16.xpose.msra.mxu0 0
      %1234 = vmatprep.subr.bf16.mxu0 0
      %1235 = vmatpush1.bf16.xpose.msra.mxu0 0
      %1236 = vmatprep.subr.bf16.mxu0 0
      %1237 = vmatpush1.bf16.xpose.msra.mxu0 0
      %1238 = vmatprep.subr.bf16.mxu0 0
      %1239 = vmatpush1.bf16.xpose.msra.mxu0 0
      %1240 = vmatprep.subr.bf16.mxu0 0
      %1241 = vmatpush1.bf16.xpose.msra.mxu0 0
      %1242 = vmatprep.subr.bf16.mxu0 0
      %1243 = vmatpush1.bf16.xpose.msra.mxu0 0
      %1244 = vmatprep.subr.bf16.mxu0 0
      %1245 = vmatpush1.bf16.xpose.msra.mxu0 0
      %1246 = vmatprep.subr.bf16.mxu0 0
      %1247 = vmatpush1.bf16.xpose.msra.mxu0 0
      %1248 = vmatprep.subr.bf16.mxu0 0
      %1249 = vmatpush1.bf16.xpose.msra.mxu0 0
      %1250 = vmatprep.subr.bf16.mxu0 0
      %1251 = vmatpush1.bf16.xpose.msra.mxu0 0
      %1252 = vmatprep.subr.bf16.mxu0 0
      %1253 = vmatpush1.bf16.xpose.msra.mxu0 0
      %1254 = vmatprep.subr.bf16.mxu0 0
      %1255 = vmatpush1.bf16.xpose.msra.mxu0 0
      %1256 = vmatprep.mubr.bf16.mxu0 0
      %1257 = vmatmul.mubr.bf16.gmra.mrb[0].mxu0 %v1219
      %v1258 = vpop.f32.mrb[0].mxu0
      %v1259 = vadd.f32 0.0, %v1258
      %v1260 = vpop.f32.mrb[0].mxu0
      %v1261 = vpop.f32.mrb[0].mxu0
      %v1262 = vadd.f32 0.0, %v1261
      %v1263 = vpop.f32.mrb[0].mxu0
      %1264 = vdwg.mxu0
      %v1265 = vsel %vm728, %v1259, -inf
      %1266 = vmax.xlane.f32.xlu0 %v1265
      %v1267 = vpop.xlane.xlu0 %1266
      %v1268 = vsel %vm728, %v1262, -inf
      %1269 = vmax.xlane.f32.xlu0 %v1268
      %v1270 = vpop.xlane.xlu0 %1269
      %v1271 = vsub.f32 %v1259, %v1267
      %v1272 = vsub.f32 %v1262, %v1270
      %v1273 = vmul.f32 %v1271, 1.442695
      %v1274 = vpow.pop %v1273
      %v1275 = vmul.f32 %v1272, 1.442695
      %v1276 = vpow.pop %v1275
      %v1277 = vsel %vm728, %v1274, 0.0
      %1278 = vadd.xlane.f32.xlu0 %v1277
      %v1279 = vpop.xlane.xlu0 %1278
      %v1280 = vsel %vm728, %v1276, 0.0
      %1281 = vadd.xlane.f32.xlu0 %v1280
      %v1282 = vpop.xlane.xlu0 %1281
      %v1283 = vpack.c.bf16 %v1276, %v1274
      %1284 = vrot.lane.b32.xlu0 %v662, 32
      %v1285 = vpop.permute.xlu0 %1284
      %v1288 = vsel %vm728, %v1283, 0
      %1290 = vmatprep.subr.bf16.mxu0 0
      %1291 = vmatpush1.bf16.msra.mxu0 %v1285
      %1292 = vmatprep.subr.bf16.mxu0 0
      %1293 = vmatpush1.bf16.msra.mxu0 0
      %1294 = vmatprep.subr.bf16.mxu0 0
      %1295 = vmatpush1.bf16.msra.mxu0 0
      %1296 = vmatprep.subr.bf16.mxu0 0
      %1297 = vmatpush1.bf16.msra.mxu0 0
      %1298 = vmatprep.subr.bf16.mxu0 0
      %1299 = vmatpush1.bf16.msra.mxu0 0
      %1300 = vmatprep.subr.bf16.mxu0 0
      %1301 = vmatpush1.bf16.msra.mxu0 0
      %1302 = vmatprep.subr.bf16.mxu0 0
      %1303 = vmatpush1.bf16.msra.mxu0 0
      %1304 = vmatprep.subr.bf16.mxu0 0
      %1305 = vmatpush1.bf16.msra.mxu0 0
      %1306 = vmatprep.subr.bf16.mxu0 0
      %1307 = vmatpush1.bf16.msra.mxu0 0
      %1308 = vmatprep.subr.bf16.mxu0 0
      %1309 = vmatpush1.bf16.msra.mxu0 0
      %1310 = vmatprep.subr.bf16.mxu0 0
      %1311 = vmatpush1.bf16.msra.mxu0 0
      %1312 = vmatprep.subr.bf16.mxu0 0
      %1313 = vmatpush1.bf16.msra.mxu0 0
      %1314 = vmatprep.subr.bf16.mxu0 0
      %1315 = vmatpush1.bf16.msra.mxu0 0
      %1316 = vmatprep.subr.bf16.mxu0 0
      %1317 = vmatpush1.bf16.msra.mxu0 0
      %1318 = vmatprep.subr.bf16.mxu0 0
      %1319 = vmatpush1.bf16.msra.mxu0 0
      %1320 = vmatprep.subr.bf16.mxu0 0
      %1321 = vmatpush1.bf16.msra.mxu0 0
      %1322 = vmatprep.mubr.bf16.mxu0 0
      %1323 = vmatmul.mubr.bf16.gmra.mrb[0].mxu0 %v1288
      %v1324 = vpop.f32.mrb[0].mxu0
      %v1325 = vadd.f32 0.0, %v1324
      %v1326 = vpop.f32.mrb[0].mxu0
      %v1327 = vpop.f32.mrb[0].mxu0
      %v1328 = vadd.f32 0.0, %v1327
      %v1329 = vpop.f32.mrb[0].mxu0
      %1330 = vdwg.mxu0
      %v1331 = vrcp.pop %v1279
      %v1332 = vrcp.pop %v1282
      %v1333 = vmul.f32 %v1325, %v1331
      %v1334 = vmul.f32 %v1328, %v1332
      %v1335 = vpack.c.bf16 %v1334, %v1333
      %v1340 = vunpack.c.l.b16 %v675
      %v1341 = vunpack.c.l.b16 %v676
      %v1342 = vunpack.c.l.b16 %v677
      %v1343 = vunpack.c.l.b16 %v678
      %v1344 = vpack.c.b16 %v1341, %v1340
      %v1345 = vpack.c.b16 %v1343, %v1342
      %v1349 = vsel %vm680, %v1335, 0
      %1351 = vmatprep.subr.bf16.mxu0 0
      %1352 = vmatpush1.bf16.msra.mxu0 %v1344
      %1353 = vmatprep.subr.bf16.mxu0 0
      %1354 = vmatpush1.bf16.msra.mxu0 %v1345
      %1355 = vmatprep.subr.bf16.mxu0 0
      %1356 = vmatpush1.bf16.msra.mxu0 0
      %1357 = vmatprep.subr.bf16.mxu0 0
      %1358 = vmatpush1.bf16.msra.mxu0 0
      %1359 = vmatprep.subr.bf16.mxu0 0
      %1360 = vmatpush1.bf16.msra.mxu0 0
      %1361 = vmatprep.subr.bf16.mxu0 0
      %1362 = vmatpush1.bf16.msra.mxu0 0
      %1363 = vmatprep.subr.bf16.mxu0 0
      %1364 = vmatpush1.bf16.msra.mxu0 0
      %1365 = vmatprep.subr.bf16.mxu0 0
      %1366 = vmatpush1.bf16.msra.mxu0 0
      %1367 = vmatprep.subr.bf16.mxu0 0
      %1368 = vmatpush1.bf16.msra.mxu0 0
      %1369 = vmatprep.subr.bf16.mxu0 0
      %1370 = vmatpush1.bf16.msra.mxu0 0
      %1371 = vmatprep.subr.bf16.mxu0 0
      %1372 = vmatpush1.bf16.msra.mxu0 0
      %1373 = vmatprep.subr.bf16.mxu0 0
      %1374 = vmatpush1.bf16.msra.mxu0 0
      %1375 = vmatprep.subr.bf16.mxu0 0
      %1376 = vmatpush1.bf16.msra.mxu0 0
      %1377 = vmatprep.subr.bf16.mxu0 0
      %1378 = vmatpush1.bf16.msra.mxu0 0
      %1379 = vmatprep.subr.bf16.mxu0 0
      %1380 = vmatpush1.bf16.msra.mxu0 0
      %1381 = vmatprep.subr.bf16.mxu0 0
      %1382 = vmatpush1.bf16.msra.mxu0 0
      %1383 = vmatprep.mubr.bf16.mxu0 0
      %1384 = vmatmul.mubr.bf16.gmra.mrb[0].mxu0 %v1349
      %v1385 = vpop.f32.mrb[0].mxu0
      %v1386 = vadd.f32 0.0, %v1385
      %v1387 = vpop.f32.mrb[0].mxu0
      %v1388 = vpop.f32.mrb[0].mxu0
      %v1389 = vadd.f32 0.0, %v1388
      %v1390 = vpop.f32.mrb[0].mxu0
      %1391 = vdwg.mxu0
      %v1392 = vadd.f32 %v1212, %v1386
      %v1393 = vadd.f32 %v1213, %v1389
      %v1395 = vlaneseq
      %v1396 = vshrl.u32 %v1395, 7
      %v1397 = vsub.s32 0, %v1396
      %v1398 = vrot.slane %v679, %v1397
      %v1400 = vadd.f32 %v1392, %v1398
      %v1401 = vadd.f32 %v1393, %v1398
      %v1402 = vunpack.c.l.bf16 %v381
      %v1403 = vunpack.c.l.bf16 %v382
      %v1404 = vadd.f32 %v1400, %v1402
      %v1405 = vadd.f32 %v1401, %v1403
      %v1406 = vld [vmem:[%s8] sm:$0x1]
      %v1407 = vld [vmem:[%s9] sm:$0x1]
      %1408 = vadd.xlane.f32.xlu0 %v1404
      %v1409 = vpop.xlane.xlu0 %1408
      %1410 = vadd.xlane.f32.xlu0 %v1405
      %v1411 = vpop.xlane.xlu0 %1410
      %v1412 = vrcp.pop 128.0
      %v1413 = vmul.f32 %v1409, %v1412
      %v1414 = vmul.f32 %v1411, %v1412
      %v1415 = vsub.f32 %v1404, %v1413
      %v1416 = vsub.f32 %v1405, %v1414
      %v1417 = vmul.f32 %v1415, %v1415
      %v1418 = vmul.f32 %v1416, %v1416
      %1419 = vadd.xlane.f32.xlu0 %v1417
      %v1420 = vpop.xlane.xlu0 %1419
      %1421 = vadd.xlane.f32.xlu0 %v1418
      %v1422 = vpop.xlane.xlu0 %1421
      %v1423 = vmul.f32 %v1420, %v1412
      %v1424 = vmul.f32 %v1422, %v1412
      %v1425 = vadd.f32 %v1423, 1e-05
      %v1426 = vadd.f32 %v1424, 1e-05
      %v1427 = vrsqrt.pop %v1425
      %v1428 = vrsqrt.pop %v1426
      %v1429 = vmul.f32 %v1415, %v1427
      %v1430 = vmul.f32 %v1416, %v1428
      %v1432 = vlaneseq
      %v1433 = vshrl.u32 %v1432, 7
      %v1434 = vsub.s32 0, %v1433
      %v1435 = vrot.slane %v1406, %v1434
      %v1437 = vmul.f32 %v1429, %v1435
      %v1438 = vmul.f32 %v1430, %v1435
      %v1440 = vlaneseq
      %v1441 = vshrl.u32 %v1440, 7
      %v1442 = vsub.s32 0, %v1441
      %v1443 = vrot.slane %v1407, %v1442
      %v1445 = vadd.f32 %v1437, %v1443
      %v1446 = vadd.f32 %v1438, %v1443
      %v1447 = vpack.c.bf16 %v1446, %v1445
      %v1449 = vunpack.c.l.b16 %v1447
      %v1450 = vunpack.c.h.b16 %v1447
      %v1451 = vpack.c.b16 %v1449, %v1449
      %v1452 = vpack.c.b16 %v1450, %v1450
      %1455 = vst [vmem:[%s379] sm:$0xf] %v1451
      %1456 = vst [vmem:[%s379 + $0x4] sm:$0xf] %v1452
      %p1457 = scmp.lt.s32.totalorder %s21, 1
      %s1458 = scalar_select %p1457, %s21, 1
      %s1459 = smul.addr %s1458, 2
      %s1460 = smul.addr %s1459, 4
      %s1461 = scalar_lea.vmem %s10, %s1460
      // Predicated region
      $region61: #{transformer_gen.16} parent=59 // pred_check
        %p1462 = pneg %p259
      $region62: #{transformer_gen.16} parent=59 // pred_check_branch
        %1464 = sbr.rel (%p1462) target = $region64
      $region63: #{transformer_gen.16} parent=59 // pred_region
        _
      $region64: #{transformer_gen.16} parent=59 // pred_fallthru
        _
    $region60: #{transformer_gen.16} parent=5 // pred_fallthru
      _
    %p1465 = scmp.le.s32.totalorder 2, %s16
    // Predicated region
    $region65: #{transformer_gen.16} parent=5 // pred_check
      %p1466 = pneg %p1465
    $region66: #{transformer_gen.16} parent=5 // pred_check_branch
      %1468 = sbr.rel (%p1466) target = $region68
    $region67: #{transformer_gen.16} parent=5 // pred_region
      %s1469 = ssub.s32 %s16, 2
      // Predicated region
      $region69: #{transformer_gen.16} parent=67 // pred_check
        %p1470 = pneg %p265
      $region70: #{transformer_gen.16} parent=67 // pred_check_branch
        %1472 = sbr.rel (%p1470) target = $region72
      $region71: #{transformer_gen.16} parent=67 // pred_region
        %p1473 = scmp.lt.s32.totalorder %s22, 1
        %s1474 = scalar_select %p1473, %s22, 1
        %s1475 = smul.addr %s1474, 2
        %s1476 = smul.addr %s1475, 4
        %s1477 = scalar_lea.vmem %s10, %s1476
      $region72: #{transformer_gen.16} parent=67 // pred_fallthru
        _
    $region68: #{transformer_gen.16} parent=5 // pred_fallthru
      _
  $region6: #{transformer_gen.16} parent=0 // loop_footer
    %s20 = sadd.s32 1, %s16
  $region7: #{transformer_gen.16} parent=0 // loop_footer_branch
    %15 = sbr.rel target = $region3
  $region8: #{transformer_gen.16} parent=0 // loop_exit
    _

</llo_original>
